<compile_context>
chip_gen: v7x
topology: tpu7x:2x2x1
jax: 0.10.0
libtpu: 0.0.40
codegen_flags: <defaults>
</compile_context>

<pallas_src>
import functools
import math

import jax
import jax.numpy as jnp
from jax.experimental import pallas as pl
from jax.experimental.pallas import tpu as pltpu

LANE = 128


def _round_up(x, m):
    return (x + m - 1) // m * m


# ----------------------------------------------------------------------------
# Roll helpers
# ----------------------------------------------------------------------------
@functools.lru_cache(maxsize=None)
def _roll_matches_jnp():
    """Empirically confirm pltpu.roll's rotation direction (robustness guard)."""
    def probe(x_ref, o_ref):
        o_ref[...] = pltpu.roll(x_ref[...], 1, 0)

    try:
        x = jnp.arange(8 * 128, dtype=jnp.int32).reshape(8, 128)
        y = pl.pallas_call(
            probe, out_shape=jax.ShapeDtypeStruct((8, 128), jnp.int32))(x)
        return int(y[1, 0]) == 0          # jnp.roll semantics: y[i] = x[i - 1]
    except Exception:
        return True


def _shift_read(x, s, size, roll_fwd):
    """Return y with y[i] = x[(i + s) % size], rolling along axis 0 (sublanes)."""
    if s % size == 0:
        return x
    amt = (-s) % size if roll_fwd else s % size
    return pltpu.roll(x, amt, 0)


# ----------------------------------------------------------------------------
# In-kernel 3x3 conv on the flat zero-padded grid
# ----------------------------------------------------------------------------
def _conv3x3(x2d_f32, w_ref, *, Wp, Mflat, c_in_p, fuse_k, roll_fwd):
    """x2d_f32: (Mflat, c_in_p) f32, valid pixels at [0:H,0:W] of each (Hp,Wp)
    image, exact zeros everywhere else.  w_ref: (3, 3*c_in_p, c_out_p) bf16 with
    the kx taps of row ky packed along the contraction dim.  Returns f32
    (Mflat, c_out_p); only rows of valid pixels are meaningful."""
    c_out_p = w_ref.shape[-1]
    acc = jnp.zeros((Mflat, c_out_p), jnp.float32)

    # Short static loops (3 fused / 9 per-tap): the accumulate dependence keeps
    # the number of live rolled-LHS copies bounded.
    if fuse_k:
        # K-fusion for the 256-deep v6e/v7x MXUs: K = 3*c_in_p per matmul.
        lhs3 = jnp.concatenate(
            [_shift_read(x2d_f32, -1, Mflat, roll_fwd),     # kx = 0  (dx = -1)
             x2d_f32,                                        # kx = 1  (dx =  0)
             _shift_read(x2d_f32, 1, Mflat, roll_fwd)],      # kx = 2  (dx = +1)
            axis=1)
        for ky in range(3):
            lhs = _shift_read(lhs3, (ky - 1) * Wp, Mflat, roll_fwd)
            acc = acc + jnp.dot(lhs.astype(jnp.bfloat16), w_ref[ky],
                                preferred_element_type=jnp.float32)
    else:
        # v5e path: per-tap K = c_in_p matmuls (matched to the 128-deep MXU).
        for ky in range(3):
            w_row = w_ref[ky]                                # (3*c_in_p, c_out_p)
            for kx in range(3):
                lhs = _shift_read(x2d_f32, (ky - 1) * Wp + (kx - 1),
                                  Mflat, roll_fwd)
                w_blk = w_row[kx * c_in_p:(kx + 1) * c_in_p, :]
                acc = acc + jnp.dot(lhs.astype(jnp.bfloat16), w_blk,
                                    preferred_element_type=jnp.float32)
    return acc


# ----------------------------------------------------------------------------
# Fused residual-block kernel body
# ----------------------------------------------------------------------------
def _resblock_body(x_ref, w1_ref, b1_ref, w2_ref, b2_ref, mask_ref,
                   wsc_ref, bsc_ref, out_ref, *, Hp, Wp, downsample,
                   fuse_k, roll_fwd):
    BT, G, Cip = x_ref.shape
    Chp = w1_ref.shape[-1]
    Cop = w2_ref.shape[-1]
    Mflat = BT * G

    x2d = x_ref[...].reshape(Mflat, Cip)           # bf16, tile-aligned reshape

    # Hoisted activation (relu commutes with the zero padding).  Kept in f32 so
    # every roll below acts on 32-bit rows.
    xr = jnp.maximum(x2d.astype(jnp.float32), 0.0)

    # ---- c1( relu(x) ) + bias + relu ----------------------------------------
    h1 = _conv3x3(xr, w1_ref, Wp=Wp, Mflat=Mflat, c_in_p=Cip,
                  fuse_k=fuse_k, roll_fwd=roll_fwd)
    h1 = jnp.maximum(h1 + b1_ref[...], 0.0)

    # Re-zero the halo/pad rows+cols so c2's rolled taps read exact zeros there
    # (one VPU multiply with a lane-broadcast mask; no masked border stores).
    h1 = h1 * mask_ref[...]

    # ---- c2 + bias ------------------------------------------------------------
    s = _conv3x3(h1, w2_ref, Wp=Wp, Mflat=Mflat, c_in_p=Chp,
                 fuse_k=fuse_k, roll_fwd=roll_fwd)
    s = s + b2_ref[...]

    # ---- shortcut (on the raw, non-activated input) ---------------------------
    if wsc_ref is not None:
        s = s + jnp.dot(x2d, wsc_ref[...], preferred_element_type=jnp.float32)
        s = s + bsc_ref[...]
    else:
        # identity shortcut: skip the 1x1 matmul entirely
        s = s + x2d.astype(jnp.float32)

    # ---- fused 2x2 average pool (valid by linearity) + lane-dense bf16 store ---
    if downsample:
        Hq, Wq = Hp // 2, Wp // 2
        t = s.reshape(BT * Hq, 2, Wp, Cop)
        t = t[:, 0] + t[:, 1]
        t = t.reshape(BT * Hq * Wq, 2, Cop)
        t = (t[:, 0, :] + t[:, 1, :]) * 0.25
        out_ref[...] = t.reshape(BT, Hq * Wq, Cop).astype(out_ref.dtype)
    else:
        out_ref[...] = s.reshape(BT, G, Cop).astype(out_ref.dtype)


def _kernel_learnable_sc(x_ref, w1_ref, b1_ref, w2_ref, b2_ref, mask_ref,
                         wsc_ref, bsc_ref, out_ref, *, Hp, Wp, downsample,
                         fuse_k, roll_fwd):
    _resblock_body(x_ref, w1_ref, b1_ref, w2_ref, b2_ref, mask_ref,
                   wsc_ref, bsc_ref, out_ref, Hp=Hp, Wp=Wp,
                   downsample=downsample, fuse_k=fuse_k, roll_fwd=roll_fwd)


def _kernel_identity_sc(x_ref, w1_ref, b1_ref, w2_ref, b2_ref, mask_ref,
                        out_ref, *, Hp, Wp, downsample, fuse_k, roll_fwd):
    _resblock_body(x_ref, w1_ref, b1_ref, w2_ref, b2_ref, mask_ref,
                   None, None, out_ref, Hp=Hp, Wp=Wp,
                   downsample=downsample, fuse_k=fuse_k, roll_fwd=roll_fwd)


# ----------------------------------------------------------------------------
# Generation-aware sizing
# ----------------------------------------------------------------------------
def _device_kind():
    try:
        return jax.devices()[0].device_kind.lower()
    except Exception:
        return ""


def _use_fused_k(kind):
    # v6e/v7x MXUs are 256 deep -> fuse kx taps along K; v5e/v4 (128 deep) keep
    # the per-tap scheme.
    return not any(t in kind for t in ("v2", "v3", "v4", "v5"))


def _vmem_capacity_bytes(kind):
    try:
        return int(pltpu.get_tpu_info().vmem_capacity_bytes)
    except Exception:
        pass
    if "v5" in kind or "v6" in kind:
        return 128 * 2 ** 20
    return 64 * 2 ** 20                 # conservative default (v7x per-TC VMEM)


def _step_vmem_estimate(bt, G, S, Cip, Chp, Cop, fuse_k):
    """Generous per-grid-step VMEM estimate, f32 intermediates included."""
    m = bt * G
    io = 2 * bt * G * Cip * 2 + 2 * bt * S * Cop * 2          # dbl-buffered blocks
    wts = 2 * 2 * 9 * (Cip * Chp + Chp * Cop) + 2 * 2 * Cip * Cop
    kw = 3 if fuse_k else 1
    live = m * (
        Cip * 4                                     # relu(x) f32
        + (3 * Cip * 4 if fuse_k else 0)            # concat LHS f32 (c1)
        + kw * Cip * 6                              # rolled f32 + bf16 LHS (c1)
        + Chp * 4 * 2                               # acc1 / masked h1 f32
        + (3 * Chp * 4 if fuse_k else 0)            # concat LHS f32 (c2)
        + kw * Chp * 6                              # rolled f32 + bf16 LHS (c2)
        + Cop * 4 * 3)                              # acc2, shortcut, pooling temp
    return io + wts + live


def _pick_batch_tile(N, G, S, Cip, Chp, Cop, fuse_k, budget_bytes):
    for bt in range(N, 0, -1):
        if N % bt:
            continue
        if N >= 2 and N // bt < 2:
            # keep >= 2 grid steps: megacore sharding on v7x + DMA pipelining
            continue
        if _step_vmem_estimate(bt, G, S, Cip, Chp, Cop, fuse_k) <= budget_bytes:
            return bt
    # TODO(synk): spatial (H-row) tiling with a 1-row halo for feature maps too
    # large to fit one batch element plus its f32 intermediates in VMEM.
    return 1


# ----------------------------------------------------------------------------
# Public wrapper: layout transposes, padding, packing, pallas_call
# ----------------------------------------------------------------------------
def discriminator_resblock(x_nchw, params, downsample):
    w1, b1 = params["w1"], params["b1"]        # (3,3,Cin,Chid) HWIO
    w2, b2 = params["w2"], params["b2"]        # (3,3,Chid,Cout)

    N, Cin, H, W = x_nchw.shape
    Chid = w1.shape[-1]
    Cout = w2.shape[-1]

    if downsample:
        assert H % 2 == 0 and W % 2 == 0, "2x2 avg-pool needs even H, W"
        Ho, Wo = H // 2, W // 2
    else:
        Ho, Wo = H, W

    learnable_sc = (Cin != Cout) or downsample

    # Padded geometry: valid data at [0:H, 0:W], zeros in the tail rows/cols.
    # Wp is bumped so each flattened image has a multiple-of-8 row count (keeps
    # the (8,128) tiling aligned for the flat reshapes and the sublane rolls).
    Hp = H + 2
    Wp = W + 2
    while (Hp * Wp) % 8 != 0:
        Wp += 1
    G = Hp * Wp

    # Channels padded to lane multiples (lane-dense layout, aligned lane concat).
    # TODO(synk): for tiny real channel counts a 9*Cin im2col packing (K padded
    # once to 128) would cut the zero-row MXU work / input inflation further.
    Cip = _round_up(Cin, LANE)
    Chp = _round_up(Chid, LANE)
    Cop = _round_up(Cout, LANE)

    kind = _device_kind()
    fuse_k = _use_fused_k(kind)
    roll_fwd = _roll_matches_jnp()
    vmem_cap = _vmem_capacity_bytes(kind)

    if downsample:
        Hq, Wq = Hp // 2, Wp // 2
        S = Hq * Wq
    else:
        S = G

    BT = _pick_batch_tile(N, G, S, Cip, Chp, Cop, fuse_k, int(vmem_cap * 0.5))
    grid = (N // BT,)

    # ---- wrapper-side packing (plain XLA) -------------------------------------
    x = jnp.transpose(x_nchw, (0, 2, 3, 1)).astype(jnp.bfloat16)     # NHWC
    x = jnp.pad(x, ((0, 0), (0, Hp - H), (0, Wp - W), (0, Cip - Cin)))
    x = x.reshape(N, G, Cip)

    w1p = jnp.pad(w1, ((0, 0), (0, 0), (0, Cip - Cin), (0, Chp - Chid)))
    w1p = w1p.astype(jnp.bfloat16).reshape(3, 3 * Cip, Chp)
    w2p = jnp.pad(w2, ((0, 0), (0, 0), (0, Chp - Chid), (0, Cop - Cout)))
    w2p = w2p.astype(jnp.bfloat16).reshape(3, 3 * Chp, Cop)
    b1p = jnp.pad(b1, (0, Chp - Chid)).astype(jnp.float32).reshape(1, Chp)
    b2p = jnp.pad(b2, (0, Cop - Cout)).astype(jnp.float32).reshape(1, Cop)

    mask = jnp.pad(jnp.ones((H, W), jnp.float32), ((0, Hp - H), (0, Wp - W)))
    mask = jnp.tile(mask.reshape(G, 1), (BT, 1))                     # (BT*G, 1)

    in_specs = [
        pl.BlockSpec((BT, G, Cip), lambda n: (n, 0, 0)),
        pl.BlockSpec((3, 3 * Cip, Chp), lambda n: (0, 0, 0)),
        pl.BlockSpec((1, Chp), lambda n: (0, 0)),
        pl.BlockSpec((3, 3 * Chp, Cop), lambda n: (0, 0, 0)),
        pl.BlockSpec((1, Cop), lambda n: (0, 0)),
        pl.BlockSpec((BT * G, 1), lambda n: (0, 0)),
    ]
    inputs = [x, w1p, b1p, w2p, b2p, mask]

    if learnable_sc:
        wscp = jnp.pad(params["wsc"], ((0, Cip - Cin), (0, Cop - Cout)))
        wscp = wscp.astype(jnp.bfloat16)
        bscp = jnp.pad(params["bsc"], (0, Cop - Cout)).astype(jnp.float32)
        bscp = bscp.reshape(1, Cop)
        in_specs += [pl.BlockSpec((Cip, Cop), lambda n: (0, 0)),
                     pl.BlockSpec((1, Cop), lambda n: (0, 0))]
        inputs += [wscp, bscp]
        kernel = functools.partial(_kernel_learnable_sc, Hp=Hp, Wp=Wp,
                                   downsample=downsample, fuse_k=fuse_k,
                                   roll_fwd=roll_fwd)
    else:
        kernel = functools.partial(_kernel_identity_sc, Hp=Hp, Wp=Wp,
                                   downsample=downsample, fuse_k=fuse_k,
                                   roll_fwd=roll_fwd)

    out = pl.pallas_call(
        kernel,
        out_shape=jax.ShapeDtypeStruct((N, S, Cop), jnp.bfloat16),
        grid_spec=pltpu.PrefetchScalarGridSpec(
            num_scalar_prefetch=0,
            grid=grid,
            in_specs=in_specs,
            out_specs=pl.BlockSpec((BT, S, Cop), lambda n: (n, 0, 0)),
        ),
        compiler_params=pltpu.CompilerParams(
            dimension_semantics=("parallel",),          # batch tiles independent
            vmem_limit_bytes=int(min(vmem_cap * 0.8, 100 * 2 ** 20)),
        ),
    )(*inputs)

    if downsample:
        out = out.reshape(N, Hp // 2, Wp // 2, Cop)[:, :Ho, :Wo, :Cout]
    else:
        out = out.reshape(N, Hp, Wp, Cop)[:, :H, :W, :Cout]
    return jnp.transpose(out, (0, 3, 1, 2)).astype(jnp.float32)      # NCHW f32


# ----------------------------------------------------------------------------
# Deterministic parameter construction (mirrors the module's __init__)
# ----------------------------------------------------------------------------
def _xavier_uniform_oihw(key, out_c, in_c, k, gain):
    fan_in = in_c * k * k
    fan_out = out_c * k * k
    bound = gain * math.sqrt(6.0 / (fan_in + fan_out))
    return jax.random.uniform(key, (out_c, in_c, k, k), jnp.float32, -bound, bound)


def _spectral_norm(w_oihw, key, n_power_iterations=5, eps=1e-12):
    out_c = w_oihw.shape[0]
    wm = w_oihw.reshape(out_c, -1)
    u = jax.random.normal(key, (out_c,), jnp.float32)
    u = u / (jnp.linalg.norm(u) + eps)
    v = None
    for _ in range(n_power_iterations):
        v = wm.T @ u
        v = v / (jnp.linalg.norm(v) + eps)
        u = wm @ v
        u = u / (jnp.linalg.norm(u) + eps)
    sigma = u @ (wm @ v)
    return w_oihw / sigma


def _conv_bias(key, out_c, in_c, k):
    bound = 1.0 / math.sqrt(in_c * k * k)   # PyTorch default Conv2d bias init
    return jax.random.uniform(key, (out_c,), jnp.float32, -bound, bound)


def init_params(key, in_c, out_c, hidden_c):
    ks = jax.random.split(key, 9)
    w1 = _spectral_norm(_xavier_uniform_oihw(ks[0], hidden_c, in_c, 3, 1.0), ks[1])
    w2 = _spectral_norm(_xavier_uniform_oihw(ks[2], out_c, hidden_c, 3, 1.0), ks[3])
    wsc = _spectral_norm(
        _xavier_uniform_oihw(ks[4], out_c, in_c, 1, math.sqrt(2.0)), ks[5])
    return {
        "w1": jnp.transpose(w1, (2, 3, 1, 0)),                         # (3,3,in,hid)
        "b1": _conv_bias(ks[6], hidden_c, in_c, 3),
        "w2": jnp.transpose(w2, (2, 3, 1, 0)),                         # (3,3,hid,out)
        "b2": _conv_bias(ks[7], out_c, hidden_c, 3),
        "wsc": jnp.transpose(wsc, (2, 3, 1, 0)).reshape(in_c, out_c),  # (in,out)
        "bsc": _conv_bias(ks[8], out_c, in_c, 1),
    }


# ----------------------------------------------------------------------------
# Pure-JAX reference (correctness check only).  Inputs / weights quantized to
# bf16 to match the kernel's input precision (math stays f32).
# ----------------------------------------------------------------------------
def reference_forward(x_nchw, params, downsample):
    q = lambda a: a.astype(jnp.bfloat16).astype(jnp.float32)
    x = q(jnp.transpose(x_nchw, (0, 2, 3, 1)))

    def conv(inp, w_hwio, b, pad):
        y = jax.lax.conv_general_dilated(
            inp, w_hwio, window_strides=(1, 1),
            padding=[(pad, pad), (pad, pad)],
            dimension_numbers=("NHWC", "HWIO", "NHWC"),
            precision=jax.lax.Precision.HIGHEST)
        return y + b

    def pool(z):
        n, h, w, c = z.shape
        return z.reshape(n, h // 2, 2, w // 2, 2, c).mean(axis=(2, 4))

    in_c = x_nchw.shape[1]
    out_c = params["w2"].shape[-1]
    learnable_sc = (in_c != out_c) or downsample

    h = jax.nn.relu(x)
    h = conv(h, q(params["w1"]), params["b1"], 1)
    h = jax.nn.relu(h)
    h = conv(h, q(params["w2"]), params["b2"], 1)
    if downsample:
        h = pool(h)

    if learnable_sc:
        wsc_hwio = q(params["wsc"]).reshape(1, 1, *params["wsc"].shape)
        sc = conv(x, wsc_hwio, params["bsc"], 0)
        if downsample:
            sc = pool(sc)
    else:
        sc = x
    return jnp.transpose(h + sc, (0, 3, 1, 2))


if __name__ == "__main__":
    key = jax.random.PRNGKey(0)
    k_x, k_p, k_p2 = jax.random.split(key, 3)

    # learnable shortcut: in=4, out=8, hidden=4
    N, Cin, H, W = 2, 4, 16, 16
    Cout, Chid = 8, 4

    x = jax.random.normal(k_x, (N, Cin, H, W), jnp.float32)
    params = init_params(k_p, Cin, Cout, Chid)

    for ds in (True, False):
        out = jax.block_until_ready(discriminator_resblock(x, params, ds))
        ref = reference_forward(x, params, ds)
        Ho, Wo = (H // 2, W // 2) if ds else (H, W)
        assert out.shape == (N, Cout, Ho, Wo), out.shape
        max_err = float(jnp.max(jnp.abs(out - ref)))
        assert jnp.allclose(out, ref, rtol=2e-2, atol=2e-2), max_err

    # identity-shortcut path (in == out, no downsample): 1x1 matmul is skipped
    params_id = init_params(k_p2, Cin, Cin, Cin)
    out = jax.block_until_ready(discriminator_resblock(x, params_id, False))
    ref = reference_forward(x, params_id, False)
    assert out.shape == (N, Cin, H, W), out.shape
    max_err = float(jnp.max(jnp.abs(out - ref)))
    assert jnp.allclose(out, ref, rtol=2e-2, atol=2e-2), max_err

    print("KERNEL_OK")
</pallas_src>

<mosaic_0001>
module attributes {stable_mosaic.version = 11 : i64} {
  func.func @probe(%arg0: memref<8x128xi32, #tpu.memory_space<vmem>>, %arg1: memref<8x128xi32, #tpu.memory_space<vmem>>) attributes {dimension_semantics = [], scalar_prefetch = 0 : i64, scratch_operands = 0 : i64, tpu.core_type = #tpu.core_type<tc>} {
    %c0 = arith.constant 0 : index
    %c0_0 = arith.constant 0 : index
    %0 = vector.load %arg0[%c0, %c0_0] : memref<8x128xi32, #tpu.memory_space<vmem>>, vector<8x128xi32>
    %c1_i32 = arith.constant 1 : i32
    %1 = tpu.dynamic_rotate %0 by %c1_i32 dim 0 : vector<8x128xi32>, i32 -> vector<8x128xi32>
    %c0_1 = arith.constant 0 : index
    %c0_2 = arith.constant 0 : index
    %2 = vector.load %arg1[%c0_1, %c0_2] : memref<8x128xi32, #tpu.memory_space<vmem>>, vector<8x128xi32>
    tpu.vector_store %arg1[%c0_1, %c0_2], %1 {strides = array<i32>} : memref<8x128xi32, #tpu.memory_space<vmem>>, vector<8x128xi32>,
    return
  }
}

module attributes {stable_mosaic.version = 11 : i64} {
  func.func @_kernel_learnable_sc(%arg0: i32, %arg1: memref<1x360x128xbf16, #tpu.memory_space<vmem>>, %arg2: memref<3x384x128xbf16, #tpu.memory_space<vmem>>, %arg3: memref<1x128xf32, #tpu.memory_space<vmem>>, %arg4: memref<3x384x128xbf16, #tpu.memory_space<vmem>>, %arg5: memref<1x128xf32, #tpu.memory_space<vmem>>, %arg6: memref<360x1xf32, #tpu.memory_space<vmem>>, %arg7: memref<128x128xbf16, #tpu.memory_space<vmem>>, %arg8: memref<1x128xf32, #tpu.memory_space<vmem>>, %arg9: memref<1x90x128xbf16, #tpu.memory_space<vmem>>) attributes {dimension_semantics = [#tpu.dimension_semantics<parallel>], iteration_bounds = array<i64: 2>, scalar_prefetch = 0 : i64, scratch_operands = 0 : i64, tpu.core_type = #tpu.core_type<tc>, window_params = [{transform_indices = @transform_0, window_bounds = array<i64: 1, 360, 128>}, {pipeline_mode = #tpu.pipeline_mode<synchronous>, transform_indices = @transform_1, window_bounds = array<i64: 3, 384, 128>}, {pipeline_mode = #tpu.pipeline_mode<synchronous>, transform_indices = @transform_2, window_bounds = array<i64: 1, 128>}, {pipeline_mode = #tpu.pipeline_mode<synchronous>, transform_indices = @transform_3, window_bounds = array<i64: 3, 384, 128>}, {pipeline_mode = #tpu.pipeline_mode<synchronous>, transform_indices = @transform_4, window_bounds = array<i64: 1, 128>}, {pipeline_mode = #tpu.pipeline_mode<synchronous>, transform_indices = @transform_5, window_bounds = array<i64: 360, 1>}, {pipeline_mode = #tpu.pipeline_mode<synchronous>, transform_indices = @transform_6, window_bounds = array<i64: 128, 128>}, {pipeline_mode = #tpu.pipeline_mode<synchronous>, transform_indices = @transform_7, window_bounds = array<i64: 1, 128>}, {transform_indices = @transform_8, window_bounds = array<i64: 1, 90, 128>}]} {
    %c0 = arith.constant 0 : index
    %c0_0 = arith.constant 0 : index
    %c0_1 = arith.constant 0 : index
    %0 = vector.load %arg1[%c0, %c0_0, %c0_1] : memref<1x360x128xbf16, #tpu.memory_space<vmem>>, vector<1x360x128xbf16>
    %1 = vector.shape_cast %0 : vector<1x360x128xbf16> to vector<360x128xbf16>
    %2 = arith.extf %1 : vector<360x128xbf16> to vector<360x128xf32>
    %cst = arith.constant 0.000000e+00 : f32
    %3 = vector.broadcast %cst : f32 to vector<360x128xf32>
    %4 = arith.maximumf %2, %3 : vector<360x128xf32>
    %cst_2 = arith.constant 0.000000e+00 : f32
    %5 = vector.broadcast %cst_2 : f32 to vector<360x128xf32>
    %c1_i32 = arith.constant 1 : i32
    %6 = tpu.dynamic_rotate %4 by %c1_i32 dim 0 : vector<360x128xf32>, i32 -> vector<360x128xf32>
    %c359_i32 = arith.constant 359 : i32
    %7 = tpu.dynamic_rotate %4 by %c359_i32 dim 0 : vector<360x128xf32>, i32 -> vector<360x128xf32>
    %8 = tpu.concatenate %6, %4, %7 in 1 : vector<360x128xf32>, vector<360x128xf32>, vector<360x128xf32> -> vector<360x384xf32>
    %c20_i32 = arith.constant 20 : i32
    %9 = tpu.dynamic_rotate %8 by %c20_i32 dim 0 : vector<360x384xf32>, i32 -> vector<360x384xf32>
    %10 = arith.truncf %9 : vector<360x384xf32> to vector<360x384xbf16>
    %c0_3 = arith.constant 0 : index
    %c0_4 = arith.constant 0 : index
    %c0_5 = arith.constant 0 : index
    %11 = vector.load %arg2[%c0_3, %c0_4, %c0_5] : memref<3x384x128xbf16, #tpu.memory_space<vmem>>, vector<1x384x128xbf16>
    %12 = vector.shape_cast %11 : vector<1x384x128xbf16> to vector<384x128xbf16>
    %cst_6 = arith.constant dense<0.000000e+00> : vector<360x128xf32>
    %13 = tpu.matmul %10, %12, %cst_6 {dimension_numbers = #tpu.dot_dimension_numbers<[1], [0], [0], [1], [0, 0, 1, 1], [], []>} : vector<360x384xbf16>, vector<384x128xbf16>, vector<360x128xf32> -> vector<360x128xf32>
    %14 = arith.addf %5, %13 : vector<360x128xf32>
    %15 = arith.truncf %8 : vector<360x384xf32> to vector<360x384xbf16>
    %c1 = arith.constant 1 : index
    %c0_7 = arith.constant 0 : index
    %c0_8 = arith.constant 0 : index
    %16 = vector.load %arg2[%c1, %c0_7, %c0_8] : memref<3x384x128xbf16, #tpu.memory_space<vmem>>, vector<1x384x128xbf16>
    %17 = vector.shape_cast %16 : vector<1x384x128xbf16> to vector<384x128xbf16>
    %cst_9 = arith.constant dense<0.000000e+00> : vector<360x128xf32>
    %18 = tpu.matmul %15, %17, %cst_9 {dimension_numbers = #tpu.dot_dimension_numbers<[1], [0], [0], [1], [0, 0, 1, 1], [], []>} : vector<360x384xbf16>, vector<384x128xbf16>, vector<360x128xf32> -> vector<360x128xf32>
    %19 = arith.addf %14, %18 : vector<360x128xf32>
    %c340_i32 = arith.constant 340 : i32
    %20 = tpu.dynamic_rotate %8 by %c340_i32 dim 0 : vector<360x384xf32>, i32 -> vector<360x384xf32>
    %21 = arith.truncf %20 : vector<360x384xf32> to vector<360x384xbf16>
    %c2 = arith.constant 2 : index
    %c0_10 = arith.constant 0 : index
    %c0_11 = arith.constant 0 : index
    %22 = vector.load %arg2[%c2, %c0_10, %c0_11] : memref<3x384x128xbf16, #tpu.memory_space<vmem>>, vector<1x384x128xbf16>
    %23 = vector.shape_cast %22 : vector<1x384x128xbf16> to vector<384x128xbf16>
    %cst_12 = arith.constant dense<0.000000e+00> : vector<360x128xf32>
    %24 = tpu.matmul %21, %23, %cst_12 {dimension_numbers = #tpu.dot_dimension_numbers<[1], [0], [0], [1], [0, 0, 1, 1], [], []>} : vector<360x384xbf16>, vector<384x128xbf16>, vector<360x128xf32> -> vector<360x128xf32>
    %25 = arith.addf %19, %24 : vector<360x128xf32>
    %c0_13 = arith.constant 0 : index
    %c0_14 = arith.constant 0 : index
    %26 = vector.load %arg3[%c0_13, %c0_14] : memref<1x128xf32, #tpu.memory_space<vmem>>, vector<1x128xf32>
    %27 = vector.broadcast %26 : vector<1x128xf32> to vector<360x128xf32>
    %28 = arith.addf %25, %27 : vector<360x128xf32>
    %cst_15 = arith.constant 0.000000e+00 : f32
    %29 = vector.broadcast %cst_15 : f32 to vector<360x128xf32>
    %30 = arith.maximumf %28, %29 : vector<360x128xf32>
    %c0_16 = arith.constant 0 : index
    %c0_17 = arith.constant 0 : index
    %31 = vector.load %arg6[%c0_16, %c0_17] : memref<360x1xf32, #tpu.memory_space<vmem>>, vector<360x1xf32>
    %32 = vector.broadcast %31 : vector<360x1xf32> to vector<360x128xf32>
    %33 = arith.mulf %30, %32 : vector<360x128xf32>
    %cst_18 = arith.constant 0.000000e+00 : f32
    %34 = vector.broadcast %cst_18 : f32 to vector<360x128xf32>
    %c1_i32_19 = arith.constant 1 : i32
    %35 = tpu.dynamic_rotate %33 by %c1_i32_19 dim 0 : vector<360x128xf32>, i32 -> vector<360x128xf32>
    %c359_i32_20 = arith.constant 359 : i32
    %36 = tpu.dynamic_rotate %33 by %c359_i32_20 dim 0 : vector<360x128xf32>, i32 -> vector<360x128xf32>
    %37 = tpu.concatenate %35, %33, %36 in 1 : vector<360x128xf32>, vector<360x128xf32>, vector<360x128xf32> -> vector<360x384xf32>
    %c20_i32_21 = arith.constant 20 : i32
    %38 = tpu.dynamic_rotate %37 by %c20_i32_21 dim 0 : vector<360x384xf32>, i32 -> vector<360x384xf32>
    %39 = arith.truncf %38 : vector<360x384xf32> to vector<360x384xbf16>
    %c0_22 = arith.constant 0 : index
    %c0_23 = arith.constant 0 : index
    %c0_24 = arith.constant 0 : index
    %40 = vector.load %arg4[%c0_22, %c0_23, %c0_24] : memref<3x384x128xbf16, #tpu.memory_space<vmem>>, vector<1x384x128xbf16>
    %41 = vector.shape_cast %40 : vector<1x384x128xbf16> to vector<384x128xbf16>
    %cst_25 = arith.constant dense<0.000000e+00> : vector<360x128xf32>
    %42 = tpu.matmul %39, %41, %cst_25 {dimension_numbers = #tpu.dot_dimension_numbers<[1], [0], [0], [1], [0, 0, 1, 1], [], []>} : vector<360x384xbf16>, vector<384x128xbf16>, vector<360x128xf32> -> vector<360x128xf32>
    %43 = arith.addf %34, %42 : vector<360x128xf32>
    %44 = arith.truncf %37 : vector<360x384xf32> to vector<360x384xbf16>
    %c1_26 = arith.constant 1 : index
    %c0_27 = arith.constant 0 : index
    %c0_28 = arith.constant 0 : index
    %45 = vector.load %arg4[%c1_26, %c0_27, %c0_28] : memref<3x384x128xbf16, #tpu.memory_space<vmem>>, vector<1x384x128xbf16>
    %46 = vector.shape_cast %45 : vector<1x384x128xbf16> to vector<384x128xbf16>
    %cst_29 = arith.constant dense<0.000000e+00> : vector<360x128xf32>
    %47 = tpu.matmul %44, %46, %cst_29 {dimension_numbers = #tpu.dot_dimension_numbers<[1], [0], [0], [1], [0, 0, 1, 1], [], []>} : vector<360x384xbf16>, vector<384x128xbf16>, vector<360x128xf32> -> vector<360x128xf32>
    %48 = arith.addf %43, %47 : vector<360x128xf32>
    %c340_i32_30 = arith.constant 340 : i32
    %49 = tpu.dynamic_rotate %37 by %c340_i32_30 dim 0 : vector<360x384xf32>, i32 -> vector<360x384xf32>
    %50 = arith.truncf %49 : vector<360x384xf32> to vector<360x384xbf16>
    %c2_31 = arith.constant 2 : index
    %c0_32 = arith.constant 0 : index
    %c0_33 = arith.constant 0 : index
    %51 = vector.load %arg4[%c2_31, %c0_32, %c0_33] : memref<3x384x128xbf16, #tpu.memory_space<vmem>>, vector<1x384x128xbf16>
    %52 = vector.shape_cast %51 : vector<1x384x128xbf16> to vector<384x128xbf16>
    %cst_34 = arith.constant dense<0.000000e+00> : vector<360x128xf32>
    %53 = tpu.matmul %50, %52, %cst_34 {dimension_numbers = #tpu.dot_dimension_numbers<[1], [0], [0], [1], [0, 0, 1, 1], [], []>} : vector<360x384xbf16>, vector<384x128xbf16>, vector<360x128xf32> -> vector<360x128xf32>
    %54 = arith.addf %48, %53 : vector<360x128xf32>
    %c0_35 = arith.constant 0 : index
    %c0_36 = arith.constant 0 : index
    %55 = vector.load %arg5[%c0_35, %c0_36] : memref<1x128xf32, #tpu.memory_space<vmem>>, vector<1x128xf32>
    %56 = vector.broadcast %55 : vector<1x128xf32> to vector<360x128xf32>
    %57 = arith.addf %54, %56 : vector<360x128xf32>
    %c0_37 = arith.constant 0 : index
    %c0_38 = arith.constant 0 : index
    %58 = vector.load %arg7[%c0_37, %c0_38] : memref<128x128xbf16, #tpu.memory_space<vmem>>, vector<128x128xbf16>
    %cst_39 = arith.constant dense<0.000000e+00> : vector<360x128xf32>
    %59 = tpu.matmul %1, %58, %cst_39 {dimension_numbers = #tpu.dot_dimension_numbers<[1], [0], [0], [1], [0, 0, 1, 1], [], []>} : vector<360x128xbf16>, vector<128x128xbf16>, vector<360x128xf32> -> vector<360x128xf32>
    %60 = arith.addf %57, %59 : vector<360x128xf32>
    %c0_40 = arith.constant 0 : index
    %c0_41 = arith.constant 0 : index
    %61 = vector.load %arg8[%c0_40, %c0_41] : memref<1x128xf32, #tpu.memory_space<vmem>>, vector<1x128xf32>
    %62 = vector.broadcast %61 : vector<1x128xf32> to vector<360x128xf32>
    %63 = arith.addf %60, %62 : vector<360x128xf32>
    %64 = vector.shape_cast %63 : vector<360x128xf32> to vector<9x2x20x128xf32>
    %65 = vector.extract_strided_slice %64 {offsets = [0, 0, 0, 0], sizes = [9, 1, 20, 128], strides = [1, 1, 1, 1]} : vector<9x2x20x128xf32> to vector<9x1x20x128xf32>
    %66 = vector.shape_cast %65 : vector<9x1x20x128xf32> to vector<9x20x128xf32>
    %67 = vector.extract_strided_slice %64 {offsets = [0, 1, 0, 0], sizes = [9, 1, 20, 128], strides = [1, 1, 1, 1]} : vector<9x2x20x128xf32> to vector<9x1x20x128xf32>
    %68 = vector.shape_cast %67 : vector<9x1x20x128xf32> to vector<9x20x128xf32>
    %69 = arith.addf %66, %68 : vector<9x20x128xf32>
    %70 = vector.shape_cast %69 : vector<9x20x128xf32> to vector<90x2x128xf32>
    %71 = vector.extract_strided_slice %70 {offsets = [0, 0, 0], sizes = [90, 1, 128], strides = [1, 1, 1]} : vector<90x2x128xf32> to vector<90x1x128xf32>
    %72 = vector.shape_cast %71 : vector<90x1x128xf32> to vector<90x128xf32>
    %73 = vector.extract_strided_slice %70 {offsets = [0, 1, 0], sizes = [90, 1, 128], strides = [1, 1, 1]} : vector<90x2x128xf32> to vector<90x1x128xf32>
    %74 = vector.shape_cast %73 : vector<90x1x128xf32> to vector<90x128xf32>
    %75 = arith.addf %72, %74 : vector<90x128xf32>
    %cst_42 = arith.constant 2.500000e-01 : f32
    %76 = vector.broadcast %cst_42 : f32 to vector<90x128xf32>
    %77 = arith.mulf %75, %76 : vector<90x128xf32>
    %78 = vector.shape_cast %77 : vector<90x128xf32> to vector<1x90x128xf32>
    %79 = arith.truncf %78 : vector<1x90x128xf32> to vector<1x90x128xbf16>
    %c0_43 = arith.constant 0 : index
    %c0_44 = arith.constant 0 : index
    %c0_45 = arith.constant 0 : index
    %80 = vector.load %arg9[%c0_43, %c0_44, %c0_45] : memref<1x90x128xbf16, #tpu.memory_space<vmem>>, vector<1x90x128xbf16>
    tpu.vector_store %arg9[%c0_43, %c0_44, %c0_45], %79 {strides = array<i32>} : memref<1x90x128xbf16, #tpu.memory_space<vmem>>, vector<1x90x128xbf16>,
    return
  }
  func.func @transform_0(%arg0: i32) -> (i32, i32, i32) {
    %c0_i32 = arith.constant 0 : i32
    %c0_i32_0 = arith.constant 0 : i32
    %c0_i32_1 = arith.constant 0 : i32
    return %arg0, %c0_i32, %c0_i32_0 : i32, i32, i32
  }
  func.func @transform_1(%arg0: i32) -> (i32, i32, i32) {
    %c0_i32 = arith.constant 0 : i32
    %c0_i32_0 = arith.constant 0 : i32
    %c0_i32_1 = arith.constant 0 : i32
    %c0_i32_2 = arith.constant 0 : i32
    return %c0_i32, %c0_i32_0, %c0_i32_1 : i32, i32, i32
  }
  func.func @transform_2(%arg0: i32) -> (i32, i32) {
    %c0_i32 = arith.constant 0 : i32
    %c0_i32_0 = arith.constant 0 : i32
    %c0_i32_1 = arith.constant 0 : i32
    return %c0_i32, %c0_i32_0 : i32, i32
  }
  func.func @transform_3(%arg0: i32) -> (i32, i32, i32) {
    %c0_i32 = arith.constant 0 : i32
    %c0_i32_0 = arith.constant 0 : i32
    %c0_i32_1 = arith.constant 0 : i32
    %c0_i32_2 = arith.constant 0 : i32
    return %c0_i32, %c0_i32_0, %c0_i32_1 : i32, i32, i32
  }
  func.func @transform_4(%arg0: i32) -> (i32, i32) {
    %c0_i32 = arith.constant 0 : i32
    %c0_i32_0 = arith.constant 0 : i32
    %c0_i32_1 = arith.constant 0 : i32
    return %c0_i32, %c0_i32_0 : i32, i32
  }
  func.func @transform_5(%arg0: i32) -> (i32, i32) {
    %c0_i32 = arith.constant 0 : i32
    %c0_i32_0 = arith.constant 0 : i32
    %c0_i32_1 = arith.constant 0 : i32
    return %c0_i32, %c0_i32_0 : i32, i32
  }
  func.func @transform_6(%arg0: i32) -> (i32, i32) {
    %c0_i32 = arith.constant 0 : i32
    %c0_i32_0 = arith.constant 0 : i32
    %c0_i32_1 = arith.constant 0 : i32
    return %c0_i32, %c0_i32_0 : i32, i32
  }
  func.func @transform_7(%arg0: i32) -> (i32, i32) {
    %c0_i32 = arith.constant 0 : i32
    %c0_i32_0 = arith.constant 0 : i32
    %c0_i32_1 = arith.constant 0 : i32
    return %c0_i32, %c0_i32_0 : i32, i32
  }
  func.func @transform_8(%arg0: i32) -> (i32, i32, i32) {
    %c0_i32 = arith.constant 0 : i32
    %c0_i32_0 = arith.constant 0 : i32
    %c0_i32_1 = arith.constant 0 : i32
    return %arg0, %c0_i32, %c0_i32_0 : i32, i32, i32
  }
}

</mosaic_0001>

<llo_original>
// kernel: tpu_custom_call.1
$region0: #{tpu_custom_call.1}
  #allocation0 [shape = 'u32[]', space=smem, size = 0x4, offset = 0x4, fixed_abs, tag = 'smem constant byte address 0x4 - core index']
  #allocation1 [shape = 'u32[144,128]{1,0:T(1,128)}', space=vmem, size = 0x12000, scoped, tag = 'internal scratch']
  %s0 = inlined_call_operand.hbm [shape: s32[8,128], index: 0, kind: input, shape index: {}]
  %s1 = inlined_call_operand.hbm [shape: s32[8,128], index: 1, kind: output, shape index: {}]
  %s2 = sld [smem:[#allocation0]]
  $region18: #{tpu_custom_call.1} parent=0
    _
  %s4 = ssub.s32 1, %s2
  %s5 = scalar_select 0, %s4, %s2
  $region1: #{tpu_custom_call.1} parent=0
    #allocation2 [shape = 'u8[4096]{0}', space=vmem, size = 0x1000, scoped, tag = 'input window, operand 0, single buffered']
    #allocation3 [shape = 's32[1]{0}', space=sflag, size = 0x4, scoped, tag = 'scoped memory for tpu_custom_call.1']
    #allocation4 [shape = 's32[1]{0}', space=sflag, size = 0x4, scoped, tag = 'scoped memory for tpu_custom_call.1']
    #allocation5 [shape = 'u8[4096]{0}', space=vmem, size = 0x1000, scoped, tag = 'output window, operand 0, single buffered']
    %6 = vsyncpa [#allocation3], 0
    %7 = vsyncpa [#allocation4], 0
    // Predicated region
    $region2: #{tpu_custom_call.1} parent=1 // pred_check
      _
    $region3: #{tpu_custom_call.1} parent=1 // pred_check_branch
      %9 = sbr.rel (0) target = $region5
    $region4: #{tpu_custom_call.1} parent=1 // pred_region
      %s11 = ssub.s32 128, 128
      %12 = vsyncadd [#allocation3], %s11
      %s14 = sshll.u32 [#allocation2], 4
      %s15 = int_to_ptr.vmem [resolvable:$true] %s14
      %17 = dma.hbm_to_vmem [thread:$0]  %s0, 128, %s15, [#allocation3]
    $region5: #{tpu_custom_call.1} parent=1 // pred_fallthru
      _
    // Predicated region
    $region6: #{tpu_custom_call.1} parent=1 // pred_check
      _
    $region7: #{tpu_custom_call.1} parent=1 // pred_check_branch
      %19 = sbr.rel (0) target = $region9
    $region8: #{tpu_custom_call.1} parent=1 // pred_region
      %20 = dma.done [#allocation3], 128
    $region9: #{tpu_custom_call.1} parent=1 // pred_fallthru
      _
    %v21 = vld [vmem:[#allocation2] sm:$0xff]
    %v22 = vrot.slane %v21, 7
    %23 = vst [vmem:[#allocation5] sm:$0xff] %v22
    // Predicated region
    $region10: #{tpu_custom_call.1} parent=1 // pred_check
      _
    $region11: #{tpu_custom_call.1} parent=1 // pred_check_branch
      %25 = sbr.rel (0) target = $region13
    $region12: #{tpu_custom_call.1} parent=1 // pred_region
      %s27 = ssub.s32 128, 128
      %28 = vsyncadd [#allocation4], %s27
      %s30 = sshll.u32 [#allocation5], 4
      %s31 = int_to_ptr.vmem [resolvable:$true] %s30
      %33 = dma.vmem_to_hbm [thread:$0]  %s31, 128, %s1, [#allocation4]
    $region13: #{tpu_custom_call.1} parent=1 // pred_fallthru
      _
    // Predicated region
    $region14: #{tpu_custom_call.1} parent=1 // pred_check
      _
    $region15: #{tpu_custom_call.1} parent=1 // pred_check_branch
      %35 = sbr.rel (0) target = $region17
    $region16: #{tpu_custom_call.1} parent=1 // pred_region
      %36 = dma.done [#allocation4], 128
    $region17: #{tpu_custom_call.1} parent=1 // pred_fallthru
      _
    %37 = vsyncpa [#allocation3], 1
    %38 = vsyncpa [#allocation4], 1

// kernel: tpu_custom_call.1
$region0: #{tpu_custom_call.1}
  #allocation0 [shape = 'u32[]', space=smem, size = 0x4, offset = 0x4, fixed_abs, tag = 'smem constant byte address 0x4 - core index']
  #allocation1 [shape = 'u32[144,128]{1,0:T(1,128)}', space=vmem, size = 0x12000, scoped, tag = 'internal scratch']
  %s0 = inlined_call_operand.vmem [shape: bf16[2,360,128], index: 0, kind: input, shape index: {}]
  %s1 = inlined_call_operand.hbm [shape: bf16[3,384,128], index: 1, kind: input, shape index: {}]
  %s2 = inlined_call_operand.vmem [shape: f32[1,128], index: 2, kind: input, shape index: {}]
  %s3 = inlined_call_operand.hbm [shape: bf16[3,384,128], index: 3, kind: input, shape index: {}]
  %s4 = inlined_call_operand.vmem [shape: f32[1,128], index: 4, kind: input, shape index: {}]
  %s5 = inlined_call_operand.vmem [shape: f32[360,1], index: 5, kind: input, shape index: {}]
  %s6 = inlined_call_operand.hbm [shape: bf16[128,128], index: 6, kind: input, shape index: {}]
  %s7 = inlined_call_operand.vmem [shape: f32[1,128], index: 7, kind: input, shape index: {}]
  %s8 = inlined_call_operand.vmem [shape: bf16[2,90,128], index: 8, kind: output, shape index: {}]
  %s9 = sld [smem:[#allocation0]]
  $region77: #{tpu_custom_call.1} parent=0
    _
  %s11 = ssub.s32 1, %s9
  %s12 = scalar_select 0, %s11, %s9
  $region1: #{tpu_custom_call.1} parent=0
    #allocation2 [shape = 'u8[294912]{0}', space=vmem, size = 0x48000, scoped, tag = 'input window, operand 1, single buffered']
    #allocation3 [shape = 's32[2]{0}', space=sflag, size = 0x8, scoped, tag = 'scoped memory for tpu_custom_call.1']
    #allocation4 [shape = 'u8[294912]{0}', space=vmem, size = 0x48000, scoped, tag = 'input window, operand 3, single buffered']
    #allocation5 [shape = 's32[1]{0}', space=sflag, size = 0x4, scoped, tag = 'scoped memory for tpu_custom_call.1']
    #allocation6 [shape = 'u8[32768]{0}', space=vmem, size = 0x8000, scoped, tag = 'input window, operand 6, single buffered']
    %13 = vsyncpa [#allocation3], 0
    %14 = vsyncpa [#allocation5], 0
    loop: start=0, step=1, limit=4
    $region2: #{tpu_custom_call.1} parent=1 // loop_pre_header
      _
    $region3: #{tpu_custom_call.1} parent=1 // loop_header
      %s16 = sphi 0, %s20
      %p17 = scmp.ge.s32.totalorder %s16, 4
      %s26 = sphi 0, %s28
      %s29 = sphi 0, %s26
      %s30 = sphi 0, %s29
      %s46 = sphi 0, %s30
      %s50 = sphi 0, %s50
      %s52 = sphi 0, %s50
      %s53 = sphi 0, %s52
      %s67 = sphi 0, %s53
      %s71 = sphi 0, %s71
      %s73 = sphi 0, %s71
      %s74 = sphi 0, %s73
      %s88 = sphi 0, %s74
      %s92 = sphi 0, %s92
      %s94 = sphi 0, %s92
      %s95 = sphi 0, %s94
      %s109 = sphi 0, %s95
      %s113 = sphi 0, %s113
      %s115 = sphi 0, %s113
      %s116 = sphi 0, %s115
      %s130 = sphi 0, %s116
      %s134 = sphi 0, %s134
      %s136 = sphi 0, %s134
      %s137 = sphi 0, %s136
      %s151 = sphi 0, %s137
      %s155 = sphi 0, %s155
      %s157 = sphi 0, %s155
      %s158 = sphi 0, %s157
      %s172 = sphi 0, %s158
      %s176 = sphi 0, %s176
      %s178 = sphi 0, %s176
      %s179 = sphi 0, %s178
      %s193 = sphi 0, %s179
      %s199 = sphi 0, %s201
      %s202 = sphi 0, %s199
      %s203 = sphi 0, %s202
      %s219 = sphi 0, %s203
    $region4: #{tpu_custom_call.1} parent=1 // loop_header_branch
      %19 = sbr.rel (%p17) target = $region8
    $region5: #{tpu_custom_call.1} parent=1 // loop_body
      %s21 = ssub.s32 %s16, 1
      %s22 = ssub.s32 %s16, 2
      %s23 = sadd.s32 %s16, 1
      %s24 = ssub.s32 %s16, %s23
      %p25 = scmp.eq.s32.totalorder %s24, 0
      %s27 = sadd.s32 %s26, 1
      %s28 = scalar_select %p25, %s26, %s27
      %p31 = pneg %p25
      %p32 = scmp.eq.s32.totalorder %s16, 1
      %p33 = por %p31, %p32
      %p34 = scmp.ne.s32.totalorder %s26, %s29
      %p35 = scmp.eq.s32.totalorder %s16, 0
      %p36 = por %p34, %p35
      %p37 = scmp.ne.s32.totalorder %s26, %s29
      %p38 = scmp.eq.s32.totalorder %s21, 1
      %p39 = por %p37, %p38
      %p40 = scmp.ne.s32.totalorder %s29, %s30
      %p41 = scmp.eq.s32.totalorder %s21, 0
      %p42 = por %p40, %p41
      %p43 = scmp.ne.s32.totalorder %s29, %s30
      %p44 = scmp.eq.s32.totalorder %s22, 1
      %p45 = por %p43, %p44
      %p47 = scmp.ne.s32.totalorder %s30, %s46
      %p48 = scmp.eq.s32.totalorder %s22, 0
      %p49 = por %p47, %p48
      %s51 = sadd.s32 %s50, 1
      %p54 = scmp.eq.s32.totalorder %s16, 1
      %p55 = scmp.ne.s32.totalorder %s50, %s52
      %p56 = scmp.eq.s32.totalorder %s16, 0
      %p57 = por %p55, %p56
      %p58 = scmp.ne.s32.totalorder %s50, %s52
      %p59 = scmp.eq.s32.totalorder %s21, 1
      %p60 = por %p58, %p59
      %p61 = scmp.ne.s32.totalorder %s52, %s53
      %p62 = scmp.eq.s32.totalorder %s21, 0
      %p63 = por %p61, %p62
      %p64 = scmp.ne.s32.totalorder %s52, %s53
      %p65 = scmp.eq.s32.totalorder %s22, 1
      %p66 = por %p64, %p65
      %p68 = scmp.ne.s32.totalorder %s53, %s67
      %p69 = scmp.eq.s32.totalorder %s22, 0
      %p70 = por %p68, %p69
      %s72 = sadd.s32 %s71, 1
      %p75 = scmp.eq.s32.totalorder %s16, 1
      %p76 = scmp.ne.s32.totalorder %s71, %s73
      %p77 = scmp.eq.s32.totalorder %s16, 0
      %p78 = por %p76, %p77
      %p79 = scmp.ne.s32.totalorder %s71, %s73
      %p80 = scmp.eq.s32.totalorder %s21, 1
      %p81 = por %p79, %p80
      %p82 = scmp.ne.s32.totalorder %s73, %s74
      %p83 = scmp.eq.s32.totalorder %s21, 0
      %p84 = por %p82, %p83
      %p85 = scmp.ne.s32.totalorder %s73, %s74
      %p86 = scmp.eq.s32.totalorder %s22, 1
      %p87 = por %p85, %p86
      %p89 = scmp.ne.s32.totalorder %s74, %s88
      %p90 = scmp.eq.s32.totalorder %s22, 0
      %p91 = por %p89, %p90
      %s93 = sadd.s32 %s92, 1
      %p96 = scmp.eq.s32.totalorder %s16, 1
      %p97 = scmp.ne.s32.totalorder %s92, %s94
      %p98 = scmp.eq.s32.totalorder %s16, 0
      %p99 = por %p97, %p98
      %p100 = scmp.ne.s32.totalorder %s92, %s94
      %p101 = scmp.eq.s32.totalorder %s21, 1
      %p102 = por %p100, %p101
      %p103 = scmp.ne.s32.totalorder %s94, %s95
      %p104 = scmp.eq.s32.totalorder %s21, 0
      %p105 = por %p103, %p104
      %p106 = scmp.ne.s32.totalorder %s94, %s95
      %p107 = scmp.eq.s32.totalorder %s22, 1
      %p108 = por %p106, %p107
      %p110 = scmp.ne.s32.totalorder %s95, %s109
      %p111 = scmp.eq.s32.totalorder %s22, 0
      %p112 = por %p110, %p111
      %s114 = sadd.s32 %s113, 1
      %p117 = scmp.eq.s32.totalorder %s16, 1
      %p118 = scmp.ne.s32.totalorder %s113, %s115
      %p119 = scmp.eq.s32.totalorder %s16, 0
      %p120 = por %p118, %p119
      %p121 = scmp.ne.s32.totalorder %s113, %s115
      %p122 = scmp.eq.s32.totalorder %s21, 1
      %p123 = por %p121, %p122
      %p124 = scmp.ne.s32.totalorder %s115, %s116
      %p125 = scmp.eq.s32.totalorder %s21, 0
      %p126 = por %p124, %p125
      %p127 = scmp.ne.s32.totalorder %s115, %s116
      %p128 = scmp.eq.s32.totalorder %s22, 1
      %p129 = por %p127, %p128
      %p131 = scmp.ne.s32.totalorder %s116, %s130
      %p132 = scmp.eq.s32.totalorder %s22, 0
      %p133 = por %p131, %p132
      %s135 = sadd.s32 %s134, 1
      %p138 = scmp.eq.s32.totalorder %s16, 1
      %p139 = scmp.ne.s32.totalorder %s134, %s136
      %p140 = scmp.eq.s32.totalorder %s16, 0
      %p141 = por %p139, %p140
      %p142 = scmp.ne.s32.totalorder %s134, %s136
      %p143 = scmp.eq.s32.totalorder %s21, 1
      %p144 = por %p142, %p143
      %p145 = scmp.ne.s32.totalorder %s136, %s137
      %p146 = scmp.eq.s32.totalorder %s21, 0
      %p147 = por %p145, %p146
      %p148 = scmp.ne.s32.totalorder %s136, %s137
      %p149 = scmp.eq.s32.totalorder %s22, 1
      %p150 = por %p148, %p149
      %p152 = scmp.ne.s32.totalorder %s137, %s151
      %p153 = scmp.eq.s32.totalorder %s22, 0
      %p154 = por %p152, %p153
      %s156 = sadd.s32 %s155, 1
      %p159 = scmp.eq.s32.totalorder %s16, 1
      %p160 = scmp.ne.s32.totalorder %s155, %s157
      %p161 = scmp.eq.s32.totalorder %s16, 0
      %p162 = por %p160, %p161
      %p163 = scmp.ne.s32.totalorder %s155, %s157
      %p164 = scmp.eq.s32.totalorder %s21, 1
      %p165 = por %p163, %p164
      %p166 = scmp.ne.s32.totalorder %s157, %s158
      %p167 = scmp.eq.s32.totalorder %s21, 0
      %p168 = por %p166, %p167
      %p169 = scmp.ne.s32.totalorder %s157, %s158
      %p170 = scmp.eq.s32.totalorder %s22, 1
      %p171 = por %p169, %p170
      %p173 = scmp.ne.s32.totalorder %s158, %s172
      %p174 = scmp.eq.s32.totalorder %s22, 0
      %p175 = por %p173, %p174
      %s177 = sadd.s32 %s176, 1
      %p180 = scmp.eq.s32.totalorder %s16, 1
      %p181 = scmp.ne.s32.totalorder %s176, %s178
      %p182 = scmp.eq.s32.totalorder %s16, 0
      %p183 = por %p181, %p182
      %p184 = scmp.ne.s32.totalorder %s176, %s178
      %p185 = scmp.eq.s32.totalorder %s21, 1
      %p186 = por %p184, %p185
      %p187 = scmp.ne.s32.totalorder %s178, %s179
      %p188 = scmp.eq.s32.totalorder %s21, 0
      %p189 = por %p187, %p188
      %p190 = scmp.ne.s32.totalorder %s178, %s179
      %p191 = scmp.eq.s32.totalorder %s22, 1
      %p192 = por %p190, %p191
      %p194 = scmp.ne.s32.totalorder %s179, %s193
      %p195 = scmp.eq.s32.totalorder %s22, 0
      %p196 = por %p194, %p195
      %s197 = ssub.s32 %s16, %s23
      %p198 = scmp.eq.s32.totalorder %s197, 0
      %s200 = sadd.s32 %s199, 1
      %s201 = scalar_select %p198, %s199, %s200
      %p204 = pneg %p198
      %p205 = scmp.eq.s32.totalorder %s16, 1
      %p206 = por %p204, %p205
      %p207 = scmp.ne.s32.totalorder %s199, %s202
      %p208 = scmp.eq.s32.totalorder %s16, 0
      %p209 = por %p207, %p208
      %p210 = scmp.ne.s32.totalorder %s199, %s202
      %p211 = scmp.eq.s32.totalorder %s21, 1
      %p212 = por %p210, %p211
      %p213 = scmp.ne.s32.totalorder %s202, %s203
      %p214 = scmp.eq.s32.totalorder %s21, 0
      %p215 = por %p213, %p214
      %p216 = scmp.ne.s32.totalorder %s202, %s203
      %p217 = scmp.eq.s32.totalorder %s22, 1
      %p218 = por %p216, %p217
      %p220 = scmp.ne.s32.totalorder %s203, %s219
      %p221 = scmp.eq.s32.totalorder %s22, 0
      %p222 = por %p220, %p221
      %p223 = scmp.le.s32.totalorder 1, %s16
      %p224 = scmp.lt.s32.totalorder %s16, 3
      %p225 = pnand %p223, %p224
      %p226 = pneg %p225
      // Predicated region
      $region9: #{tpu_custom_call.1} parent=5 // pred_check
        _
      $region10: #{tpu_custom_call.1} parent=5 // pred_check_branch
        %228 = sbr.rel (%p225) target = $region12
      $region11: #{tpu_custom_call.1} parent=5 // pred_region
        %s229 = ssub.s32 %s16, 1
        // Predicated region
        $region13: #{tpu_custom_call.1} parent=11 // pred_check
          %p230 = pneg %p63
        $region14: #{tpu_custom_call.1} parent=11 // pred_check_branch
          %232 = sbr.rel (%p230) target = $region16
        $region15: #{tpu_custom_call.1} parent=11 // pred_region
          %s234 = ssub.s32 9216, 9216
          %235 = vsyncadd [#allocation3], %s234
          %s236 = sshll.u32 [#allocation2], 4
          %s237 = int_to_ptr.vmem [resolvable:$true] %s236
          %242 = dma.hbm_to_vmem [thread:$0]  %s1, 9216, %s237, [#allocation3], 64, 64, 4
        $region16: #{tpu_custom_call.1} parent=11 // pred_fallthru
          _
        // Predicated region
        $region17: #{tpu_custom_call.1} parent=11 // pred_check
          %p243 = pneg %p84
        $region18: #{tpu_custom_call.1} parent=11 // pred_check_branch
          %245 = sbr.rel (%p243) target = $region20
        $region19: #{tpu_custom_call.1} parent=11 // pred_region
          _
        $region20: #{tpu_custom_call.1} parent=11 // pred_fallthru
          _
        // Predicated region
        $region21: #{tpu_custom_call.1} parent=11 // pred_check
          %p246 = pneg %p105
        $region22: #{tpu_custom_call.1} parent=11 // pred_check_branch
          %248 = sbr.rel (%p246) target = $region24
        $region23: #{tpu_custom_call.1} parent=11 // pred_region
          %s250 = ssub.s32 9216, 9216
          %251 = vsyncadd [#allocation5], %s250
          %s252 = sshll.u32 [#allocation4], 4
          %s253 = int_to_ptr.vmem [resolvable:$true] %s252
          %258 = dma.hbm_to_vmem [thread:$0]  %s3, 9216, %s253, [#allocation5], 64, 64, 4
        $region24: #{tpu_custom_call.1} parent=11 // pred_fallthru
          _
        // Predicated region
        $region25: #{tpu_custom_call.1} parent=11 // pred_check
          %p259 = pneg %p126
        $region26: #{tpu_custom_call.1} parent=11 // pred_check_branch
          %261 = sbr.rel (%p259) target = $region28
        $region27: #{tpu_custom_call.1} parent=11 // pred_region
          _
        $region28: #{tpu_custom_call.1} parent=11 // pred_fallthru
          _
        // Predicated region
        $region29: #{tpu_custom_call.1} parent=11 // pred_check
          %p262 = pneg %p147
        $region30: #{tpu_custom_call.1} parent=11 // pred_check_branch
          %264 = sbr.rel (%p262) target = $region32
        $region31: #{tpu_custom_call.1} parent=11 // pred_region
          _
        $region32: #{tpu_custom_call.1} parent=11 // pred_fallthru
          _
        // Predicated region
        $region33: #{tpu_custom_call.1} parent=11 // pred_check
          %p265 = pneg %p168
        $region34: #{tpu_custom_call.1} parent=11 // pred_check_branch
          %267 = sbr.rel (%p265) target = $region36
        $region35: #{tpu_custom_call.1} parent=11 // pred_region
          %s269 = ssub.s32 1024, 1024
          %270 = vsyncadd [#allocation5], %s269
          %s271 = sshll.u32 [#allocation6], 4
          %s272 = int_to_ptr.vmem [resolvable:$true] %s271
          %277 = dma.hbm_to_vmem [thread:$0]  %s6, 1024, %s272, [#allocation5], 64, 64, 4
        $region36: #{tpu_custom_call.1} parent=11 // pred_fallthru
          _
        // Predicated region
        $region37: #{tpu_custom_call.1} parent=11 // pred_check
          %p278 = pneg %p189
        $region38: #{tpu_custom_call.1} parent=11 // pred_check_branch
          %280 = sbr.rel (%p278) target = $region40
        $region39: #{tpu_custom_call.1} parent=11 // pred_region
          _
        $region40: #{tpu_custom_call.1} parent=11 // pred_fallthru
          _
      $region12: #{tpu_custom_call.1} parent=5 // pred_fallthru
        _
      %p281 = scmp.lt.s32.totalorder %s16, 2
      // Predicated region
      $region41: #{tpu_custom_call.1} parent=5 // pred_check
        %p282 = pneg %p281
      $region42: #{tpu_custom_call.1} parent=5 // pred_check_branch
        %284 = sbr.rel (%p282) target = $region44
      $region43: #{tpu_custom_call.1} parent=5 // pred_region
        // Predicated region
        $region45: #{tpu_custom_call.1} parent=43 // pred_check
          %p285 = pneg %p36
        $region46: #{tpu_custom_call.1} parent=43 // pred_check_branch
          %287 = sbr.rel (%p285) target = $region48
        $region47: #{tpu_custom_call.1} parent=43 // pred_region
          %p288 = scmp.lt.s32.totalorder %s16, 1
          %s289 = scalar_select %p288, %s16, 1
          %s290 = smul.addr %s289, 45
          %s291 = smul.addr %s290, 4
          %s292 = scalar_lea.vmem %s0, %s291
        $region48: #{tpu_custom_call.1} parent=43 // pred_fallthru
          _
      $region44: #{tpu_custom_call.1} parent=5 // pred_fallthru
        _
      %p293 = scmp.le.s32.totalorder 1, %s16
      %p294 = scmp.lt.s32.totalorder %s16, 3
      %p295 = pnand %p293, %p294
      %p296 = pneg %p295
      // Predicated region
      $region49: #{tpu_custom_call.1} parent=5 // pred_check
        _
      $region50: #{tpu_custom_call.1} parent=5 // pred_check_branch
        %298 = sbr.rel (%p295) target = $region52
      $region51: #{tpu_custom_call.1} parent=5 // pred_region
        %s299 = ssub.s32 %s16, 1
        // Predicated region
        $region53: #{tpu_custom_call.1} parent=51 // pred_check
          %p300 = pneg %p63
        $region54: #{tpu_custom_call.1} parent=51 // pred_check_branch
          %302 = sbr.rel (%p300) target = $region56
        $region55: #{tpu_custom_call.1} parent=51 // pred_region
          %303 = dma.done [#allocation3], 9216
        $region56: #{tpu_custom_call.1} parent=51 // pred_fallthru
          _
        // Predicated region
        $region57: #{tpu_custom_call.1} parent=51 // pred_check
          %p304 = pneg %p105
        $region58: #{tpu_custom_call.1} parent=51 // pred_check_branch
          %306 = sbr.rel (%p304) target = $region60
        $region59: #{tpu_custom_call.1} parent=51 // pred_region
          %307 = dma.done [#allocation5], 9216
        $region60: #{tpu_custom_call.1} parent=51 // pred_fallthru
          _
        // Predicated region
        $region61: #{tpu_custom_call.1} parent=51 // pred_check
          %p308 = pneg %p168
        $region62: #{tpu_custom_call.1} parent=51 // pred_check_branch
          %310 = sbr.rel (%p308) target = $region64
        $region63: #{tpu_custom_call.1} parent=51 // pred_region
          %311 = dma.done [#allocation5], 1024
        $region64: #{tpu_custom_call.1} parent=51 // pred_fallthru
          _
        %p312 = scmp.lt.s32.totalorder %s21, 1
        %s313 = scalar_select %p312, %s21, 1
        %s314 = smul.addr %s313, 45
        %s315 = smul.addr %s314, 4
        %s316 = scalar_lea.vmem %s0, %s315
        %p317 = pneg %p42
        %p318 = pneg %p39
        %p319 = pneg %p63
        %p320 = pneg %p60
        %p321 = pneg %p84
        %p322 = pneg %p81
        %p323 = pneg %p105
        %p324 = pneg %p102
        %p325 = pneg %p126
        %p326 = pneg %p123
        %p327 = pneg %p147
        %p328 = pneg %p144
        %p329 = pneg %p168
        %p330 = pneg %p165
        %p331 = pneg %p189
        %p332 = pneg %p186
        %p333 = pneg %p215
        %p334 = pneg %p212
        %p335 = scmp.lt.s32.totalorder %s21, 1
        %s336 = scalar_select %p335, %s21, 1
        %s337 = smul.addr %s336, 12
        %s338 = smul.addr %s337, 4
        %s339 = scalar_lea.vmem %s8, %s338
        %p340 = scmp.lt.s32.totalorder %s21, 1
        %s341 = scalar_select %p340, %s21, 1
        %s342 = smul.addr %s341, 45
        %s343 = smul.addr %s342, 4
        %s344 = scalar_lea.vmem %s0, %s343
        %p345 = scmp.lt.s32.totalorder %s21, 1
        %s346 = scalar_select %p345, %s21, 1
        %s347 = smul.addr %s346, 12
        %s348 = smul.addr %s347, 4
        %s349 = scalar_lea.vmem %s8, %s348
        %v351 = vld [vmem:[%s344] sm:$0xf]
        %v352 = vld [vmem:[%s344 + $0x4] sm:$0xf]
        %v353 = vld [vmem:[%s344 + $0x8] sm:$0xf]
        %v354 = vld [vmem:[%s344 + $0xc] sm:$0xf]
        %v355 = vld [vmem:[%s344 + $0x10] sm:$0xf]
        %v356 = vld [vmem:[%s344 + $0x14] sm:$0xf]
        %v357 = vld [vmem:[%s344 + $0x18] sm:$0xf]
        %v358 = vld [vmem:[%s344 + $0x1c] sm:$0xf]
        %v359 = vld [vmem:[%s344 + $0x20] sm:$0xf]
        %v360 = vld [vmem:[%s344 + $0x24] sm:$0xf]
        %v361 = vld [vmem:[%s344 + $0x28] sm:$0xf]
        %v362 = vld [vmem:[%s344 + $0x2c] sm:$0xf]
        %v363 = vld [vmem:[%s344 + $0x30] sm:$0xf]
        %v364 = vld [vmem:[%s344 + $0x34] sm:$0xf]
        %v365 = vld [vmem:[%s344 + $0x38] sm:$0xf]
        %v366 = vld [vmem:[%s344 + $0x3c] sm:$0xf]
        %v367 = vld [vmem:[%s344 + $0x40] sm:$0xf]
        %v368 = vld [vmem:[%s344 + $0x44] sm:$0xf]
        %v369 = vld [vmem:[%s344 + $0x48] sm:$0xf]
        %v370 = vld [vmem:[%s344 + $0x4c] sm:$0xf]
        %v371 = vld [vmem:[%s344 + $0x50] sm:$0xf]
        %v372 = vld [vmem:[%s344 + $0x54] sm:$0xf]
        %v373 = vld [vmem:[%s344 + $0x58] sm:$0xf]
        %v374 = vld [vmem:[%s344 + $0x5c] sm:$0xf]
        %v375 = vld [vmem:[%s344 + $0x60] sm:$0xf]
        %v376 = vld [vmem:[%s344 + $0x64] sm:$0xf]
        %v377 = vld [vmem:[%s344 + $0x68] sm:$0xf]
        %v378 = vld [vmem:[%s344 + $0x6c] sm:$0xf]
        %v379 = vld [vmem:[%s344 + $0x70] sm:$0xf]
        %v380 = vld [vmem:[%s344 + $0x74] sm:$0xf]
        %v381 = vld [vmem:[%s344 + $0x78] sm:$0xf]
        %v382 = vld [vmem:[%s344 + $0x7c] sm:$0xf]
        %v383 = vld [vmem:[%s344 + $0x80] sm:$0xf]
        %v384 = vld [vmem:[%s344 + $0x84] sm:$0xf]
        %v385 = vld [vmem:[%s344 + $0x88] sm:$0xf]
        %v386 = vld [vmem:[%s344 + $0x8c] sm:$0xf]
        %v387 = vld [vmem:[%s344 + $0x90] sm:$0xf]
        %v388 = vld [vmem:[%s344 + $0x94] sm:$0xf]
        %v389 = vld [vmem:[%s344 + $0x98] sm:$0xf]
        %v390 = vld [vmem:[%s344 + $0x9c] sm:$0xf]
        %v391 = vld [vmem:[%s344 + $0xa0] sm:$0xf]
        %v392 = vld [vmem:[%s344 + $0xa4] sm:$0xf]
        %v393 = vld [vmem:[%s344 + $0xa8] sm:$0xf]
        %v394 = vld [vmem:[%s344 + $0xac] sm:$0xf]
        %v395 = vld [vmem:[%s344 + $0xb0] sm:$0xf]
        %v396 = vunpack.c.l.bf16 %v351
        %v397 = vunpack.c.l.bf16 %v352
        %v398 = vunpack.c.l.bf16 %v353
        %v399 = vunpack.c.l.bf16 %v354
        %v400 = vunpack.c.l.bf16 %v355
        %v401 = vunpack.c.l.bf16 %v356
        %v402 = vunpack.c.l.bf16 %v357
        %v403 = vunpack.c.l.bf16 %v358
        %v404 = vunpack.c.l.bf16 %v359
        %v405 = vunpack.c.l.bf16 %v360
        %v406 = vunpack.c.l.bf16 %v361
        %v407 = vunpack.c.l.bf16 %v362
        %v408 = vunpack.c.l.bf16 %v363
        %v409 = vunpack.c.l.bf16 %v364
        %v410 = vunpack.c.l.bf16 %v365
        %v411 = vunpack.c.l.bf16 %v366
        %v412 = vunpack.c.l.bf16 %v367
        %v413 = vunpack.c.l.bf16 %v368
        %v414 = vunpack.c.l.bf16 %v369
        %v415 = vunpack.c.l.bf16 %v370
        %v416 = vunpack.c.l.bf16 %v371
        %v417 = vunpack.c.l.bf16 %v372
        %v418 = vunpack.c.l.bf16 %v373
        %v419 = vunpack.c.l.bf16 %v374
        %v420 = vunpack.c.l.bf16 %v375
        %v421 = vunpack.c.l.bf16 %v376
        %v422 = vunpack.c.l.bf16 %v377
        %v423 = vunpack.c.l.bf16 %v378
        %v424 = vunpack.c.l.bf16 %v379
        %v425 = vunpack.c.l.bf16 %v380
        %v426 = vunpack.c.l.bf16 %v381
        %v427 = vunpack.c.l.bf16 %v382
        %v428 = vunpack.c.l.bf16 %v383
        %v429 = vunpack.c.l.bf16 %v384
        %v430 = vunpack.c.l.bf16 %v385
        %v431 = vunpack.c.l.bf16 %v386
        %v432 = vunpack.c.l.bf16 %v387
        %v433 = vunpack.c.l.bf16 %v388
        %v434 = vunpack.c.l.bf16 %v389
        %v435 = vunpack.c.l.bf16 %v390
        %v436 = vunpack.c.l.bf16 %v391
        %v437 = vunpack.c.l.bf16 %v392
        %v438 = vunpack.c.l.bf16 %v393
        %v439 = vunpack.c.l.bf16 %v394
        %v440 = vunpack.c.l.bf16 %v395
        %v441 = vmax.f32 %v396, 0.0
        %v442 = vmax.f32 %v397, 0.0
        %v443 = vmax.f32 %v398, 0.0
        %v444 = vmax.f32 %v399, 0.0
        %v445 = vmax.f32 %v400, 0.0
        %v446 = vmax.f32 %v401, 0.0
        %v447 = vmax.f32 %v402, 0.0
        %v448 = vmax.f32 %v403, 0.0
        %v449 = vmax.f32 %v404, 0.0
        %v450 = vmax.f32 %v405, 0.0
        %v451 = vmax.f32 %v406, 0.0
        %v452 = vmax.f32 %v407, 0.0
        %v453 = vmax.f32 %v408, 0.0
        %v454 = vmax.f32 %v409, 0.0
        %v455 = vmax.f32 %v410, 0.0
        %v456 = vmax.f32 %v411, 0.0
        %v457 = vmax.f32 %v412, 0.0
        %v458 = vmax.f32 %v413, 0.0
        %v459 = vmax.f32 %v414, 0.0
        %v460 = vmax.f32 %v415, 0.0
        %v461 = vmax.f32 %v416, 0.0
        %v462 = vmax.f32 %v417, 0.0
        %v463 = vmax.f32 %v418, 0.0
        %v464 = vmax.f32 %v419, 0.0
        %v465 = vmax.f32 %v420, 0.0
        %v466 = vmax.f32 %v421, 0.0
        %v467 = vmax.f32 %v422, 0.0
        %v468 = vmax.f32 %v423, 0.0
        %v469 = vmax.f32 %v424, 0.0
        %v470 = vmax.f32 %v425, 0.0
        %v471 = vmax.f32 %v426, 0.0
        %v472 = vmax.f32 %v427, 0.0
        %v473 = vmax.f32 %v428, 0.0
        %v474 = vmax.f32 %v429, 0.0
        %v475 = vmax.f32 %v430, 0.0
        %v476 = vmax.f32 %v431, 0.0
        %v477 = vmax.f32 %v432, 0.0
        %v478 = vmax.f32 %v433, 0.0
        %v479 = vmax.f32 %v434, 0.0
        %v480 = vmax.f32 %v435, 0.0
        %v481 = vmax.f32 %v436, 0.0
        %v482 = vmax.f32 %v437, 0.0
        %v483 = vmax.f32 %v438, 0.0
        %v484 = vmax.f32 %v439, 0.0
        %v485 = vmax.f32 %v440, 0.0
        %v486 = vrot.slane %v441, 7
        %v487 = vrot.slane %v442, 7
        %v488 = vrot.slane %v443, 7
        %v489 = vrot.slane %v444, 7
        %v490 = vrot.slane %v445, 7
        %v491 = vrot.slane %v446, 7
        %v492 = vrot.slane %v447, 7
        %v493 = vrot.slane %v448, 7
        %v494 = vrot.slane %v449, 7
        %v495 = vrot.slane %v450, 7
        %v496 = vrot.slane %v451, 7
        %v497 = vrot.slane %v452, 7
        %v498 = vrot.slane %v453, 7
        %v499 = vrot.slane %v454, 7
        %v500 = vrot.slane %v455, 7
        %v501 = vrot.slane %v456, 7
        %v502 = vrot.slane %v457, 7
        %v503 = vrot.slane %v458, 7
        %v504 = vrot.slane %v459, 7
        %v505 = vrot.slane %v460, 7
        %v506 = vrot.slane %v461, 7
        %v507 = vrot.slane %v462, 7
        %v508 = vrot.slane %v463, 7
        %v509 = vrot.slane %v464, 7
        %v510 = vrot.slane %v465, 7
        %v511 = vrot.slane %v466, 7
        %v512 = vrot.slane %v467, 7
        %v513 = vrot.slane %v468, 7
        %v514 = vrot.slane %v469, 7
        %v515 = vrot.slane %v470, 7
        %v516 = vrot.slane %v471, 7
        %v517 = vrot.slane %v472, 7
        %v518 = vrot.slane %v473, 7
        %v519 = vrot.slane %v474, 7
        %v520 = vrot.slane %v475, 7
        %v521 = vrot.slane %v476, 7
        %v522 = vrot.slane %v477, 7
        %v523 = vrot.slane %v478, 7
        %v524 = vrot.slane %v479, 7
        %v525 = vrot.slane %v480, 7
        %v526 = vrot.slane %v481, 7
        %v527 = vrot.slane %v482, 7
        %v528 = vrot.slane %v483, 7
        %v529 = vrot.slane %v484, 7
        %v530 = vrot.slane %v485, 7
        %v531 = vlaneseq
        %v532 = vshrl.u32 %v531, 7
        %vm533 = vcmp.lt.s32.totalorder %v532, 1
        %v534 = vsel %vm533, %v529, %v530
        %v535 = vsel %vm533, %v528, %v529
        %v536 = vsel %vm533, %v527, %v528
        %v537 = vsel %vm533, %v526, %v527
        %v538 = vsel %vm533, %v525, %v526
        %v539 = vsel %vm533, %v524, %v525
        %v540 = vsel %vm533, %v523, %v524
        %v541 = vsel %vm533, %v522, %v523
        %v542 = vsel %vm533, %v521, %v522
        %v543 = vsel %vm533, %v520, %v521
        %v544 = vsel %vm533, %v519, %v520
        %v545 = vsel %vm533, %v518, %v519
        %v546 = vsel %vm533, %v517, %v518
        %v547 = vsel %vm533, %v516, %v517
        %v548 = vsel %vm533, %v515, %v516
        %v549 = vsel %vm533, %v514, %v515
        %v550 = vsel %vm533, %v513, %v514
        %v551 = vsel %vm533, %v512, %v513
        %v552 = vsel %vm533, %v511, %v512
        %v553 = vsel %vm533, %v510, %v511
        %v554 = vsel %vm533, %v509, %v510
        %v555 = vsel %vm533, %v508, %v509
        %v556 = vsel %vm533, %v507, %v508
        %v557 = vsel %vm533, %v506, %v507
        %v558 = vsel %vm533, %v505, %v506
        %v559 = vsel %vm533, %v504, %v505
        %v560 = vsel %vm533, %v503, %v504
        %v561 = vsel %vm533, %v502, %v503
        %v562 = vsel %vm533, %v501, %v502
        %v563 = vsel %vm533, %v500, %v501
        %v564 = vsel %vm533, %v499, %v500
        %v565 = vsel %vm533, %v498, %v499
        %v566 = vsel %vm533, %v497, %v498
        %v567 = vsel %vm533, %v496, %v497
        %v568 = vsel %vm533, %v495, %v496
        %v569 = vsel %vm533, %v494, %v495
        %v570 = vsel %vm533, %v493, %v494
        %v571 = vsel %vm533, %v492, %v493
        %v572 = vsel %vm533, %v491, %v492
        %v573 = vsel %vm533, %v490, %v491
        %v574 = vsel %vm533, %v489, %v490
        %v575 = vsel %vm533, %v488, %v489
        %v576 = vsel %vm533, %v487, %v488
        %v577 = vsel %vm533, %v486, %v487
        %v578 = vsel %vm533, %v530, %v486
        %v579 = vrot.slane %v441, 1
        %v580 = vrot.slane %v442, 1
        %v581 = vrot.slane %v443, 1
        %v582 = vrot.slane %v444, 1
        %v583 = vrot.slane %v445, 1
        %v584 = vrot.slane %v446, 1
        %v585 = vrot.slane %v447, 1
        %v586 = vrot.slane %v448, 1
        %v587 = vrot.slane %v449, 1
        %v588 = vrot.slane %v450, 1
        %v589 = vrot.slane %v451, 1
        %v590 = vrot.slane %v452, 1
        %v591 = vrot.slane %v453, 1
        %v592 = vrot.slane %v454, 1
        %v593 = vrot.slane %v455, 1
        %v594 = vrot.slane %v456, 1
        %v595 = vrot.slane %v457, 1
        %v596 = vrot.slane %v458, 1
        %v597 = vrot.slane %v459, 1
        %v598 = vrot.slane %v460, 1
        %v599 = vrot.slane %v461, 1
        %v600 = vrot.slane %v462, 1
        %v601 = vrot.slane %v463, 1
        %v602 = vrot.slane %v464, 1
        %v603 = vrot.slane %v465, 1
        %v604 = vrot.slane %v466, 1
        %v605 = vrot.slane %v467, 1
        %v606 = vrot.slane %v468, 1
        %v607 = vrot.slane %v469, 1
        %v608 = vrot.slane %v470, 1
        %v609 = vrot.slane %v471, 1
        %v610 = vrot.slane %v472, 1
        %v611 = vrot.slane %v473, 1
        %v612 = vrot.slane %v474, 1
        %v613 = vrot.slane %v475, 1
        %v614 = vrot.slane %v476, 1
        %v615 = vrot.slane %v477, 1
        %v616 = vrot.slane %v478, 1
        %v617 = vrot.slane %v479, 1
        %v618 = vrot.slane %v480, 1
        %v619 = vrot.slane %v481, 1
        %v620 = vrot.slane %v482, 1
        %v621 = vrot.slane %v483, 1
        %v622 = vrot.slane %v484, 1
        %v623 = vrot.slane %v485, 1
        %vm624 = vcmp.lt.s32.totalorder %v532, 7
        %v625 = vsel %vm624, %v622, %v623
        %v626 = vsel %vm624, %v621, %v622
        %v627 = vsel %vm624, %v620, %v621
        %v628 = vsel %vm624, %v619, %v620
        %v629 = vsel %vm624, %v618, %v619
        %v630 = vsel %vm624, %v617, %v618
        %v631 = vsel %vm624, %v616, %v617
        %v632 = vsel %vm624, %v615, %v616
        %v633 = vsel %vm624, %v614, %v615
        %v634 = vsel %vm624, %v613, %v614
        %v635 = vsel %vm624, %v612, %v613
        %v636 = vsel %vm624, %v611, %v612
        %v637 = vsel %vm624, %v610, %v611
        %v638 = vsel %vm624, %v609, %v610
        %v639 = vsel %vm624, %v608, %v609
        %v640 = vsel %vm624, %v607, %v608
        %v641 = vsel %vm624, %v606, %v607
        %v642 = vsel %vm624, %v605, %v606
        %v643 = vsel %vm624, %v604, %v605
        %v644 = vsel %vm624, %v603, %v604
        %v645 = vsel %vm624, %v602, %v603
        %v646 = vsel %vm624, %v601, %v602
        %v647 = vsel %vm624, %v600, %v601
        %v648 = vsel %vm624, %v599, %v600
        %v649 = vsel %vm624, %v598, %v599
        %v650 = vsel %vm624, %v597, %v598
        %v651 = vsel %vm624, %v596, %v597
        %v652 = vsel %vm624, %v595, %v596
        %v653 = vsel %vm624, %v594, %v595
        %v654 = vsel %vm624, %v593, %v594
        %v655 = vsel %vm624, %v592, %v593
        %v656 = vsel %vm624, %v591, %v592
        %v657 = vsel %vm624, %v590, %v591
        %v658 = vsel %vm624, %v589, %v590
        %v659 = vsel %vm624, %v588, %v589
        %v660 = vsel %vm624, %v587, %v588
        %v661 = vsel %vm624, %v586, %v587
        %v662 = vsel %vm624, %v585, %v586
        %v663 = vsel %vm624, %v584, %v585
        %v664 = vsel %vm624, %v583, %v584
        %v665 = vsel %vm624, %v582, %v583
        %v666 = vsel %vm624, %v581, %v582
        %v667 = vsel %vm624, %v580, %v581
        %v668 = vsel %vm624, %v579, %v580
        %v669 = vsel %vm624, %v623, %v579
        %v670 = vrot.slane %v578, 4
        %v671 = vrot.slane %v441, 4
        %v672 = vrot.slane %v668, 4
        %v673 = vrot.slane %v577, 4
        %v674 = vrot.slane %v442, 4
        %v675 = vrot.slane %v667, 4
        %v676 = vrot.slane %v576, 4
        %v677 = vrot.slane %v443, 4
        %v678 = vrot.slane %v666, 4
        %v679 = vrot.slane %v575, 4
        %v680 = vrot.slane %v444, 4
        %v681 = vrot.slane %v665, 4
        %v682 = vrot.slane %v574, 4
        %v683 = vrot.slane %v445, 4
        %v684 = vrot.slane %v664, 4
        %v685 = vrot.slane %v573, 4
        %v686 = vrot.slane %v446, 4
        %v687 = vrot.slane %v663, 4
        %v688 = vrot.slane %v572, 4
        %v689 = vrot.slane %v447, 4
        %v690 = vrot.slane %v662, 4
        %v691 = vrot.slane %v571, 4
        %v692 = vrot.slane %v448, 4
        %v693 = vrot.slane %v661, 4
        %v694 = vrot.slane %v570, 4
        %v695 = vrot.slane %v449, 4
        %v696 = vrot.slane %v660, 4
        %v697 = vrot.slane %v569, 4
        %v698 = vrot.slane %v450, 4
        %v699 = vrot.slane %v659, 4
        %v700 = vrot.slane %v568, 4
        %v701 = vrot.slane %v451, 4
        %v702 = vrot.slane %v658, 4
        %v703 = vrot.slane %v567, 4
        %v704 = vrot.slane %v452, 4
        %v705 = vrot.slane %v657, 4
        %v706 = vrot.slane %v566, 4
        %v707 = vrot.slane %v453, 4
        %v708 = vrot.slane %v656, 4
        %v709 = vrot.slane %v565, 4
        %v710 = vrot.slane %v454, 4
        %v711 = vrot.slane %v655, 4
        %v712 = vrot.slane %v564, 4
        %v713 = vrot.slane %v455, 4
        %v714 = vrot.slane %v654, 4
        %v715 = vrot.slane %v563, 4
        %v716 = vrot.slane %v456, 4
        %v717 = vrot.slane %v653, 4
        %v718 = vrot.slane %v562, 4
        %v719 = vrot.slane %v457, 4
        %v720 = vrot.slane %v652, 4
        %v721 = vrot.slane %v561, 4
        %v722 = vrot.slane %v458, 4
        %v723 = vrot.slane %v651, 4
        %v724 = vrot.slane %v560, 4
        %v725 = vrot.slane %v459, 4
        %v726 = vrot.slane %v650, 4
        %v727 = vrot.slane %v559, 4
        %v728 = vrot.slane %v460, 4
        %v729 = vrot.slane %v649, 4
        %v730 = vrot.slane %v558, 4
        %v731 = vrot.slane %v461, 4
        %v732 = vrot.slane %v648, 4
        %v733 = vrot.slane %v557, 4
        %v734 = vrot.slane %v462, 4
        %v735 = vrot.slane %v647, 4
        %v736 = vrot.slane %v556, 4
        %v737 = vrot.slane %v463, 4
        %v738 = vrot.slane %v646, 4
        %v739 = vrot.slane %v555, 4
        %v740 = vrot.slane %v464, 4
        %v741 = vrot.slane %v645, 4
        %v742 = vrot.slane %v554, 4
        %v743 = vrot.slane %v465, 4
        %v744 = vrot.slane %v644, 4
        %v745 = vrot.slane %v553, 4
        %v746 = vrot.slane %v466, 4
        %v747 = vrot.slane %v643, 4
        %v748 = vrot.slane %v552, 4
        %v749 = vrot.slane %v467, 4
        %v750 = vrot.slane %v642, 4
        %v751 = vrot.slane %v551, 4
        %v752 = vrot.slane %v468, 4
        %v753 = vrot.slane %v641, 4
        %v754 = vrot.slane %v550, 4
        %v755 = vrot.slane %v469, 4
        %v756 = vrot.slane %v640, 4
        %v757 = vrot.slane %v549, 4
        %v758 = vrot.slane %v470, 4
        %v759 = vrot.slane %v639, 4
        %v760 = vrot.slane %v548, 4
        %v761 = vrot.slane %v471, 4
        %v762 = vrot.slane %v638, 4
        %v763 = vrot.slane %v547, 4
        %v764 = vrot.slane %v472, 4
        %v765 = vrot.slane %v637, 4
        %v766 = vrot.slane %v546, 4
        %v767 = vrot.slane %v473, 4
        %v768 = vrot.slane %v636, 4
        %v769 = vrot.slane %v545, 4
        %v770 = vrot.slane %v474, 4
        %v771 = vrot.slane %v635, 4
        %v772 = vrot.slane %v544, 4
        %v773 = vrot.slane %v475, 4
        %v774 = vrot.slane %v634, 4
        %v775 = vrot.slane %v543, 4
        %v776 = vrot.slane %v476, 4
        %v777 = vrot.slane %v633, 4
        %v778 = vrot.slane %v542, 4
        %v779 = vrot.slane %v477, 4
        %v780 = vrot.slane %v632, 4
        %v781 = vrot.slane %v541, 4
        %v782 = vrot.slane %v478, 4
        %v783 = vrot.slane %v631, 4
        %v784 = vrot.slane %v540, 4
        %v785 = vrot.slane %v479, 4
        %v786 = vrot.slane %v630, 4
        %v787 = vrot.slane %v539, 4
        %v788 = vrot.slane %v480, 4
        %v789 = vrot.slane %v629, 4
        %v790 = vrot.slane %v538, 4
        %v791 = vrot.slane %v481, 4
        %v792 = vrot.slane %v628, 4
        %v793 = vrot.slane %v537, 4
        %v794 = vrot.slane %v482, 4
        %v795 = vrot.slane %v627, 4
        %v796 = vrot.slane %v536, 4
        %v797 = vrot.slane %v483, 4
        %v798 = vrot.slane %v626, 4
        %v799 = vrot.slane %v535, 4
        %v800 = vrot.slane %v484, 4
        %v801 = vrot.slane %v625, 4
        %v802 = vrot.slane %v534, 4
        %v803 = vrot.slane %v485, 4
        %v804 = vrot.slane %v669, 4
        %vm805 = vcmp.lt.s32.totalorder %v532, 4
        %v806 = vsel %vm805, %v799, %v802
        %v807 = vsel %vm805, %v800, %v803
        %v808 = vsel %vm805, %v801, %v804
        %v809 = vsel %vm805, %v796, %v799
        %v810 = vsel %vm805, %v797, %v800
        %v811 = vsel %vm805, %v798, %v801
        %v812 = vsel %vm805, %v793, %v796
        %v813 = vsel %vm805, %v794, %v797
        %v814 = vsel %vm805, %v795, %v798
        %v815 = vsel %vm805, %v790, %v793
        %v816 = vsel %vm805, %v791, %v794
        %v817 = vsel %vm805, %v792, %v795
        %v818 = vsel %vm805, %v787, %v790
        %v819 = vsel %vm805, %v788, %v791
        %v820 = vsel %vm805, %v789, %v792
        %v821 = vsel %vm805, %v784, %v787
        %v822 = vsel %vm805, %v785, %v788
        %v823 = vsel %vm805, %v786, %v789
        %v824 = vsel %vm805, %v781, %v784
        %v825 = vsel %vm805, %v782, %v785
        %v826 = vsel %vm805, %v783, %v786
        %v827 = vsel %vm805, %v778, %v781
        %v828 = vsel %vm805, %v779, %v782
        %v829 = vsel %vm805, %v780, %v783
        %v830 = vsel %vm805, %v775, %v778
        %v831 = vsel %vm805, %v776, %v779
        %v832 = vsel %vm805, %v777, %v780
        %v833 = vsel %vm805, %v772, %v775
        %v834 = vsel %vm805, %v773, %v776
        %v835 = vsel %vm805, %v774, %v777
        %v836 = vsel %vm805, %v769, %v772
        %v837 = vsel %vm805, %v770, %v773
        %v838 = vsel %vm805, %v771, %v774
        %v839 = vsel %vm805, %v766, %v769
        %v840 = vsel %vm805, %v767, %v770
        %v841 = vsel %vm805, %v768, %v771
        %v842 = vsel %vm805, %v763, %v766
        %v843 = vsel %vm805, %v764, %v767
        %v844 = vsel %vm805, %v765, %v768
        %v845 = vsel %vm805, %v760, %v763
        %v846 = vsel %vm805, %v761, %v764
        %v847 = vsel %vm805, %v762, %v765
        %v848 = vsel %vm805, %v757, %v760
        %v849 = vsel %vm805, %v758, %v761
        %v850 = vsel %vm805, %v759, %v762
        %v851 = vsel %vm805, %v754, %v757
        %v852 = vsel %vm805, %v755, %v758
        %v853 = vsel %vm805, %v756, %v759
        %v854 = vsel %vm805, %v751, %v754
        %v855 = vsel %vm805, %v752, %v755
        %v856 = vsel %vm805, %v753, %v756
        %v857 = vsel %vm805, %v748, %v751
        %v858 = vsel %vm805, %v749, %v752
        %v859 = vsel %vm805, %v750, %v753
        %v860 = vsel %vm805, %v745, %v748
        %v861 = vsel %vm805, %v746, %v749
        %v862 = vsel %vm805, %v747, %v750
        %v863 = vsel %vm805, %v742, %v745
        %v864 = vsel %vm805, %v743, %v746
        %v865 = vsel %vm805, %v744, %v747
        %v866 = vsel %vm805, %v739, %v742
        %v867 = vsel %vm805, %v740, %v743
        %v868 = vsel %vm805, %v741, %v744
        %v869 = vsel %vm805, %v736, %v739
        %v870 = vsel %vm805, %v737, %v740
        %v871 = vsel %vm805, %v738, %v741
        %v872 = vsel %vm805, %v733, %v736
        %v873 = vsel %vm805, %v734, %v737
        %v874 = vsel %vm805, %v735, %v738
        %v875 = vsel %vm805, %v730, %v733
        %v876 = vsel %vm805, %v731, %v734
        %v877 = vsel %vm805, %v732, %v735
        %v878 = vsel %vm805, %v727, %v730
        %v879 = vsel %vm805, %v728, %v731
        %v880 = vsel %vm805, %v729, %v732
        %v881 = vsel %vm805, %v724, %v727
        %v882 = vsel %vm805, %v725, %v728
        %v883 = vsel %vm805, %v726, %v729
        %v884 = vsel %vm805, %v721, %v724
        %v885 = vsel %vm805, %v722, %v725
        %v886 = vsel %vm805, %v723, %v726
        %v887 = vsel %vm805, %v718, %v721
        %v888 = vsel %vm805, %v719, %v722
        %v889 = vsel %vm805, %v720, %v723
        %v890 = vsel %vm805, %v715, %v718
        %v891 = vsel %vm805, %v716, %v719
        %v892 = vsel %vm805, %v717, %v720
        %v893 = vsel %vm805, %v712, %v715
        %v894 = vsel %vm805, %v713, %v716
        %v895 = vsel %vm805, %v714, %v717
        %v896 = vsel %vm805, %v709, %v712
        %v897 = vsel %vm805, %v710, %v713
        %v898 = vsel %vm805, %v711, %v714
        %v899 = vsel %vm805, %v706, %v709
        %v900 = vsel %vm805, %v707, %v710
        %v901 = vsel %vm805, %v708, %v711
        %v902 = vsel %vm805, %v703, %v706
        %v903 = vsel %vm805, %v704, %v707
        %v904 = vsel %vm805, %v705, %v708
        %v905 = vsel %vm805, %v700, %v703
        %v906 = vsel %vm805, %v701, %v704
        %v907 = vsel %vm805, %v702, %v705
        %v908 = vsel %vm805, %v697, %v700
        %v909 = vsel %vm805, %v698, %v701
        %v910 = vsel %vm805, %v699, %v702
        %v911 = vsel %vm805, %v694, %v697
        %v912 = vsel %vm805, %v695, %v698
        %v913 = vsel %vm805, %v696, %v699
        %v914 = vsel %vm805, %v691, %v694
        %v915 = vsel %vm805, %v692, %v695
        %v916 = vsel %vm805, %v693, %v696
        %v917 = vsel %vm805, %v688, %v691
        %v918 = vsel %vm805, %v689, %v692
        %v919 = vsel %vm805, %v690, %v693
        %v920 = vsel %vm805, %v685, %v688
        %v921 = vsel %vm805, %v686, %v689
        %v922 = vsel %vm805, %v687, %v690
        %v923 = vsel %vm805, %v682, %v685
        %v924 = vsel %vm805, %v683, %v686
        %v925 = vsel %vm805, %v684, %v687
        %v926 = vsel %vm805, %v679, %v682
        %v927 = vsel %vm805, %v680, %v683
        %v928 = vsel %vm805, %v681, %v684
        %v929 = vsel %vm805, %v676, %v679
        %v930 = vsel %vm805, %v677, %v680
        %v931 = vsel %vm805, %v678, %v681
        %v932 = vsel %vm805, %v673, %v676
        %v933 = vsel %vm805, %v674, %v677
        %v934 = vsel %vm805, %v675, %v678
        %v935 = vsel %vm805, %v670, %v673
        %v936 = vsel %vm805, %v671, %v674
        %v937 = vsel %vm805, %v672, %v675
        %v938 = vsel %vm805, %v802, %v670
        %v939 = vsel %vm805, %v803, %v671
        %v940 = vsel %vm805, %v804, %v672
        %v941 = vpack.c.bf16 %v806, %v809
        %v942 = vpack.c.bf16 %v807, %v810
        %v943 = vpack.c.bf16 %v808, %v811
        %v944 = vpack.c.bf16 %v935, %v938
        %v945 = vpack.c.bf16 %v936, %v939
        %v946 = vpack.c.bf16 %v937, %v940
        %v947 = vpack.c.bf16 %v929, %v932
        %v948 = vpack.c.bf16 %v930, %v933
        %v949 = vpack.c.bf16 %v931, %v934
        %v950 = vpack.c.bf16 %v923, %v926
        %v951 = vpack.c.bf16 %v924, %v927
        %v952 = vpack.c.bf16 %v925, %v928
        %v953 = vpack.c.bf16 %v917, %v920
        %v954 = vpack.c.bf16 %v918, %v921
        %v955 = vpack.c.bf16 %v919, %v922
        %v956 = vpack.c.bf16 %v911, %v914
        %v957 = vpack.c.bf16 %v912, %v915
        %v958 = vpack.c.bf16 %v913, %v916
        %v959 = vpack.c.bf16 %v905, %v908
        %v960 = vpack.c.bf16 %v906, %v909
        %v961 = vpack.c.bf16 %v907, %v910
        %v962 = vpack.c.bf16 %v899, %v902
        %v963 = vpack.c.bf16 %v900, %v903
        %v964 = vpack.c.bf16 %v901, %v904
        %v965 = vpack.c.bf16 %v893, %v896
        %v966 = vpack.c.bf16 %v894, %v897
        %v967 = vpack.c.bf16 %v895, %v898
        %v968 = vpack.c.bf16 %v887, %v890
        %v969 = vpack.c.bf16 %v888, %v891
        %v970 = vpack.c.bf16 %v889, %v892
        %v971 = vpack.c.bf16 %v881, %v884
        %v972 = vpack.c.bf16 %v882, %v885
        %v973 = vpack.c.bf16 %v883, %v886
        %v974 = vpack.c.bf16 %v875, %v878
        %v975 = vpack.c.bf16 %v876, %v879
        %v976 = vpack.c.bf16 %v877, %v880
        %v977 = vpack.c.bf16 %v869, %v872
        %v978 = vpack.c.bf16 %v870, %v873
        %v979 = vpack.c.bf16 %v871, %v874
        %v980 = vpack.c.bf16 %v863, %v866
        %v981 = vpack.c.bf16 %v864, %v867
        %v982 = vpack.c.bf16 %v865, %v868
        %v983 = vpack.c.bf16 %v857, %v860
        %v984 = vpack.c.bf16 %v858, %v861
        %v985 = vpack.c.bf16 %v859, %v862
        %v986 = vpack.c.bf16 %v851, %v854
        %v987 = vpack.c.bf16 %v852, %v855
        %v988 = vpack.c.bf16 %v853, %v856
        %v989 = vpack.c.bf16 %v845, %v848
        %v990 = vpack.c.bf16 %v846, %v849
        %v991 = vpack.c.bf16 %v847, %v850
        %v992 = vpack.c.bf16 %v839, %v842
        %v993 = vpack.c.bf16 %v840, %v843
        %v994 = vpack.c.bf16 %v841, %v844
        %v995 = vpack.c.bf16 %v833, %v836
        %v996 = vpack.c.bf16 %v834, %v837
        %v997 = vpack.c.bf16 %v835, %v838
        %v998 = vpack.c.bf16 %v827, %v830
        %v999 = vpack.c.bf16 %v828, %v831
        %v1000 = vpack.c.bf16 %v829, %v832
        %v1001 = vpack.c.bf16 %v821, %v824
        %v1002 = vpack.c.bf16 %v822, %v825
        %v1003 = vpack.c.bf16 %v823, %v826
        %v1004 = vpack.c.bf16 %v815, %v818
        %v1005 = vpack.c.bf16 %v816, %v819
        %v1006 = vpack.c.bf16 %v817, %v820
        %v1007 = vpack.c.bf16 %v812, %v812
        %v1008 = vpack.c.bf16 %v813, %v813
        %v1009 = vpack.c.bf16 %v814, %v814
        %v1010 = vld [vmem:[#allocation2] sm:$0xf]
        %v1011 = vld [vmem:[#allocation2 + $0x4] sm:$0xf]
        %v1012 = vld [vmem:[#allocation2 + $0x8] sm:$0xf]
        %v1013 = vld [vmem:[#allocation2 + $0xc] sm:$0xf]
        %v1014 = vld [vmem:[#allocation2 + $0x10] sm:$0xf]
        %v1015 = vld [vmem:[#allocation2 + $0x14] sm:$0xf]
        %v1016 = vld [vmem:[#allocation2 + $0x18] sm:$0xf]
        %v1017 = vld [vmem:[#allocation2 + $0x1c] sm:$0xf]
        %v1018 = vld [vmem:[#allocation2 + $0x20] sm:$0xf]
        %v1019 = vld [vmem:[#allocation2 + $0x24] sm:$0xf]
        %v1020 = vld [vmem:[#allocation2 + $0x28] sm:$0xf]
        %v1021 = vld [vmem:[#allocation2 + $0x2c] sm:$0xf]
        %v1022 = vld [vmem:[#allocation2 + $0x30] sm:$0xf]
        %v1023 = vld [vmem:[#allocation2 + $0x34] sm:$0xf]
        %v1024 = vld [vmem:[#allocation2 + $0x38] sm:$0xf]
        %v1025 = vld [vmem:[#allocation2 + $0x3c] sm:$0xf]
        %v1026 = vld [vmem:[#allocation2 + $0x40] sm:$0xf]
        %v1027 = vld [vmem:[#allocation2 + $0x44] sm:$0xf]
        %v1028 = vld [vmem:[#allocation2 + $0x48] sm:$0xf]
        %v1029 = vld [vmem:[#allocation2 + $0x4c] sm:$0xf]
        %v1030 = vld [vmem:[#allocation2 + $0x50] sm:$0xf]
        %v1031 = vld [vmem:[#allocation2 + $0x54] sm:$0xf]
        %v1032 = vld [vmem:[#allocation2 + $0x58] sm:$0xf]
        %v1033 = vld [vmem:[#allocation2 + $0x5c] sm:$0xf]
        %v1034 = vld [vmem:[#allocation2 + $0x60] sm:$0xf]
        %v1035 = vld [vmem:[#allocation2 + $0x64] sm:$0xf]
        %v1036 = vld [vmem:[#allocation2 + $0x68] sm:$0xf]
        %v1037 = vld [vmem:[#allocation2 + $0x6c] sm:$0xf]
        %v1038 = vld [vmem:[#allocation2 + $0x70] sm:$0xf]
        %v1039 = vld [vmem:[#allocation2 + $0x74] sm:$0xf]
        %v1040 = vld [vmem:[#allocation2 + $0x78] sm:$0xf]
        %v1041 = vld [vmem:[#allocation2 + $0x7c] sm:$0xf]
        %v1042 = vld [vmem:[#allocation2 + $0x80] sm:$0xf]
        %v1043 = vld [vmem:[#allocation2 + $0x84] sm:$0xf]
        %v1044 = vld [vmem:[#allocation2 + $0x88] sm:$0xf]
        %v1045 = vld [vmem:[#allocation2 + $0x8c] sm:$0xf]
        %v1046 = vld [vmem:[#allocation2 + $0x90] sm:$0xf]
        %v1047 = vld [vmem:[#allocation2 + $0x94] sm:$0xf]
        %v1048 = vld [vmem:[#allocation2 + $0x98] sm:$0xf]
        %v1049 = vld [vmem:[#allocation2 + $0x9c] sm:$0xf]
        %v1050 = vld [vmem:[#allocation2 + $0xa0] sm:$0xf]
        %v1051 = vld [vmem:[#allocation2 + $0xa4] sm:$0xf]
        %v1052 = vld [vmem:[#allocation2 + $0xa8] sm:$0xf]
        %v1053 = vld [vmem:[#allocation2 + $0xac] sm:$0xf]
        %v1054 = vld [vmem:[#allocation2 + $0xb0] sm:$0xf]
        %v1055 = vld [vmem:[#allocation2 + $0xb4] sm:$0xf]
        %v1056 = vld [vmem:[#allocation2 + $0xb8] sm:$0xf]
        %v1057 = vld [vmem:[#allocation2 + $0xbc] sm:$0xf]
        %v1058 = vpack.c.bf16 %v577, %v578
        %v1059 = vpack.c.bf16 %v442, %v441
        %v1060 = vpack.c.bf16 %v667, %v668
        %v1061 = vpack.c.bf16 %v575, %v576
        %v1062 = vpack.c.bf16 %v444, %v443
        %v1063 = vpack.c.bf16 %v665, %v666
        %v1064 = vpack.c.bf16 %v573, %v574
        %v1065 = vpack.c.bf16 %v446, %v445
        %v1066 = vpack.c.bf16 %v663, %v664
        %v1067 = vpack.c.bf16 %v571, %v572
        %v1068 = vpack.c.bf16 %v448, %v447
        %v1069 = vpack.c.bf16 %v661, %v662
        %v1070 = vpack.c.bf16 %v569, %v570
        %v1071 = vpack.c.bf16 %v450, %v449
        %v1072 = vpack.c.bf16 %v659, %v660
        %v1073 = vpack.c.bf16 %v567, %v568
        %v1074 = vpack.c.bf16 %v452, %v451
        %v1075 = vpack.c.bf16 %v657, %v658
        %v1076 = vpack.c.bf16 %v565, %v566
        %v1077 = vpack.c.bf16 %v454, %v453
        %v1078 = vpack.c.bf16 %v655, %v656
        %v1079 = vpack.c.bf16 %v563, %v564
        %v1080 = vpack.c.bf16 %v456, %v455
        %v1081 = vpack.c.bf16 %v653, %v654
        %v1082 = vpack.c.bf16 %v561, %v562
        %v1083 = vpack.c.bf16 %v458, %v457
        %v1084 = vpack.c.bf16 %v651, %v652
        %v1085 = vpack.c.bf16 %v559, %v560
        %v1086 = vpack.c.bf16 %v460, %v459
        %v1087 = vpack.c.bf16 %v649, %v650
        %v1088 = vpack.c.bf16 %v557, %v558
        %v1089 = vpack.c.bf16 %v462, %v461
        %v1090 = vpack.c.bf16 %v647, %v648
        %v1091 = vpack.c.bf16 %v555, %v556
        %v1092 = vpack.c.bf16 %v464, %v463
        %v1093 = vpack.c.bf16 %v645, %v646
        %v1094 = vpack.c.bf16 %v553, %v554
        %v1095 = vpack.c.bf16 %v466, %v465
        %v1096 = vpack.c.bf16 %v643, %v644
        %v1097 = vpack.c.bf16 %v551, %v552
        %v1098 = vpack.c.bf16 %v468, %v467
        %v1099 = vpack.c.bf16 %v641, %v642
        %v1100 = vpack.c.bf16 %v549, %v550
        %v1101 = vpack.c.bf16 %v470, %v469
        %v1102 = vpack.c.bf16 %v639, %v640
        %v1103 = vpack.c.bf16 %v547, %v548
        %v1104 = vpack.c.bf16 %v472, %v471
        %v1105 = vpack.c.bf16 %v637, %v638
        %v1106 = vpack.c.bf16 %v545, %v546
        %v1107 = vpack.c.bf16 %v474, %v473
        %v1108 = vpack.c.bf16 %v635, %v636
        %v1109 = vpack.c.bf16 %v543, %v544
        %v1110 = vpack.c.bf16 %v476, %v475
        %v1111 = vpack.c.bf16 %v633, %v634
        %v1112 = vpack.c.bf16 %v541, %v542
        %v1113 = vpack.c.bf16 %v478, %v477
        %v1114 = vpack.c.bf16 %v631, %v632
        %v1115 = vpack.c.bf16 %v539, %v540
        %v1116 = vpack.c.bf16 %v480, %v479
        %v1117 = vpack.c.bf16 %v629, %v630
        %v1118 = vpack.c.bf16 %v537, %v538
        %v1119 = vpack.c.bf16 %v482, %v481
        %v1120 = vpack.c.bf16 %v627, %v628
        %v1121 = vpack.c.bf16 %v535, %v536
        %v1122 = vpack.c.bf16 %v484, %v483
        %v1123 = vpack.c.bf16 %v625, %v626
        %v1124 = vpack.c.bf16 %v534, %v534
        %v1125 = vpack.c.bf16 %v485, %v485
        %v1126 = vpack.c.bf16 %v669, %v669
        %s1127 = scalar_lea.vmem [#allocation2], 192
        %v1128 = vld [vmem:[%s1127] sm:$0xf]
        %v1129 = vld [vmem:[%s1127 + $0x4] sm:$0xf]
        %v1130 = vld [vmem:[%s1127 + $0x8] sm:$0xf]
        %v1131 = vld [vmem:[%s1127 + $0xc] sm:$0xf]
        %v1132 = vld [vmem:[%s1127 + $0x10] sm:$0xf]
        %v1133 = vld [vmem:[%s1127 + $0x14] sm:$0xf]
        %v1134 = vld [vmem:[%s1127 + $0x18] sm:$0xf]
        %v1135 = vld [vmem:[%s1127 + $0x1c] sm:$0xf]
        %v1136 = vld [vmem:[%s1127 + $0x20] sm:$0xf]
        %v1137 = vld [vmem:[%s1127 + $0x24] sm:$0xf]
        %v1138 = vld [vmem:[%s1127 + $0x28] sm:$0xf]
        %v1139 = vld [vmem:[%s1127 + $0x2c] sm:$0xf]
        %v1140 = vld [vmem:[%s1127 + $0x30] sm:$0xf]
        %v1141 = vld [vmem:[%s1127 + $0x34] sm:$0xf]
        %v1142 = vld [vmem:[%s1127 + $0x38] sm:$0xf]
        %v1143 = vld [vmem:[%s1127 + $0x3c] sm:$0xf]
        %v1144 = vld [vmem:[%s1127 + $0x40] sm:$0xf]
        %v1145 = vld [vmem:[%s1127 + $0x44] sm:$0xf]
        %v1146 = vld [vmem:[%s1127 + $0x48] sm:$0xf]
        %v1147 = vld [vmem:[%s1127 + $0x4c] sm:$0xf]
        %v1148 = vld [vmem:[%s1127 + $0x50] sm:$0xf]
        %v1149 = vld [vmem:[%s1127 + $0x54] sm:$0xf]
        %v1150 = vld [vmem:[%s1127 + $0x58] sm:$0xf]
        %v1151 = vld [vmem:[%s1127 + $0x5c] sm:$0xf]
        %v1152 = vld [vmem:[%s1127 + $0x60] sm:$0xf]
        %v1153 = vld [vmem:[%s1127 + $0x64] sm:$0xf]
        %v1154 = vld [vmem:[%s1127 + $0x68] sm:$0xf]
        %v1155 = vld [vmem:[%s1127 + $0x6c] sm:$0xf]
        %v1156 = vld [vmem:[%s1127 + $0x70] sm:$0xf]
        %v1157 = vld [vmem:[%s1127 + $0x74] sm:$0xf]
        %v1158 = vld [vmem:[%s1127 + $0x78] sm:$0xf]
        %v1159 = vld [vmem:[%s1127 + $0x7c] sm:$0xf]
        %v1160 = vld [vmem:[%s1127 + $0x80] sm:$0xf]
        %v1161 = vld [vmem:[%s1127 + $0x84] sm:$0xf]
        %v1162 = vld [vmem:[%s1127 + $0x88] sm:$0xf]
        %v1163 = vld [vmem:[%s1127 + $0x8c] sm:$0xf]
        %v1164 = vld [vmem:[%s1127 + $0x90] sm:$0xf]
        %v1165 = vld [vmem:[%s1127 + $0x94] sm:$0xf]
        %v1166 = vld [vmem:[%s1127 + $0x98] sm:$0xf]
        %v1167 = vld [vmem:[%s1127 + $0x9c] sm:$0xf]
        %v1168 = vld [vmem:[%s1127 + $0xa0] sm:$0xf]
        %v1169 = vld [vmem:[%s1127 + $0xa4] sm:$0xf]
        %v1170 = vld [vmem:[%s1127 + $0xa8] sm:$0xf]
        %v1171 = vld [vmem:[%s1127 + $0xac] sm:$0xf]
        %v1172 = vld [vmem:[%s1127 + $0xb0] sm:$0xf]
        %v1173 = vld [vmem:[%s1127 + $0xb4] sm:$0xf]
        %v1174 = vld [vmem:[%s1127 + $0xb8] sm:$0xf]
        %v1175 = vld [vmem:[%s1127 + $0xbc] sm:$0xf]
        %v1224 = vunpack.c.l.b16 %v1128
        %v1225 = vunpack.c.l.b16 %v1129
        %v1226 = vunpack.c.l.b16 %v1130
        %v1227 = vunpack.c.l.b16 %v1131
        %v1228 = vunpack.c.l.b16 %v1132
        %v1229 = vunpack.c.l.b16 %v1133
        %v1230 = vunpack.c.l.b16 %v1134
        %v1231 = vunpack.c.l.b16 %v1135
        %v1232 = vunpack.c.l.b16 %v1136
        %v1233 = vunpack.c.l.b16 %v1137
        %v1234 = vunpack.c.l.b16 %v1138
        %v1235 = vunpack.c.l.b16 %v1139
        %v1236 = vunpack.c.l.b16 %v1140
        %v1237 = vunpack.c.l.b16 %v1141
        %v1238 = vunpack.c.l.b16 %v1142
        %v1239 = vunpack.c.l.b16 %v1143
        %v1240 = vunpack.c.l.b16 %v1144
        %v1241 = vunpack.c.l.b16 %v1145
        %v1242 = vunpack.c.l.b16 %v1146
        %v1243 = vunpack.c.l.b16 %v1147
        %v1244 = vunpack.c.l.b16 %v1148
        %v1245 = vunpack.c.l.b16 %v1149
        %v1246 = vunpack.c.l.b16 %v1150
        %v1247 = vunpack.c.l.b16 %v1151
        %v1248 = vunpack.c.l.b16 %v1152
        %v1249 = vunpack.c.l.b16 %v1153
        %v1250 = vunpack.c.l.b16 %v1154
        %v1251 = vunpack.c.l.b16 %v1155
        %v1252 = vunpack.c.l.b16 %v1156
        %v1253 = vunpack.c.l.b16 %v1157
        %v1254 = vunpack.c.l.b16 %v1158
        %v1255 = vunpack.c.l.b16 %v1159
        %v1256 = vunpack.c.l.b16 %v1160
        %v1257 = vunpack.c.l.b16 %v1161
        %v1258 = vunpack.c.l.b16 %v1162
        %v1259 = vunpack.c.l.b16 %v1163
        %v1260 = vunpack.c.l.b16 %v1164
        %v1261 = vunpack.c.l.b16 %v1165
        %v1262 = vunpack.c.l.b16 %v1166
        %v1263 = vunpack.c.l.b16 %v1167
        %v1264 = vunpack.c.l.b16 %v1168
        %v1265 = vunpack.c.l.b16 %v1169
        %v1266 = vunpack.c.l.b16 %v1170
        %v1267 = vunpack.c.l.b16 %v1171
        %v1268 = vunpack.c.l.b16 %v1172
        %v1269 = vunpack.c.l.b16 %v1173
        %v1270 = vunpack.c.l.b16 %v1174
        %v1271 = vunpack.c.l.b16 %v1175
        %v1272 = vpack.c.b16 %v1225, %v1224
        %v1273 = vpack.c.b16 %v1227, %v1226
        %v1274 = vpack.c.b16 %v1229, %v1228
        %v1275 = vpack.c.b16 %v1231, %v1230
        %v1276 = vpack.c.b16 %v1233, %v1232
        %v1277 = vpack.c.b16 %v1235, %v1234
        %v1278 = vpack.c.b16 %v1237, %v1236
        %v1279 = vpack.c.b16 %v1239, %v1238
        %v1280 = vpack.c.b16 %v1241, %v1240
        %v1281 = vpack.c.b16 %v1243, %v1242
        %v1282 = vpack.c.b16 %v1245, %v1244
        %v1283 = vpack.c.b16 %v1247, %v1246
        %v1284 = vpack.c.b16 %v1249, %v1248
        %v1285 = vpack.c.b16 %v1251, %v1250
        %v1286 = vpack.c.b16 %v1253, %v1252
        %v1287 = vpack.c.b16 %v1255, %v1254
        %v1288 = vpack.c.b16 %v1257, %v1256
        %v1289 = vpack.c.b16 %v1259, %v1258
        %v1290 = vpack.c.b16 %v1261, %v1260
        %v1291 = vpack.c.b16 %v1263, %v1262
        %v1292 = vpack.c.b16 %v1265, %v1264
        %v1293 = vpack.c.b16 %v1267, %v1266
        %v1294 = vpack.c.b16 %v1269, %v1268
        %v1295 = vpack.c.b16 %v1271, %v1270
        %1320 = vmatprep.subr.bf16.mxu0 0
        %1321 = vmatpush1.bf16.msra.mxu0 %v1272
        %1322 = vmatprep.subr.bf16.mxu0 0
        %1323 = vmatpush1.bf16.msra.mxu0 %v1273
        %1324 = vmatprep.subr.bf16.mxu0 0
        %1325 = vmatpush1.bf16.msra.mxu0 %v1274
        %1326 = vmatprep.subr.bf16.mxu0 0
        %1327 = vmatpush1.bf16.msra.mxu0 %v1275
        %1328 = vmatprep.subr.bf16.mxu0 0
        %1329 = vmatpush1.bf16.msra.mxu0 %v1276
        %1330 = vmatprep.subr.bf16.mxu0 0
        %1331 = vmatpush1.bf16.msra.mxu0 %v1277
        %1332 = vmatprep.subr.bf16.mxu0 0
        %1333 = vmatpush1.bf16.msra.mxu0 %v1278
        %1334 = vmatprep.subr.bf16.mxu0 0
        %1335 = vmatpush1.bf16.msra.mxu0 %v1279
        %1336 = vmatprep.subr.bf16.mxu0 0
        %1337 = vmatpush1.bf16.msra.mxu0 %v1280
        %1338 = vmatprep.subr.bf16.mxu0 0
        %1339 = vmatpush1.bf16.msra.mxu0 %v1281
        %1340 = vmatprep.subr.bf16.mxu0 0
        %1341 = vmatpush1.bf16.msra.mxu0 %v1282
        %1342 = vmatprep.subr.bf16.mxu0 0
        %1343 = vmatpush1.bf16.msra.mxu0 %v1283
        %1344 = vmatprep.subr.bf16.mxu0 0
        %1345 = vmatpush1.bf16.msra.mxu0 %v1284
        %1346 = vmatprep.subr.bf16.mxu0 0
        %1347 = vmatpush1.bf16.msra.mxu0 %v1285
        %1348 = vmatprep.subr.bf16.mxu0 0
        %1349 = vmatpush1.bf16.msra.mxu0 %v1286
        %1350 = vmatprep.subr.bf16.mxu0 0
        %1351 = vmatpush1.bf16.msra.mxu0 %v1287
        %1352 = vmatprep.mubr.bf16.mxu0 %v1059
        %1353 = vmatmul.mubr.bf16.gmra.mrb[0].mxu0 %v1058
        %v1354 = vpop.f32.mrb[0].mxu0
        %v1355 = vadd.f32 0.0, %v1354
        %v1356 = vpop.f32.mrb[0].mxu0
        %v1357 = vpop.f32.mrb[0].mxu0
        %v1358 = vadd.f32 0.0, %v1357
        %v1359 = vpop.f32.mrb[0].mxu0
        %1360 = vmatprep.mubr.bf16.mxu0 %v1062
        %1361 = vmatmul.mubr.bf16.gmra.mrb[0].mxu0 %v1061
        %v1362 = vpop.f32.mrb[0].mxu0
        %v1363 = vadd.f32 0.0, %v1362
        %v1364 = vpop.f32.mrb[0].mxu0
        %v1365 = vpop.f32.mrb[0].mxu0
        %v1366 = vadd.f32 0.0, %v1365
        %v1367 = vpop.f32.mrb[0].mxu0
        %1368 = vmatprep.mubr.bf16.mxu0 %v1065
        %1369 = vmatmul.mubr.bf16.gmra.mrb[0].mxu0 %v1064
        %v1370 = vpop.f32.mrb[0].mxu0
        %v1371 = vadd.f32 0.0, %v1370
        %v1372 = vpop.f32.mrb[0].mxu0
        %v1373 = vpop.f32.mrb[0].mxu0
        %v1374 = vadd.f32 0.0, %v1373
        %v1375 = vpop.f32.mrb[0].mxu0
        %1376 = vmatprep.mubr.bf16.mxu0 %v1068
        %1377 = vmatmul.mubr.bf16.gmra.mrb[0].mxu0 %v1067
        %v1378 = vpop.f32.mrb[0].mxu0
        %v1379 = vadd.f32 0.0, %v1378
        %v1380 = vpop.f32.mrb[0].mxu0
        %v1381 = vpop.f32.mrb[0].mxu0
        %v1382 = vadd.f32 0.0, %v1381
        %v1383 = vpop.f32.mrb[0].mxu0
        %1384 = vmatprep.mubr.bf16.mxu0 %v1071
        %1385 = vmatmul.mubr.bf16.gmra.mrb[0].mxu0 %v1070
        %v1386 = vpop.f32.mrb[0].mxu0
        %v1387 = vadd.f32 0.0, %v1386
        %v1388 = vpop.f32.mrb[0].mxu0
        %v1389 = vpop.f32.mrb[0].mxu0
        %v1390 = vadd.f32 0.0, %v1389
        %v1391 = vpop.f32.mrb[0].mxu0
        %1392 = vmatprep.mubr.bf16.mxu0 %v1074
        %1393 = vmatmul.mubr.bf16.gmra.mrb[0].mxu0 %v1073
        %v1394 = vpop.f32.mrb[0].mxu0
        %v1395 = vadd.f32 0.0, %v1394
        %v1396 = vpop.f32.mrb[0].mxu0
        %v1397 = vpop.f32.mrb[0].mxu0
        %v1398 = vadd.f32 0.0, %v1397
        %v1399 = vpop.f32.mrb[0].mxu0
        %1400 = vmatprep.mubr.bf16.mxu0 %v1077
        %1401 = vmatmul.mubr.bf16.gmra.mrb[0].mxu0 %v1076
        %v1402 = vpop.f32.mrb[0].mxu0
        %v1403 = vadd.f32 0.0, %v1402
        %v1404 = vpop.f32.mrb[0].mxu0
        %v1405 = vpop.f32.mrb[0].mxu0
        %v1406 = vadd.f32 0.0, %v1405
        %v1407 = vpop.f32.mrb[0].mxu0
        %1408 = vmatprep.mubr.bf16.mxu0 %v1080
        %1409 = vmatmul.mubr.bf16.gmra.mrb[0].mxu0 %v1079
        %v1410 = vpop.f32.mrb[0].mxu0
        %v1411 = vadd.f32 0.0, %v1410
        %v1412 = vpop.f32.mrb[0].mxu0
        %v1413 = vpop.f32.mrb[0].mxu0
        %v1414 = vadd.f32 0.0, %v1413
        %v1415 = vpop.f32.mrb[0].mxu0
        %1416 = vmatprep.mubr.bf16.mxu0 %v1083
        %1417 = vmatmul.mubr.bf16.gmra.mrb[0].mxu0 %v1082
        %v1418 = vpop.f32.mrb[0].mxu0
        %v1419 = vadd.f32 0.0, %v1418
        %v1420 = vpop.f32.mrb[0].mxu0
        %v1421 = vpop.f32.mrb[0].mxu0
        %v1422 = vadd.f32 0.0, %v1421
        %v1423 = vpop.f32.mrb[0].mxu0
        %1424 = vmatprep.mubr.bf16.mxu0 %v1086
        %1425 = vmatmul.mubr.bf16.gmra.mrb[0].mxu0 %v1085
        %v1426 = vpop.f32.mrb[0].mxu0
        %v1427 = vadd.f32 0.0, %v1426
        %v1428 = vpop.f32.mrb[0].mxu0
        %v1429 = vpop.f32.mrb[0].mxu0
        %v1430 = vadd.f32 0.0, %v1429
        %v1431 = vpop.f32.mrb[0].mxu0
        %1432 = vmatprep.mubr.bf16.mxu0 %v1089
        %1433 = vmatmul.mubr.bf16.gmra.mrb[0].mxu0 %v1088
        %v1434 = vpop.f32.mrb[0].mxu0
        %v1435 = vadd.f32 0.0, %v1434
        %v1436 = vpop.f32.mrb[0].mxu0
        %v1437 = vpop.f32.mrb[0].mxu0
        %v1438 = vadd.f32 0.0, %v1437
        %v1439 = vpop.f32.mrb[0].mxu0
        %1440 = vmatprep.mubr.bf16.mxu0 %v1092
        %1441 = vmatmul.mubr.bf16.gmra.mrb[0].mxu0 %v1091
        %v1442 = vpop.f32.mrb[0].mxu0
        %v1443 = vadd.f32 0.0, %v1442
        %v1444 = vpop.f32.mrb[0].mxu0
        %v1445 = vpop.f32.mrb[0].mxu0
        %v1446 = vadd.f32 0.0, %v1445
        %v1447 = vpop.f32.mrb[0].mxu0
        %1448 = vmatprep.mubr.bf16.mxu0 %v1095
        %1449 = vmatmul.mubr.bf16.gmra.mrb[0].mxu0 %v1094
        %v1450 = vpop.f32.mrb[0].mxu0
        %v1451 = vadd.f32 0.0, %v1450
        %v1452 = vpop.f32.mrb[0].mxu0
        %v1453 = vpop.f32.mrb[0].mxu0
        %v1454 = vadd.f32 0.0, %v1453
        %v1455 = vpop.f32.mrb[0].mxu0
        %1456 = vmatprep.mubr.bf16.mxu0 %v1098
        %1457 = vmatmul.mubr.bf16.gmra.mrb[0].mxu0 %v1097
        %v1458 = vpop.f32.mrb[0].mxu0
        %v1459 = vadd.f32 0.0, %v1458
        %v1460 = vpop.f32.mrb[0].mxu0
        %v1461 = vpop.f32.mrb[0].mxu0
        %v1462 = vadd.f32 0.0, %v1461
        %v1463 = vpop.f32.mrb[0].mxu0
        %1464 = vmatprep.mubr.bf16.mxu0 %v1101
        %1465 = vmatmul.mubr.bf16.gmra.mrb[0].mxu0 %v1100
        %v1466 = vpop.f32.mrb[0].mxu0
        %v1467 = vadd.f32 0.0, %v1466
        %v1468 = vpop.f32.mrb[0].mxu0
        %v1469 = vpop.f32.mrb[0].mxu0
        %v1470 = vadd.f32 0.0, %v1469
        %v1471 = vpop.f32.mrb[0].mxu0
        %1472 = vmatprep.mubr.bf16.mxu0 %v1104
        %1473 = vmatmul.mubr.bf16.gmra.mrb[0].mxu0 %v1103
        %v1474 = vpop.f32.mrb[0].mxu0
        %v1475 = vadd.f32 0.0, %v1474
        %v1476 = vpop.f32.mrb[0].mxu0
        %v1477 = vpop.f32.mrb[0].mxu0
        %v1478 = vadd.f32 0.0, %v1477
        %v1479 = vpop.f32.mrb[0].mxu0
        %1480 = vmatprep.mubr.bf16.mxu0 %v1107
        %1481 = vmatmul.mubr.bf16.gmra.mrb[0].mxu0 %v1106
        %v1482 = vpop.f32.mrb[0].mxu0
        %v1483 = vadd.f32 0.0, %v1482
        %v1484 = vpop.f32.mrb[0].mxu0
        %v1485 = vpop.f32.mrb[0].mxu0
        %v1486 = vadd.f32 0.0, %v1485
        %v1487 = vpop.f32.mrb[0].mxu0
        %1488 = vmatprep.mubr.bf16.mxu0 %v1110
        %1489 = vmatmul.mubr.bf16.gmra.mrb[0].mxu0 %v1109
        %v1490 = vpop.f32.mrb[0].mxu0
        %v1491 = vadd.f32 0.0, %v1490
        %v1492 = vpop.f32.mrb[0].mxu0
        %v1493 = vpop.f32.mrb[0].mxu0
        %v1494 = vadd.f32 0.0, %v1493
        %v1495 = vpop.f32.mrb[0].mxu0
        %1496 = vmatprep.mubr.bf16.mxu0 %v1113
        %1497 = vmatmul.mubr.bf16.gmra.mrb[0].mxu0 %v1112
        %v1498 = vpop.f32.mrb[0].mxu0
        %v1499 = vadd.f32 0.0, %v1498
        %v1500 = vpop.f32.mrb[0].mxu0
        %v1501 = vpop.f32.mrb[0].mxu0
        %v1502 = vadd.f32 0.0, %v1501
        %v1503 = vpop.f32.mrb[0].mxu0
        %1504 = vmatprep.mubr.bf16.mxu0 %v1116
        %1505 = vmatmul.mubr.bf16.gmra.mrb[0].mxu0 %v1115
        %v1506 = vpop.f32.mrb[0].mxu0
        %v1507 = vadd.f32 0.0, %v1506
        %v1508 = vpop.f32.mrb[0].mxu0
        %v1509 = vpop.f32.mrb[0].mxu0
        %v1510 = vadd.f32 0.0, %v1509
        %v1511 = vpop.f32.mrb[0].mxu0
        %1512 = vmatprep.mubr.bf16.mxu0 %v1119
        %1513 = vmatmul.mubr.bf16.gmra.mrb[0].mxu0 %v1118
        %v1514 = vpop.f32.mrb[0].mxu0
        %v1515 = vadd.f32 0.0, %v1514
        %v1516 = vpop.f32.mrb[0].mxu0
        %v1517 = vpop.f32.mrb[0].mxu0
        %v1518 = vadd.f32 0.0, %v1517
        %v1519 = vpop.f32.mrb[0].mxu0
        %1520 = vmatprep.mubr.bf16.mxu0 %v1122
        %1521 = vmatmul.mubr.bf16.gmra.mrb[0].mxu0 %v1121
        %v1522 = vpop.f32.mrb[0].mxu0
        %v1523 = vadd.f32 0.0, %v1522
        %v1524 = vpop.f32.mrb[0].mxu0
        %v1525 = vpop.f32.mrb[0].mxu0
        %v1526 = vadd.f32 0.0, %v1525
        %v1527 = vpop.f32.mrb[0].mxu0
        %1528 = vmatprep.mubr.bf16.mxu0 %v1125
        %1529 = vmatmul.mubr.bf16.gmra.mrb[0].mxu0 %v1124
        %v1530 = vpop.f32.mrb[0].mxu0
        %v1531 = vadd.f32 0.0, %v1530
        %v1532 = vpop.f32.mrb[0].mxu0
        %v1533 = vpop.f32.mrb[0].mxu0
        %v1534 = vpop.f32.mrb[0].mxu0
        %1535 = vdwg.mxu0
        %1536 = vmatprep.subr.bf16.mxu0 0
        %1537 = vmatpush1.bf16.msra.mxu0 %v1288
        %1538 = vmatprep.subr.bf16.mxu0 0
        %1539 = vmatpush1.bf16.msra.mxu0 %v1289
        %1540 = vmatprep.subr.bf16.mxu0 0
        %1541 = vmatpush1.bf16.msra.mxu0 %v1290
        %1542 = vmatprep.subr.bf16.mxu0 0
        %1543 = vmatpush1.bf16.msra.mxu0 %v1291
        %1544 = vmatprep.subr.bf16.mxu0 0
        %1545 = vmatpush1.bf16.msra.mxu0 %v1292
        %1546 = vmatprep.subr.bf16.mxu0 0
        %1547 = vmatpush1.bf16.msra.mxu0 %v1293
        %1548 = vmatprep.subr.bf16.mxu0 0
        %1549 = vmatpush1.bf16.msra.mxu0 %v1294
        %1550 = vmatprep.subr.bf16.mxu0 0
        %1551 = vmatpush1.bf16.msra.mxu0 %v1295
        %1552 = vmatprep.subr.bf16.mxu0 0
        %1553 = vmatpush1.bf16.msra.mxu0 0
        %1554 = vmatprep.subr.bf16.mxu0 0
        %1555 = vmatpush1.bf16.msra.mxu0 0
        %1556 = vmatprep.subr.bf16.mxu0 0
        %1557 = vmatpush1.bf16.msra.mxu0 0
        %1558 = vmatprep.subr.bf16.mxu0 0
        %1559 = vmatpush1.bf16.msra.mxu0 0
        %1560 = vmatprep.subr.bf16.mxu0 0
        %1561 = vmatpush1.bf16.msra.mxu0 0
        %1562 = vmatprep.subr.bf16.mxu0 0
        %1563 = vmatpush1.bf16.msra.mxu0 0
        %1564 = vmatprep.subr.bf16.mxu0 0
        %1565 = vmatpush1.bf16.msra.mxu0 0
        %1566 = vmatprep.subr.bf16.mxu0 0
        %1567 = vmatpush1.bf16.msra.mxu0 0
        %1568 = vmatprep.mubr.bf16.mxu0 0
        %1569 = vmatmul.mubr.bf16.gmra.mrb[0].mxu0 %v1060
        %v1570 = vpop.f32.mrb[0].mxu0
        %v1571 = vadd.f32 %v1355, %v1570
        %v1572 = vpop.f32.mrb[0].mxu0
        %v1573 = vpop.f32.mrb[0].mxu0
        %v1574 = vadd.f32 %v1358, %v1573
        %v1575 = vpop.f32.mrb[0].mxu0
        %1576 = vmatprep.mubr.bf16.mxu0 0
        %1577 = vmatmul.mubr.bf16.gmra.mrb[0].mxu0 %v1063
        %v1578 = vpop.f32.mrb[0].mxu0
        %v1579 = vadd.f32 %v1363, %v1578
        %v1580 = vpop.f32.mrb[0].mxu0
        %v1581 = vpop.f32.mrb[0].mxu0
        %v1582 = vadd.f32 %v1366, %v1581
        %v1583 = vpop.f32.mrb[0].mxu0
        %1584 = vmatprep.mubr.bf16.mxu0 0
        %1585 = vmatmul.mubr.bf16.gmra.mrb[0].mxu0 %v1066
        %v1586 = vpop.f32.mrb[0].mxu0
        %v1587 = vadd.f32 %v1371, %v1586
        %v1588 = vpop.f32.mrb[0].mxu0
        %v1589 = vpop.f32.mrb[0].mxu0
        %v1590 = vadd.f32 %v1374, %v1589
        %v1591 = vpop.f32.mrb[0].mxu0
        %1592 = vmatprep.mubr.bf16.mxu0 0
        %1593 = vmatmul.mubr.bf16.gmra.mrb[0].mxu0 %v1069
        %v1594 = vpop.f32.mrb[0].mxu0
        %v1595 = vadd.f32 %v1379, %v1594
        %v1596 = vpop.f32.mrb[0].mxu0
        %v1597 = vpop.f32.mrb[0].mxu0
        %v1598 = vadd.f32 %v1382, %v1597
        %v1599 = vpop.f32.mrb[0].mxu0
        %1600 = vmatprep.mubr.bf16.mxu0 0
        %1601 = vmatmul.mubr.bf16.gmra.mrb[0].mxu0 %v1072
        %v1602 = vpop.f32.mrb[0].mxu0
        %v1603 = vadd.f32 %v1387, %v1602
        %v1604 = vpop.f32.mrb[0].mxu0
        %v1605 = vpop.f32.mrb[0].mxu0
        %v1606 = vadd.f32 %v1390, %v1605
        %v1607 = vpop.f32.mrb[0].mxu0
        %1608 = vmatprep.mubr.bf16.mxu0 0
        %1609 = vmatmul.mubr.bf16.gmra.mrb[0].mxu0 %v1075
        %v1610 = vpop.f32.mrb[0].mxu0
        %v1611 = vadd.f32 %v1395, %v1610
        %v1612 = vpop.f32.mrb[0].mxu0
        %v1613 = vpop.f32.mrb[0].mxu0
        %v1614 = vadd.f32 %v1398, %v1613
        %v1615 = vpop.f32.mrb[0].mxu0
        %1616 = vmatprep.mubr.bf16.mxu0 0
        %1617 = vmatmul.mubr.bf16.gmra.mrb[0].mxu0 %v1078
        %v1618 = vpop.f32.mrb[0].mxu0
        %v1619 = vadd.f32 %v1403, %v1618
        %v1620 = vpop.f32.mrb[0].mxu0
        %v1621 = vpop.f32.mrb[0].mxu0
        %v1622 = vadd.f32 %v1406, %v1621
        %v1623 = vpop.f32.mrb[0].mxu0
        %1624 = vmatprep.mubr.bf16.mxu0 0
        %1625 = vmatmul.mubr.bf16.gmra.mrb[0].mxu0 %v1081
        %v1626 = vpop.f32.mrb[0].mxu0
        %v1627 = vadd.f32 %v1411, %v1626
        %v1628 = vpop.f32.mrb[0].mxu0
        %v1629 = vpop.f32.mrb[0].mxu0
        %v1630 = vadd.f32 %v1414, %v1629
        %v1631 = vpop.f32.mrb[0].mxu0
        %1632 = vmatprep.mubr.bf16.mxu0 0
        %1633 = vmatmul.mubr.bf16.gmra.mrb[0].mxu0 %v1084
        %v1634 = vpop.f32.mrb[0].mxu0
        %v1635 = vadd.f32 %v1419, %v1634
        %v1636 = vpop.f32.mrb[0].mxu0
        %v1637 = vpop.f32.mrb[0].mxu0
        %v1638 = vadd.f32 %v1422, %v1637
        %v1639 = vpop.f32.mrb[0].mxu0
        %1640 = vmatprep.mubr.bf16.mxu0 0
        %1641 = vmatmul.mubr.bf16.gmra.mrb[0].mxu0 %v1087
        %v1642 = vpop.f32.mrb[0].mxu0
        %v1643 = vadd.f32 %v1427, %v1642
        %v1644 = vpop.f32.mrb[0].mxu0
        %v1645 = vpop.f32.mrb[0].mxu0
        %v1646 = vadd.f32 %v1430, %v1645
        %v1647 = vpop.f32.mrb[0].mxu0
        %1648 = vmatprep.mubr.bf16.mxu0 0
        %1649 = vmatmul.mubr.bf16.gmra.mrb[0].mxu0 %v1090
        %v1650 = vpop.f32.mrb[0].mxu0
        %v1651 = vadd.f32 %v1435, %v1650
        %v1652 = vpop.f32.mrb[0].mxu0
        %v1653 = vpop.f32.mrb[0].mxu0
        %v1654 = vadd.f32 %v1438, %v1653
        %v1655 = vpop.f32.mrb[0].mxu0
        %1656 = vmatprep.mubr.bf16.mxu0 0
        %1657 = vmatmul.mubr.bf16.gmra.mrb[0].mxu0 %v1093
        %v1658 = vpop.f32.mrb[0].mxu0
        %v1659 = vadd.f32 %v1443, %v1658
        %v1660 = vpop.f32.mrb[0].mxu0
        %v1661 = vpop.f32.mrb[0].mxu0
        %v1662 = vadd.f32 %v1446, %v1661
        %v1663 = vpop.f32.mrb[0].mxu0
        %1664 = vmatprep.mubr.bf16.mxu0 0
        %1665 = vmatmul.mubr.bf16.gmra.mrb[0].mxu0 %v1096
        %v1666 = vpop.f32.mrb[0].mxu0
        %v1667 = vadd.f32 %v1451, %v1666
        %v1668 = vpop.f32.mrb[0].mxu0
        %v1669 = vpop.f32.mrb[0].mxu0
        %v1670 = vadd.f32 %v1454, %v1669
        %v1671 = vpop.f32.mrb[0].mxu0
        %1672 = vmatprep.mubr.bf16.mxu0 0
        %1673 = vmatmul.mubr.bf16.gmra.mrb[0].mxu0 %v1099
        %v1674 = vpop.f32.mrb[0].mxu0
        %v1675 = vadd.f32 %v1459, %v1674
        %v1676 = vpop.f32.mrb[0].mxu0
        %v1677 = vpop.f32.mrb[0].mxu0
        %v1678 = vadd.f32 %v1462, %v1677
        %v1679 = vpop.f32.mrb[0].mxu0
        %1680 = vmatprep.mubr.bf16.mxu0 0
        %1681 = vmatmul.mubr.bf16.gmra.mrb[0].mxu0 %v1102
        %v1682 = vpop.f32.mrb[0].mxu0
        %v1683 = vadd.f32 %v1467, %v1682
        %v1684 = vpop.f32.mrb[0].mxu0
        %v1685 = vpop.f32.mrb[0].mxu0
        %v1686 = vadd.f32 %v1470, %v1685
        %v1687 = vpop.f32.mrb[0].mxu0
        %1688 = vmatprep.mubr.bf16.mxu0 0
        %1689 = vmatmul.mubr.bf16.gmra.mrb[0].mxu0 %v1105
        %v1690 = vpop.f32.mrb[0].mxu0
        %v1691 = vadd.f32 %v1475, %v1690
        %v1692 = vpop.f32.mrb[0].mxu0
        %v1693 = vpop.f32.mrb[0].mxu0
        %v1694 = vadd.f32 %v1478, %v1693
        %v1695 = vpop.f32.mrb[0].mxu0
        %1696 = vmatprep.mubr.bf16.mxu0 0
        %1697 = vmatmul.mubr.bf16.gmra.mrb[0].mxu0 %v1108
        %v1698 = vpop.f32.mrb[0].mxu0
        %v1699 = vadd.f32 %v1483, %v1698
        %v1700 = vpop.f32.mrb[0].mxu0
        %v1701 = vpop.f32.mrb[0].mxu0
        %v1702 = vadd.f32 %v1486, %v1701
        %v1703 = vpop.f32.mrb[0].mxu0
        %1704 = vmatprep.mubr.bf16.mxu0 0
        %1705 = vmatmul.mubr.bf16.gmra.mrb[0].mxu0 %v1111
        %v1706 = vpop.f32.mrb[0].mxu0
        %v1707 = vadd.f32 %v1491, %v1706
        %v1708 = vpop.f32.mrb[0].mxu0
        %v1709 = vpop.f32.mrb[0].mxu0
        %v1710 = vadd.f32 %v1494, %v1709
        %v1711 = vpop.f32.mrb[0].mxu0
        %1712 = vmatprep.mubr.bf16.mxu0 0
        %1713 = vmatmul.mubr.bf16.gmra.mrb[0].mxu0 %v1114
        %v1714 = vpop.f32.mrb[0].mxu0
        %v1715 = vadd.f32 %v1499, %v1714
        %v1716 = vpop.f32.mrb[0].mxu0
        %v1717 = vpop.f32.mrb[0].mxu0
        %v1718 = vadd.f32 %v1502, %v1717
        %v1719 = vpop.f32.mrb[0].mxu0
        %1720 = vmatprep.mubr.bf16.mxu0 0
        %1721 = vmatmul.mubr.bf16.gmra.mrb[0].mxu0 %v1117
        %v1722 = vpop.f32.mrb[0].mxu0
        %v1723 = vadd.f32 %v1507, %v1722
        %v1724 = vpop.f32.mrb[0].mxu0
        %v1725 = vpop.f32.mrb[0].mxu0
        %v1726 = vadd.f32 %v1510, %v1725
        %v1727 = vpop.f32.mrb[0].mxu0
        %1728 = vmatprep.mubr.bf16.mxu0 0
        %1729 = vmatmul.mubr.bf16.gmra.mrb[0].mxu0 %v1120
        %v1730 = vpop.f32.mrb[0].mxu0
        %v1731 = vadd.f32 %v1515, %v1730
        %v1732 = vpop.f32.mrb[0].mxu0
        %v1733 = vpop.f32.mrb[0].mxu0
        %v1734 = vadd.f32 %v1518, %v1733
        %v1735 = vpop.f32.mrb[0].mxu0
        %1736 = vmatprep.mubr.bf16.mxu0 0
        %1737 = vmatmul.mubr.bf16.gmra.mrb[0].mxu0 %v1123
        %v1738 = vpop.f32.mrb[0].mxu0
        %v1739 = vadd.f32 %v1523, %v1738
        %v1740 = vpop.f32.mrb[0].mxu0
        %v1741 = vpop.f32.mrb[0].mxu0
        %v1742 = vadd.f32 %v1526, %v1741
        %v1743 = vpop.f32.mrb[0].mxu0
        %1744 = vmatprep.mubr.bf16.mxu0 0
        %1745 = vmatmul.mubr.bf16.gmra.mrb[0].mxu0 %v1126
        %v1746 = vpop.f32.mrb[0].mxu0
        %v1747 = vadd.f32 %v1531, %v1746
        %v1748 = vpop.f32.mrb[0].mxu0
        %v1749 = vpop.f32.mrb[0].mxu0
        %v1750 = vpop.f32.mrb[0].mxu0
        %1751 = vdwg.mxu0
        %v1800 = vunpack.c.l.b16 %v1010
        %v1801 = vunpack.c.l.b16 %v1011
        %v1802 = vunpack.c.l.b16 %v1012
        %v1803 = vunpack.c.l.b16 %v1013
        %v1804 = vunpack.c.l.b16 %v1014
        %v1805 = vunpack.c.l.b16 %v1015
        %v1806 = vunpack.c.l.b16 %v1016
        %v1807 = vunpack.c.l.b16 %v1017
        %v1808 = vunpack.c.l.b16 %v1018
        %v1809 = vunpack.c.l.b16 %v1019
        %v1810 = vunpack.c.l.b16 %v1020
        %v1811 = vunpack.c.l.b16 %v1021
        %v1812 = vunpack.c.l.b16 %v1022
        %v1813 = vunpack.c.l.b16 %v1023
        %v1814 = vunpack.c.l.b16 %v1024
        %v1815 = vunpack.c.l.b16 %v1025
        %v1816 = vunpack.c.l.b16 %v1026
        %v1817 = vunpack.c.l.b16 %v1027
        %v1818 = vunpack.c.l.b16 %v1028
        %v1819 = vunpack.c.l.b16 %v1029
        %v1820 = vunpack.c.l.b16 %v1030
        %v1821 = vunpack.c.l.b16 %v1031
        %v1822 = vunpack.c.l.b16 %v1032
        %v1823 = vunpack.c.l.b16 %v1033
        %v1824 = vunpack.c.l.b16 %v1034
        %v1825 = vunpack.c.l.b16 %v1035
        %v1826 = vunpack.c.l.b16 %v1036
        %v1827 = vunpack.c.l.b16 %v1037
        %v1828 = vunpack.c.l.b16 %v1038
        %v1829 = vunpack.c.l.b16 %v1039
        %v1830 = vunpack.c.l.b16 %v1040
        %v1831 = vunpack.c.l.b16 %v1041
        %v1832 = vunpack.c.l.b16 %v1042
        %v1833 = vunpack.c.l.b16 %v1043
        %v1834 = vunpack.c.l.b16 %v1044
        %v1835 = vunpack.c.l.b16 %v1045
        %v1836 = vunpack.c.l.b16 %v1046
        %v1837 = vunpack.c.l.b16 %v1047
        %v1838 = vunpack.c.l.b16 %v1048
        %v1839 = vunpack.c.l.b16 %v1049
        %v1840 = vunpack.c.l.b16 %v1050
        %v1841 = vunpack.c.l.b16 %v1051
        %v1842 = vunpack.c.l.b16 %v1052
        %v1843 = vunpack.c.l.b16 %v1053
        %v1844 = vunpack.c.l.b16 %v1054
        %v1845 = vunpack.c.l.b16 %v1055
        %v1846 = vunpack.c.l.b16 %v1056
        %v1847 = vunpack.c.l.b16 %v1057
        %v1848 = vpack.c.b16 %v1801, %v1800
        %v1849 = vpack.c.b16 %v1803, %v1802
        %v1850 = vpack.c.b16 %v1805, %v1804
        %v1851 = vpack.c.b16 %v1807, %v1806
        %v1852 = vpack.c.b16 %v1809, %v1808
        %v1853 = vpack.c.b16 %v1811, %v1810
        %v1854 = vpack.c.b16 %v1813, %v1812
        %v1855 = vpack.c.b16 %v1815, %v1814
        %v1856 = vpack.c.b16 %v1817, %v1816
        %v1857 = vpack.c.b16 %v1819, %v1818
        %v1858 = vpack.c.b16 %v1821, %v1820
        %v1859 = vpack.c.b16 %v1823, %v1822
        %v1860 = vpack.c.b16 %v1825, %v1824
        %v1861 = vpack.c.b16 %v1827, %v1826
        %v1862 = vpack.c.b16 %v1829, %v1828
        %v1863 = vpack.c.b16 %v1831, %v1830
        %v1864 = vpack.c.b16 %v1833, %v1832
        %v1865 = vpack.c.b16 %v1835, %v1834
        %v1866 = vpack.c.b16 %v1837, %v1836
        %v1867 = vpack.c.b16 %v1839, %v1838
        %v1868 = vpack.c.b16 %v1841, %v1840
        %v1869 = vpack.c.b16 %v1843, %v1842
        %v1870 = vpack.c.b16 %v1845, %v1844
        %v1871 = vpack.c.b16 %v1847, %v1846
        %1896 = vmatprep.subr.bf16.mxu0 0
        %1897 = vmatpush1.bf16.msra.mxu0 %v1848
        %1898 = vmatprep.subr.bf16.mxu0 0
        %1899 = vmatpush1.bf16.msra.mxu0 %v1849
        %1900 = vmatprep.subr.bf16.mxu0 0
        %1901 = vmatpush1.bf16.msra.mxu0 %v1850
        %1902 = vmatprep.subr.bf16.mxu0 0
        %1903 = vmatpush1.bf16.msra.mxu0 %v1851
        %1904 = vmatprep.subr.bf16.mxu0 0
        %1905 = vmatpush1.bf16.msra.mxu0 %v1852
        %1906 = vmatprep.subr.bf16.mxu0 0
        %1907 = vmatpush1.bf16.msra.mxu0 %v1853
        %1908 = vmatprep.subr.bf16.mxu0 0
        %1909 = vmatpush1.bf16.msra.mxu0 %v1854
        %1910 = vmatprep.subr.bf16.mxu0 0
        %1911 = vmatpush1.bf16.msra.mxu0 %v1855
        %1912 = vmatprep.subr.bf16.mxu0 0
        %1913 = vmatpush1.bf16.msra.mxu0 %v1856
        %1914 = vmatprep.subr.bf16.mxu0 0
        %1915 = vmatpush1.bf16.msra.mxu0 %v1857
        %1916 = vmatprep.subr.bf16.mxu0 0
        %1917 = vmatpush1.bf16.msra.mxu0 %v1858
        %1918 = vmatprep.subr.bf16.mxu0 0
        %1919 = vmatpush1.bf16.msra.mxu0 %v1859
        %1920 = vmatprep.subr.bf16.mxu0 0
        %1921 = vmatpush1.bf16.msra.mxu0 %v1860
        %1922 = vmatprep.subr.bf16.mxu0 0
        %1923 = vmatpush1.bf16.msra.mxu0 %v1861
        %1924 = vmatprep.subr.bf16.mxu0 0
        %1925 = vmatpush1.bf16.msra.mxu0 %v1862
        %1926 = vmatprep.subr.bf16.mxu0 0
        %1927 = vmatpush1.bf16.msra.mxu0 %v1863
        %1928 = vmatprep.mubr.bf16.mxu0 %v942
        %1929 = vmatmul.mubr.bf16.gmra.mrb[0].mxu0 %v941
        %v1930 = vpop.f32.mrb[0].mxu0
        %v1931 = vadd.f32 %v1571, %v1930
        %v1932 = vpop.f32.mrb[0].mxu0
        %v1933 = vpop.f32.mrb[0].mxu0
        %v1934 = vadd.f32 %v1574, %v1933
        %v1935 = vpop.f32.mrb[0].mxu0
        %1936 = vmatprep.mubr.bf16.mxu0 %v945
        %1937 = vmatmul.mubr.bf16.gmra.mrb[0].mxu0 %v944
        %v1938 = vpop.f32.mrb[0].mxu0
        %v1939 = vadd.f32 %v1579, %v1938
        %v1940 = vpop.f32.mrb[0].mxu0
        %v1941 = vpop.f32.mrb[0].mxu0
        %v1942 = vadd.f32 %v1582, %v1941
        %v1943 = vpop.f32.mrb[0].mxu0
        %1944 = vmatprep.mubr.bf16.mxu0 %v948
        %1945 = vmatmul.mubr.bf16.gmra.mrb[0].mxu0 %v947
        %v1946 = vpop.f32.mrb[0].mxu0
        %v1947 = vadd.f32 %v1587, %v1946
        %v1948 = vpop.f32.mrb[0].mxu0
        %v1949 = vpop.f32.mrb[0].mxu0
        %v1950 = vadd.f32 %v1590, %v1949
        %v1951 = vpop.f32.mrb[0].mxu0
        %1952 = vmatprep.mubr.bf16.mxu0 %v951
        %1953 = vmatmul.mubr.bf16.gmra.mrb[0].mxu0 %v950
        %v1954 = vpop.f32.mrb[0].mxu0
        %v1955 = vadd.f32 %v1595, %v1954
        %v1956 = vpop.f32.mrb[0].mxu0
        %v1957 = vpop.f32.mrb[0].mxu0
        %v1958 = vadd.f32 %v1598, %v1957
        %v1959 = vpop.f32.mrb[0].mxu0
        %1960 = vmatprep.mubr.bf16.mxu0 %v954
        %1961 = vmatmul.mubr.bf16.gmra.mrb[0].mxu0 %v953
        %v1962 = vpop.f32.mrb[0].mxu0
        %v1963 = vadd.f32 %v1603, %v1962
        %v1964 = vpop.f32.mrb[0].mxu0
        %v1965 = vpop.f32.mrb[0].mxu0
        %v1966 = vadd.f32 %v1606, %v1965
        %v1967 = vpop.f32.mrb[0].mxu0
        %1968 = vmatprep.mubr.bf16.mxu0 %v957
        %1969 = vmatmul.mubr.bf16.gmra.mrb[0].mxu0 %v956
        %v1970 = vpop.f32.mrb[0].mxu0
        %v1971 = vadd.f32 %v1611, %v1970
        %v1972 = vpop.f32.mrb[0].mxu0
        %v1973 = vpop.f32.mrb[0].mxu0
        %v1974 = vadd.f32 %v1614, %v1973
        %v1975 = vpop.f32.mrb[0].mxu0
        %1976 = vmatprep.mubr.bf16.mxu0 %v960
        %1977 = vmatmul.mubr.bf16.gmra.mrb[0].mxu0 %v959
        %v1978 = vpop.f32.mrb[0].mxu0
        %v1979 = vadd.f32 %v1619, %v1978
        %v1980 = vpop.f32.mrb[0].mxu0
        %v1981 = vpop.f32.mrb[0].mxu0
        %v1982 = vadd.f32 %v1622, %v1981
        %v1983 = vpop.f32.mrb[0].mxu0
        %1984 = vmatprep.mubr.bf16.mxu0 %v963
        %1985 = vmatmul.mubr.bf16.gmra.mrb[0].mxu0 %v962
        %v1986 = vpop.f32.mrb[0].mxu0
        %v1987 = vadd.f32 %v1627, %v1986
        %v1988 = vpop.f32.mrb[0].mxu0
        %v1989 = vpop.f32.mrb[0].mxu0
        %v1990 = vadd.f32 %v1630, %v1989
        %v1991 = vpop.f32.mrb[0].mxu0
        %1992 = vmatprep.mubr.bf16.mxu0 %v966
        %1993 = vmatmul.mubr.bf16.gmra.mrb[0].mxu0 %v965
        %v1994 = vpop.f32.mrb[0].mxu0
        %v1995 = vadd.f32 %v1635, %v1994
        %v1996 = vpop.f32.mrb[0].mxu0
        %v1997 = vpop.f32.mrb[0].mxu0
        %v1998 = vadd.f32 %v1638, %v1997
        %v1999 = vpop.f32.mrb[0].mxu0
        %2000 = vmatprep.mubr.bf16.mxu0 %v969
        %2001 = vmatmul.mubr.bf16.gmra.mrb[0].mxu0 %v968
        %v2002 = vpop.f32.mrb[0].mxu0
        %v2003 = vadd.f32 %v1643, %v2002
        %v2004 = vpop.f32.mrb[0].mxu0
        %v2005 = vpop.f32.mrb[0].mxu0
        %v2006 = vadd.f32 %v1646, %v2005
        %v2007 = vpop.f32.mrb[0].mxu0
        %2008 = vmatprep.mubr.bf16.mxu0 %v972
        %2009 = vmatmul.mubr.bf16.gmra.mrb[0].mxu0 %v971
        %v2010 = vpop.f32.mrb[0].mxu0
        %v2011 = vadd.f32 %v1651, %v2010
        %v2012 = vpop.f32.mrb[0].mxu0
        %v2013 = vpop.f32.mrb[0].mxu0
        %v2014 = vadd.f32 %v1654, %v2013
        %v2015 = vpop.f32.mrb[0].mxu0
        %2016 = vmatprep.mubr.bf16.mxu0 %v975
        %2017 = vmatmul.mubr.bf16.gmra.mrb[0].mxu0 %v974
        %v2018 = vpop.f32.mrb[0].mxu0
        %v2019 = vadd.f32 %v1659, %v2018
        %v2020 = vpop.f32.mrb[0].mxu0
        %v2021 = vpop.f32.mrb[0].mxu0
        %v2022 = vadd.f32 %v1662, %v2021
        %v2023 = vpop.f32.mrb[0].mxu0
        %2024 = vmatprep.mubr.bf16.mxu0 %v978
        %2025 = vmatmul.mubr.bf16.gmra.mrb[0].mxu0 %v977
        %v2026 = vpop.f32.mrb[0].mxu0
        %v2027 = vadd.f32 %v1667, %v2026
        %v2028 = vpop.f32.mrb[0].mxu0
        %v2029 = vpop.f32.mrb[0].mxu0
        %v2030 = vadd.f32 %v1670, %v2029
        %v2031 = vpop.f32.mrb[0].mxu0
        %2032 = vmatprep.mubr.bf16.mxu0 %v981
        %2033 = vmatmul.mubr.bf16.gmra.mrb[0].mxu0 %v980
        %v2034 = vpop.f32.mrb[0].mxu0
        %v2035 = vadd.f32 %v1675, %v2034
        %v2036 = vpop.f32.mrb[0].mxu0
        %v2037 = vpop.f32.mrb[0].mxu0
        %v2038 = vadd.f32 %v1678, %v2037
        %v2039 = vpop.f32.mrb[0].mxu0
        %2040 = vmatprep.mubr.bf16.mxu0 %v984
        %2041 = vmatmul.mubr.bf16.gmra.mrb[0].mxu0 %v983
        %v2042 = vpop.f32.mrb[0].mxu0
        %v2043 = vadd.f32 %v1683, %v2042
        %v2044 = vpop.f32.mrb[0].mxu0
        %v2045 = vpop.f32.mrb[0].mxu0
        %v2046 = vadd.f32 %v1686, %v2045
        %v2047 = vpop.f32.mrb[0].mxu0
        %2048 = vmatprep.mubr.bf16.mxu0 %v987
        %2049 = vmatmul.mubr.bf16.gmra.mrb[0].mxu0 %v986
        %v2050 = vpop.f32.mrb[0].mxu0
        %v2051 = vadd.f32 %v1691, %v2050
        %v2052 = vpop.f32.mrb[0].mxu0
        %v2053 = vpop.f32.mrb[0].mxu0
        %v2054 = vadd.f32 %v1694, %v2053
        %v2055 = vpop.f32.mrb[0].mxu0
        %2056 = vmatprep.mubr.bf16.mxu0 %v990
        %2057 = vmatmul.mubr.bf16.gmra.mrb[0].mxu0 %v989
        %v2058 = vpop.f32.mrb[0].mxu0
        %v2059 = vadd.f32 %v1699, %v2058
        %v2060 = vpop.f32.mrb[0].mxu0
        %v2061 = vpop.f32.mrb[0].mxu0
        %v2062 = vadd.f32 %v1702, %v2061
        %v2063 = vpop.f32.mrb[0].mxu0
        %2064 = vmatprep.mubr.bf16.mxu0 %v993
        %2065 = vmatmul.mubr.bf16.gmra.mrb[0].mxu0 %v992
        %v2066 = vpop.f32.mrb[0].mxu0
        %v2067 = vadd.f32 %v1707, %v2066
        %v2068 = vpop.f32.mrb[0].mxu0
        %v2069 = vpop.f32.mrb[0].mxu0
        %v2070 = vadd.f32 %v1710, %v2069
        %v2071 = vpop.f32.mrb[0].mxu0
        %2072 = vmatprep.mubr.bf16.mxu0 %v996
        %2073 = vmatmul.mubr.bf16.gmra.mrb[0].mxu0 %v995
        %v2074 = vpop.f32.mrb[0].mxu0
        %v2075 = vadd.f32 %v1715, %v2074
        %v2076 = vpop.f32.mrb[0].mxu0
        %v2077 = vpop.f32.mrb[0].mxu0
        %v2078 = vadd.f32 %v1718, %v2077
        %v2079 = vpop.f32.mrb[0].mxu0
        %2080 = vmatprep.mubr.bf16.mxu0 %v999
        %2081 = vmatmul.mubr.bf16.gmra.mrb[0].mxu0 %v998
        %v2082 = vpop.f32.mrb[0].mxu0
        %v2083 = vadd.f32 %v1723, %v2082
        %v2084 = vpop.f32.mrb[0].mxu0
        %v2085 = vpop.f32.mrb[0].mxu0
        %v2086 = vadd.f32 %v1726, %v2085
        %v2087 = vpop.f32.mrb[0].mxu0
        %2088 = vmatprep.mubr.bf16.mxu0 %v1002
        %2089 = vmatmul.mubr.bf16.gmra.mrb[0].mxu0 %v1001
        %v2090 = vpop.f32.mrb[0].mxu0
        %v2091 = vadd.f32 %v1731, %v2090
        %v2092 = vpop.f32.mrb[0].mxu0
        %v2093 = vpop.f32.mrb[0].mxu0
        %v2094 = vadd.f32 %v1734, %v2093
        %v2095 = vpop.f32.mrb[0].mxu0
        %2096 = vmatprep.mubr.bf16.mxu0 %v1005
        %2097 = vmatmul.mubr.bf16.gmra.mrb[0].mxu0 %v1004
        %v2098 = vpop.f32.mrb[0].mxu0
        %v2099 = vadd.f32 %v1739, %v2098
        %v2100 = vpop.f32.mrb[0].mxu0
        %v2101 = vpop.f32.mrb[0].mxu0
        %v2102 = vadd.f32 %v1742, %v2101
        %v2103 = vpop.f32.mrb[0].mxu0
        %2104 = vmatprep.mubr.bf16.mxu0 %v1008
        %2105 = vmatmul.mubr.bf16.gmra.mrb[0].mxu0 %v1007
        %v2106 = vpop.f32.mrb[0].mxu0
        %v2107 = vadd.f32 %v1747, %v2106
        %v2108 = vpop.f32.mrb[0].mxu0
        %v2109 = vpop.f32.mrb[0].mxu0
        %v2110 = vpop.f32.mrb[0].mxu0
        %2111 = vdwg.mxu0
        %2112 = vmatprep.subr.bf16.mxu0 0
        %2113 = vmatpush1.bf16.msra.mxu0 %v1864
        %2114 = vmatprep.subr.bf16.mxu0 0
        %2115 = vmatpush1.bf16.msra.mxu0 %v1865
        %2116 = vmatprep.subr.bf16.mxu0 0
        %2117 = vmatpush1.bf16.msra.mxu0 %v1866
        %2118 = vmatprep.subr.bf16.mxu0 0
        %2119 = vmatpush1.bf16.msra.mxu0 %v1867
        %2120 = vmatprep.subr.bf16.mxu0 0
        %2121 = vmatpush1.bf16.msra.mxu0 %v1868
        %2122 = vmatprep.subr.bf16.mxu0 0
        %2123 = vmatpush1.bf16.msra.mxu0 %v1869
        %2124 = vmatprep.subr.bf16.mxu0 0
        %2125 = vmatpush1.bf16.msra.mxu0 %v1870
        %2126 = vmatprep.subr.bf16.mxu0 0
        %2127 = vmatpush1.bf16.msra.mxu0 %v1871
        %2128 = vmatprep.subr.bf16.mxu0 0
        %2129 = vmatpush1.bf16.msra.mxu0 0
        %2130 = vmatprep.subr.bf16.mxu0 0
        %2131 = vmatpush1.bf16.msra.mxu0 0
        %2132 = vmatprep.subr.bf16.mxu0 0
        %2133 = vmatpush1.bf16.msra.mxu0 0
        %2134 = vmatprep.subr.bf16.mxu0 0
        %2135 = vmatpush1.bf16.msra.mxu0 0
        %2136 = vmatprep.subr.bf16.mxu0 0
        %2137 = vmatpush1.bf16.msra.mxu0 0
        %2138 = vmatprep.subr.bf16.mxu0 0
        %2139 = vmatpush1.bf16.msra.mxu0 0
        %2140 = vmatprep.subr.bf16.mxu0 0
        %2141 = vmatpush1.bf16.msra.mxu0 0
        %2142 = vmatprep.subr.bf16.mxu0 0
        %2143 = vmatpush1.bf16.msra.mxu0 0
        %2144 = vmatprep.mubr.bf16.mxu0 0
        %2145 = vmatmul.mubr.bf16.gmra.mrb[0].mxu0 %v943
        %v2146 = vpop.f32.mrb[0].mxu0
        %v2147 = vadd.f32 %v1931, %v2146
        %v2148 = vpop.f32.mrb[0].mxu0
        %v2149 = vpop.f32.mrb[0].mxu0
        %v2150 = vadd.f32 %v1934, %v2149
        %v2151 = vpop.f32.mrb[0].mxu0
        %2152 = vmatprep.mubr.bf16.mxu0 0
        %2153 = vmatmul.mubr.bf16.gmra.mrb[0].mxu0 %v946
        %v2154 = vpop.f32.mrb[0].mxu0
        %v2155 = vadd.f32 %v1939, %v2154
        %v2156 = vpop.f32.mrb[0].mxu0
        %v2157 = vpop.f32.mrb[0].mxu0
        %v2158 = vadd.f32 %v1942, %v2157
        %v2159 = vpop.f32.mrb[0].mxu0
        %2160 = vmatprep.mubr.bf16.mxu0 0
        %2161 = vmatmul.mubr.bf16.gmra.mrb[0].mxu0 %v949
        %v2162 = vpop.f32.mrb[0].mxu0
        %v2163 = vadd.f32 %v1947, %v2162
        %v2164 = vpop.f32.mrb[0].mxu0
        %v2165 = vpop.f32.mrb[0].mxu0
        %v2166 = vadd.f32 %v1950, %v2165
        %v2167 = vpop.f32.mrb[0].mxu0
        %2168 = vmatprep.mubr.bf16.mxu0 0
        %2169 = vmatmul.mubr.bf16.gmra.mrb[0].mxu0 %v952
        %v2170 = vpop.f32.mrb[0].mxu0
        %v2171 = vadd.f32 %v1955, %v2170
        %v2172 = vpop.f32.mrb[0].mxu0
        %v2173 = vpop.f32.mrb[0].mxu0
        %v2174 = vadd.f32 %v1958, %v2173
        %v2175 = vpop.f32.mrb[0].mxu0
        %2176 = vmatprep.mubr.bf16.mxu0 0
        %2177 = vmatmul.mubr.bf16.gmra.mrb[0].mxu0 %v955
        %v2178 = vpop.f32.mrb[0].mxu0
        %v2179 = vadd.f32 %v1963, %v2178
        %v2180 = vpop.f32.mrb[0].mxu0
        %v2181 = vpop.f32.mrb[0].mxu0
        %v2182 = vadd.f32 %v1966, %v2181
        %v2183 = vpop.f32.mrb[0].mxu0
        %2184 = vmatprep.mubr.bf16.mxu0 0
        %2185 = vmatmul.mubr.bf16.gmra.mrb[0].mxu0 %v958
        %v2186 = vpop.f32.mrb[0].mxu0
        %v2187 = vadd.f32 %v1971, %v2186
        %v2188 = vpop.f32.mrb[0].mxu0
        %v2189 = vpop.f32.mrb[0].mxu0
        %v2190 = vadd.f32 %v1974, %v2189
        %v2191 = vpop.f32.mrb[0].mxu0
        %2192 = vmatprep.mubr.bf16.mxu0 0
        %2193 = vmatmul.mubr.bf16.gmra.mrb[0].mxu0 %v961
        %v2194 = vpop.f32.mrb[0].mxu0
        %v2195 = vadd.f32 %v1979, %v2194
        %v2196 = vpop.f32.mrb[0].mxu0
        %v2197 = vpop.f32.mrb[0].mxu0
        %v2198 = vadd.f32 %v1982, %v2197
        %v2199 = vpop.f32.mrb[0].mxu0
        %2200 = vmatprep.mubr.bf16.mxu0 0
        %2201 = vmatmul.mubr.bf16.gmra.mrb[0].mxu0 %v964
        %v2202 = vpop.f32.mrb[0].mxu0
        %v2203 = vadd.f32 %v1987, %v2202
        %v2204 = vpop.f32.mrb[0].mxu0
        %v2205 = vpop.f32.mrb[0].mxu0
        %v2206 = vadd.f32 %v1990, %v2205
        %v2207 = vpop.f32.mrb[0].mxu0
        %2208 = vmatprep.mubr.bf16.mxu0 0
        %2209 = vmatmul.mubr.bf16.gmra.mrb[0].mxu0 %v967
        %v2210 = vpop.f32.mrb[0].mxu0
        %v2211 = vadd.f32 %v1995, %v2210
        %v2212 = vpop.f32.mrb[0].mxu0
        %v2213 = vpop.f32.mrb[0].mxu0
        %v2214 = vadd.f32 %v1998, %v2213
        %v2215 = vpop.f32.mrb[0].mxu0
        %2216 = vmatprep.mubr.bf16.mxu0 0
        %2217 = vmatmul.mubr.bf16.gmra.mrb[0].mxu0 %v970
        %v2218 = vpop.f32.mrb[0].mxu0
        %v2219 = vadd.f32 %v2003, %v2218
        %v2220 = vpop.f32.mrb[0].mxu0
        %v2221 = vpop.f32.mrb[0].mxu0
        %v2222 = vadd.f32 %v2006, %v2221
        %v2223 = vpop.f32.mrb[0].mxu0
        %2224 = vmatprep.mubr.bf16.mxu0 0
        %2225 = vmatmul.mubr.bf16.gmra.mrb[0].mxu0 %v973
        %v2226 = vpop.f32.mrb[0].mxu0
        %v2227 = vadd.f32 %v2011, %v2226
        %v2228 = vpop.f32.mrb[0].mxu0
        %v2229 = vpop.f32.mrb[0].mxu0
        %v2230 = vadd.f32 %v2014, %v2229
        %v2231 = vpop.f32.mrb[0].mxu0
        %2232 = vmatprep.mubr.bf16.mxu0 0
        %2233 = vmatmul.mubr.bf16.gmra.mrb[0].mxu0 %v976
        %v2234 = vpop.f32.mrb[0].mxu0
        %v2235 = vadd.f32 %v2019, %v2234
        %v2236 = vpop.f32.mrb[0].mxu0
        %v2237 = vpop.f32.mrb[0].mxu0
        %v2238 = vadd.f32 %v2022, %v2237
        %v2239 = vpop.f32.mrb[0].mxu0
        %2240 = vmatprep.mubr.bf16.mxu0 0
        %2241 = vmatmul.mubr.bf16.gmra.mrb[0].mxu0 %v979
        %v2242 = vpop.f32.mrb[0].mxu0
        %v2243 = vadd.f32 %v2027, %v2242
        %v2244 = vpop.f32.mrb[0].mxu0
        %v2245 = vpop.f32.mrb[0].mxu0
        %v2246 = vadd.f32 %v2030, %v2245
        %v2247 = vpop.f32.mrb[0].mxu0
        %2248 = vmatprep.mubr.bf16.mxu0 0
        %2249 = vmatmul.mubr.bf16.gmra.mrb[0].mxu0 %v982
        %v2250 = vpop.f32.mrb[0].mxu0
        %v2251 = vadd.f32 %v2035, %v2250
        %v2252 = vpop.f32.mrb[0].mxu0
        %v2253 = vpop.f32.mrb[0].mxu0
        %v2254 = vadd.f32 %v2038, %v2253
        %v2255 = vpop.f32.mrb[0].mxu0
        %2256 = vmatprep.mubr.bf16.mxu0 0
        %2257 = vmatmul.mubr.bf16.gmra.mrb[0].mxu0 %v985
        %v2258 = vpop.f32.mrb[0].mxu0
        %v2259 = vadd.f32 %v2043, %v2258
        %v2260 = vpop.f32.mrb[0].mxu0
        %v2261 = vpop.f32.mrb[0].mxu0
        %v2262 = vadd.f32 %v2046, %v2261
        %v2263 = vpop.f32.mrb[0].mxu0
        %2264 = vmatprep.mubr.bf16.mxu0 0
        %2265 = vmatmul.mubr.bf16.gmra.mrb[0].mxu0 %v988
        %v2266 = vpop.f32.mrb[0].mxu0
        %v2267 = vadd.f32 %v2051, %v2266
        %v2268 = vpop.f32.mrb[0].mxu0
        %v2269 = vpop.f32.mrb[0].mxu0
        %v2270 = vadd.f32 %v2054, %v2269
        %v2271 = vpop.f32.mrb[0].mxu0
        %2272 = vmatprep.mubr.bf16.mxu0 0
        %2273 = vmatmul.mubr.bf16.gmra.mrb[0].mxu0 %v991
        %v2274 = vpop.f32.mrb[0].mxu0
        %v2275 = vadd.f32 %v2059, %v2274
        %v2276 = vpop.f32.mrb[0].mxu0
        %v2277 = vpop.f32.mrb[0].mxu0
        %v2278 = vadd.f32 %v2062, %v2277
        %v2279 = vpop.f32.mrb[0].mxu0
        %2280 = vmatprep.mubr.bf16.mxu0 0
        %2281 = vmatmul.mubr.bf16.gmra.mrb[0].mxu0 %v994
        %v2282 = vpop.f32.mrb[0].mxu0
        %v2283 = vadd.f32 %v2067, %v2282
        %v2284 = vpop.f32.mrb[0].mxu0
        %v2285 = vpop.f32.mrb[0].mxu0
        %v2286 = vadd.f32 %v2070, %v2285
        %v2287 = vpop.f32.mrb[0].mxu0
        %2288 = vmatprep.mubr.bf16.mxu0 0
        %2289 = vmatmul.mubr.bf16.gmra.mrb[0].mxu0 %v997
        %v2290 = vpop.f32.mrb[0].mxu0
        %v2291 = vadd.f32 %v2075, %v2290
        %v2292 = vpop.f32.mrb[0].mxu0
        %v2293 = vpop.f32.mrb[0].mxu0
        %v2294 = vadd.f32 %v2078, %v2293
        %v2295 = vpop.f32.mrb[0].mxu0
        %2296 = vmatprep.mubr.bf16.mxu0 0
        %2297 = vmatmul.mubr.bf16.gmra.mrb[0].mxu0 %v1000
        %v2298 = vpop.f32.mrb[0].mxu0
        %v2299 = vadd.f32 %v2083, %v2298
        %v2300 = vpop.f32.mrb[0].mxu0
        %v2301 = vpop.f32.mrb[0].mxu0
        %v2302 = vadd.f32 %v2086, %v2301
        %v2303 = vpop.f32.mrb[0].mxu0
        %2304 = vmatprep.mubr.bf16.mxu0 0
        %2305 = vmatmul.mubr.bf16.gmra.mrb[0].mxu0 %v1003
        %v2306 = vpop.f32.mrb[0].mxu0
        %v2307 = vadd.f32 %v2091, %v2306
        %v2308 = vpop.f32.mrb[0].mxu0
        %v2309 = vpop.f32.mrb[0].mxu0
        %v2310 = vadd.f32 %v2094, %v2309
        %v2311 = vpop.f32.mrb[0].mxu0
        %2312 = vmatprep.mubr.bf16.mxu0 0
        %2313 = vmatmul.mubr.bf16.gmra.mrb[0].mxu0 %v1006
        %v2314 = vpop.f32.mrb[0].mxu0
        %v2315 = vadd.f32 %v2099, %v2314
        %v2316 = vpop.f32.mrb[0].mxu0
        %v2317 = vpop.f32.mrb[0].mxu0
        %v2318 = vadd.f32 %v2102, %v2317
        %v2319 = vpop.f32.mrb[0].mxu0
        %2320 = vmatprep.mubr.bf16.mxu0 0
        %2321 = vmatmul.mubr.bf16.gmra.mrb[0].mxu0 %v1009
        %v2322 = vpop.f32.mrb[0].mxu0
        %v2323 = vadd.f32 %v2107, %v2322
        %v2324 = vpop.f32.mrb[0].mxu0
        %v2325 = vpop.f32.mrb[0].mxu0
        %v2326 = vpop.f32.mrb[0].mxu0
        %2327 = vdwg.mxu0
        %v2328 = vpack.c.bf16 %v926, %v929
        %v2329 = vpack.c.bf16 %v927, %v930
        %v2330 = vpack.c.bf16 %v928, %v931
        %v2331 = vpack.c.bf16 %v920, %v923
        %v2332 = vpack.c.bf16 %v921, %v924
        %v2333 = vpack.c.bf16 %v922, %v925
        %v2334 = vpack.c.bf16 %v914, %v917
        %v2335 = vpack.c.bf16 %v915, %v918
        %v2336 = vpack.c.bf16 %v916, %v919
        %v2337 = vpack.c.bf16 %v908, %v911
        %v2338 = vpack.c.bf16 %v909, %v912
        %v2339 = vpack.c.bf16 %v910, %v913
        %v2340 = vpack.c.bf16 %v902, %v905
        %v2341 = vpack.c.bf16 %v903, %v906
        %v2342 = vpack.c.bf16 %v904, %v907
        %v2343 = vpack.c.bf16 %v896, %v899
        %v2344 = vpack.c.bf16 %v897, %v900
        %v2345 = vpack.c.bf16 %v898, %v901
        %v2346 = vpack.c.bf16 %v890, %v893
        %v2347 = vpack.c.bf16 %v891, %v894
        %v2348 = vpack.c.bf16 %v892, %v895
        %v2349 = vpack.c.bf16 %v884, %v887
        %v2350 = vpack.c.bf16 %v885, %v888
        %v2351 = vpack.c.bf16 %v886, %v889
        %v2352 = vpack.c.bf16 %v878, %v881
        %v2353 = vpack.c.bf16 %v879, %v882
        %v2354 = vpack.c.bf16 %v880, %v883
        %v2355 = vpack.c.bf16 %v872, %v875
        %v2356 = vpack.c.bf16 %v873, %v876
        %v2357 = vpack.c.bf16 %v874, %v877
        %v2358 = vpack.c.bf16 %v866, %v869
        %v2359 = vpack.c.bf16 %v867, %v870
        %v2360 = vpack.c.bf16 %v868, %v871
        %v2361 = vpack.c.bf16 %v860, %v863
        %v2362 = vpack.c.bf16 %v861, %v864
        %v2363 = vpack.c.bf16 %v862, %v865
        %v2364 = vpack.c.bf16 %v854, %v857
        %v2365 = vpack.c.bf16 %v855, %v858
        %v2366 = vpack.c.bf16 %v856, %v859
        %v2367 = vpack.c.bf16 %v848, %v851
        %v2368 = vpack.c.bf16 %v849, %v852
        %v2369 = vpack.c.bf16 %v850, %v853
        %v2370 = vpack.c.bf16 %v842, %v845
        %v2371 = vpack.c.bf16 %v843, %v846
        %v2372 = vpack.c.bf16 %v844, %v847
        %v2373 = vpack.c.bf16 %v836, %v839
        %v2374 = vpack.c.bf16 %v837, %v840
        %v2375 = vpack.c.bf16 %v838, %v841
        %v2376 = vpack.c.bf16 %v830, %v833
        %v2377 = vpack.c.bf16 %v831, %v834
        %v2378 = vpack.c.bf16 %v832, %v835
        %v2379 = vpack.c.bf16 %v824, %v827
        %v2380 = vpack.c.bf16 %v825, %v828
        %v2381 = vpack.c.bf16 %v826, %v829
        %v2382 = vpack.c.bf16 %v818, %v821
        %v2383 = vpack.c.bf16 %v819, %v822
        %v2384 = vpack.c.bf16 %v820, %v823
        %v2385 = vpack.c.bf16 %v812, %v815
        %v2386 = vpack.c.bf16 %v813, %v816
        %v2387 = vpack.c.bf16 %v814, %v817
        %v2388 = vpack.c.bf16 %v932, %v932
        %v2389 = vpack.c.bf16 %v933, %v933
        %v2390 = vpack.c.bf16 %v934, %v934
        %s2391 = scalar_lea.vmem [#allocation2], 384
        %v2392 = vld [vmem:[%s2391] sm:$0xf]
        %v2393 = vld [vmem:[%s2391 + $0x4] sm:$0xf]
        %v2394 = vld [vmem:[%s2391 + $0x8] sm:$0xf]
        %v2395 = vld [vmem:[%s2391 + $0xc] sm:$0xf]
        %v2396 = vld [vmem:[%s2391 + $0x10] sm:$0xf]
        %v2397 = vld [vmem:[%s2391 + $0x14] sm:$0xf]
        %v2398 = vld [vmem:[%s2391 + $0x18] sm:$0xf]
        %v2399 = vld [vmem:[%s2391 + $0x1c] sm:$0xf]
        %v2400 = vld [vmem:[%s2391 + $0x20] sm:$0xf]
        %v2401 = vld [vmem:[%s2391 + $0x24] sm:$0xf]
        %v2402 = vld [vmem:[%s2391 + $0x28] sm:$0xf]
        %v2403 = vld [vmem:[%s2391 + $0x2c] sm:$0xf]
        %v2404 = vld [vmem:[%s2391 + $0x30] sm:$0xf]
        %v2405 = vld [vmem:[%s2391 + $0x34] sm:$0xf]
        %v2406 = vld [vmem:[%s2391 + $0x38] sm:$0xf]
        %v2407 = vld [vmem:[%s2391 + $0x3c] sm:$0xf]
        %v2408 = vld [vmem:[%s2391 + $0x40] sm:$0xf]
        %v2409 = vld [vmem:[%s2391 + $0x44] sm:$0xf]
        %v2410 = vld [vmem:[%s2391 + $0x48] sm:$0xf]
        %v2411 = vld [vmem:[%s2391 + $0x4c] sm:$0xf]
        %v2412 = vld [vmem:[%s2391 + $0x50] sm:$0xf]
        %v2413 = vld [vmem:[%s2391 + $0x54] sm:$0xf]
        %v2414 = vld [vmem:[%s2391 + $0x58] sm:$0xf]
        %v2415 = vld [vmem:[%s2391 + $0x5c] sm:$0xf]
        %v2416 = vld [vmem:[%s2391 + $0x60] sm:$0xf]
        %v2417 = vld [vmem:[%s2391 + $0x64] sm:$0xf]
        %v2418 = vld [vmem:[%s2391 + $0x68] sm:$0xf]
        %v2419 = vld [vmem:[%s2391 + $0x6c] sm:$0xf]
        %v2420 = vld [vmem:[%s2391 + $0x70] sm:$0xf]
        %v2421 = vld [vmem:[%s2391 + $0x74] sm:$0xf]
        %v2422 = vld [vmem:[%s2391 + $0x78] sm:$0xf]
        %v2423 = vld [vmem:[%s2391 + $0x7c] sm:$0xf]
        %v2424 = vld [vmem:[%s2391 + $0x80] sm:$0xf]
        %v2425 = vld [vmem:[%s2391 + $0x84] sm:$0xf]
        %v2426 = vld [vmem:[%s2391 + $0x88] sm:$0xf]
        %v2427 = vld [vmem:[%s2391 + $0x8c] sm:$0xf]
        %v2428 = vld [vmem:[%s2391 + $0x90] sm:$0xf]
        %v2429 = vld [vmem:[%s2391 + $0x94] sm:$0xf]
        %v2430 = vld [vmem:[%s2391 + $0x98] sm:$0xf]
        %v2431 = vld [vmem:[%s2391 + $0x9c] sm:$0xf]
        %v2432 = vld [vmem:[%s2391 + $0xa0] sm:$0xf]
        %v2433 = vld [vmem:[%s2391 + $0xa4] sm:$0xf]
        %v2434 = vld [vmem:[%s2391 + $0xa8] sm:$0xf]
        %v2435 = vld [vmem:[%s2391 + $0xac] sm:$0xf]
        %v2436 = vld [vmem:[%s2391 + $0xb0] sm:$0xf]
        %v2437 = vld [vmem:[%s2391 + $0xb4] sm:$0xf]
        %v2438 = vld [vmem:[%s2391 + $0xb8] sm:$0xf]
        %v2439 = vld [vmem:[%s2391 + $0xbc] sm:$0xf]
        %v2488 = vunpack.c.l.b16 %v2392
        %v2489 = vunpack.c.l.b16 %v2393
        %v2490 = vunpack.c.l.b16 %v2394
        %v2491 = vunpack.c.l.b16 %v2395
        %v2492 = vunpack.c.l.b16 %v2396
        %v2493 = vunpack.c.l.b16 %v2397
        %v2494 = vunpack.c.l.b16 %v2398
        %v2495 = vunpack.c.l.b16 %v2399
        %v2496 = vunpack.c.l.b16 %v2400
        %v2497 = vunpack.c.l.b16 %v2401
        %v2498 = vunpack.c.l.b16 %v2402
        %v2499 = vunpack.c.l.b16 %v2403
        %v2500 = vunpack.c.l.b16 %v2404
        %v2501 = vunpack.c.l.b16 %v2405
        %v2502 = vunpack.c.l.b16 %v2406
        %v2503 = vunpack.c.l.b16 %v2407
        %v2504 = vunpack.c.l.b16 %v2408
        %v2505 = vunpack.c.l.b16 %v2409
        %v2506 = vunpack.c.l.b16 %v2410
        %v2507 = vunpack.c.l.b16 %v2411
        %v2508 = vunpack.c.l.b16 %v2412
        %v2509 = vunpack.c.l.b16 %v2413
        %v2510 = vunpack.c.l.b16 %v2414
        %v2511 = vunpack.c.l.b16 %v2415
        %v2512 = vunpack.c.l.b16 %v2416
        %v2513 = vunpack.c.l.b16 %v2417
        %v2514 = vunpack.c.l.b16 %v2418
        %v2515 = vunpack.c.l.b16 %v2419
        %v2516 = vunpack.c.l.b16 %v2420
        %v2517 = vunpack.c.l.b16 %v2421
        %v2518 = vunpack.c.l.b16 %v2422
        %v2519 = vunpack.c.l.b16 %v2423
        %v2520 = vunpack.c.l.b16 %v2424
        %v2521 = vunpack.c.l.b16 %v2425
        %v2522 = vunpack.c.l.b16 %v2426
        %v2523 = vunpack.c.l.b16 %v2427
        %v2524 = vunpack.c.l.b16 %v2428
        %v2525 = vunpack.c.l.b16 %v2429
        %v2526 = vunpack.c.l.b16 %v2430
        %v2527 = vunpack.c.l.b16 %v2431
        %v2528 = vunpack.c.l.b16 %v2432
        %v2529 = vunpack.c.l.b16 %v2433
        %v2530 = vunpack.c.l.b16 %v2434
        %v2531 = vunpack.c.l.b16 %v2435
        %v2532 = vunpack.c.l.b16 %v2436
        %v2533 = vunpack.c.l.b16 %v2437
        %v2534 = vunpack.c.l.b16 %v2438
        %v2535 = vunpack.c.l.b16 %v2439
        %v2536 = vpack.c.b16 %v2489, %v2488
        %v2537 = vpack.c.b16 %v2491, %v2490
        %v2538 = vpack.c.b16 %v2493, %v2492
        %v2539 = vpack.c.b16 %v2495, %v2494
        %v2540 = vpack.c.b16 %v2497, %v2496
        %v2541 = vpack.c.b16 %v2499, %v2498
        %v2542 = vpack.c.b16 %v2501, %v2500
        %v2543 = vpack.c.b16 %v2503, %v2502
        %v2544 = vpack.c.b16 %v2505, %v2504
        %v2545 = vpack.c.b16 %v2507, %v2506
        %v2546 = vpack.c.b16 %v2509, %v2508
        %v2547 = vpack.c.b16 %v2511, %v2510
        %v2548 = vpack.c.b16 %v2513, %v2512
        %v2549 = vpack.c.b16 %v2515, %v2514
        %v2550 = vpack.c.b16 %v2517, %v2516
        %v2551 = vpack.c.b16 %v2519, %v2518
        %v2552 = vpack.c.b16 %v2521, %v2520
        %v2553 = vpack.c.b16 %v2523, %v2522
        %v2554 = vpack.c.b16 %v2525, %v2524
        %v2555 = vpack.c.b16 %v2527, %v2526
        %v2556 = vpack.c.b16 %v2529, %v2528
        %v2557 = vpack.c.b16 %v2531, %v2530
        %v2558 = vpack.c.b16 %v2533, %v2532
        %v2559 = vpack.c.b16 %v2535, %v2534
        %2584 = vmatprep.subr.bf16.mxu0 0
        %2585 = vmatpush1.bf16.msra.mxu0 %v2536
        %2586 = vmatprep.subr.bf16.mxu0 0
        %2587 = vmatpush1.bf16.msra.mxu0 %v2537
        %2588 = vmatprep.subr.bf16.mxu0 0
        %2589 = vmatpush1.bf16.msra.mxu0 %v2538
        %2590 = vmatprep.subr.bf16.mxu0 0
        %2591 = vmatpush1.bf16.msra.mxu0 %v2539
        %2592 = vmatprep.subr.bf16.mxu0 0
        %2593 = vmatpush1.bf16.msra.mxu0 %v2540
        %2594 = vmatprep.subr.bf16.mxu0 0
        %2595 = vmatpush1.bf16.msra.mxu0 %v2541
        %2596 = vmatprep.subr.bf16.mxu0 0
        %2597 = vmatpush1.bf16.msra.mxu0 %v2542
        %2598 = vmatprep.subr.bf16.mxu0 0
        %2599 = vmatpush1.bf16.msra.mxu0 %v2543
        %2600 = vmatprep.subr.bf16.mxu0 0
        %2601 = vmatpush1.bf16.msra.mxu0 %v2544
        %2602 = vmatprep.subr.bf16.mxu0 0
        %2603 = vmatpush1.bf16.msra.mxu0 %v2545
        %2604 = vmatprep.subr.bf16.mxu0 0
        %2605 = vmatpush1.bf16.msra.mxu0 %v2546
        %2606 = vmatprep.subr.bf16.mxu0 0
        %2607 = vmatpush1.bf16.msra.mxu0 %v2547
        %2608 = vmatprep.subr.bf16.mxu0 0
        %2609 = vmatpush1.bf16.msra.mxu0 %v2548
        %2610 = vmatprep.subr.bf16.mxu0 0
        %2611 = vmatpush1.bf16.msra.mxu0 %v2549
        %2612 = vmatprep.subr.bf16.mxu0 0
        %2613 = vmatpush1.bf16.msra.mxu0 %v2550
        %2614 = vmatprep.subr.bf16.mxu0 0
        %2615 = vmatpush1.bf16.msra.mxu0 %v2551
        %2616 = vmatprep.mubr.bf16.mxu0 %v2329
        %2617 = vmatmul.mubr.bf16.gmra.mrb[0].mxu0 %v2328
        %v2618 = vpop.f32.mrb[0].mxu0
        %v2619 = vadd.f32 0.0, %v2618
        %v2620 = vpop.f32.mrb[0].mxu0
        %v2621 = vpop.f32.mrb[0].mxu0
        %v2622 = vadd.f32 0.0, %v2621
        %v2623 = vpop.f32.mrb[0].mxu0
        %2624 = vmatprep.mubr.bf16.mxu0 %v2332
        %2625 = vmatmul.mubr.bf16.gmra.mrb[0].mxu0 %v2331
        %v2626 = vpop.f32.mrb[0].mxu0
        %v2627 = vadd.f32 0.0, %v2626
        %v2628 = vpop.f32.mrb[0].mxu0
        %v2629 = vpop.f32.mrb[0].mxu0
        %v2630 = vadd.f32 0.0, %v2629
        %v2631 = vpop.f32.mrb[0].mxu0
        %2632 = vmatprep.mubr.bf16.mxu0 %v2335
        %2633 = vmatmul.mubr.bf16.gmra.mrb[0].mxu0 %v2334
        %v2634 = vpop.f32.mrb[0].mxu0
        %v2635 = vadd.f32 0.0, %v2634
        %v2636 = vpop.f32.mrb[0].mxu0
        %v2637 = vpop.f32.mrb[0].mxu0
        %v2638 = vadd.f32 0.0, %v2637
        %v2639 = vpop.f32.mrb[0].mxu0
        %2640 = vmatprep.mubr.bf16.mxu0 %v2338
        %2641 = vmatmul.mubr.bf16.gmra.mrb[0].mxu0 %v2337
        %v2642 = vpop.f32.mrb[0].mxu0
        %v2643 = vadd.f32 0.0, %v2642
        %v2644 = vpop.f32.mrb[0].mxu0
        %v2645 = vpop.f32.mrb[0].mxu0
        %v2646 = vadd.f32 0.0, %v2645
        %v2647 = vpop.f32.mrb[0].mxu0
        %2648 = vmatprep.mubr.bf16.mxu0 %v2341
        %2649 = vmatmul.mubr.bf16.gmra.mrb[0].mxu0 %v2340
        %v2650 = vpop.f32.mrb[0].mxu0
        %v2651 = vadd.f32 0.0, %v2650
        %v2652 = vpop.f32.mrb[0].mxu0
        %v2653 = vpop.f32.mrb[0].mxu0
        %v2654 = vadd.f32 0.0, %v2653
        %v2655 = vpop.f32.mrb[0].mxu0
        %2656 = vmatprep.mubr.bf16.mxu0 %v2344
        %2657 = vmatmul.mubr.bf16.gmra.mrb[0].mxu0 %v2343
        %v2658 = vpop.f32.mrb[0].mxu0
        %v2659 = vadd.f32 0.0, %v2658
        %v2660 = vpop.f32.mrb[0].mxu0
        %v2661 = vpop.f32.mrb[0].mxu0
        %v2662 = vadd.f32 0.0, %v2661
        %v2663 = vpop.f32.mrb[0].mxu0
        %2664 = vmatprep.mubr.bf16.mxu0 %v2347
        %2665 = vmatmul.mubr.bf16.gmra.mrb[0].mxu0 %v2346
        %v2666 = vpop.f32.mrb[0].mxu0
        %v2667 = vadd.f32 0.0, %v2666
        %v2668 = vpop.f32.mrb[0].mxu0
        %v2669 = vpop.f32.mrb[0].mxu0
        %v2670 = vadd.f32 0.0, %v2669
        %v2671 = vpop.f32.mrb[0].mxu0
        %2672 = vmatprep.mubr.bf16.mxu0 %v2350
        %2673 = vmatmul.mubr.bf16.gmra.mrb[0].mxu0 %v2349
        %v2674 = vpop.f32.mrb[0].mxu0
        %v2675 = vadd.f32 0.0, %v2674
        %v2676 = vpop.f32.mrb[0].mxu0
        %v2677 = vpop.f32.mrb[0].mxu0
        %v2678 = vadd.f32 0.0, %v2677
        %v2679 = vpop.f32.mrb[0].mxu0
        %2680 = vmatprep.mubr.bf16.mxu0 %v2353
        %2681 = vmatmul.mubr.bf16.gmra.mrb[0].mxu0 %v2352
        %v2682 = vpop.f32.mrb[0].mxu0
        %v2683 = vadd.f32 0.0, %v2682
        %v2684 = vpop.f32.mrb[0].mxu0
        %v2685 = vpop.f32.mrb[0].mxu0
        %v2686 = vadd.f32 0.0, %v2685
        %v2687 = vpop.f32.mrb[0].mxu0
        %2688 = vmatprep.mubr.bf16.mxu0 %v2356
        %2689 = vmatmul.mubr.bf16.gmra.mrb[0].mxu0 %v2355
        %v2690 = vpop.f32.mrb[0].mxu0
        %v2691 = vadd.f32 0.0, %v2690
        %v2692 = vpop.f32.mrb[0].mxu0
        %v2693 = vpop.f32.mrb[0].mxu0
        %v2694 = vadd.f32 0.0, %v2693
        %v2695 = vpop.f32.mrb[0].mxu0
        %2696 = vmatprep.mubr.bf16.mxu0 %v2359
        %2697 = vmatmul.mubr.bf16.gmra.mrb[0].mxu0 %v2358
        %v2698 = vpop.f32.mrb[0].mxu0
        %v2699 = vadd.f32 0.0, %v2698
        %v2700 = vpop.f32.mrb[0].mxu0
        %v2701 = vpop.f32.mrb[0].mxu0
        %v2702 = vadd.f32 0.0, %v2701
        %v2703 = vpop.f32.mrb[0].mxu0
        %2704 = vmatprep.mubr.bf16.mxu0 %v2362
        %2705 = vmatmul.mubr.bf16.gmra.mrb[0].mxu0 %v2361
        %v2706 = vpop.f32.mrb[0].mxu0
        %v2707 = vadd.f32 0.0, %v2706
        %v2708 = vpop.f32.mrb[0].mxu0
        %v2709 = vpop.f32.mrb[0].mxu0
        %v2710 = vadd.f32 0.0, %v2709
        %v2711 = vpop.f32.mrb[0].mxu0
        %2712 = vmatprep.mubr.bf16.mxu0 %v2365
        %2713 = vmatmul.mubr.bf16.gmra.mrb[0].mxu0 %v2364
        %v2714 = vpop.f32.mrb[0].mxu0
        %v2715 = vadd.f32 0.0, %v2714
        %v2716 = vpop.f32.mrb[0].mxu0
        %v2717 = vpop.f32.mrb[0].mxu0
        %v2718 = vadd.f32 0.0, %v2717
        %v2719 = vpop.f32.mrb[0].mxu0
        %2720 = vmatprep.mubr.bf16.mxu0 %v2368
        %2721 = vmatmul.mubr.bf16.gmra.mrb[0].mxu0 %v2367
        %v2722 = vpop.f32.mrb[0].mxu0
        %v2723 = vadd.f32 0.0, %v2722
        %v2724 = vpop.f32.mrb[0].mxu0
        %v2725 = vpop.f32.mrb[0].mxu0
        %v2726 = vadd.f32 0.0, %v2725
        %v2727 = vpop.f32.mrb[0].mxu0
        %2728 = vmatprep.mubr.bf16.mxu0 %v2371
        %2729 = vmatmul.mubr.bf16.gmra.mrb[0].mxu0 %v2370
        %v2730 = vpop.f32.mrb[0].mxu0
        %v2731 = vadd.f32 0.0, %v2730
        %v2732 = vpop.f32.mrb[0].mxu0
        %v2733 = vpop.f32.mrb[0].mxu0
        %v2734 = vadd.f32 0.0, %v2733
        %v2735 = vpop.f32.mrb[0].mxu0
        %2736 = vmatprep.mubr.bf16.mxu0 %v2374
        %2737 = vmatmul.mubr.bf16.gmra.mrb[0].mxu0 %v2373
        %v2738 = vpop.f32.mrb[0].mxu0
        %v2739 = vadd.f32 0.0, %v2738
        %v2740 = vpop.f32.mrb[0].mxu0
        %v2741 = vpop.f32.mrb[0].mxu0
        %v2742 = vadd.f32 0.0, %v2741
        %v2743 = vpop.f32.mrb[0].mxu0
        %2744 = vmatprep.mubr.bf16.mxu0 %v2377
        %2745 = vmatmul.mubr.bf16.gmra.mrb[0].mxu0 %v2376
        %v2746 = vpop.f32.mrb[0].mxu0
        %v2747 = vadd.f32 0.0, %v2746
        %v2748 = vpop.f32.mrb[0].mxu0
        %v2749 = vpop.f32.mrb[0].mxu0
        %v2750 = vadd.f32 0.0, %v2749
        %v2751 = vpop.f32.mrb[0].mxu0
        %2752 = vmatprep.mubr.bf16.mxu0 %v2380
        %2753 = vmatmul.mubr.bf16.gmra.mrb[0].mxu0 %v2379
        %v2754 = vpop.f32.mrb[0].mxu0
        %v2755 = vadd.f32 0.0, %v2754
        %v2756 = vpop.f32.mrb[0].mxu0
        %v2757 = vpop.f32.mrb[0].mxu0
        %v2758 = vadd.f32 0.0, %v2757
        %v2759 = vpop.f32.mrb[0].mxu0
        %2760 = vmatprep.mubr.bf16.mxu0 %v2383
        %2761 = vmatmul.mubr.bf16.gmra.mrb[0].mxu0 %v2382
        %v2762 = vpop.f32.mrb[0].mxu0
        %v2763 = vadd.f32 0.0, %v2762
        %v2764 = vpop.f32.mrb[0].mxu0
        %v2765 = vpop.f32.mrb[0].mxu0
        %v2766 = vadd.f32 0.0, %v2765
        %v2767 = vpop.f32.mrb[0].mxu0
        %2768 = vmatprep.mubr.bf16.mxu0 %v2386
        %2769 = vmatmul.mubr.bf16.gmra.mrb[0].mxu0 %v2385
        %v2770 = vpop.f32.mrb[0].mxu0
        %v2771 = vadd.f32 0.0, %v2770
        %v2772 = vpop.f32.mrb[0].mxu0
        %v2773 = vpop.f32.mrb[0].mxu0
        %v2774 = vadd.f32 0.0, %v2773
        %v2775 = vpop.f32.mrb[0].mxu0
        %2776 = vmatprep.mubr.bf16.mxu0 %v942
        %2777 = vmatmul.mubr.bf16.gmra.mrb[0].mxu0 %v941
        %v2778 = vpop.f32.mrb[0].mxu0
        %v2779 = vadd.f32 0.0, %v2778
        %v2780 = vpop.f32.mrb[0].mxu0
        %v2781 = vpop.f32.mrb[0].mxu0
        %v2782 = vadd.f32 0.0, %v2781
        %v2783 = vpop.f32.mrb[0].mxu0
        %2784 = vmatprep.mubr.bf16.mxu0 %v945
        %2785 = vmatmul.mubr.bf16.gmra.mrb[0].mxu0 %v944
        %v2786 = vpop.f32.mrb[0].mxu0
        %v2787 = vadd.f32 0.0, %v2786
        %v2788 = vpop.f32.mrb[0].mxu0
        %v2789 = vpop.f32.mrb[0].mxu0
        %v2790 = vadd.f32 0.0, %v2789
        %v2791 = vpop.f32.mrb[0].mxu0
        %2792 = vmatprep.mubr.bf16.mxu0 %v2389
        %2793 = vmatmul.mubr.bf16.gmra.mrb[0].mxu0 %v2388
        %v2794 = vpop.f32.mrb[0].mxu0
        %v2795 = vadd.f32 0.0, %v2794
        %v2796 = vpop.f32.mrb[0].mxu0
        %v2797 = vpop.f32.mrb[0].mxu0
        %v2798 = vpop.f32.mrb[0].mxu0
        %2799 = vdwg.mxu0
        %2800 = vmatprep.subr.bf16.mxu0 0
        %2801 = vmatpush1.bf16.msra.mxu0 %v2552
        %2802 = vmatprep.subr.bf16.mxu0 0
        %2803 = vmatpush1.bf16.msra.mxu0 %v2553
        %2804 = vmatprep.subr.bf16.mxu0 0
        %2805 = vmatpush1.bf16.msra.mxu0 %v2554
        %2806 = vmatprep.subr.bf16.mxu0 0
        %2807 = vmatpush1.bf16.msra.mxu0 %v2555
        %2808 = vmatprep.subr.bf16.mxu0 0
        %2809 = vmatpush1.bf16.msra.mxu0 %v2556
        %2810 = vmatprep.subr.bf16.mxu0 0
        %2811 = vmatpush1.bf16.msra.mxu0 %v2557
        %2812 = vmatprep.subr.bf16.mxu0 0
        %2813 = vmatpush1.bf16.msra.mxu0 %v2558
        %2814 = vmatprep.subr.bf16.mxu0 0
        %2815 = vmatpush1.bf16.msra.mxu0 %v2559
        %2816 = vmatprep.subr.bf16.mxu0 0
        %2817 = vmatpush1.bf16.msra.mxu0 0
        %2818 = vmatprep.subr.bf16.mxu0 0
        %2819 = vmatpush1.bf16.msra.mxu0 0
        %2820 = vmatprep.subr.bf16.mxu0 0
        %2821 = vmatpush1.bf16.msra.mxu0 0
        %2822 = vmatprep.subr.bf16.mxu0 0
        %2823 = vmatpush1.bf16.msra.mxu0 0
        %2824 = vmatprep.subr.bf16.mxu0 0
        %2825 = vmatpush1.bf16.msra.mxu0 0
        %2826 = vmatprep.subr.bf16.mxu0 0
        %2827 = vmatpush1.bf16.msra.mxu0 0
        %2828 = vmatprep.subr.bf16.mxu0 0
        %2829 = vmatpush1.bf16.msra.mxu0 0
        %2830 = vmatprep.subr.bf16.mxu0 0
        %2831 = vmatpush1.bf16.msra.mxu0 0
        %2832 = vmatprep.mubr.bf16.mxu0 0
        %2833 = vmatmul.mubr.bf16.gmra.mrb[0].mxu0 %v2330
        %v2834 = vpop.f32.mrb[0].mxu0
        %v2835 = vadd.f32 %v2619, %v2834
        %v2836 = vpop.f32.mrb[0].mxu0
        %v2837 = vpop.f32.mrb[0].mxu0
        %v2838 = vadd.f32 %v2622, %v2837
        %v2839 = vpop.f32.mrb[0].mxu0
        %2840 = vmatprep.mubr.bf16.mxu0 0
        %2841 = vmatmul.mubr.bf16.gmra.mrb[0].mxu0 %v2333
        %v2842 = vpop.f32.mrb[0].mxu0
        %v2843 = vadd.f32 %v2627, %v2842
        %v2844 = vpop.f32.mrb[0].mxu0
        %v2845 = vpop.f32.mrb[0].mxu0
        %v2846 = vadd.f32 %v2630, %v2845
        %v2847 = vpop.f32.mrb[0].mxu0
        %2848 = vmatprep.mubr.bf16.mxu0 0
        %2849 = vmatmul.mubr.bf16.gmra.mrb[0].mxu0 %v2336
        %v2850 = vpop.f32.mrb[0].mxu0
        %v2851 = vadd.f32 %v2635, %v2850
        %v2852 = vpop.f32.mrb[0].mxu0
        %v2853 = vpop.f32.mrb[0].mxu0
        %v2854 = vadd.f32 %v2638, %v2853
        %v2855 = vpop.f32.mrb[0].mxu0
        %2856 = vmatprep.mubr.bf16.mxu0 0
        %2857 = vmatmul.mubr.bf16.gmra.mrb[0].mxu0 %v2339
        %v2858 = vpop.f32.mrb[0].mxu0
        %v2859 = vadd.f32 %v2643, %v2858
        %v2860 = vpop.f32.mrb[0].mxu0
        %v2861 = vpop.f32.mrb[0].mxu0
        %v2862 = vadd.f32 %v2646, %v2861
        %v2863 = vpop.f32.mrb[0].mxu0
        %2864 = vmatprep.mubr.bf16.mxu0 0
        %2865 = vmatmul.mubr.bf16.gmra.mrb[0].mxu0 %v2342
        %v2866 = vpop.f32.mrb[0].mxu0
        %v2867 = vadd.f32 %v2651, %v2866
        %v2868 = vpop.f32.mrb[0].mxu0
        %v2869 = vpop.f32.mrb[0].mxu0
        %v2870 = vadd.f32 %v2654, %v2869
        %v2871 = vpop.f32.mrb[0].mxu0
        %2872 = vmatprep.mubr.bf16.mxu0 0
        %2873 = vmatmul.mubr.bf16.gmra.mrb[0].mxu0 %v2345
        %v2874 = vpop.f32.mrb[0].mxu0
        %v2875 = vadd.f32 %v2659, %v2874
        %v2876 = vpop.f32.mrb[0].mxu0
        %v2877 = vpop.f32.mrb[0].mxu0
        %v2878 = vadd.f32 %v2662, %v2877
        %v2879 = vpop.f32.mrb[0].mxu0
        %2880 = vmatprep.mubr.bf16.mxu0 0
        %2881 = vmatmul.mubr.bf16.gmra.mrb[0].mxu0 %v2348
        %v2882 = vpop.f32.mrb[0].mxu0
        %v2883 = vadd.f32 %v2667, %v2882
        %v2884 = vpop.f32.mrb[0].mxu0
        %v2885 = vpop.f32.mrb[0].mxu0
        %v2886 = vadd.f32 %v2670, %v2885
        %v2887 = vpop.f32.mrb[0].mxu0
        %2888 = vmatprep.mubr.bf16.mxu0 0
        %2889 = vmatmul.mubr.bf16.gmra.mrb[0].mxu0 %v2351
        %v2890 = vpop.f32.mrb[0].mxu0
        %v2891 = vadd.f32 %v2675, %v2890
        %v2892 = vpop.f32.mrb[0].mxu0
        %v2893 = vpop.f32.mrb[0].mxu0
        %v2894 = vadd.f32 %v2678, %v2893
        %v2895 = vpop.f32.mrb[0].mxu0
        %2896 = vmatprep.mubr.bf16.mxu0 0
        %2897 = vmatmul.mubr.bf16.gmra.mrb[0].mxu0 %v2354
        %v2898 = vpop.f32.mrb[0].mxu0
        %v2899 = vadd.f32 %v2683, %v2898
        %v2900 = vpop.f32.mrb[0].mxu0
        %v2901 = vpop.f32.mrb[0].mxu0
        %v2902 = vadd.f32 %v2686, %v2901
        %v2903 = vpop.f32.mrb[0].mxu0
        %2904 = vmatprep.mubr.bf16.mxu0 0
        %2905 = vmatmul.mubr.bf16.gmra.mrb[0].mxu0 %v2357
        %v2906 = vpop.f32.mrb[0].mxu0
        %v2907 = vadd.f32 %v2691, %v2906
        %v2908 = vpop.f32.mrb[0].mxu0
        %v2909 = vpop.f32.mrb[0].mxu0
        %v2910 = vadd.f32 %v2694, %v2909
        %v2911 = vpop.f32.mrb[0].mxu0
        %2912 = vmatprep.mubr.bf16.mxu0 0
        %2913 = vmatmul.mubr.bf16.gmra.mrb[0].mxu0 %v2360
        %v2914 = vpop.f32.mrb[0].mxu0
        %v2915 = vadd.f32 %v2699, %v2914
        %v2916 = vpop.f32.mrb[0].mxu0
        %v2917 = vpop.f32.mrb[0].mxu0
        %v2918 = vadd.f32 %v2702, %v2917
        %v2919 = vpop.f32.mrb[0].mxu0
        %2920 = vmatprep.mubr.bf16.mxu0 0
        %2921 = vmatmul.mubr.bf16.gmra.mrb[0].mxu0 %v2363
        %v2922 = vpop.f32.mrb[0].mxu0
        %v2923 = vadd.f32 %v2707, %v2922
        %v2924 = vpop.f32.mrb[0].mxu0
        %v2925 = vpop.f32.mrb[0].mxu0
        %v2926 = vadd.f32 %v2710, %v2925
        %v2927 = vpop.f32.mrb[0].mxu0
        %2928 = vmatprep.mubr.bf16.mxu0 0
        %2929 = vmatmul.mubr.bf16.gmra.mrb[0].mxu0 %v2366
        %v2930 = vpop.f32.mrb[0].mxu0
        %v2931 = vadd.f32 %v2715, %v2930
        %v2932 = vpop.f32.mrb[0].mxu0
        %v2933 = vpop.f32.mrb[0].mxu0
        %v2934 = vadd.f32 %v2718, %v2933
        %v2935 = vpop.f32.mrb[0].mxu0
        %2936 = vmatprep.mubr.bf16.mxu0 0
        %2937 = vmatmul.mubr.bf16.gmra.mrb[0].mxu0 %v2369
        %v2938 = vpop.f32.mrb[0].mxu0
        %v2939 = vadd.f32 %v2723, %v2938
        %v2940 = vpop.f32.mrb[0].mxu0
        %v2941 = vpop.f32.mrb[0].mxu0
        %v2942 = vadd.f32 %v2726, %v2941
        %v2943 = vpop.f32.mrb[0].mxu0
        %2944 = vmatprep.mubr.bf16.mxu0 0
        %2945 = vmatmul.mubr.bf16.gmra.mrb[0].mxu0 %v2372
        %v2946 = vpop.f32.mrb[0].mxu0
        %v2947 = vadd.f32 %v2731, %v2946
        %v2948 = vpop.f32.mrb[0].mxu0
        %v2949 = vpop.f32.mrb[0].mxu0
        %v2950 = vadd.f32 %v2734, %v2949
        %v2951 = vpop.f32.mrb[0].mxu0
        %2952 = vmatprep.mubr.bf16.mxu0 0
        %2953 = vmatmul.mubr.bf16.gmra.mrb[0].mxu0 %v2375
        %v2954 = vpop.f32.mrb[0].mxu0
        %v2955 = vadd.f32 %v2739, %v2954
        %v2956 = vpop.f32.mrb[0].mxu0
        %v2957 = vpop.f32.mrb[0].mxu0
        %v2958 = vadd.f32 %v2742, %v2957
        %v2959 = vpop.f32.mrb[0].mxu0
        %2960 = vmatprep.mubr.bf16.mxu0 0
        %2961 = vmatmul.mubr.bf16.gmra.mrb[0].mxu0 %v2378
        %v2962 = vpop.f32.mrb[0].mxu0
        %v2963 = vadd.f32 %v2747, %v2962
        %v2964 = vpop.f32.mrb[0].mxu0
        %v2965 = vpop.f32.mrb[0].mxu0
        %v2966 = vadd.f32 %v2750, %v2965
        %v2967 = vpop.f32.mrb[0].mxu0
        %2968 = vmatprep.mubr.bf16.mxu0 0
        %2969 = vmatmul.mubr.bf16.gmra.mrb[0].mxu0 %v2381
        %v2970 = vpop.f32.mrb[0].mxu0
        %v2971 = vadd.f32 %v2755, %v2970
        %v2972 = vpop.f32.mrb[0].mxu0
        %v2973 = vpop.f32.mrb[0].mxu0
        %v2974 = vadd.f32 %v2758, %v2973
        %v2975 = vpop.f32.mrb[0].mxu0
        %2976 = vmatprep.mubr.bf16.mxu0 0
        %2977 = vmatmul.mubr.bf16.gmra.mrb[0].mxu0 %v2384
        %v2978 = vpop.f32.mrb[0].mxu0
        %v2979 = vadd.f32 %v2763, %v2978
        %v2980 = vpop.f32.mrb[0].mxu0
        %v2981 = vpop.f32.mrb[0].mxu0
        %v2982 = vadd.f32 %v2766, %v2981
        %v2983 = vpop.f32.mrb[0].mxu0
        %2984 = vmatprep.mubr.bf16.mxu0 0
        %2985 = vmatmul.mubr.bf16.gmra.mrb[0].mxu0 %v2387
        %v2986 = vpop.f32.mrb[0].mxu0
        %v2987 = vadd.f32 %v2771, %v2986
        %v2988 = vpop.f32.mrb[0].mxu0
        %v2989 = vpop.f32.mrb[0].mxu0
        %v2990 = vadd.f32 %v2774, %v2989
        %v2991 = vpop.f32.mrb[0].mxu0
        %2992 = vmatprep.mubr.bf16.mxu0 0
        %2993 = vmatmul.mubr.bf16.gmra.mrb[0].mxu0 %v943
        %v2994 = vpop.f32.mrb[0].mxu0
        %v2995 = vadd.f32 %v2779, %v2994
        %v2996 = vpop.f32.mrb[0].mxu0
        %v2997 = vpop.f32.mrb[0].mxu0
        %v2998 = vadd.f32 %v2782, %v2997
        %v2999 = vpop.f32.mrb[0].mxu0
        %3000 = vmatprep.mubr.bf16.mxu0 0
        %3001 = vmatmul.mubr.bf16.gmra.mrb[0].mxu0 %v946
        %v3002 = vpop.f32.mrb[0].mxu0
        %v3003 = vadd.f32 %v2787, %v3002
        %v3004 = vpop.f32.mrb[0].mxu0
        %v3005 = vpop.f32.mrb[0].mxu0
        %v3006 = vadd.f32 %v2790, %v3005
        %v3007 = vpop.f32.mrb[0].mxu0
        %3008 = vmatprep.mubr.bf16.mxu0 0
        %3009 = vmatmul.mubr.bf16.gmra.mrb[0].mxu0 %v2390
        %v3010 = vpop.f32.mrb[0].mxu0
        %v3011 = vadd.f32 %v2795, %v3010
        %v3012 = vpop.f32.mrb[0].mxu0
        %v3013 = vpop.f32.mrb[0].mxu0
        %v3014 = vpop.f32.mrb[0].mxu0
        %3015 = vdwg.mxu0
        %v3016 = vadd.f32 %v2147, %v2835
        %v3017 = vadd.f32 %v2150, %v2838
        %v3018 = vadd.f32 %v2155, %v2843
        %v3019 = vadd.f32 %v2158, %v2846
        %v3020 = vadd.f32 %v2163, %v2851
        %v3021 = vadd.f32 %v2166, %v2854
        %v3022 = vadd.f32 %v2171, %v2859
        %v3023 = vadd.f32 %v2174, %v2862
        %v3024 = vadd.f32 %v2179, %v2867
        %v3025 = vadd.f32 %v2182, %v2870
        %v3026 = vadd.f32 %v2187, %v2875
        %v3027 = vadd.f32 %v2190, %v2878
        %v3028 = vadd.f32 %v2195, %v2883
        %v3029 = vadd.f32 %v2198, %v2886
        %v3030 = vadd.f32 %v2203, %v2891
        %v3031 = vadd.f32 %v2206, %v2894
        %v3032 = vadd.f32 %v2211, %v2899
        %v3033 = vadd.f32 %v2214, %v2902
        %v3034 = vadd.f32 %v2219, %v2907
        %v3035 = vadd.f32 %v2222, %v2910
        %v3036 = vadd.f32 %v2227, %v2915
        %v3037 = vadd.f32 %v2230, %v2918
        %v3038 = vadd.f32 %v2235, %v2923
        %v3039 = vadd.f32 %v2238, %v2926
        %v3040 = vadd.f32 %v2243, %v2931
        %v3041 = vadd.f32 %v2246, %v2934
        %v3042 = vadd.f32 %v2251, %v2939
        %v3043 = vadd.f32 %v2254, %v2942
        %v3044 = vadd.f32 %v2259, %v2947
        %v3045 = vadd.f32 %v2262, %v2950
        %v3046 = vadd.f32 %v2267, %v2955
        %v3047 = vadd.f32 %v2270, %v2958
        %v3048 = vadd.f32 %v2275, %v2963
        %v3049 = vadd.f32 %v2278, %v2966
        %v3050 = vadd.f32 %v2283, %v2971
        %v3051 = vadd.f32 %v2286, %v2974
        %v3052 = vadd.f32 %v2291, %v2979
        %v3053 = vadd.f32 %v2294, %v2982
        %v3054 = vadd.f32 %v2299, %v2987
        %v3055 = vadd.f32 %v2302, %v2990
        %v3056 = vadd.f32 %v2307, %v2995
        %v3057 = vadd.f32 %v2310, %v2998
        %v3058 = vadd.f32 %v2315, %v3003
        %v3059 = vadd.f32 %v2318, %v3006
        %v3060 = vadd.f32 %v2323, %v3011
        %v3061 = vld [vmem:[%s2] sm:$0x1]
        %v3063 = vlaneseq
        %v3064 = vshrl.u32 %v3063, 7
        %v3065 = vsub.s32 0, %v3064
        %v3066 = vrot.slane %v3061, %v3065
        %v3068 = vadd.f32 %v3016, %v3066
        %v3069 = vadd.f32 %v3017, %v3066
        %v3070 = vadd.f32 %v3018, %v3066
        %v3071 = vadd.f32 %v3019, %v3066
        %v3072 = vadd.f32 %v3020, %v3066
        %v3073 = vadd.f32 %v3021, %v3066
        %v3074 = vadd.f32 %v3022, %v3066
        %v3075 = vadd.f32 %v3023, %v3066
        %v3076 = vadd.f32 %v3024, %v3066
        %v3077 = vadd.f32 %v3025, %v3066
        %v3078 = vadd.f32 %v3026, %v3066
        %v3079 = vadd.f32 %v3027, %v3066
        %v3080 = vadd.f32 %v3028, %v3066
        %v3081 = vadd.f32 %v3029, %v3066
        %v3082 = vadd.f32 %v3030, %v3066
        %v3083 = vadd.f32 %v3031, %v3066
        %v3084 = vadd.f32 %v3032, %v3066
        %v3085 = vadd.f32 %v3033, %v3066
        %v3086 = vadd.f32 %v3034, %v3066
        %v3087 = vadd.f32 %v3035, %v3066
        %v3088 = vadd.f32 %v3036, %v3066
        %v3089 = vadd.f32 %v3037, %v3066
        %v3090 = vadd.f32 %v3038, %v3066
        %v3091 = vadd.f32 %v3039, %v3066
        %v3092 = vadd.f32 %v3040, %v3066
        %v3093 = vadd.f32 %v3041, %v3066
        %v3094 = vadd.f32 %v3042, %v3066
        %v3095 = vadd.f32 %v3043, %v3066
        %v3096 = vadd.f32 %v3044, %v3066
        %v3097 = vadd.f32 %v3045, %v3066
        %v3098 = vadd.f32 %v3046, %v3066
        %v3099 = vadd.f32 %v3047, %v3066
        %v3100 = vadd.f32 %v3048, %v3066
        %v3101 = vadd.f32 %v3049, %v3066
        %v3102 = vadd.f32 %v3050, %v3066
        %v3103 = vadd.f32 %v3051, %v3066
        %v3104 = vadd.f32 %v3052, %v3066
        %v3105 = vadd.f32 %v3053, %v3066
        %v3106 = vadd.f32 %v3054, %v3066
        %v3107 = vadd.f32 %v3055, %v3066
        %v3108 = vadd.f32 %v3056, %v3066
        %v3109 = vadd.f32 %v3057, %v3066
        %v3110 = vadd.f32 %v3058, %v3066
        %v3111 = vadd.f32 %v3059, %v3066
        %v3112 = vadd.f32 %v3060, %v3066
        %v3113 = vmax.f32 %v3068, 0.0
        %v3114 = vmax.f32 %v3069, 0.0
        %v3115 = vmax.f32 %v3070, 0.0
        %v3116 = vmax.f32 %v3071, 0.0
        %v3117 = vmax.f32 %v3072, 0.0
        %v3118 = vmax.f32 %v3073, 0.0
        %v3119 = vmax.f32 %v3074, 0.0
        %v3120 = vmax.f32 %v3075, 0.0
        %v3121 = vmax.f32 %v3076, 0.0
        %v3122 = vmax.f32 %v3077, 0.0
        %v3123 = vmax.f32 %v3078, 0.0
        %v3124 = vmax.f32 %v3079, 0.0
        %v3125 = vmax.f32 %v3080, 0.0
        %v3126 = vmax.f32 %v3081, 0.0
        %v3127 = vmax.f32 %v3082, 0.0
        %v3128 = vmax.f32 %v3083, 0.0
        %v3129 = vmax.f32 %v3084, 0.0
        %v3130 = vmax.f32 %v3085, 0.0
        %v3131 = vmax.f32 %v3086, 0.0
        %v3132 = vmax.f32 %v3087, 0.0
        %v3133 = vmax.f32 %v3088, 0.0
        %v3134 = vmax.f32 %v3089, 0.0
        %v3135 = vmax.f32 %v3090, 0.0
        %v3136 = vmax.f32 %v3091, 0.0
        %v3137 = vmax.f32 %v3092, 0.0
        %v3138 = vmax.f32 %v3093, 0.0
        %v3139 = vmax.f32 %v3094, 0.0
        %v3140 = vmax.f32 %v3095, 0.0
        %v3141 = vmax.f32 %v3096, 0.0
        %v3142 = vmax.f32 %v3097, 0.0
        %v3143 = vmax.f32 %v3098, 0.0
        %v3144 = vmax.f32 %v3099, 0.0
        %v3145 = vmax.f32 %v3100, 0.0
        %v3146 = vmax.f32 %v3101, 0.0
        %v3147 = vmax.f32 %v3102, 0.0
        %v3148 = vmax.f32 %v3103, 0.0
        %v3149 = vmax.f32 %v3104, 0.0
        %v3150 = vmax.f32 %v3105, 0.0
        %v3151 = vmax.f32 %v3106, 0.0
        %v3152 = vmax.f32 %v3107, 0.0
        %v3153 = vmax.f32 %v3108, 0.0
        %v3154 = vmax.f32 %v3109, 0.0
        %v3155 = vmax.f32 %v3110, 0.0
        %v3156 = vmax.f32 %v3111, 0.0
        %v3157 = vmax.f32 %v3112, 0.0
        %v3158 = vld [vmem:[%s5] sm:$0xff]
        %v3159 = vld [vmem:[%s5 + $0x8] sm:$0xff]
        %v3160 = vld [vmem:[%s5 + $0x10] sm:$0xff]
        %v3161 = vld [vmem:[%s5 + $0x18] sm:$0xff]
        %v3162 = vld [vmem:[%s5 + $0x20] sm:$0xff]
        %v3163 = vld [vmem:[%s5 + $0x28] sm:$0xff]
        %v3164 = vld [vmem:[%s5 + $0x30] sm:$0xff]
        %v3165 = vld [vmem:[%s5 + $0x38] sm:$0xff]
        %v3166 = vld [vmem:[%s5 + $0x40] sm:$0xff]
        %v3167 = vld [vmem:[%s5 + $0x48] sm:$0xff]
        %v3168 = vld [vmem:[%s5 + $0x50] sm:$0xff]
        %v3169 = vld [vmem:[%s5 + $0x58] sm:$0xff]
        %v3170 = vld [vmem:[%s5 + $0x60] sm:$0xff]
        %v3171 = vld [vmem:[%s5 + $0x68] sm:$0xff]
        %v3172 = vld [vmem:[%s5 + $0x70] sm:$0xff]
        %v3173 = vld [vmem:[%s5 + $0x78] sm:$0xff]
        %v3174 = vld [vmem:[%s5 + $0x80] sm:$0xff]
        %v3175 = vld [vmem:[%s5 + $0x88] sm:$0xff]
        %v3176 = vld [vmem:[%s5 + $0x90] sm:$0xff]
        %v3177 = vld [vmem:[%s5 + $0x98] sm:$0xff]
        %v3178 = vld [vmem:[%s5 + $0xa0] sm:$0xff]
        %v3179 = vld [vmem:[%s5 + $0xa8] sm:$0xff]
        %v3180 = vld [vmem:[%s5 + $0xb0] sm:$0xff]
        %v3181 = vld [vmem:[%s5 + $0xb8] sm:$0xff]
        %v3182 = vld [vmem:[%s5 + $0xc0] sm:$0xff]
        %v3183 = vld [vmem:[%s5 + $0xc8] sm:$0xff]
        %v3184 = vld [vmem:[%s5 + $0xd0] sm:$0xff]
        %v3185 = vld [vmem:[%s5 + $0xd8] sm:$0xff]
        %v3186 = vld [vmem:[%s5 + $0xe0] sm:$0xff]
        %v3187 = vld [vmem:[%s5 + $0xe8] sm:$0xff]
        %v3188 = vld [vmem:[%s5 + $0xf0] sm:$0xff]
        %v3189 = vld [vmem:[%s5 + $0xf8] sm:$0xff]
        %v3190 = vld [vmem:[%s5 + $0x100] sm:$0xff]
        %v3191 = vld [vmem:[%s5 + $0x108] sm:$0xff]
        %v3192 = vld [vmem:[%s5 + $0x110] sm:$0xff]
        %v3193 = vld [vmem:[%s5 + $0x118] sm:$0xff]
        %v3194 = vld [vmem:[%s5 + $0x120] sm:$0xff]
        %v3195 = vld [vmem:[%s5 + $0x128] sm:$0xff]
        %v3196 = vld [vmem:[%s5 + $0x130] sm:$0xff]
        %v3197 = vld [vmem:[%s5 + $0x138] sm:$0xff]
        %v3198 = vld [vmem:[%s5 + $0x140] sm:$0xff]
        %v3199 = vld [vmem:[%s5 + $0x148] sm:$0xff]
        %v3200 = vld [vmem:[%s5 + $0x150] sm:$0xff]
        %v3201 = vld [vmem:[%s5 + $0x158] sm:$0xff]
        %v3202 = vld [vmem:[%s5 + $0x160] sm:$0xff]
        %3204 = vset.pattern.permute.xlu0 0
        %3205 = vperm.xlu0 %3204, %v3158
        %v3206 = vpop.permute.xlu0 %3205
        %3209 = vset.pattern.permute.xlu0 0
        %3210 = vperm.xlu0 %3209, %v3159
        %v3211 = vpop.permute.xlu0 %3210
        %3214 = vset.pattern.permute.xlu0 0
        %3215 = vperm.xlu0 %3214, %v3160
        %v3216 = vpop.permute.xlu0 %3215
        %3219 = vset.pattern.permute.xlu0 0
        %3220 = vperm.xlu0 %3219, %v3161
        %v3221 = vpop.permute.xlu0 %3220
        %3224 = vset.pattern.permute.xlu0 0
        %3225 = vperm.xlu0 %3224, %v3162
        %v3226 = vpop.permute.xlu0 %3225
        %3229 = vset.pattern.permute.xlu0 0
        %3230 = vperm.xlu0 %3229, %v3163
        %v3231 = vpop.permute.xlu0 %3230
        %3234 = vset.pattern.permute.xlu0 0
        %3235 = vperm.xlu0 %3234, %v3164
        %v3236 = vpop.permute.xlu0 %3235
        %3239 = vset.pattern.permute.xlu0 0
        %3240 = vperm.xlu0 %3239, %v3165
        %v3241 = vpop.permute.xlu0 %3240
        %3244 = vset.pattern.permute.xlu0 0
        %3245 = vperm.xlu0 %3244, %v3166
        %v3246 = vpop.permute.xlu0 %3245
        %3249 = vset.pattern.permute.xlu0 0
        %3250 = vperm.xlu0 %3249, %v3167
        %v3251 = vpop.permute.xlu0 %3250
        %3254 = vset.pattern.permute.xlu0 0
        %3255 = vperm.xlu0 %3254, %v3168
        %v3256 = vpop.permute.xlu0 %3255
        %3259 = vset.pattern.permute.xlu0 0
        %3260 = vperm.xlu0 %3259, %v3169
        %v3261 = vpop.permute.xlu0 %3260
        %3264 = vset.pattern.permute.xlu0 0
        %3265 = vperm.xlu0 %3264, %v3170
        %v3266 = vpop.permute.xlu0 %3265
        %3269 = vset.pattern.permute.xlu0 0
        %3270 = vperm.xlu0 %3269, %v3171
        %v3271 = vpop.permute.xlu0 %3270
        %3274 = vset.pattern.permute.xlu0 0
        %3275 = vperm.xlu0 %3274, %v3172
        %v3276 = vpop.permute.xlu0 %3275
        %3279 = vset.pattern.permute.xlu0 0
        %3280 = vperm.xlu0 %3279, %v3173
        %v3281 = vpop.permute.xlu0 %3280
        %3284 = vset.pattern.permute.xlu0 0
        %3285 = vperm.xlu0 %3284, %v3174
        %v3286 = vpop.permute.xlu0 %3285
        %3289 = vset.pattern.permute.xlu0 0
        %3290 = vperm.xlu0 %3289, %v3175
        %v3291 = vpop.permute.xlu0 %3290
        %3294 = vset.pattern.permute.xlu0 0
        %3295 = vperm.xlu0 %3294, %v3176
        %v3296 = vpop.permute.xlu0 %3295
        %3299 = vset.pattern.permute.xlu0 0
        %3300 = vperm.xlu0 %3299, %v3177
        %v3301 = vpop.permute.xlu0 %3300
        %3304 = vset.pattern.permute.xlu0 0
        %3305 = vperm.xlu0 %3304, %v3178
        %v3306 = vpop.permute.xlu0 %3305
        %3309 = vset.pattern.permute.xlu0 0
        %3310 = vperm.xlu0 %3309, %v3179
        %v3311 = vpop.permute.xlu0 %3310
        %3314 = vset.pattern.permute.xlu0 0
        %3315 = vperm.xlu0 %3314, %v3180
        %v3316 = vpop.permute.xlu0 %3315
        %3319 = vset.pattern.permute.xlu0 0
        %3320 = vperm.xlu0 %3319, %v3181
        %v3321 = vpop.permute.xlu0 %3320
        %3324 = vset.pattern.permute.xlu0 0
        %3325 = vperm.xlu0 %3324, %v3182
        %v3326 = vpop.permute.xlu0 %3325
        %3329 = vset.pattern.permute.xlu0 0
        %3330 = vperm.xlu0 %3329, %v3183
        %v3331 = vpop.permute.xlu0 %3330
        %3334 = vset.pattern.permute.xlu0 0
        %3335 = vperm.xlu0 %3334, %v3184
        %v3336 = vpop.permute.xlu0 %3335
        %3339 = vset.pattern.permute.xlu0 0
        %3340 = vperm.xlu0 %3339, %v3185
        %v3341 = vpop.permute.xlu0 %3340
        %3344 = vset.pattern.permute.xlu0 0
        %3345 = vperm.xlu0 %3344, %v3186
        %v3346 = vpop.permute.xlu0 %3345
        %3349 = vset.pattern.permute.xlu0 0
        %3350 = vperm.xlu0 %3349, %v3187
        %v3351 = vpop.permute.xlu0 %3350
        %3354 = vset.pattern.permute.xlu0 0
        %3355 = vperm.xlu0 %3354, %v3188
        %v3356 = vpop.permute.xlu0 %3355
        %3359 = vset.pattern.permute.xlu0 0
        %3360 = vperm.xlu0 %3359, %v3189
        %v3361 = vpop.permute.xlu0 %3360
        %3364 = vset.pattern.permute.xlu0 0
        %3365 = vperm.xlu0 %3364, %v3190
        %v3366 = vpop.permute.xlu0 %3365
        %3369 = vset.pattern.permute.xlu0 0
        %3370 = vperm.xlu0 %3369, %v3191
        %v3371 = vpop.permute.xlu0 %3370
        %3374 = vset.pattern.permute.xlu0 0
        %3375 = vperm.xlu0 %3374, %v3192
        %v3376 = vpop.permute.xlu0 %3375
        %3379 = vset.pattern.permute.xlu0 0
        %3380 = vperm.xlu0 %3379, %v3193
        %v3381 = vpop.permute.xlu0 %3380
        %3384 = vset.pattern.permute.xlu0 0
        %3385 = vperm.xlu0 %3384, %v3194
        %v3386 = vpop.permute.xlu0 %3385
        %3389 = vset.pattern.permute.xlu0 0
        %3390 = vperm.xlu0 %3389, %v3195
        %v3391 = vpop.permute.xlu0 %3390
        %3394 = vset.pattern.permute.xlu0 0
        %3395 = vperm.xlu0 %3394, %v3196
        %v3396 = vpop.permute.xlu0 %3395
        %3399 = vset.pattern.permute.xlu0 0
        %3400 = vperm.xlu0 %3399, %v3197
        %v3401 = vpop.permute.xlu0 %3400
        %3404 = vset.pattern.permute.xlu0 0
        %3405 = vperm.xlu0 %3404, %v3198
        %v3406 = vpop.permute.xlu0 %3405
        %3409 = vset.pattern.permute.xlu0 0
        %3410 = vperm.xlu0 %3409, %v3199
        %v3411 = vpop.permute.xlu0 %3410
        %3414 = vset.pattern.permute.xlu0 0
        %3415 = vperm.xlu0 %3414, %v3200
        %v3416 = vpop.permute.xlu0 %3415
        %3419 = vset.pattern.permute.xlu0 0
        %3420 = vperm.xlu0 %3419, %v3201
        %v3421 = vpop.permute.xlu0 %3420
        %3424 = vset.pattern.permute.xlu0 0
        %3425 = vperm.xlu0 %3424, %v3202
        %v3426 = vpop.permute.xlu0 %3425
        %v3428 = vmul.f32 %v3113, %v3206
        %v3429 = vmul.f32 %v3114, %v3211
        %v3430 = vmul.f32 %v3115, %v3216
        %v3431 = vmul.f32 %v3116, %v3221
        %v3432 = vmul.f32 %v3117, %v3226
        %v3433 = vmul.f32 %v3118, %v3231
        %v3434 = vmul.f32 %v3119, %v3236
        %v3435 = vmul.f32 %v3120, %v3241
        %v3436 = vmul.f32 %v3121, %v3246
        %v3437 = vmul.f32 %v3122, %v3251
        %v3438 = vmul.f32 %v3123, %v3256
        %v3439 = vmul.f32 %v3124, %v3261
        %v3440 = vmul.f32 %v3125, %v3266
        %v3441 = vmul.f32 %v3126, %v3271
        %v3442 = vmul.f32 %v3127, %v3276
        %v3443 = vmul.f32 %v3128, %v3281
        %v3444 = vmul.f32 %v3129, %v3286
        %v3445 = vmul.f32 %v3130, %v3291
        %v3446 = vmul.f32 %v3131, %v3296
        %v3447 = vmul.f32 %v3132, %v3301
        %v3448 = vmul.f32 %v3133, %v3306
        %v3449 = vmul.f32 %v3134, %v3311
        %v3450 = vmul.f32 %v3135, %v3316
        %v3451 = vmul.f32 %v3136, %v3321
        %v3452 = vmul.f32 %v3137, %v3326
        %v3453 = vmul.f32 %v3138, %v3331
        %v3454 = vmul.f32 %v3139, %v3336
        %v3455 = vmul.f32 %v3140, %v3341
        %v3456 = vmul.f32 %v3141, %v3346
        %v3457 = vmul.f32 %v3142, %v3351
        %v3458 = vmul.f32 %v3143, %v3356
        %v3459 = vmul.f32 %v3144, %v3361
        %v3460 = vmul.f32 %v3145, %v3366
        %v3461 = vmul.f32 %v3146, %v3371
        %v3462 = vmul.f32 %v3147, %v3376
        %v3463 = vmul.f32 %v3148, %v3381
        %v3464 = vmul.f32 %v3149, %v3386
        %v3465 = vmul.f32 %v3150, %v3391
        %v3466 = vmul.f32 %v3151, %v3396
        %v3467 = vmul.f32 %v3152, %v3401
        %v3468 = vmul.f32 %v3153, %v3406
        %v3469 = vmul.f32 %v3154, %v3411
        %v3470 = vmul.f32 %v3155, %v3416
        %v3471 = vmul.f32 %v3156, %v3421
        %v3472 = vmul.f32 %v3157, %v3426
        %v3473 = vrot.slane %v3428, 7
        %v3474 = vrot.slane %v3429, 7
        %v3475 = vrot.slane %v3430, 7
        %v3476 = vrot.slane %v3431, 7
        %v3477 = vrot.slane %v3432, 7
        %v3478 = vrot.slane %v3433, 7
        %v3479 = vrot.slane %v3434, 7
        %v3480 = vrot.slane %v3435, 7
        %v3481 = vrot.slane %v3436, 7
        %v3482 = vrot.slane %v3437, 7
        %v3483 = vrot.slane %v3438, 7
        %v3484 = vrot.slane %v3439, 7
        %v3485 = vrot.slane %v3440, 7
        %v3486 = vrot.slane %v3441, 7
        %v3487 = vrot.slane %v3442, 7
        %v3488 = vrot.slane %v3443, 7
        %v3489 = vrot.slane %v3444, 7
        %v3490 = vrot.slane %v3445, 7
        %v3491 = vrot.slane %v3446, 7
        %v3492 = vrot.slane %v3447, 7
        %v3493 = vrot.slane %v3448, 7
        %v3494 = vrot.slane %v3449, 7
        %v3495 = vrot.slane %v3450, 7
        %v3496 = vrot.slane %v3451, 7
        %v3497 = vrot.slane %v3452, 7
        %v3498 = vrot.slane %v3453, 7
        %v3499 = vrot.slane %v3454, 7
        %v3500 = vrot.slane %v3455, 7
        %v3501 = vrot.slane %v3456, 7
        %v3502 = vrot.slane %v3457, 7
        %v3503 = vrot.slane %v3458, 7
        %v3504 = vrot.slane %v3459, 7
        %v3505 = vrot.slane %v3460, 7
        %v3506 = vrot.slane %v3461, 7
        %v3507 = vrot.slane %v3462, 7
        %v3508 = vrot.slane %v3463, 7
        %v3509 = vrot.slane %v3464, 7
        %v3510 = vrot.slane %v3465, 7
        %v3511 = vrot.slane %v3466, 7
        %v3512 = vrot.slane %v3467, 7
        %v3513 = vrot.slane %v3468, 7
        %v3514 = vrot.slane %v3469, 7
        %v3515 = vrot.slane %v3470, 7
        %v3516 = vrot.slane %v3471, 7
        %v3517 = vrot.slane %v3472, 7
        %v3518 = vsel %vm533, %v3516, %v3517
        %v3519 = vsel %vm533, %v3515, %v3516
        %v3520 = vsel %vm533, %v3514, %v3515
        %v3521 = vsel %vm533, %v3513, %v3514
        %v3522 = vsel %vm533, %v3512, %v3513
        %v3523 = vsel %vm533, %v3511, %v3512
        %v3524 = vsel %vm533, %v3510, %v3511
        %v3525 = vsel %vm533, %v3509, %v3510
        %v3526 = vsel %vm533, %v3508, %v3509
        %v3527 = vsel %vm533, %v3507, %v3508
        %v3528 = vsel %vm533, %v3506, %v3507
        %v3529 = vsel %vm533, %v3505, %v3506
        %v3530 = vsel %vm533, %v3504, %v3505
        %v3531 = vsel %vm533, %v3503, %v3504
        %v3532 = vsel %vm533, %v3502, %v3503
        %v3533 = vsel %vm533, %v3501, %v3502
        %v3534 = vsel %vm533, %v3500, %v3501
        %v3535 = vsel %vm533, %v3499, %v3500
        %v3536 = vsel %vm533, %v3498, %v3499
        %v3537 = vsel %vm533, %v3497, %v3498
        %v3538 = vsel %vm533, %v3496, %v3497
        %v3539 = vsel %vm533, %v3495, %v3496
        %v3540 = vsel %vm533, %v3494, %v3495
        %v3541 = vsel %vm533, %v3493, %v3494
        %v3542 = vsel %vm533, %v3492, %v3493
        %v3543 = vsel %vm533, %v3491, %v3492
        %v3544 = vsel %vm533, %v3490, %v3491
        %v3545 = vsel %vm533, %v3489, %v3490
        %v3546 = vsel %vm533, %v3488, %v3489
        %v3547 = vsel %vm533, %v3487, %v3488
        %v3548 = vsel %vm533, %v3486, %v3487
        %v3549 = vsel %vm533, %v3485, %v3486
        %v3550 = vsel %vm533, %v3484, %v3485
        %v3551 = vsel %vm533, %v3483, %v3484
        %v3552 = vsel %vm533, %v3482, %v3483
        %v3553 = vsel %vm533, %v3481, %v3482
        %v3554 = vsel %vm533, %v3480, %v3481
        %v3555 = vsel %vm533, %v3479, %v3480
        %v3556 = vsel %vm533, %v3478, %v3479
        %v3557 = vsel %vm533, %v3477, %v3478
        %v3558 = vsel %vm533, %v3476, %v3477
        %v3559 = vsel %vm533, %v3475, %v3476
        %v3560 = vsel %vm533, %v3474, %v3475
        %v3561 = vsel %vm533, %v3473, %v3474
        %v3562 = vsel %vm533, %v3517, %v3473
        %v3563 = vrot.slane %v3428, 1
        %v3564 = vrot.slane %v3429, 1
        %v3565 = vrot.slane %v3430, 1
        %v3566 = vrot.slane %v3431, 1
        %v3567 = vrot.slane %v3432, 1
        %v3568 = vrot.slane %v3433, 1
        %v3569 = vrot.slane %v3434, 1
        %v3570 = vrot.slane %v3435, 1
        %v3571 = vrot.slane %v3436, 1
        %v3572 = vrot.slane %v3437, 1
        %v3573 = vrot.slane %v3438, 1
        %v3574 = vrot.slane %v3439, 1
        %v3575 = vrot.slane %v3440, 1
        %v3576 = vrot.slane %v3441, 1
        %v3577 = vrot.slane %v3442, 1
        %v3578 = vrot.slane %v3443, 1
        %v3579 = vrot.slane %v3444, 1
        %v3580 = vrot.slane %v3445, 1
        %v3581 = vrot.slane %v3446, 1
        %v3582 = vrot.slane %v3447, 1
        %v3583 = vrot.slane %v3448, 1
        %v3584 = vrot.slane %v3449, 1
        %v3585 = vrot.slane %v3450, 1
        %v3586 = vrot.slane %v3451, 1
        %v3587 = vrot.slane %v3452, 1
        %v3588 = vrot.slane %v3453, 1
        %v3589 = vrot.slane %v3454, 1
        %v3590 = vrot.slane %v3455, 1
        %v3591 = vrot.slane %v3456, 1
        %v3592 = vrot.slane %v3457, 1
        %v3593 = vrot.slane %v3458, 1
        %v3594 = vrot.slane %v3459, 1
        %v3595 = vrot.slane %v3460, 1
        %v3596 = vrot.slane %v3461, 1
        %v3597 = vrot.slane %v3462, 1
        %v3598 = vrot.slane %v3463, 1
        %v3599 = vrot.slane %v3464, 1
        %v3600 = vrot.slane %v3465, 1
        %v3601 = vrot.slane %v3466, 1
        %v3602 = vrot.slane %v3467, 1
        %v3603 = vrot.slane %v3468, 1
        %v3604 = vrot.slane %v3469, 1
        %v3605 = vrot.slane %v3470, 1
        %v3606 = vrot.slane %v3471, 1
        %v3607 = vrot.slane %v3472, 1
        %v3608 = vsel %vm624, %v3606, %v3607
        %v3609 = vsel %vm624, %v3605, %v3606
        %v3610 = vsel %vm624, %v3604, %v3605
        %v3611 = vsel %vm624, %v3603, %v3604
        %v3612 = vsel %vm624, %v3602, %v3603
        %v3613 = vsel %vm624, %v3601, %v3602
        %v3614 = vsel %vm624, %v3600, %v3601
        %v3615 = vsel %vm624, %v3599, %v3600
        %v3616 = vsel %vm624, %v3598, %v3599
        %v3617 = vsel %vm624, %v3597, %v3598
        %v3618 = vsel %vm624, %v3596, %v3597
        %v3619 = vsel %vm624, %v3595, %v3596
        %v3620 = vsel %vm624, %v3594, %v3595
        %v3621 = vsel %vm624, %v3593, %v3594
        %v3622 = vsel %vm624, %v3592, %v3593
        %v3623 = vsel %vm624, %v3591, %v3592
        %v3624 = vsel %vm624, %v3590, %v3591
        %v3625 = vsel %vm624, %v3589, %v3590
        %v3626 = vsel %vm624, %v3588, %v3589
        %v3627 = vsel %vm624, %v3587, %v3588
        %v3628 = vsel %vm624, %v3586, %v3587
        %v3629 = vsel %vm624, %v3585, %v3586
        %v3630 = vsel %vm624, %v3584, %v3585
        %v3631 = vsel %vm624, %v3583, %v3584
        %v3632 = vsel %vm624, %v3582, %v3583
        %v3633 = vsel %vm624, %v3581, %v3582
        %v3634 = vsel %vm624, %v3580, %v3581
        %v3635 = vsel %vm624, %v3579, %v3580
        %v3636 = vsel %vm624, %v3578, %v3579
        %v3637 = vsel %vm624, %v3577, %v3578
        %v3638 = vsel %vm624, %v3576, %v3577
        %v3639 = vsel %vm624, %v3575, %v3576
        %v3640 = vsel %vm624, %v3574, %v3575
        %v3641 = vsel %vm624, %v3573, %v3574
        %v3642 = vsel %vm624, %v3572, %v3573
        %v3643 = vsel %vm624, %v3571, %v3572
        %v3644 = vsel %vm624, %v3570, %v3571
        %v3645 = vsel %vm624, %v3569, %v3570
        %v3646 = vsel %vm624, %v3568, %v3569
        %v3647 = vsel %vm624, %v3567, %v3568
        %v3648 = vsel %vm624, %v3566, %v3567
        %v3649 = vsel %vm624, %v3565, %v3566
        %v3650 = vsel %vm624, %v3564, %v3565
        %v3651 = vsel %vm624, %v3563, %v3564
        %v3652 = vsel %vm624, %v3607, %v3563
        %v3653 = vrot.slane %v3562, 4
        %v3654 = vrot.slane %v3428, 4
        %v3655 = vrot.slane %v3651, 4
        %v3656 = vrot.slane %v3561, 4
        %v3657 = vrot.slane %v3429, 4
        %v3658 = vrot.slane %v3650, 4
        %v3659 = vrot.slane %v3560, 4
        %v3660 = vrot.slane %v3430, 4
        %v3661 = vrot.slane %v3649, 4
        %v3662 = vrot.slane %v3559, 4
        %v3663 = vrot.slane %v3431, 4
        %v3664 = vrot.slane %v3648, 4
        %v3665 = vrot.slane %v3558, 4
        %v3666 = vrot.slane %v3432, 4
        %v3667 = vrot.slane %v3647, 4
        %v3668 = vrot.slane %v3557, 4
        %v3669 = vrot.slane %v3433, 4
        %v3670 = vrot.slane %v3646, 4
        %v3671 = vrot.slane %v3556, 4
        %v3672 = vrot.slane %v3434, 4
        %v3673 = vrot.slane %v3645, 4
        %v3674 = vrot.slane %v3555, 4
        %v3675 = vrot.slane %v3435, 4
        %v3676 = vrot.slane %v3644, 4
        %v3677 = vrot.slane %v3554, 4
        %v3678 = vrot.slane %v3436, 4
        %v3679 = vrot.slane %v3643, 4
        %v3680 = vrot.slane %v3553, 4
        %v3681 = vrot.slane %v3437, 4
        %v3682 = vrot.slane %v3642, 4
        %v3683 = vrot.slane %v3552, 4
        %v3684 = vrot.slane %v3438, 4
        %v3685 = vrot.slane %v3641, 4
        %v3686 = vrot.slane %v3551, 4
        %v3687 = vrot.slane %v3439, 4
        %v3688 = vrot.slane %v3640, 4
        %v3689 = vrot.slane %v3550, 4
        %v3690 = vrot.slane %v3440, 4
        %v3691 = vrot.slane %v3639, 4
        %v3692 = vrot.slane %v3549, 4
        %v3693 = vrot.slane %v3441, 4
        %v3694 = vrot.slane %v3638, 4
        %v3695 = vrot.slane %v3548, 4
        %v3696 = vrot.slane %v3442, 4
        %v3697 = vrot.slane %v3637, 4
        %v3698 = vrot.slane %v3547, 4
        %v3699 = vrot.slane %v3443, 4
        %v3700 = vrot.slane %v3636, 4
        %v3701 = vrot.slane %v3546, 4
        %v3702 = vrot.slane %v3444, 4
        %v3703 = vrot.slane %v3635, 4
        %v3704 = vrot.slane %v3545, 4
        %v3705 = vrot.slane %v3445, 4
        %v3706 = vrot.slane %v3634, 4
        %v3707 = vrot.slane %v3544, 4
        %v3708 = vrot.slane %v3446, 4
        %v3709 = vrot.slane %v3633, 4
        %v3710 = vrot.slane %v3543, 4
        %v3711 = vrot.slane %v3447, 4
        %v3712 = vrot.slane %v3632, 4
        %v3713 = vrot.slane %v3542, 4
        %v3714 = vrot.slane %v3448, 4
        %v3715 = vrot.slane %v3631, 4
        %v3716 = vrot.slane %v3541, 4
        %v3717 = vrot.slane %v3449, 4
        %v3718 = vrot.slane %v3630, 4
        %v3719 = vrot.slane %v3540, 4
        %v3720 = vrot.slane %v3450, 4
        %v3721 = vrot.slane %v3629, 4
        %v3722 = vrot.slane %v3539, 4
        %v3723 = vrot.slane %v3451, 4
        %v3724 = vrot.slane %v3628, 4
        %v3725 = vrot.slane %v3538, 4
        %v3726 = vrot.slane %v3452, 4
        %v3727 = vrot.slane %v3627, 4
        %v3728 = vrot.slane %v3537, 4
        %v3729 = vrot.slane %v3453, 4
        %v3730 = vrot.slane %v3626, 4
        %v3731 = vrot.slane %v3536, 4
        %v3732 = vrot.slane %v3454, 4
        %v3733 = vrot.slane %v3625, 4
        %v3734 = vrot.slane %v3535, 4
        %v3735 = vrot.slane %v3455, 4
        %v3736 = vrot.slane %v3624, 4
        %v3737 = vrot.slane %v3534, 4
        %v3738 = vrot.slane %v3456, 4
        %v3739 = vrot.slane %v3623, 4
        %v3740 = vrot.slane %v3533, 4
        %v3741 = vrot.slane %v3457, 4
        %v3742 = vrot.slane %v3622, 4
        %v3743 = vrot.slane %v3532, 4
        %v3744 = vrot.slane %v3458, 4
        %v3745 = vrot.slane %v3621, 4
        %v3746 = vrot.slane %v3531, 4
        %v3747 = vrot.slane %v3459, 4
        %v3748 = vrot.slane %v3620, 4
        %v3749 = vrot.slane %v3530, 4
        %v3750 = vrot.slane %v3460, 4
        %v3751 = vrot.slane %v3619, 4
        %v3752 = vrot.slane %v3529, 4
        %v3753 = vrot.slane %v3461, 4
        %v3754 = vrot.slane %v3618, 4
        %v3755 = vrot.slane %v3528, 4
        %v3756 = vrot.slane %v3462, 4
        %v3757 = vrot.slane %v3617, 4
        %v3758 = vrot.slane %v3527, 4
        %v3759 = vrot.slane %v3463, 4
        %v3760 = vrot.slane %v3616, 4
        %v3761 = vrot.slane %v3526, 4
        %v3762 = vrot.slane %v3464, 4
        %v3763 = vrot.slane %v3615, 4
        %v3764 = vrot.slane %v3525, 4
        %v3765 = vrot.slane %v3465, 4
        %v3766 = vrot.slane %v3614, 4
        %v3767 = vrot.slane %v3524, 4
        %v3768 = vrot.slane %v3466, 4
        %v3769 = vrot.slane %v3613, 4
        %v3770 = vrot.slane %v3523, 4
        %v3771 = vrot.slane %v3467, 4
        %v3772 = vrot.slane %v3612, 4
        %v3773 = vrot.slane %v3522, 4
        %v3774 = vrot.slane %v3468, 4
        %v3775 = vrot.slane %v3611, 4
        %v3776 = vrot.slane %v3521, 4
        %v3777 = vrot.slane %v3469, 4
        %v3778 = vrot.slane %v3610, 4
        %v3779 = vrot.slane %v3520, 4
        %v3780 = vrot.slane %v3470, 4
        %v3781 = vrot.slane %v3609, 4
        %v3782 = vrot.slane %v3519, 4
        %v3783 = vrot.slane %v3471, 4
        %v3784 = vrot.slane %v3608, 4
        %v3785 = vrot.slane %v3518, 4
        %v3786 = vrot.slane %v3472, 4
        %v3787 = vrot.slane %v3652, 4
        %v3788 = vsel %vm805, %v3782, %v3785
        %v3789 = vsel %vm805, %v3783, %v3786
        %v3790 = vsel %vm805, %v3784, %v3787
        %v3791 = vsel %vm805, %v3779, %v3782
        %v3792 = vsel %vm805, %v3780, %v3783
        %v3793 = vsel %vm805, %v3781, %v3784
        %v3794 = vsel %vm805, %v3776, %v3779
        %v3795 = vsel %vm805, %v3777, %v3780
        %v3796 = vsel %vm805, %v3778, %v3781
        %v3797 = vsel %vm805, %v3773, %v3776
        %v3798 = vsel %vm805, %v3774, %v3777
        %v3799 = vsel %vm805, %v3775, %v3778
        %v3800 = vsel %vm805, %v3770, %v3773
        %v3801 = vsel %vm805, %v3771, %v3774
        %v3802 = vsel %vm805, %v3772, %v3775
        %v3803 = vsel %vm805, %v3767, %v3770
        %v3804 = vsel %vm805, %v3768, %v3771
        %v3805 = vsel %vm805, %v3769, %v3772
        %v3806 = vsel %vm805, %v3764, %v3767
        %v3807 = vsel %vm805, %v3765, %v3768
        %v3808 = vsel %vm805, %v3766, %v3769
        %v3809 = vsel %vm805, %v3761, %v3764
        %v3810 = vsel %vm805, %v3762, %v3765
        %v3811 = vsel %vm805, %v3763, %v3766
        %v3812 = vsel %vm805, %v3758, %v3761
        %v3813 = vsel %vm805, %v3759, %v3762
        %v3814 = vsel %vm805, %v3760, %v3763
        %v3815 = vsel %vm805, %v3755, %v3758
        %v3816 = vsel %vm805, %v3756, %v3759
        %v3817 = vsel %vm805, %v3757, %v3760
        %v3818 = vsel %vm805, %v3752, %v3755
        %v3819 = vsel %vm805, %v3753, %v3756
        %v3820 = vsel %vm805, %v3754, %v3757
        %v3821 = vsel %vm805, %v3749, %v3752
        %v3822 = vsel %vm805, %v3750, %v3753
        %v3823 = vsel %vm805, %v3751, %v3754
        %v3824 = vsel %vm805, %v3746, %v3749
        %v3825 = vsel %vm805, %v3747, %v3750
        %v3826 = vsel %vm805, %v3748, %v3751
        %v3827 = vsel %vm805, %v3743, %v3746
        %v3828 = vsel %vm805, %v3744, %v3747
        %v3829 = vsel %vm805, %v3745, %v3748
        %v3830 = vsel %vm805, %v3740, %v3743
        %v3831 = vsel %vm805, %v3741, %v3744
        %v3832 = vsel %vm805, %v3742, %v3745
        %v3833 = vsel %vm805, %v3737, %v3740
        %v3834 = vsel %vm805, %v3738, %v3741
        %v3835 = vsel %vm805, %v3739, %v3742
        %v3836 = vsel %vm805, %v3734, %v3737
        %v3837 = vsel %vm805, %v3735, %v3738
        %v3838 = vsel %vm805, %v3736, %v3739
        %v3839 = vsel %vm805, %v3731, %v3734
        %v3840 = vsel %vm805, %v3732, %v3735
        %v3841 = vsel %vm805, %v3733, %v3736
        %v3842 = vsel %vm805, %v3728, %v3731
        %v3843 = vsel %vm805, %v3729, %v3732
        %v3844 = vsel %vm805, %v3730, %v3733
        %v3845 = vsel %vm805, %v3725, %v3728
        %v3846 = vsel %vm805, %v3726, %v3729
        %v3847 = vsel %vm805, %v3727, %v3730
        %v3848 = vsel %vm805, %v3722, %v3725
        %v3849 = vsel %vm805, %v3723, %v3726
        %v3850 = vsel %vm805, %v3724, %v3727
        %v3851 = vsel %vm805, %v3719, %v3722
        %v3852 = vsel %vm805, %v3720, %v3723
        %v3853 = vsel %vm805, %v3721, %v3724
        %v3854 = vsel %vm805, %v3716, %v3719
        %v3855 = vsel %vm805, %v3717, %v3720
        %v3856 = vsel %vm805, %v3718, %v3721
        %v3857 = vsel %vm805, %v3713, %v3716
        %v3858 = vsel %vm805, %v3714, %v3717
        %v3859 = vsel %vm805, %v3715, %v3718
        %v3860 = vsel %vm805, %v3710, %v3713
        %v3861 = vsel %vm805, %v3711, %v3714
        %v3862 = vsel %vm805, %v3712, %v3715
        %v3863 = vsel %vm805, %v3707, %v3710
        %v3864 = vsel %vm805, %v3708, %v3711
        %v3865 = vsel %vm805, %v3709, %v3712
        %v3866 = vsel %vm805, %v3704, %v3707
        %v3867 = vsel %vm805, %v3705, %v3708
        %v3868 = vsel %vm805, %v3706, %v3709
        %v3869 = vsel %vm805, %v3701, %v3704
        %v3870 = vsel %vm805, %v3702, %v3705
        %v3871 = vsel %vm805, %v3703, %v3706
        %v3872 = vsel %vm805, %v3698, %v3701
        %v3873 = vsel %vm805, %v3699, %v3702
        %v3874 = vsel %vm805, %v3700, %v3703
        %v3875 = vsel %vm805, %v3695, %v3698
        %v3876 = vsel %vm805, %v3696, %v3699
        %v3877 = vsel %vm805, %v3697, %v3700
        %v3878 = vsel %vm805, %v3692, %v3695
        %v3879 = vsel %vm805, %v3693, %v3696
        %v3880 = vsel %vm805, %v3694, %v3697
        %v3881 = vsel %vm805, %v3689, %v3692
        %v3882 = vsel %vm805, %v3690, %v3693
        %v3883 = vsel %vm805, %v3691, %v3694
        %v3884 = vsel %vm805, %v3686, %v3689
        %v3885 = vsel %vm805, %v3687, %v3690
        %v3886 = vsel %vm805, %v3688, %v3691
        %v3887 = vsel %vm805, %v3683, %v3686
        %v3888 = vsel %vm805, %v3684, %v3687
        %v3889 = vsel %vm805, %v3685, %v3688
        %v3890 = vsel %vm805, %v3680, %v3683
        %v3891 = vsel %vm805, %v3681, %v3684
        %v3892 = vsel %vm805, %v3682, %v3685
        %v3893 = vsel %vm805, %v3677, %v3680
        %v3894 = vsel %vm805, %v3678, %v3681
        %v3895 = vsel %vm805, %v3679, %v3682
        %v3896 = vsel %vm805, %v3674, %v3677
        %v3897 = vsel %vm805, %v3675, %v3678
        %v3898 = vsel %vm805, %v3676, %v3679
        %v3899 = vsel %vm805, %v3671, %v3674
        %v3900 = vsel %vm805, %v3672, %v3675
        %v3901 = vsel %vm805, %v3673, %v3676
        %v3902 = vsel %vm805, %v3668, %v3671
        %v3903 = vsel %vm805, %v3669, %v3672
        %v3904 = vsel %vm805, %v3670, %v3673
        %v3905 = vsel %vm805, %v3665, %v3668
        %v3906 = vsel %vm805, %v3666, %v3669
        %v3907 = vsel %vm805, %v3667, %v3670
        %v3908 = vsel %vm805, %v3662, %v3665
        %v3909 = vsel %vm805, %v3663, %v3666
        %v3910 = vsel %vm805, %v3664, %v3667
        %v3911 = vsel %vm805, %v3659, %v3662
        %v3912 = vsel %vm805, %v3660, %v3663
        %v3913 = vsel %vm805, %v3661, %v3664
        %v3914 = vsel %vm805, %v3656, %v3659
        %v3915 = vsel %vm805, %v3657, %v3660
        %v3916 = vsel %vm805, %v3658, %v3661
        %v3917 = vsel %vm805, %v3653, %v3656
        %v3918 = vsel %vm805, %v3654, %v3657
        %v3919 = vsel %vm805, %v3655, %v3658
        %v3920 = vsel %vm805, %v3785, %v3653
        %v3921 = vsel %vm805, %v3786, %v3654
        %v3922 = vsel %vm805, %v3787, %v3655
        %v3923 = vpack.c.bf16 %v3788, %v3791
        %v3924 = vpack.c.bf16 %v3789, %v3792
        %v3925 = vpack.c.bf16 %v3790, %v3793
        %v3926 = vpack.c.bf16 %v3917, %v3920
        %v3927 = vpack.c.bf16 %v3918, %v3921
        %v3928 = vpack.c.bf16 %v3919, %v3922
        %v3929 = vpack.c.bf16 %v3911, %v3914
        %v3930 = vpack.c.bf16 %v3912, %v3915
        %v3931 = vpack.c.bf16 %v3913, %v3916
        %v3932 = vpack.c.bf16 %v3905, %v3908
        %v3933 = vpack.c.bf16 %v3906, %v3909
        %v3934 = vpack.c.bf16 %v3907, %v3910
        %v3935 = vpack.c.bf16 %v3899, %v3902
        %v3936 = vpack.c.bf16 %v3900, %v3903
        %v3937 = vpack.c.bf16 %v3901, %v3904
        %v3938 = vpack.c.bf16 %v3893, %v3896
        %v3939 = vpack.c.bf16 %v3894, %v3897
        %v3940 = vpack.c.bf16 %v3895, %v3898
        %v3941 = vpack.c.bf16 %v3887, %v3890
        %v3942 = vpack.c.bf16 %v3888, %v3891
        %v3943 = vpack.c.bf16 %v3889, %v3892
        %v3944 = vpack.c.bf16 %v3881, %v3884
        %v3945 = vpack.c.bf16 %v3882, %v3885
        %v3946 = vpack.c.bf16 %v3883, %v3886
        %v3947 = vpack.c.bf16 %v3875, %v3878
        %v3948 = vpack.c.bf16 %v3876, %v3879
        %v3949 = vpack.c.bf16 %v3877, %v3880
        %v3950 = vpack.c.bf16 %v3869, %v3872
        %v3951 = vpack.c.bf16 %v3870, %v3873
        %v3952 = vpack.c.bf16 %v3871, %v3874
        %v3953 = vpack.c.bf16 %v3863, %v3866
        %v3954 = vpack.c.bf16 %v3864, %v3867
        %v3955 = vpack.c.bf16 %v3865, %v3868
        %v3956 = vpack.c.bf16 %v3857, %v3860
        %v3957 = vpack.c.bf16 %v3858, %v3861
        %v3958 = vpack.c.bf16 %v3859, %v3862
        %v3959 = vpack.c.bf16 %v3851, %v3854
        %v3960 = vpack.c.bf16 %v3852, %v3855
        %v3961 = vpack.c.bf16 %v3853, %v3856
        %v3962 = vpack.c.bf16 %v3845, %v3848
        %v3963 = vpack.c.bf16 %v3846, %v3849
        %v3964 = vpack.c.bf16 %v3847, %v3850
        %v3965 = vpack.c.bf16 %v3839, %v3842
        %v3966 = vpack.c.bf16 %v3840, %v3843
        %v3967 = vpack.c.bf16 %v3841, %v3844
        %v3968 = vpack.c.bf16 %v3833, %v3836
        %v3969 = vpack.c.bf16 %v3834, %v3837
        %v3970 = vpack.c.bf16 %v3835, %v3838
        %v3971 = vpack.c.bf16 %v3827, %v3830
        %v3972 = vpack.c.bf16 %v3828, %v3831
        %v3973 = vpack.c.bf16 %v3829, %v3832
        %v3974 = vpack.c.bf16 %v3821, %v3824
        %v3975 = vpack.c.bf16 %v3822, %v3825
        %v3976 = vpack.c.bf16 %v3823, %v3826
        %v3977 = vpack.c.bf16 %v3815, %v3818
        %v3978 = vpack.c.bf16 %v3816, %v3819
        %v3979 = vpack.c.bf16 %v3817, %v3820
        %v3980 = vpack.c.bf16 %v3809, %v3812
        %v3981 = vpack.c.bf16 %v3810, %v3813
        %v3982 = vpack.c.bf16 %v3811, %v3814
        %v3983 = vpack.c.bf16 %v3803, %v3806
        %v3984 = vpack.c.bf16 %v3804, %v3807
        %v3985 = vpack.c.bf16 %v3805, %v3808
        %v3986 = vpack.c.bf16 %v3797, %v3800
        %v3987 = vpack.c.bf16 %v3798, %v3801
        %v3988 = vpack.c.bf16 %v3799, %v3802
        %v3989 = vpack.c.bf16 %v3794, %v3794
        %v3990 = vpack.c.bf16 %v3795, %v3795
        %v3991 = vpack.c.bf16 %v3796, %v3796
        %v3992 = vld [vmem:[#allocation4] sm:$0xf]
        %v3993 = vld [vmem:[#allocation4 + $0x4] sm:$0xf]
        %v3994 = vld [vmem:[#allocation4 + $0x8] sm:$0xf]
        %v3995 = vld [vmem:[#allocation4 + $0xc] sm:$0xf]
        %v3996 = vld [vmem:[#allocation4 + $0x10] sm:$0xf]
        %v3997 = vld [vmem:[#allocation4 + $0x14] sm:$0xf]
        %v3998 = vld [vmem:[#allocation4 + $0x18] sm:$0xf]
        %v3999 = vld [vmem:[#allocation4 + $0x1c] sm:$0xf]
        %v4000 = vld [vmem:[#allocation4 + $0x20] sm:$0xf]
        %v4001 = vld [vmem:[#allocation4 + $0x24] sm:$0xf]
        %v4002 = vld [vmem:[#allocation4 + $0x28] sm:$0xf]
        %v4003 = vld [vmem:[#allocation4 + $0x2c] sm:$0xf]
        %v4004 = vld [vmem:[#allocation4 + $0x30] sm:$0xf]
        %v4005 = vld [vmem:[#allocation4 + $0x34] sm:$0xf]
        %v4006 = vld [vmem:[#allocation4 + $0x38] sm:$0xf]
        %v4007 = vld [vmem:[#allocation4 + $0x3c] sm:$0xf]
        %v4008 = vld [vmem:[#allocation4 + $0x40] sm:$0xf]
        %v4009 = vld [vmem:[#allocation4 + $0x44] sm:$0xf]
        %v4010 = vld [vmem:[#allocation4 + $0x48] sm:$0xf]
        %v4011 = vld [vmem:[#allocation4 + $0x4c] sm:$0xf]
        %v4012 = vld [vmem:[#allocation4 + $0x50] sm:$0xf]
        %v4013 = vld [vmem:[#allocation4 + $0x54] sm:$0xf]
        %v4014 = vld [vmem:[#allocation4 + $0x58] sm:$0xf]
        %v4015 = vld [vmem:[#allocation4 + $0x5c] sm:$0xf]
        %v4016 = vld [vmem:[#allocation4 + $0x60] sm:$0xf]
        %v4017 = vld [vmem:[#allocation4 + $0x64] sm:$0xf]
        %v4018 = vld [vmem:[#allocation4 + $0x68] sm:$0xf]
        %v4019 = vld [vmem:[#allocation4 + $0x6c] sm:$0xf]
        %v4020 = vld [vmem:[#allocation4 + $0x70] sm:$0xf]
        %v4021 = vld [vmem:[#allocation4 + $0x74] sm:$0xf]
        %v4022 = vld [vmem:[#allocation4 + $0x78] sm:$0xf]
        %v4023 = vld [vmem:[#allocation4 + $0x7c] sm:$0xf]
        %v4024 = vld [vmem:[#allocation4 + $0x80] sm:$0xf]
        %v4025 = vld [vmem:[#allocation4 + $0x84] sm:$0xf]
        %v4026 = vld [vmem:[#allocation4 + $0x88] sm:$0xf]
        %v4027 = vld [vmem:[#allocation4 + $0x8c] sm:$0xf]
        %v4028 = vld [vmem:[#allocation4 + $0x90] sm:$0xf]
        %v4029 = vld [vmem:[#allocation4 + $0x94] sm:$0xf]
        %v4030 = vld [vmem:[#allocation4 + $0x98] sm:$0xf]
        %v4031 = vld [vmem:[#allocation4 + $0x9c] sm:$0xf]
        %v4032 = vld [vmem:[#allocation4 + $0xa0] sm:$0xf]
        %v4033 = vld [vmem:[#allocation4 + $0xa4] sm:$0xf]
        %v4034 = vld [vmem:[#allocation4 + $0xa8] sm:$0xf]
        %v4035 = vld [vmem:[#allocation4 + $0xac] sm:$0xf]
        %v4036 = vld [vmem:[#allocation4 + $0xb0] sm:$0xf]
        %v4037 = vld [vmem:[#allocation4 + $0xb4] sm:$0xf]
        %v4038 = vld [vmem:[#allocation4 + $0xb8] sm:$0xf]
        %v4039 = vld [vmem:[#allocation4 + $0xbc] sm:$0xf]
        %v4040 = vpack.c.bf16 %v3561, %v3562
        %v4041 = vpack.c.bf16 %v3429, %v3428
        %v4042 = vpack.c.bf16 %v3650, %v3651
        %v4043 = vpack.c.bf16 %v3559, %v3560
        %v4044 = vpack.c.bf16 %v3431, %v3430
        %v4045 = vpack.c.bf16 %v3648, %v3649
        %v4046 = vpack.c.bf16 %v3557, %v3558
        %v4047 = vpack.c.bf16 %v3433, %v3432
        %v4048 = vpack.c.bf16 %v3646, %v3647
        %v4049 = vpack.c.bf16 %v3555, %v3556
        %v4050 = vpack.c.bf16 %v3435, %v3434
        %v4051 = vpack.c.bf16 %v3644, %v3645
        %v4052 = vpack.c.bf16 %v3553, %v3554
        %v4053 = vpack.c.bf16 %v3437, %v3436
        %v4054 = vpack.c.bf16 %v3642, %v3643
        %v4055 = vpack.c.bf16 %v3551, %v3552
        %v4056 = vpack.c.bf16 %v3439, %v3438
        %v4057 = vpack.c.bf16 %v3640, %v3641
        %v4058 = vpack.c.bf16 %v3549, %v3550
        %v4059 = vpack.c.bf16 %v3441, %v3440
        %v4060 = vpack.c.bf16 %v3638, %v3639
        %v4061 = vpack.c.bf16 %v3547, %v3548
        %v4062 = vpack.c.bf16 %v3443, %v3442
        %v4063 = vpack.c.bf16 %v3636, %v3637
        %v4064 = vpack.c.bf16 %v3545, %v3546
        %v4065 = vpack.c.bf16 %v3445, %v3444
        %v4066 = vpack.c.bf16 %v3634, %v3635
        %v4067 = vpack.c.bf16 %v3543, %v3544
        %v4068 = vpack.c.bf16 %v3447, %v3446
        %v4069 = vpack.c.bf16 %v3632, %v3633
        %v4070 = vpack.c.bf16 %v3541, %v3542
        %v4071 = vpack.c.bf16 %v3449, %v3448
        %v4072 = vpack.c.bf16 %v3630, %v3631
        %v4073 = vpack.c.bf16 %v3539, %v3540
        %v4074 = vpack.c.bf16 %v3451, %v3450
        %v4075 = vpack.c.bf16 %v3628, %v3629
        %v4076 = vpack.c.bf16 %v3537, %v3538
        %v4077 = vpack.c.bf16 %v3453, %v3452
        %v4078 = vpack.c.bf16 %v3626, %v3627
        %v4079 = vpack.c.bf16 %v3535, %v3536
        %v4080 = vpack.c.bf16 %v3455, %v3454
        %v4081 = vpack.c.bf16 %v3624, %v3625
        %v4082 = vpack.c.bf16 %v3533, %v3534
        %v4083 = vpack.c.bf16 %v3457, %v3456
        %v4084 = vpack.c.bf16 %v3622, %v3623
        %v4085 = vpack.c.bf16 %v3531, %v3532
        %v4086 = vpack.c.bf16 %v3459, %v3458
        %v4087 = vpack.c.bf16 %v3620, %v3621
        %v4088 = vpack.c.bf16 %v3529, %v3530
        %v4089 = vpack.c.bf16 %v3461, %v3460
        %v4090 = vpack.c.bf16 %v3618, %v3619
        %v4091 = vpack.c.bf16 %v3527, %v3528
        %v4092 = vpack.c.bf16 %v3463, %v3462
        %v4093 = vpack.c.bf16 %v3616, %v3617
        %v4094 = vpack.c.bf16 %v3525, %v3526
        %v4095 = vpack.c.bf16 %v3465, %v3464
        %v4096 = vpack.c.bf16 %v3614, %v3615
        %v4097 = vpack.c.bf16 %v3523, %v3524
        %v4098 = vpack.c.bf16 %v3467, %v3466
        %v4099 = vpack.c.bf16 %v3612, %v3613
        %v4100 = vpack.c.bf16 %v3521, %v3522
        %v4101 = vpack.c.bf16 %v3469, %v3468
        %v4102 = vpack.c.bf16 %v3610, %v3611
        %v4103 = vpack.c.bf16 %v3519, %v3520
        %v4104 = vpack.c.bf16 %v3471, %v3470
        %v4105 = vpack.c.bf16 %v3608, %v3609
        %v4106 = vpack.c.bf16 %v3518, %v3518
        %v4107 = vpack.c.bf16 %v3472, %v3472
        %v4108 = vpack.c.bf16 %v3652, %v3652
        %s4109 = scalar_lea.vmem [#allocation4], 192
        %v4110 = vld [vmem:[%s4109] sm:$0xf]
        %v4111 = vld [vmem:[%s4109 + $0x4] sm:$0xf]
        %v4112 = vld [vmem:[%s4109 + $0x8] sm:$0xf]
        %v4113 = vld [vmem:[%s4109 + $0xc] sm:$0xf]
        %v4114 = vld [vmem:[%s4109 + $0x10] sm:$0xf]
        %v4115 = vld [vmem:[%s4109 + $0x14] sm:$0xf]
        %v4116 = vld [vmem:[%s4109 + $0x18] sm:$0xf]
        %v4117 = vld [vmem:[%s4109 + $0x1c] sm:$0xf]
        %v4118 = vld [vmem:[%s4109 + $0x20] sm:$0xf]
        %v4119 = vld [vmem:[%s4109 + $0x24] sm:$0xf]
        %v4120 = vld [vmem:[%s4109 + $0x28] sm:$0xf]
        %v4121 = vld [vmem:[%s4109 + $0x2c] sm:$0xf]
        %v4122 = vld [vmem:[%s4109 + $0x30] sm:$0xf]
        %v4123 = vld [vmem:[%s4109 + $0x34] sm:$0xf]
        %v4124 = vld [vmem:[%s4109 + $0x38] sm:$0xf]
        %v4125 = vld [vmem:[%s4109 + $0x3c] sm:$0xf]
        %v4126 = vld [vmem:[%s4109 + $0x40] sm:$0xf]
        %v4127 = vld [vmem:[%s4109 + $0x44] sm:$0xf]
        %v4128 = vld [vmem:[%s4109 + $0x48] sm:$0xf]
        %v4129 = vld [vmem:[%s4109 + $0x4c] sm:$0xf]
        %v4130 = vld [vmem:[%s4109 + $0x50] sm:$0xf]
        %v4131 = vld [vmem:[%s4109 + $0x54] sm:$0xf]
        %v4132 = vld [vmem:[%s4109 + $0x58] sm:$0xf]
        %v4133 = vld [vmem:[%s4109 + $0x5c] sm:$0xf]
        %v4134 = vld [vmem:[%s4109 + $0x60] sm:$0xf]
        %v4135 = vld [vmem:[%s4109 + $0x64] sm:$0xf]
        %v4136 = vld [vmem:[%s4109 + $0x68] sm:$0xf]
        %v4137 = vld [vmem:[%s4109 + $0x6c] sm:$0xf]
        %v4138 = vld [vmem:[%s4109 + $0x70] sm:$0xf]
        %v4139 = vld [vmem:[%s4109 + $0x74] sm:$0xf]
        %v4140 = vld [vmem:[%s4109 + $0x78] sm:$0xf]
        %v4141 = vld [vmem:[%s4109 + $0x7c] sm:$0xf]
        %v4142 = vld [vmem:[%s4109 + $0x80] sm:$0xf]
        %v4143 = vld [vmem:[%s4109 + $0x84] sm:$0xf]
        %v4144 = vld [vmem:[%s4109 + $0x88] sm:$0xf]
        %v4145 = vld [vmem:[%s4109 + $0x8c] sm:$0xf]
        %v4146 = vld [vmem:[%s4109 + $0x90] sm:$0xf]
        %v4147 = vld [vmem:[%s4109 + $0x94] sm:$0xf]
        %v4148 = vld [vmem:[%s4109 + $0x98] sm:$0xf]
        %v4149 = vld [vmem:[%s4109 + $0x9c] sm:$0xf]
        %v4150 = vld [vmem:[%s4109 + $0xa0] sm:$0xf]
        %v4151 = vld [vmem:[%s4109 + $0xa4] sm:$0xf]
        %v4152 = vld [vmem:[%s4109 + $0xa8] sm:$0xf]
        %v4153 = vld [vmem:[%s4109 + $0xac] sm:$0xf]
        %v4154 = vld [vmem:[%s4109 + $0xb0] sm:$0xf]
        %v4155 = vld [vmem:[%s4109 + $0xb4] sm:$0xf]
        %v4156 = vld [vmem:[%s4109 + $0xb8] sm:$0xf]
        %v4157 = vld [vmem:[%s4109 + $0xbc] sm:$0xf]
        %v4206 = vunpack.c.l.b16 %v4110
        %v4207 = vunpack.c.l.b16 %v4111
        %v4208 = vunpack.c.l.b16 %v4112
        %v4209 = vunpack.c.l.b16 %v4113
        %v4210 = vunpack.c.l.b16 %v4114
        %v4211 = vunpack.c.l.b16 %v4115
        %v4212 = vunpack.c.l.b16 %v4116
        %v4213 = vunpack.c.l.b16 %v4117
        %v4214 = vunpack.c.l.b16 %v4118
        %v4215 = vunpack.c.l.b16 %v4119
        %v4216 = vunpack.c.l.b16 %v4120
        %v4217 = vunpack.c.l.b16 %v4121
        %v4218 = vunpack.c.l.b16 %v4122
        %v4219 = vunpack.c.l.b16 %v4123
        %v4220 = vunpack.c.l.b16 %v4124
        %v4221 = vunpack.c.l.b16 %v4125
        %v4222 = vunpack.c.l.b16 %v4126
        %v4223 = vunpack.c.l.b16 %v4127
        %v4224 = vunpack.c.l.b16 %v4128
        %v4225 = vunpack.c.l.b16 %v4129
        %v4226 = vunpack.c.l.b16 %v4130
        %v4227 = vunpack.c.l.b16 %v4131
        %v4228 = vunpack.c.l.b16 %v4132
        %v4229 = vunpack.c.l.b16 %v4133
        %v4230 = vunpack.c.l.b16 %v4134
        %v4231 = vunpack.c.l.b16 %v4135
        %v4232 = vunpack.c.l.b16 %v4136
        %v4233 = vunpack.c.l.b16 %v4137
        %v4234 = vunpack.c.l.b16 %v4138
        %v4235 = vunpack.c.l.b16 %v4139
        %v4236 = vunpack.c.l.b16 %v4140
        %v4237 = vunpack.c.l.b16 %v4141
        %v4238 = vunpack.c.l.b16 %v4142
        %v4239 = vunpack.c.l.b16 %v4143
        %v4240 = vunpack.c.l.b16 %v4144
        %v4241 = vunpack.c.l.b16 %v4145
        %v4242 = vunpack.c.l.b16 %v4146
        %v4243 = vunpack.c.l.b16 %v4147
        %v4244 = vunpack.c.l.b16 %v4148
        %v4245 = vunpack.c.l.b16 %v4149
        %v4246 = vunpack.c.l.b16 %v4150
        %v4247 = vunpack.c.l.b16 %v4151
        %v4248 = vunpack.c.l.b16 %v4152
        %v4249 = vunpack.c.l.b16 %v4153
        %v4250 = vunpack.c.l.b16 %v4154
        %v4251 = vunpack.c.l.b16 %v4155
        %v4252 = vunpack.c.l.b16 %v4156
        %v4253 = vunpack.c.l.b16 %v4157
        %v4254 = vpack.c.b16 %v4207, %v4206
        %v4255 = vpack.c.b16 %v4209, %v4208
        %v4256 = vpack.c.b16 %v4211, %v4210
        %v4257 = vpack.c.b16 %v4213, %v4212
        %v4258 = vpack.c.b16 %v4215, %v4214
        %v4259 = vpack.c.b16 %v4217, %v4216
        %v4260 = vpack.c.b16 %v4219, %v4218
        %v4261 = vpack.c.b16 %v4221, %v4220
        %v4262 = vpack.c.b16 %v4223, %v4222
        %v4263 = vpack.c.b16 %v4225, %v4224
        %v4264 = vpack.c.b16 %v4227, %v4226
        %v4265 = vpack.c.b16 %v4229, %v4228
        %v4266 = vpack.c.b16 %v4231, %v4230
        %v4267 = vpack.c.b16 %v4233, %v4232
        %v4268 = vpack.c.b16 %v4235, %v4234
        %v4269 = vpack.c.b16 %v4237, %v4236
        %v4270 = vpack.c.b16 %v4239, %v4238
        %v4271 = vpack.c.b16 %v4241, %v4240
        %v4272 = vpack.c.b16 %v4243, %v4242
        %v4273 = vpack.c.b16 %v4245, %v4244
        %v4274 = vpack.c.b16 %v4247, %v4246
        %v4275 = vpack.c.b16 %v4249, %v4248
        %v4276 = vpack.c.b16 %v4251, %v4250
        %v4277 = vpack.c.b16 %v4253, %v4252
        %4302 = vmatprep.subr.bf16.mxu0 0
        %4303 = vmatpush1.bf16.msra.mxu0 %v4254
        %4304 = vmatprep.subr.bf16.mxu0 0
        %4305 = vmatpush1.bf16.msra.mxu0 %v4255
        %4306 = vmatprep.subr.bf16.mxu0 0
        %4307 = vmatpush1.bf16.msra.mxu0 %v4256
        %4308 = vmatprep.subr.bf16.mxu0 0
        %4309 = vmatpush1.bf16.msra.mxu0 %v4257
        %4310 = vmatprep.subr.bf16.mxu0 0
        %4311 = vmatpush1.bf16.msra.mxu0 %v4258
        %4312 = vmatprep.subr.bf16.mxu0 0
        %4313 = vmatpush1.bf16.msra.mxu0 %v4259
        %4314 = vmatprep.subr.bf16.mxu0 0
        %4315 = vmatpush1.bf16.msra.mxu0 %v4260
        %4316 = vmatprep.subr.bf16.mxu0 0
        %4317 = vmatpush1.bf16.msra.mxu0 %v4261
        %4318 = vmatprep.subr.bf16.mxu0 0
        %4319 = vmatpush1.bf16.msra.mxu0 %v4262
        %4320 = vmatprep.subr.bf16.mxu0 0
        %4321 = vmatpush1.bf16.msra.mxu0 %v4263
        %4322 = vmatprep.subr.bf16.mxu0 0
        %4323 = vmatpush1.bf16.msra.mxu0 %v4264
        %4324 = vmatprep.subr.bf16.mxu0 0
        %4325 = vmatpush1.bf16.msra.mxu0 %v4265
        %4326 = vmatprep.subr.bf16.mxu0 0
        %4327 = vmatpush1.bf16.msra.mxu0 %v4266
        %4328 = vmatprep.subr.bf16.mxu0 0
        %4329 = vmatpush1.bf16.msra.mxu0 %v4267
        %4330 = vmatprep.subr.bf16.mxu0 0
        %4331 = vmatpush1.bf16.msra.mxu0 %v4268
        %4332 = vmatprep.subr.bf16.mxu0 0
        %4333 = vmatpush1.bf16.msra.mxu0 %v4269
        %4334 = vmatprep.mubr.bf16.mxu0 %v4041
        %4335 = vmatmul.mubr.bf16.gmra.mrb[0].mxu0 %v4040
        %v4336 = vpop.f32.mrb[0].mxu0
        %v4337 = vadd.f32 0.0, %v4336
        %v4338 = vpop.f32.mrb[0].mxu0
        %v4339 = vpop.f32.mrb[0].mxu0
        %v4340 = vadd.f32 0.0, %v4339
        %v4341 = vpop.f32.mrb[0].mxu0
        %4342 = vmatprep.mubr.bf16.mxu0 %v4044
        %4343 = vmatmul.mubr.bf16.gmra.mrb[0].mxu0 %v4043
        %v4344 = vpop.f32.mrb[0].mxu0
        %v4345 = vadd.f32 0.0, %v4344
        %v4346 = vpop.f32.mrb[0].mxu0
        %v4347 = vpop.f32.mrb[0].mxu0
        %v4348 = vadd.f32 0.0, %v4347
        %v4349 = vpop.f32.mrb[0].mxu0
        %4350 = vmatprep.mubr.bf16.mxu0 %v4047
        %4351 = vmatmul.mubr.bf16.gmra.mrb[0].mxu0 %v4046
        %v4352 = vpop.f32.mrb[0].mxu0
        %v4353 = vadd.f32 0.0, %v4352
        %v4354 = vpop.f32.mrb[0].mxu0
        %v4355 = vpop.f32.mrb[0].mxu0
        %v4356 = vadd.f32 0.0, %v4355
        %v4357 = vpop.f32.mrb[0].mxu0
        %4358 = vmatprep.mubr.bf16.mxu0 %v4050
        %4359 = vmatmul.mubr.bf16.gmra.mrb[0].mxu0 %v4049
        %v4360 = vpop.f32.mrb[0].mxu0
        %v4361 = vadd.f32 0.0, %v4360
        %v4362 = vpop.f32.mrb[0].mxu0
        %v4363 = vpop.f32.mrb[0].mxu0
        %v4364 = vadd.f32 0.0, %v4363
        %v4365 = vpop.f32.mrb[0].mxu0
        %4366 = vmatprep.mubr.bf16.mxu0 %v4053
        %4367 = vmatmul.mubr.bf16.gmra.mrb[0].mxu0 %v4052
        %v4368 = vpop.f32.mrb[0].mxu0
        %v4369 = vadd.f32 0.0, %v4368
        %v4370 = vpop.f32.mrb[0].mxu0
        %v4371 = vpop.f32.mrb[0].mxu0
        %v4372 = vadd.f32 0.0, %v4371
        %v4373 = vpop.f32.mrb[0].mxu0
        %4374 = vmatprep.mubr.bf16.mxu0 %v4056
        %4375 = vmatmul.mubr.bf16.gmra.mrb[0].mxu0 %v4055
        %v4376 = vpop.f32.mrb[0].mxu0
        %v4377 = vadd.f32 0.0, %v4376
        %v4378 = vpop.f32.mrb[0].mxu0
        %v4379 = vpop.f32.mrb[0].mxu0
        %v4380 = vadd.f32 0.0, %v4379
        %v4381 = vpop.f32.mrb[0].mxu0
        %4382 = vmatprep.mubr.bf16.mxu0 %v4059
        %4383 = vmatmul.mubr.bf16.gmra.mrb[0].mxu0 %v4058
        %v4384 = vpop.f32.mrb[0].mxu0
        %v4385 = vadd.f32 0.0, %v4384
        %v4386 = vpop.f32.mrb[0].mxu0
        %v4387 = vpop.f32.mrb[0].mxu0
        %v4388 = vadd.f32 0.0, %v4387
        %v4389 = vpop.f32.mrb[0].mxu0
        %4390 = vmatprep.mubr.bf16.mxu0 %v4062
        %4391 = vmatmul.mubr.bf16.gmra.mrb[0].mxu0 %v4061
        %v4392 = vpop.f32.mrb[0].mxu0
        %v4393 = vadd.f32 0.0, %v4392
        %v4394 = vpop.f32.mrb[0].mxu0
        %v4395 = vpop.f32.mrb[0].mxu0
        %v4396 = vadd.f32 0.0, %v4395
        %v4397 = vpop.f32.mrb[0].mxu0
        %4398 = vmatprep.mubr.bf16.mxu0 %v4065
        %4399 = vmatmul.mubr.bf16.gmra.mrb[0].mxu0 %v4064
        %v4400 = vpop.f32.mrb[0].mxu0
        %v4401 = vadd.f32 0.0, %v4400
        %v4402 = vpop.f32.mrb[0].mxu0
        %v4403 = vpop.f32.mrb[0].mxu0
        %v4404 = vadd.f32 0.0, %v4403
        %v4405 = vpop.f32.mrb[0].mxu0
        %4406 = vmatprep.mubr.bf16.mxu0 %v4068
        %4407 = vmatmul.mubr.bf16.gmra.mrb[0].mxu0 %v4067
        %v4408 = vpop.f32.mrb[0].mxu0
        %v4409 = vadd.f32 0.0, %v4408
        %v4410 = vpop.f32.mrb[0].mxu0
        %v4411 = vpop.f32.mrb[0].mxu0
        %v4412 = vadd.f32 0.0, %v4411
        %v4413 = vpop.f32.mrb[0].mxu0
        %4414 = vmatprep.mubr.bf16.mxu0 %v4071
        %4415 = vmatmul.mubr.bf16.gmra.mrb[0].mxu0 %v4070
        %v4416 = vpop.f32.mrb[0].mxu0
        %v4417 = vadd.f32 0.0, %v4416
        %v4418 = vpop.f32.mrb[0].mxu0
        %v4419 = vpop.f32.mrb[0].mxu0
        %v4420 = vadd.f32 0.0, %v4419
        %v4421 = vpop.f32.mrb[0].mxu0
        %4422 = vmatprep.mubr.bf16.mxu0 %v4074
        %4423 = vmatmul.mubr.bf16.gmra.mrb[0].mxu0 %v4073
        %v4424 = vpop.f32.mrb[0].mxu0
        %v4425 = vadd.f32 0.0, %v4424
        %v4426 = vpop.f32.mrb[0].mxu0
        %v4427 = vpop.f32.mrb[0].mxu0
        %v4428 = vadd.f32 0.0, %v4427
        %v4429 = vpop.f32.mrb[0].mxu0
        %4430 = vmatprep.mubr.bf16.mxu0 %v4077
        %4431 = vmatmul.mubr.bf16.gmra.mrb[0].mxu0 %v4076
        %v4432 = vpop.f32.mrb[0].mxu0
        %v4433 = vadd.f32 0.0, %v4432
        %v4434 = vpop.f32.mrb[0].mxu0
        %v4435 = vpop.f32.mrb[0].mxu0
        %v4436 = vadd.f32 0.0, %v4435
        %v4437 = vpop.f32.mrb[0].mxu0
        %4438 = vmatprep.mubr.bf16.mxu0 %v4080
        %4439 = vmatmul.mubr.bf16.gmra.mrb[0].mxu0 %v4079
        %v4440 = vpop.f32.mrb[0].mxu0
        %v4441 = vadd.f32 0.0, %v4440
        %v4442 = vpop.f32.mrb[0].mxu0
        %v4443 = vpop.f32.mrb[0].mxu0
        %v4444 = vadd.f32 0.0, %v4443
        %v4445 = vpop.f32.mrb[0].mxu0
        %4446 = vmatprep.mubr.bf16.mxu0 %v4083
        %4447 = vmatmul.mubr.bf16.gmra.mrb[0].mxu0 %v4082
        %v4448 = vpop.f32.mrb[0].mxu0
        %v4449 = vadd.f32 0.0, %v4448
        %v4450 = vpop.f32.mrb[0].mxu0
        %v4451 = vpop.f32.mrb[0].mxu0
        %v4452 = vadd.f32 0.0, %v4451
        %v4453 = vpop.f32.mrb[0].mxu0
        %4454 = vmatprep.mubr.bf16.mxu0 %v4086
        %4455 = vmatmul.mubr.bf16.gmra.mrb[0].mxu0 %v4085
        %v4456 = vpop.f32.mrb[0].mxu0
        %v4457 = vadd.f32 0.0, %v4456
        %v4458 = vpop.f32.mrb[0].mxu0
        %v4459 = vpop.f32.mrb[0].mxu0
        %v4460 = vadd.f32 0.0, %v4459
        %v4461 = vpop.f32.mrb[0].mxu0
        %4462 = vmatprep.mubr.bf16.mxu0 %v4089
        %4463 = vmatmul.mubr.bf16.gmra.mrb[0].mxu0 %v4088
        %v4464 = vpop.f32.mrb[0].mxu0
        %v4465 = vadd.f32 0.0, %v4464
        %v4466 = vpop.f32.mrb[0].mxu0
        %v4467 = vpop.f32.mrb[0].mxu0
        %v4468 = vadd.f32 0.0, %v4467
        %v4469 = vpop.f32.mrb[0].mxu0
        %4470 = vmatprep.mubr.bf16.mxu0 %v4092
        %4471 = vmatmul.mubr.bf16.gmra.mrb[0].mxu0 %v4091
        %v4472 = vpop.f32.mrb[0].mxu0
        %v4473 = vadd.f32 0.0, %v4472
        %v4474 = vpop.f32.mrb[0].mxu0
        %v4475 = vpop.f32.mrb[0].mxu0
        %v4476 = vadd.f32 0.0, %v4475
        %v4477 = vpop.f32.mrb[0].mxu0
        %4478 = vmatprep.mubr.bf16.mxu0 %v4095
        %4479 = vmatmul.mubr.bf16.gmra.mrb[0].mxu0 %v4094
        %v4480 = vpop.f32.mrb[0].mxu0
        %v4481 = vadd.f32 0.0, %v4480
        %v4482 = vpop.f32.mrb[0].mxu0
        %v4483 = vpop.f32.mrb[0].mxu0
        %v4484 = vadd.f32 0.0, %v4483
        %v4485 = vpop.f32.mrb[0].mxu0
        %4486 = vmatprep.mubr.bf16.mxu0 %v4098
        %4487 = vmatmul.mubr.bf16.gmra.mrb[0].mxu0 %v4097
        %v4488 = vpop.f32.mrb[0].mxu0
        %v4489 = vadd.f32 0.0, %v4488
        %v4490 = vpop.f32.mrb[0].mxu0
        %v4491 = vpop.f32.mrb[0].mxu0
        %v4492 = vadd.f32 0.0, %v4491
        %v4493 = vpop.f32.mrb[0].mxu0
        %4494 = vmatprep.mubr.bf16.mxu0 %v4101
        %4495 = vmatmul.mubr.bf16.gmra.mrb[0].mxu0 %v4100
        %v4496 = vpop.f32.mrb[0].mxu0
        %v4497 = vadd.f32 0.0, %v4496
        %v4498 = vpop.f32.mrb[0].mxu0
        %v4499 = vpop.f32.mrb[0].mxu0
        %v4500 = vadd.f32 0.0, %v4499
        %v4501 = vpop.f32.mrb[0].mxu0
        %4502 = vmatprep.mubr.bf16.mxu0 %v4104
        %4503 = vmatmul.mubr.bf16.gmra.mrb[0].mxu0 %v4103
        %v4504 = vpop.f32.mrb[0].mxu0
        %v4505 = vadd.f32 0.0, %v4504
        %v4506 = vpop.f32.mrb[0].mxu0
        %v4507 = vpop.f32.mrb[0].mxu0
        %v4508 = vadd.f32 0.0, %v4507
        %v4509 = vpop.f32.mrb[0].mxu0
        %4510 = vmatprep.mubr.bf16.mxu0 %v4107
        %4511 = vmatmul.mubr.bf16.gmra.mrb[0].mxu0 %v4106
        %v4512 = vpop.f32.mrb[0].mxu0
        %v4513 = vadd.f32 0.0, %v4512
        %v4514 = vpop.f32.mrb[0].mxu0
        %v4515 = vpop.f32.mrb[0].mxu0
        %v4516 = vpop.f32.mrb[0].mxu0
        %4517 = vdwg.mxu0
        %4518 = vmatprep.subr.bf16.mxu0 0
        %4519 = vmatpush1.bf16.msra.mxu0 %v4270
        %4520 = vmatprep.subr.bf16.mxu0 0
        %4521 = vmatpush1.bf16.msra.mxu0 %v4271
        %4522 = vmatprep.subr.bf16.mxu0 0
        %4523 = vmatpush1.bf16.msra.mxu0 %v4272
        %4524 = vmatprep.subr.bf16.mxu0 0
        %4525 = vmatpush1.bf16.msra.mxu0 %v4273
        %4526 = vmatprep.subr.bf16.mxu0 0
        %4527 = vmatpush1.bf16.msra.mxu0 %v4274
        %4528 = vmatprep.subr.bf16.mxu0 0
        %4529 = vmatpush1.bf16.msra.mxu0 %v4275
        %4530 = vmatprep.subr.bf16.mxu0 0
        %4531 = vmatpush1.bf16.msra.mxu0 %v4276
        %4532 = vmatprep.subr.bf16.mxu0 0
        %4533 = vmatpush1.bf16.msra.mxu0 %v4277
        %4534 = vmatprep.subr.bf16.mxu0 0
        %4535 = vmatpush1.bf16.msra.mxu0 0
        %4536 = vmatprep.subr.bf16.mxu0 0
        %4537 = vmatpush1.bf16.msra.mxu0 0
        %4538 = vmatprep.subr.bf16.mxu0 0
        %4539 = vmatpush1.bf16.msra.mxu0 0
        %4540 = vmatprep.subr.bf16.mxu0 0
        %4541 = vmatpush1.bf16.msra.mxu0 0
        %4542 = vmatprep.subr.bf16.mxu0 0
        %4543 = vmatpush1.bf16.msra.mxu0 0
        %4544 = vmatprep.subr.bf16.mxu0 0
        %4545 = vmatpush1.bf16.msra.mxu0 0
        %4546 = vmatprep.subr.bf16.mxu0 0
        %4547 = vmatpush1.bf16.msra.mxu0 0
        %4548 = vmatprep.subr.bf16.mxu0 0
        %4549 = vmatpush1.bf16.msra.mxu0 0
        %4550 = vmatprep.mubr.bf16.mxu0 0
        %4551 = vmatmul.mubr.bf16.gmra.mrb[0].mxu0 %v4042
        %v4552 = vpop.f32.mrb[0].mxu0
        %v4553 = vadd.f32 %v4337, %v4552
        %v4554 = vpop.f32.mrb[0].mxu0
        %v4555 = vpop.f32.mrb[0].mxu0
        %v4556 = vadd.f32 %v4340, %v4555
        %v4557 = vpop.f32.mrb[0].mxu0
        %4558 = vmatprep.mubr.bf16.mxu0 0
        %4559 = vmatmul.mubr.bf16.gmra.mrb[0].mxu0 %v4045
        %v4560 = vpop.f32.mrb[0].mxu0
        %v4561 = vadd.f32 %v4345, %v4560
        %v4562 = vpop.f32.mrb[0].mxu0
        %v4563 = vpop.f32.mrb[0].mxu0
        %v4564 = vadd.f32 %v4348, %v4563
        %v4565 = vpop.f32.mrb[0].mxu0
        %4566 = vmatprep.mubr.bf16.mxu0 0
        %4567 = vmatmul.mubr.bf16.gmra.mrb[0].mxu0 %v4048
        %v4568 = vpop.f32.mrb[0].mxu0
        %v4569 = vadd.f32 %v4353, %v4568
        %v4570 = vpop.f32.mrb[0].mxu0
        %v4571 = vpop.f32.mrb[0].mxu0
        %v4572 = vadd.f32 %v4356, %v4571
        %v4573 = vpop.f32.mrb[0].mxu0
        %4574 = vmatprep.mubr.bf16.mxu0 0
        %4575 = vmatmul.mubr.bf16.gmra.mrb[0].mxu0 %v4051
        %v4576 = vpop.f32.mrb[0].mxu0
        %v4577 = vadd.f32 %v4361, %v4576
        %v4578 = vpop.f32.mrb[0].mxu0
        %v4579 = vpop.f32.mrb[0].mxu0
        %v4580 = vadd.f32 %v4364, %v4579
        %v4581 = vpop.f32.mrb[0].mxu0
        %4582 = vmatprep.mubr.bf16.mxu0 0
        %4583 = vmatmul.mubr.bf16.gmra.mrb[0].mxu0 %v4054
        %v4584 = vpop.f32.mrb[0].mxu0
        %v4585 = vadd.f32 %v4369, %v4584
        %v4586 = vpop.f32.mrb[0].mxu0
        %v4587 = vpop.f32.mrb[0].mxu0
        %v4588 = vadd.f32 %v4372, %v4587
        %v4589 = vpop.f32.mrb[0].mxu0
        %4590 = vmatprep.mubr.bf16.mxu0 0
        %4591 = vmatmul.mubr.bf16.gmra.mrb[0].mxu0 %v4057
        %v4592 = vpop.f32.mrb[0].mxu0
        %v4593 = vadd.f32 %v4377, %v4592
        %v4594 = vpop.f32.mrb[0].mxu0
        %v4595 = vpop.f32.mrb[0].mxu0
        %v4596 = vadd.f32 %v4380, %v4595
        %v4597 = vpop.f32.mrb[0].mxu0
        %4598 = vmatprep.mubr.bf16.mxu0 0
        %4599 = vmatmul.mubr.bf16.gmra.mrb[0].mxu0 %v4060
        %v4600 = vpop.f32.mrb[0].mxu0
        %v4601 = vadd.f32 %v4385, %v4600
        %v4602 = vpop.f32.mrb[0].mxu0
        %v4603 = vpop.f32.mrb[0].mxu0
        %v4604 = vadd.f32 %v4388, %v4603
        %v4605 = vpop.f32.mrb[0].mxu0
        %4606 = vmatprep.mubr.bf16.mxu0 0
        %4607 = vmatmul.mubr.bf16.gmra.mrb[0].mxu0 %v4063
        %v4608 = vpop.f32.mrb[0].mxu0
        %v4609 = vadd.f32 %v4393, %v4608
        %v4610 = vpop.f32.mrb[0].mxu0
        %v4611 = vpop.f32.mrb[0].mxu0
        %v4612 = vadd.f32 %v4396, %v4611
        %v4613 = vpop.f32.mrb[0].mxu0
        %4614 = vmatprep.mubr.bf16.mxu0 0
        %4615 = vmatmul.mubr.bf16.gmra.mrb[0].mxu0 %v4066
        %v4616 = vpop.f32.mrb[0].mxu0
        %v4617 = vadd.f32 %v4401, %v4616
        %v4618 = vpop.f32.mrb[0].mxu0
        %v4619 = vpop.f32.mrb[0].mxu0
        %v4620 = vadd.f32 %v4404, %v4619
        %v4621 = vpop.f32.mrb[0].mxu0
        %4622 = vmatprep.mubr.bf16.mxu0 0
        %4623 = vmatmul.mubr.bf16.gmra.mrb[0].mxu0 %v4069
        %v4624 = vpop.f32.mrb[0].mxu0
        %v4625 = vadd.f32 %v4409, %v4624
        %v4626 = vpop.f32.mrb[0].mxu0
        %v4627 = vpop.f32.mrb[0].mxu0
        %v4628 = vadd.f32 %v4412, %v4627
        %v4629 = vpop.f32.mrb[0].mxu0
        %4630 = vmatprep.mubr.bf16.mxu0 0
        %4631 = vmatmul.mubr.bf16.gmra.mrb[0].mxu0 %v4072
        %v4632 = vpop.f32.mrb[0].mxu0
        %v4633 = vadd.f32 %v4417, %v4632
        %v4634 = vpop.f32.mrb[0].mxu0
        %v4635 = vpop.f32.mrb[0].mxu0
        %v4636 = vadd.f32 %v4420, %v4635
        %v4637 = vpop.f32.mrb[0].mxu0
        %4638 = vmatprep.mubr.bf16.mxu0 0
        %4639 = vmatmul.mubr.bf16.gmra.mrb[0].mxu0 %v4075
        %v4640 = vpop.f32.mrb[0].mxu0
        %v4641 = vadd.f32 %v4425, %v4640
        %v4642 = vpop.f32.mrb[0].mxu0
        %v4643 = vpop.f32.mrb[0].mxu0
        %v4644 = vadd.f32 %v4428, %v4643
        %v4645 = vpop.f32.mrb[0].mxu0
        %4646 = vmatprep.mubr.bf16.mxu0 0
        %4647 = vmatmul.mubr.bf16.gmra.mrb[0].mxu0 %v4078
        %v4648 = vpop.f32.mrb[0].mxu0
        %v4649 = vadd.f32 %v4433, %v4648
        %v4650 = vpop.f32.mrb[0].mxu0
        %v4651 = vpop.f32.mrb[0].mxu0
        %v4652 = vadd.f32 %v4436, %v4651
        %v4653 = vpop.f32.mrb[0].mxu0
        %4654 = vmatprep.mubr.bf16.mxu0 0
        %4655 = vmatmul.mubr.bf16.gmra.mrb[0].mxu0 %v4081
        %v4656 = vpop.f32.mrb[0].mxu0
        %v4657 = vadd.f32 %v4441, %v4656
        %v4658 = vpop.f32.mrb[0].mxu0
        %v4659 = vpop.f32.mrb[0].mxu0
        %v4660 = vadd.f32 %v4444, %v4659
        %v4661 = vpop.f32.mrb[0].mxu0
        %4662 = vmatprep.mubr.bf16.mxu0 0
        %4663 = vmatmul.mubr.bf16.gmra.mrb[0].mxu0 %v4084
        %v4664 = vpop.f32.mrb[0].mxu0
        %v4665 = vadd.f32 %v4449, %v4664
        %v4666 = vpop.f32.mrb[0].mxu0
        %v4667 = vpop.f32.mrb[0].mxu0
        %v4668 = vadd.f32 %v4452, %v4667
        %v4669 = vpop.f32.mrb[0].mxu0
        %4670 = vmatprep.mubr.bf16.mxu0 0
        %4671 = vmatmul.mubr.bf16.gmra.mrb[0].mxu0 %v4087
        %v4672 = vpop.f32.mrb[0].mxu0
        %v4673 = vadd.f32 %v4457, %v4672
        %v4674 = vpop.f32.mrb[0].mxu0
        %v4675 = vpop.f32.mrb[0].mxu0
        %v4676 = vadd.f32 %v4460, %v4675
        %v4677 = vpop.f32.mrb[0].mxu0
        %4678 = vmatprep.mubr.bf16.mxu0 0
        %4679 = vmatmul.mubr.bf16.gmra.mrb[0].mxu0 %v4090
        %v4680 = vpop.f32.mrb[0].mxu0
        %v4681 = vadd.f32 %v4465, %v4680
        %v4682 = vpop.f32.mrb[0].mxu0
        %v4683 = vpop.f32.mrb[0].mxu0
        %v4684 = vadd.f32 %v4468, %v4683
        %v4685 = vpop.f32.mrb[0].mxu0
        %4686 = vmatprep.mubr.bf16.mxu0 0
        %4687 = vmatmul.mubr.bf16.gmra.mrb[0].mxu0 %v4093
        %v4688 = vpop.f32.mrb[0].mxu0
        %v4689 = vadd.f32 %v4473, %v4688
        %v4690 = vpop.f32.mrb[0].mxu0
        %v4691 = vpop.f32.mrb[0].mxu0
        %v4692 = vadd.f32 %v4476, %v4691
        %v4693 = vpop.f32.mrb[0].mxu0
        %4694 = vmatprep.mubr.bf16.mxu0 0
        %4695 = vmatmul.mubr.bf16.gmra.mrb[0].mxu0 %v4096
        %v4696 = vpop.f32.mrb[0].mxu0
        %v4697 = vadd.f32 %v4481, %v4696
        %v4698 = vpop.f32.mrb[0].mxu0
        %v4699 = vpop.f32.mrb[0].mxu0
        %v4700 = vadd.f32 %v4484, %v4699
        %v4701 = vpop.f32.mrb[0].mxu0
        %4702 = vmatprep.mubr.bf16.mxu0 0
        %4703 = vmatmul.mubr.bf16.gmra.mrb[0].mxu0 %v4099
        %v4704 = vpop.f32.mrb[0].mxu0
        %v4705 = vadd.f32 %v4489, %v4704
        %v4706 = vpop.f32.mrb[0].mxu0
        %v4707 = vpop.f32.mrb[0].mxu0
        %v4708 = vadd.f32 %v4492, %v4707
        %v4709 = vpop.f32.mrb[0].mxu0
        %4710 = vmatprep.mubr.bf16.mxu0 0
        %4711 = vmatmul.mubr.bf16.gmra.mrb[0].mxu0 %v4102
        %v4712 = vpop.f32.mrb[0].mxu0
        %v4713 = vadd.f32 %v4497, %v4712
        %v4714 = vpop.f32.mrb[0].mxu0
        %v4715 = vpop.f32.mrb[0].mxu0
        %v4716 = vadd.f32 %v4500, %v4715
        %v4717 = vpop.f32.mrb[0].mxu0
        %4718 = vmatprep.mubr.bf16.mxu0 0
        %4719 = vmatmul.mubr.bf16.gmra.mrb[0].mxu0 %v4105
        %v4720 = vpop.f32.mrb[0].mxu0
        %v4721 = vadd.f32 %v4505, %v4720
        %v4722 = vpop.f32.mrb[0].mxu0
        %v4723 = vpop.f32.mrb[0].mxu0
        %v4724 = vadd.f32 %v4508, %v4723
        %v4725 = vpop.f32.mrb[0].mxu0
        %4726 = vmatprep.mubr.bf16.mxu0 0
        %4727 = vmatmul.mubr.bf16.gmra.mrb[0].mxu0 %v4108
        %v4728 = vpop.f32.mrb[0].mxu0
        %v4729 = vadd.f32 %v4513, %v4728
        %v4730 = vpop.f32.mrb[0].mxu0
        %v4731 = vpop.f32.mrb[0].mxu0
        %v4732 = vpop.f32.mrb[0].mxu0
        %4733 = vdwg.mxu0
        %v4782 = vunpack.c.l.b16 %v3992
        %v4783 = vunpack.c.l.b16 %v3993
        %v4784 = vunpack.c.l.b16 %v3994
        %v4785 = vunpack.c.l.b16 %v3995
        %v4786 = vunpack.c.l.b16 %v3996
        %v4787 = vunpack.c.l.b16 %v3997
        %v4788 = vunpack.c.l.b16 %v3998
        %v4789 = vunpack.c.l.b16 %v3999
        %v4790 = vunpack.c.l.b16 %v4000
        %v4791 = vunpack.c.l.b16 %v4001
        %v4792 = vunpack.c.l.b16 %v4002
        %v4793 = vunpack.c.l.b16 %v4003
        %v4794 = vunpack.c.l.b16 %v4004
        %v4795 = vunpack.c.l.b16 %v4005
        %v4796 = vunpack.c.l.b16 %v4006
        %v4797 = vunpack.c.l.b16 %v4007
        %v4798 = vunpack.c.l.b16 %v4008
        %v4799 = vunpack.c.l.b16 %v4009
        %v4800 = vunpack.c.l.b16 %v4010
        %v4801 = vunpack.c.l.b16 %v4011
        %v4802 = vunpack.c.l.b16 %v4012
        %v4803 = vunpack.c.l.b16 %v4013
        %v4804 = vunpack.c.l.b16 %v4014
        %v4805 = vunpack.c.l.b16 %v4015
        %v4806 = vunpack.c.l.b16 %v4016
        %v4807 = vunpack.c.l.b16 %v4017
        %v4808 = vunpack.c.l.b16 %v4018
        %v4809 = vunpack.c.l.b16 %v4019
        %v4810 = vunpack.c.l.b16 %v4020
        %v4811 = vunpack.c.l.b16 %v4021
        %v4812 = vunpack.c.l.b16 %v4022
        %v4813 = vunpack.c.l.b16 %v4023
        %v4814 = vunpack.c.l.b16 %v4024
        %v4815 = vunpack.c.l.b16 %v4025
        %v4816 = vunpack.c.l.b16 %v4026
        %v4817 = vunpack.c.l.b16 %v4027
        %v4818 = vunpack.c.l.b16 %v4028
        %v4819 = vunpack.c.l.b16 %v4029
        %v4820 = vunpack.c.l.b16 %v4030
        %v4821 = vunpack.c.l.b16 %v4031
        %v4822 = vunpack.c.l.b16 %v4032
        %v4823 = vunpack.c.l.b16 %v4033
        %v4824 = vunpack.c.l.b16 %v4034
        %v4825 = vunpack.c.l.b16 %v4035
        %v4826 = vunpack.c.l.b16 %v4036
        %v4827 = vunpack.c.l.b16 %v4037
        %v4828 = vunpack.c.l.b16 %v4038
        %v4829 = vunpack.c.l.b16 %v4039
        %v4830 = vpack.c.b16 %v4783, %v4782
        %v4831 = vpack.c.b16 %v4785, %v4784
        %v4832 = vpack.c.b16 %v4787, %v4786
        %v4833 = vpack.c.b16 %v4789, %v4788
        %v4834 = vpack.c.b16 %v4791, %v4790
        %v4835 = vpack.c.b16 %v4793, %v4792
        %v4836 = vpack.c.b16 %v4795, %v4794
        %v4837 = vpack.c.b16 %v4797, %v4796
        %v4838 = vpack.c.b16 %v4799, %v4798
        %v4839 = vpack.c.b16 %v4801, %v4800
        %v4840 = vpack.c.b16 %v4803, %v4802
        %v4841 = vpack.c.b16 %v4805, %v4804
        %v4842 = vpack.c.b16 %v4807, %v4806
        %v4843 = vpack.c.b16 %v4809, %v4808
        %v4844 = vpack.c.b16 %v4811, %v4810
        %v4845 = vpack.c.b16 %v4813, %v4812
        %v4846 = vpack.c.b16 %v4815, %v4814
        %v4847 = vpack.c.b16 %v4817, %v4816
        %v4848 = vpack.c.b16 %v4819, %v4818
        %v4849 = vpack.c.b16 %v4821, %v4820
        %v4850 = vpack.c.b16 %v4823, %v4822
        %v4851 = vpack.c.b16 %v4825, %v4824
        %v4852 = vpack.c.b16 %v4827, %v4826
        %v4853 = vpack.c.b16 %v4829, %v4828
        %4878 = vmatprep.subr.bf16.mxu0 0
        %4879 = vmatpush1.bf16.msra.mxu0 %v4830
        %4880 = vmatprep.subr.bf16.mxu0 0
        %4881 = vmatpush1.bf16.msra.mxu0 %v4831
        %4882 = vmatprep.subr.bf16.mxu0 0
        %4883 = vmatpush1.bf16.msra.mxu0 %v4832
        %4884 = vmatprep.subr.bf16.mxu0 0
        %4885 = vmatpush1.bf16.msra.mxu0 %v4833
        %4886 = vmatprep.subr.bf16.mxu0 0
        %4887 = vmatpush1.bf16.msra.mxu0 %v4834
        %4888 = vmatprep.subr.bf16.mxu0 0
        %4889 = vmatpush1.bf16.msra.mxu0 %v4835
        %4890 = vmatprep.subr.bf16.mxu0 0
        %4891 = vmatpush1.bf16.msra.mxu0 %v4836
        %4892 = vmatprep.subr.bf16.mxu0 0
        %4893 = vmatpush1.bf16.msra.mxu0 %v4837
        %4894 = vmatprep.subr.bf16.mxu0 0
        %4895 = vmatpush1.bf16.msra.mxu0 %v4838
        %4896 = vmatprep.subr.bf16.mxu0 0
        %4897 = vmatpush1.bf16.msra.mxu0 %v4839
        %4898 = vmatprep.subr.bf16.mxu0 0
        %4899 = vmatpush1.bf16.msra.mxu0 %v4840
        %4900 = vmatprep.subr.bf16.mxu0 0
        %4901 = vmatpush1.bf16.msra.mxu0 %v4841
        %4902 = vmatprep.subr.bf16.mxu0 0
        %4903 = vmatpush1.bf16.msra.mxu0 %v4842
        %4904 = vmatprep.subr.bf16.mxu0 0
        %4905 = vmatpush1.bf16.msra.mxu0 %v4843
        %4906 = vmatprep.subr.bf16.mxu0 0
        %4907 = vmatpush1.bf16.msra.mxu0 %v4844
        %4908 = vmatprep.subr.bf16.mxu0 0
        %4909 = vmatpush1.bf16.msra.mxu0 %v4845
        %4910 = vmatprep.mubr.bf16.mxu0 %v3924
        %4911 = vmatmul.mubr.bf16.gmra.mrb[0].mxu0 %v3923
        %v4912 = vpop.f32.mrb[0].mxu0
        %v4913 = vadd.f32 %v4553, %v4912
        %v4914 = vpop.f32.mrb[0].mxu0
        %v4915 = vpop.f32.mrb[0].mxu0
        %v4916 = vadd.f32 %v4556, %v4915
        %v4917 = vpop.f32.mrb[0].mxu0
        %4918 = vmatprep.mubr.bf16.mxu0 %v3927
        %4919 = vmatmul.mubr.bf16.gmra.mrb[0].mxu0 %v3926
        %v4920 = vpop.f32.mrb[0].mxu0
        %v4921 = vadd.f32 %v4561, %v4920
        %v4922 = vpop.f32.mrb[0].mxu0
        %v4923 = vpop.f32.mrb[0].mxu0
        %v4924 = vadd.f32 %v4564, %v4923
        %v4925 = vpop.f32.mrb[0].mxu0
        %4926 = vmatprep.mubr.bf16.mxu0 %v3930
        %4927 = vmatmul.mubr.bf16.gmra.mrb[0].mxu0 %v3929
        %v4928 = vpop.f32.mrb[0].mxu0
        %v4929 = vadd.f32 %v4569, %v4928
        %v4930 = vpop.f32.mrb[0].mxu0
        %v4931 = vpop.f32.mrb[0].mxu0
        %v4932 = vadd.f32 %v4572, %v4931
        %v4933 = vpop.f32.mrb[0].mxu0
        %4934 = vmatprep.mubr.bf16.mxu0 %v3933
        %4935 = vmatmul.mubr.bf16.gmra.mrb[0].mxu0 %v3932
        %v4936 = vpop.f32.mrb[0].mxu0
        %v4937 = vadd.f32 %v4577, %v4936
        %v4938 = vpop.f32.mrb[0].mxu0
        %v4939 = vpop.f32.mrb[0].mxu0
        %v4940 = vadd.f32 %v4580, %v4939
        %v4941 = vpop.f32.mrb[0].mxu0
        %4942 = vmatprep.mubr.bf16.mxu0 %v3936
        %4943 = vmatmul.mubr.bf16.gmra.mrb[0].mxu0 %v3935
        %v4944 = vpop.f32.mrb[0].mxu0
        %v4945 = vadd.f32 %v4585, %v4944
        %v4946 = vpop.f32.mrb[0].mxu0
        %v4947 = vpop.f32.mrb[0].mxu0
        %v4948 = vadd.f32 %v4588, %v4947
        %v4949 = vpop.f32.mrb[0].mxu0
        %4950 = vmatprep.mubr.bf16.mxu0 %v3939
        %4951 = vmatmul.mubr.bf16.gmra.mrb[0].mxu0 %v3938
        %v4952 = vpop.f32.mrb[0].mxu0
        %v4953 = vadd.f32 %v4593, %v4952
        %v4954 = vpop.f32.mrb[0].mxu0
        %v4955 = vpop.f32.mrb[0].mxu0
        %v4956 = vadd.f32 %v4596, %v4955
        %v4957 = vpop.f32.mrb[0].mxu0
        %4958 = vmatprep.mubr.bf16.mxu0 %v3942
        %4959 = vmatmul.mubr.bf16.gmra.mrb[0].mxu0 %v3941
        %v4960 = vpop.f32.mrb[0].mxu0
        %v4961 = vadd.f32 %v4601, %v4960
        %v4962 = vpop.f32.mrb[0].mxu0
        %v4963 = vpop.f32.mrb[0].mxu0
        %v4964 = vadd.f32 %v4604, %v4963
        %v4965 = vpop.f32.mrb[0].mxu0
        %4966 = vmatprep.mubr.bf16.mxu0 %v3945
        %4967 = vmatmul.mubr.bf16.gmra.mrb[0].mxu0 %v3944
        %v4968 = vpop.f32.mrb[0].mxu0
        %v4969 = vadd.f32 %v4609, %v4968
        %v4970 = vpop.f32.mrb[0].mxu0
        %v4971 = vpop.f32.mrb[0].mxu0
        %v4972 = vadd.f32 %v4612, %v4971
        %v4973 = vpop.f32.mrb[0].mxu0
        %4974 = vmatprep.mubr.bf16.mxu0 %v3948
        %4975 = vmatmul.mubr.bf16.gmra.mrb[0].mxu0 %v3947
        %v4976 = vpop.f32.mrb[0].mxu0
        %v4977 = vadd.f32 %v4617, %v4976
        %v4978 = vpop.f32.mrb[0].mxu0
        %v4979 = vpop.f32.mrb[0].mxu0
        %v4980 = vadd.f32 %v4620, %v4979
        %v4981 = vpop.f32.mrb[0].mxu0
        %4982 = vmatprep.mubr.bf16.mxu0 %v3951
        %4983 = vmatmul.mubr.bf16.gmra.mrb[0].mxu0 %v3950
        %v4984 = vpop.f32.mrb[0].mxu0
        %v4985 = vadd.f32 %v4625, %v4984
        %v4986 = vpop.f32.mrb[0].mxu0
        %v4987 = vpop.f32.mrb[0].mxu0
        %v4988 = vadd.f32 %v4628, %v4987
        %v4989 = vpop.f32.mrb[0].mxu0
        %4990 = vmatprep.mubr.bf16.mxu0 %v3954
        %4991 = vmatmul.mubr.bf16.gmra.mrb[0].mxu0 %v3953
        %v4992 = vpop.f32.mrb[0].mxu0
        %v4993 = vadd.f32 %v4633, %v4992
        %v4994 = vpop.f32.mrb[0].mxu0
        %v4995 = vpop.f32.mrb[0].mxu0
        %v4996 = vadd.f32 %v4636, %v4995
        %v4997 = vpop.f32.mrb[0].mxu0
        %4998 = vmatprep.mubr.bf16.mxu0 %v3957
        %4999 = vmatmul.mubr.bf16.gmra.mrb[0].mxu0 %v3956
        %v5000 = vpop.f32.mrb[0].mxu0
        %v5001 = vadd.f32 %v4641, %v5000
        %v5002 = vpop.f32.mrb[0].mxu0
        %v5003 = vpop.f32.mrb[0].mxu0
        %v5004 = vadd.f32 %v4644, %v5003
        %v5005 = vpop.f32.mrb[0].mxu0
        %5006 = vmatprep.mubr.bf16.mxu0 %v3960
        %5007 = vmatmul.mubr.bf16.gmra.mrb[0].mxu0 %v3959
        %v5008 = vpop.f32.mrb[0].mxu0
        %v5009 = vadd.f32 %v4649, %v5008
        %v5010 = vpop.f32.mrb[0].mxu0
        %v5011 = vpop.f32.mrb[0].mxu0
        %v5012 = vadd.f32 %v4652, %v5011
        %v5013 = vpop.f32.mrb[0].mxu0
        %5014 = vmatprep.mubr.bf16.mxu0 %v3963
        %5015 = vmatmul.mubr.bf16.gmra.mrb[0].mxu0 %v3962
        %v5016 = vpop.f32.mrb[0].mxu0
        %v5017 = vadd.f32 %v4657, %v5016
        %v5018 = vpop.f32.mrb[0].mxu0
        %v5019 = vpop.f32.mrb[0].mxu0
        %v5020 = vadd.f32 %v4660, %v5019
        %v5021 = vpop.f32.mrb[0].mxu0
        %5022 = vmatprep.mubr.bf16.mxu0 %v3966
        %5023 = vmatmul.mubr.bf16.gmra.mrb[0].mxu0 %v3965
        %v5024 = vpop.f32.mrb[0].mxu0
        %v5025 = vadd.f32 %v4665, %v5024
        %v5026 = vpop.f32.mrb[0].mxu0
        %v5027 = vpop.f32.mrb[0].mxu0
        %v5028 = vadd.f32 %v4668, %v5027
        %v5029 = vpop.f32.mrb[0].mxu0
        %5030 = vmatprep.mubr.bf16.mxu0 %v3969
        %5031 = vmatmul.mubr.bf16.gmra.mrb[0].mxu0 %v3968
        %v5032 = vpop.f32.mrb[0].mxu0
        %v5033 = vadd.f32 %v4673, %v5032
        %v5034 = vpop.f32.mrb[0].mxu0
        %v5035 = vpop.f32.mrb[0].mxu0
        %v5036 = vadd.f32 %v4676, %v5035
        %v5037 = vpop.f32.mrb[0].mxu0
        %5038 = vmatprep.mubr.bf16.mxu0 %v3972
        %5039 = vmatmul.mubr.bf16.gmra.mrb[0].mxu0 %v3971
        %v5040 = vpop.f32.mrb[0].mxu0
        %v5041 = vadd.f32 %v4681, %v5040
        %v5042 = vpop.f32.mrb[0].mxu0
        %v5043 = vpop.f32.mrb[0].mxu0
        %v5044 = vadd.f32 %v4684, %v5043
        %v5045 = vpop.f32.mrb[0].mxu0
        %5046 = vmatprep.mubr.bf16.mxu0 %v3975
        %5047 = vmatmul.mubr.bf16.gmra.mrb[0].mxu0 %v3974
        %v5048 = vpop.f32.mrb[0].mxu0
        %v5049 = vadd.f32 %v4689, %v5048
        %v5050 = vpop.f32.mrb[0].mxu0
        %v5051 = vpop.f32.mrb[0].mxu0
        %v5052 = vadd.f32 %v4692, %v5051
        %v5053 = vpop.f32.mrb[0].mxu0
        %5054 = vmatprep.mubr.bf16.mxu0 %v3978
        %5055 = vmatmul.mubr.bf16.gmra.mrb[0].mxu0 %v3977
        %v5056 = vpop.f32.mrb[0].mxu0
        %v5057 = vadd.f32 %v4697, %v5056
        %v5058 = vpop.f32.mrb[0].mxu0
        %v5059 = vpop.f32.mrb[0].mxu0
        %v5060 = vadd.f32 %v4700, %v5059
        %v5061 = vpop.f32.mrb[0].mxu0
        %5062 = vmatprep.mubr.bf16.mxu0 %v3981
        %5063 = vmatmul.mubr.bf16.gmra.mrb[0].mxu0 %v3980
        %v5064 = vpop.f32.mrb[0].mxu0
        %v5065 = vadd.f32 %v4705, %v5064
        %v5066 = vpop.f32.mrb[0].mxu0
        %v5067 = vpop.f32.mrb[0].mxu0
        %v5068 = vadd.f32 %v4708, %v5067
        %v5069 = vpop.f32.mrb[0].mxu0
        %5070 = vmatprep.mubr.bf16.mxu0 %v3984
        %5071 = vmatmul.mubr.bf16.gmra.mrb[0].mxu0 %v3983
        %v5072 = vpop.f32.mrb[0].mxu0
        %v5073 = vadd.f32 %v4713, %v5072
        %v5074 = vpop.f32.mrb[0].mxu0
        %v5075 = vpop.f32.mrb[0].mxu0
        %v5076 = vadd.f32 %v4716, %v5075
        %v5077 = vpop.f32.mrb[0].mxu0
        %5078 = vmatprep.mubr.bf16.mxu0 %v3987
        %5079 = vmatmul.mubr.bf16.gmra.mrb[0].mxu0 %v3986
        %v5080 = vpop.f32.mrb[0].mxu0
        %v5081 = vadd.f32 %v4721, %v5080
        %v5082 = vpop.f32.mrb[0].mxu0
        %v5083 = vpop.f32.mrb[0].mxu0
        %v5084 = vadd.f32 %v4724, %v5083
        %v5085 = vpop.f32.mrb[0].mxu0
        %5086 = vmatprep.mubr.bf16.mxu0 %v3990
        %5087 = vmatmul.mubr.bf16.gmra.mrb[0].mxu0 %v3989
        %v5088 = vpop.f32.mrb[0].mxu0
        %v5089 = vadd.f32 %v4729, %v5088
        %v5090 = vpop.f32.mrb[0].mxu0
        %v5091 = vpop.f32.mrb[0].mxu0
        %v5092 = vpop.f32.mrb[0].mxu0
        %5093 = vdwg.mxu0
        %5094 = vmatprep.subr.bf16.mxu0 0
        %5095 = vmatpush1.bf16.msra.mxu0 %v4846
        %5096 = vmatprep.subr.bf16.mxu0 0
        %5097 = vmatpush1.bf16.msra.mxu0 %v4847
        %5098 = vmatprep.subr.bf16.mxu0 0
        %5099 = vmatpush1.bf16.msra.mxu0 %v4848
        %5100 = vmatprep.subr.bf16.mxu0 0
        %5101 = vmatpush1.bf16.msra.mxu0 %v4849
        %5102 = vmatprep.subr.bf16.mxu0 0
        %5103 = vmatpush1.bf16.msra.mxu0 %v4850
        %5104 = vmatprep.subr.bf16.mxu0 0
        %5105 = vmatpush1.bf16.msra.mxu0 %v4851
        %5106 = vmatprep.subr.bf16.mxu0 0
        %5107 = vmatpush1.bf16.msra.mxu0 %v4852
        %5108 = vmatprep.subr.bf16.mxu0 0
        %5109 = vmatpush1.bf16.msra.mxu0 %v4853
        %5110 = vmatprep.subr.bf16.mxu0 0
        %5111 = vmatpush1.bf16.msra.mxu0 0
        %5112 = vmatprep.subr.bf16.mxu0 0
        %5113 = vmatpush1.bf16.msra.mxu0 0
        %5114 = vmatprep.subr.bf16.mxu0 0
        %5115 = vmatpush1.bf16.msra.mxu0 0
        %5116 = vmatprep.subr.bf16.mxu0 0
        %5117 = vmatpush1.bf16.msra.mxu0 0
        %5118 = vmatprep.subr.bf16.mxu0 0
        %5119 = vmatpush1.bf16.msra.mxu0 0
        %5120 = vmatprep.subr.bf16.mxu0 0
        %5121 = vmatpush1.bf16.msra.mxu0 0
        %5122 = vmatprep.subr.bf16.mxu0 0
        %5123 = vmatpush1.bf16.msra.mxu0 0
        %5124 = vmatprep.subr.bf16.mxu0 0
        %5125 = vmatpush1.bf16.msra.mxu0 0
        %5126 = vmatprep.mubr.bf16.mxu0 0
        %5127 = vmatmul.mubr.bf16.gmra.mrb[0].mxu0 %v3925
        %v5128 = vpop.f32.mrb[0].mxu0
        %v5129 = vadd.f32 %v4913, %v5128
        %v5130 = vpop.f32.mrb[0].mxu0
        %v5131 = vpop.f32.mrb[0].mxu0
        %v5132 = vadd.f32 %v4916, %v5131
        %v5133 = vpop.f32.mrb[0].mxu0
        %5134 = vmatprep.mubr.bf16.mxu0 0
        %5135 = vmatmul.mubr.bf16.gmra.mrb[0].mxu0 %v3928
        %v5136 = vpop.f32.mrb[0].mxu0
        %v5137 = vadd.f32 %v4921, %v5136
        %v5138 = vpop.f32.mrb[0].mxu0
        %v5139 = vpop.f32.mrb[0].mxu0
        %v5140 = vadd.f32 %v4924, %v5139
        %v5141 = vpop.f32.mrb[0].mxu0
        %5142 = vmatprep.mubr.bf16.mxu0 0
        %5143 = vmatmul.mubr.bf16.gmra.mrb[0].mxu0 %v3931
        %v5144 = vpop.f32.mrb[0].mxu0
        %v5145 = vadd.f32 %v4929, %v5144
        %v5146 = vpop.f32.mrb[0].mxu0
        %v5147 = vpop.f32.mrb[0].mxu0
        %v5148 = vadd.f32 %v4932, %v5147
        %v5149 = vpop.f32.mrb[0].mxu0
        %5150 = vmatprep.mubr.bf16.mxu0 0
        %5151 = vmatmul.mubr.bf16.gmra.mrb[0].mxu0 %v3934
        %v5152 = vpop.f32.mrb[0].mxu0
        %v5153 = vadd.f32 %v4937, %v5152
        %v5154 = vpop.f32.mrb[0].mxu0
        %v5155 = vpop.f32.mrb[0].mxu0
        %v5156 = vadd.f32 %v4940, %v5155
        %v5157 = vpop.f32.mrb[0].mxu0
        %5158 = vmatprep.mubr.bf16.mxu0 0
        %5159 = vmatmul.mubr.bf16.gmra.mrb[0].mxu0 %v3937
        %v5160 = vpop.f32.mrb[0].mxu0
        %v5161 = vadd.f32 %v4945, %v5160
        %v5162 = vpop.f32.mrb[0].mxu0
        %v5163 = vpop.f32.mrb[0].mxu0
        %v5164 = vadd.f32 %v4948, %v5163
        %v5165 = vpop.f32.mrb[0].mxu0
        %5166 = vmatprep.mubr.bf16.mxu0 0
        %5167 = vmatmul.mubr.bf16.gmra.mrb[0].mxu0 %v3940
        %v5168 = vpop.f32.mrb[0].mxu0
        %v5169 = vadd.f32 %v4953, %v5168
        %v5170 = vpop.f32.mrb[0].mxu0
        %v5171 = vpop.f32.mrb[0].mxu0
        %v5172 = vadd.f32 %v4956, %v5171
        %v5173 = vpop.f32.mrb[0].mxu0
        %5174 = vmatprep.mubr.bf16.mxu0 0
        %5175 = vmatmul.mubr.bf16.gmra.mrb[0].mxu0 %v3943
        %v5176 = vpop.f32.mrb[0].mxu0
        %v5177 = vadd.f32 %v4961, %v5176
        %v5178 = vpop.f32.mrb[0].mxu0
        %v5179 = vpop.f32.mrb[0].mxu0
        %v5180 = vadd.f32 %v4964, %v5179
        %v5181 = vpop.f32.mrb[0].mxu0
        %5182 = vmatprep.mubr.bf16.mxu0 0
        %5183 = vmatmul.mubr.bf16.gmra.mrb[0].mxu0 %v3946
        %v5184 = vpop.f32.mrb[0].mxu0
        %v5185 = vadd.f32 %v4969, %v5184
        %v5186 = vpop.f32.mrb[0].mxu0
        %v5187 = vpop.f32.mrb[0].mxu0
        %v5188 = vadd.f32 %v4972, %v5187
        %v5189 = vpop.f32.mrb[0].mxu0
        %5190 = vmatprep.mubr.bf16.mxu0 0
        %5191 = vmatmul.mubr.bf16.gmra.mrb[0].mxu0 %v3949
        %v5192 = vpop.f32.mrb[0].mxu0
        %v5193 = vadd.f32 %v4977, %v5192
        %v5194 = vpop.f32.mrb[0].mxu0
        %v5195 = vpop.f32.mrb[0].mxu0
        %v5196 = vadd.f32 %v4980, %v5195
        %v5197 = vpop.f32.mrb[0].mxu0
        %5198 = vmatprep.mubr.bf16.mxu0 0
        %5199 = vmatmul.mubr.bf16.gmra.mrb[0].mxu0 %v3952
        %v5200 = vpop.f32.mrb[0].mxu0
        %v5201 = vadd.f32 %v4985, %v5200
        %v5202 = vpop.f32.mrb[0].mxu0
        %v5203 = vpop.f32.mrb[0].mxu0
        %v5204 = vadd.f32 %v4988, %v5203
        %v5205 = vpop.f32.mrb[0].mxu0
        %5206 = vmatprep.mubr.bf16.mxu0 0
        %5207 = vmatmul.mubr.bf16.gmra.mrb[0].mxu0 %v3955
        %v5208 = vpop.f32.mrb[0].mxu0
        %v5209 = vadd.f32 %v4993, %v5208
        %v5210 = vpop.f32.mrb[0].mxu0
        %v5211 = vpop.f32.mrb[0].mxu0
        %v5212 = vadd.f32 %v4996, %v5211
        %v5213 = vpop.f32.mrb[0].mxu0
        %5214 = vmatprep.mubr.bf16.mxu0 0
        %5215 = vmatmul.mubr.bf16.gmra.mrb[0].mxu0 %v3958
        %v5216 = vpop.f32.mrb[0].mxu0
        %v5217 = vadd.f32 %v5001, %v5216
        %v5218 = vpop.f32.mrb[0].mxu0
        %v5219 = vpop.f32.mrb[0].mxu0
        %v5220 = vadd.f32 %v5004, %v5219
        %v5221 = vpop.f32.mrb[0].mxu0
        %5222 = vmatprep.mubr.bf16.mxu0 0
        %5223 = vmatmul.mubr.bf16.gmra.mrb[0].mxu0 %v3961
        %v5224 = vpop.f32.mrb[0].mxu0
        %v5225 = vadd.f32 %v5009, %v5224
        %v5226 = vpop.f32.mrb[0].mxu0
        %v5227 = vpop.f32.mrb[0].mxu0
        %v5228 = vadd.f32 %v5012, %v5227
        %v5229 = vpop.f32.mrb[0].mxu0
        %5230 = vmatprep.mubr.bf16.mxu0 0
        %5231 = vmatmul.mubr.bf16.gmra.mrb[0].mxu0 %v3964
        %v5232 = vpop.f32.mrb[0].mxu0
        %v5233 = vadd.f32 %v5017, %v5232
        %v5234 = vpop.f32.mrb[0].mxu0
        %v5235 = vpop.f32.mrb[0].mxu0
        %v5236 = vadd.f32 %v5020, %v5235
        %v5237 = vpop.f32.mrb[0].mxu0
        %5238 = vmatprep.mubr.bf16.mxu0 0
        %5239 = vmatmul.mubr.bf16.gmra.mrb[0].mxu0 %v3967
        %v5240 = vpop.f32.mrb[0].mxu0
        %v5241 = vadd.f32 %v5025, %v5240
        %v5242 = vpop.f32.mrb[0].mxu0
        %v5243 = vpop.f32.mrb[0].mxu0
        %v5244 = vadd.f32 %v5028, %v5243
        %v5245 = vpop.f32.mrb[0].mxu0
        %5246 = vmatprep.mubr.bf16.mxu0 0
        %5247 = vmatmul.mubr.bf16.gmra.mrb[0].mxu0 %v3970
        %v5248 = vpop.f32.mrb[0].mxu0
        %v5249 = vadd.f32 %v5033, %v5248
        %v5250 = vpop.f32.mrb[0].mxu0
        %v5251 = vpop.f32.mrb[0].mxu0
        %v5252 = vadd.f32 %v5036, %v5251
        %v5253 = vpop.f32.mrb[0].mxu0
        %5254 = vmatprep.mubr.bf16.mxu0 0
        %5255 = vmatmul.mubr.bf16.gmra.mrb[0].mxu0 %v3973
        %v5256 = vpop.f32.mrb[0].mxu0
        %v5257 = vadd.f32 %v5041, %v5256
        %v5258 = vpop.f32.mrb[0].mxu0
        %v5259 = vpop.f32.mrb[0].mxu0
        %v5260 = vadd.f32 %v5044, %v5259
        %v5261 = vpop.f32.mrb[0].mxu0
        %5262 = vmatprep.mubr.bf16.mxu0 0
        %5263 = vmatmul.mubr.bf16.gmra.mrb[0].mxu0 %v3976
        %v5264 = vpop.f32.mrb[0].mxu0
        %v5265 = vadd.f32 %v5049, %v5264
        %v5266 = vpop.f32.mrb[0].mxu0
        %v5267 = vpop.f32.mrb[0].mxu0
        %v5268 = vadd.f32 %v5052, %v5267
        %v5269 = vpop.f32.mrb[0].mxu0
        %5270 = vmatprep.mubr.bf16.mxu0 0
        %5271 = vmatmul.mubr.bf16.gmra.mrb[0].mxu0 %v3979
        %v5272 = vpop.f32.mrb[0].mxu0
        %v5273 = vadd.f32 %v5057, %v5272
        %v5274 = vpop.f32.mrb[0].mxu0
        %v5275 = vpop.f32.mrb[0].mxu0
        %v5276 = vadd.f32 %v5060, %v5275
        %v5277 = vpop.f32.mrb[0].mxu0
        %5278 = vmatprep.mubr.bf16.mxu0 0
        %5279 = vmatmul.mubr.bf16.gmra.mrb[0].mxu0 %v3982
        %v5280 = vpop.f32.mrb[0].mxu0
        %v5281 = vadd.f32 %v5065, %v5280
        %v5282 = vpop.f32.mrb[0].mxu0
        %v5283 = vpop.f32.mrb[0].mxu0
        %v5284 = vadd.f32 %v5068, %v5283
        %v5285 = vpop.f32.mrb[0].mxu0
        %5286 = vmatprep.mubr.bf16.mxu0 0
        %5287 = vmatmul.mubr.bf16.gmra.mrb[0].mxu0 %v3985
        %v5288 = vpop.f32.mrb[0].mxu0
        %v5289 = vadd.f32 %v5073, %v5288
        %v5290 = vpop.f32.mrb[0].mxu0
        %v5291 = vpop.f32.mrb[0].mxu0
        %v5292 = vadd.f32 %v5076, %v5291
        %v5293 = vpop.f32.mrb[0].mxu0
        %5294 = vmatprep.mubr.bf16.mxu0 0
        %5295 = vmatmul.mubr.bf16.gmra.mrb[0].mxu0 %v3988
        %v5296 = vpop.f32.mrb[0].mxu0
        %v5297 = vadd.f32 %v5081, %v5296
        %v5298 = vpop.f32.mrb[0].mxu0
        %v5299 = vpop.f32.mrb[0].mxu0
        %v5300 = vadd.f32 %v5084, %v5299
        %v5301 = vpop.f32.mrb[0].mxu0
        %5302 = vmatprep.mubr.bf16.mxu0 0
        %5303 = vmatmul.mubr.bf16.gmra.mrb[0].mxu0 %v3991
        %v5304 = vpop.f32.mrb[0].mxu0
        %v5305 = vadd.f32 %v5089, %v5304
        %v5306 = vpop.f32.mrb[0].mxu0
        %v5307 = vpop.f32.mrb[0].mxu0
        %v5308 = vpop.f32.mrb[0].mxu0
        %5309 = vdwg.mxu0
        %v5310 = vpack.c.bf16 %v3908, %v3911
        %v5311 = vpack.c.bf16 %v3909, %v3912
        %v5312 = vpack.c.bf16 %v3910, %v3913
        %v5313 = vpack.c.bf16 %v3902, %v3905
        %v5314 = vpack.c.bf16 %v3903, %v3906
        %v5315 = vpack.c.bf16 %v3904, %v3907
        %v5316 = vpack.c.bf16 %v3896, %v3899
        %v5317 = vpack.c.bf16 %v3897, %v3900
        %v5318 = vpack.c.bf16 %v3898, %v3901
        %v5319 = vpack.c.bf16 %v3890, %v3893
        %v5320 = vpack.c.bf16 %v3891, %v3894
        %v5321 = vpack.c.bf16 %v3892, %v3895
        %v5322 = vpack.c.bf16 %v3884, %v3887
        %v5323 = vpack.c.bf16 %v3885, %v3888
        %v5324 = vpack.c.bf16 %v3886, %v3889
        %v5325 = vpack.c.bf16 %v3878, %v3881
        %v5326 = vpack.c.bf16 %v3879, %v3882
        %v5327 = vpack.c.bf16 %v3880, %v3883
        %v5328 = vpack.c.bf16 %v3872, %v3875
        %v5329 = vpack.c.bf16 %v3873, %v3876
        %v5330 = vpack.c.bf16 %v3874, %v3877
        %v5331 = vpack.c.bf16 %v3866, %v3869
        %v5332 = vpack.c.bf16 %v3867, %v3870
        %v5333 = vpack.c.bf16 %v3868, %v3871
        %v5334 = vpack.c.bf16 %v3860, %v3863
        %v5335 = vpack.c.bf16 %v3861, %v3864
        %v5336 = vpack.c.bf16 %v3862, %v3865
        %v5337 = vpack.c.bf16 %v3854, %v3857
        %v5338 = vpack.c.bf16 %v3855, %v3858
        %v5339 = vpack.c.bf16 %v3856, %v3859
        %v5340 = vpack.c.bf16 %v3848, %v3851
        %v5341 = vpack.c.bf16 %v3849, %v3852
        %v5342 = vpack.c.bf16 %v3850, %v3853
        %v5343 = vpack.c.bf16 %v3842, %v3845
        %v5344 = vpack.c.bf16 %v3843, %v3846
        %v5345 = vpack.c.bf16 %v3844, %v3847
        %v5346 = vpack.c.bf16 %v3836, %v3839
        %v5347 = vpack.c.bf16 %v3837, %v3840
        %v5348 = vpack.c.bf16 %v3838, %v3841
        %v5349 = vpack.c.bf16 %v3830, %v3833
        %v5350 = vpack.c.bf16 %v3831, %v3834
        %v5351 = vpack.c.bf16 %v3832, %v3835
        %v5352 = vpack.c.bf16 %v3824, %v3827
        %v5353 = vpack.c.bf16 %v3825, %v3828
        %v5354 = vpack.c.bf16 %v3826, %v3829
        %v5355 = vpack.c.bf16 %v3818, %v3821
        %v5356 = vpack.c.bf16 %v3819, %v3822
        %v5357 = vpack.c.bf16 %v3820, %v3823
        %v5358 = vpack.c.bf16 %v3812, %v3815
        %v5359 = vpack.c.bf16 %v3813, %v3816
        %v5360 = vpack.c.bf16 %v3814, %v3817
        %v5361 = vpack.c.bf16 %v3806, %v3809
        %v5362 = vpack.c.bf16 %v3807, %v3810
        %v5363 = vpack.c.bf16 %v3808, %v3811
        %v5364 = vpack.c.bf16 %v3800, %v3803
        %v5365 = vpack.c.bf16 %v3801, %v3804
        %v5366 = vpack.c.bf16 %v3802, %v3805
        %v5367 = vpack.c.bf16 %v3794, %v3797
        %v5368 = vpack.c.bf16 %v3795, %v3798
        %v5369 = vpack.c.bf16 %v3796, %v3799
        %v5370 = vpack.c.bf16 %v3914, %v3914
        %v5371 = vpack.c.bf16 %v3915, %v3915
        %v5372 = vpack.c.bf16 %v3916, %v3916
        %s5373 = scalar_lea.vmem [#allocation4], 384
        %v5374 = vld [vmem:[%s5373] sm:$0xf]
        %v5375 = vld [vmem:[%s5373 + $0x4] sm:$0xf]
        %v5376 = vld [vmem:[%s5373 + $0x8] sm:$0xf]
        %v5377 = vld [vmem:[%s5373 + $0xc] sm:$0xf]
        %v5378 = vld [vmem:[%s5373 + $0x10] sm:$0xf]
        %v5379 = vld [vmem:[%s5373 + $0x14] sm:$0xf]
        %v5380 = vld [vmem:[%s5373 + $0x18] sm:$0xf]
        %v5381 = vld [vmem:[%s5373 + $0x1c] sm:$0xf]
        %v5382 = vld [vmem:[%s5373 + $0x20] sm:$0xf]
        %v5383 = vld [vmem:[%s5373 + $0x24] sm:$0xf]
        %v5384 = vld [vmem:[%s5373 + $0x28] sm:$0xf]
        %v5385 = vld [vmem:[%s5373 + $0x2c] sm:$0xf]
        %v5386 = vld [vmem:[%s5373 + $0x30] sm:$0xf]
        %v5387 = vld [vmem:[%s5373 + $0x34] sm:$0xf]
        %v5388 = vld [vmem:[%s5373 + $0x38] sm:$0xf]
        %v5389 = vld [vmem:[%s5373 + $0x3c] sm:$0xf]
        %v5390 = vld [vmem:[%s5373 + $0x40] sm:$0xf]
        %v5391 = vld [vmem:[%s5373 + $0x44] sm:$0xf]
        %v5392 = vld [vmem:[%s5373 + $0x48] sm:$0xf]
        %v5393 = vld [vmem:[%s5373 + $0x4c] sm:$0xf]
        %v5394 = vld [vmem:[%s5373 + $0x50] sm:$0xf]
        %v5395 = vld [vmem:[%s5373 + $0x54] sm:$0xf]
        %v5396 = vld [vmem:[%s5373 + $0x58] sm:$0xf]
        %v5397 = vld [vmem:[%s5373 + $0x5c] sm:$0xf]
        %v5398 = vld [vmem:[%s5373 + $0x60] sm:$0xf]
        %v5399 = vld [vmem:[%s5373 + $0x64] sm:$0xf]
        %v5400 = vld [vmem:[%s5373 + $0x68] sm:$0xf]
        %v5401 = vld [vmem:[%s5373 + $0x6c] sm:$0xf]
        %v5402 = vld [vmem:[%s5373 + $0x70] sm:$0xf]
        %v5403 = vld [vmem:[%s5373 + $0x74] sm:$0xf]
        %v5404 = vld [vmem:[%s5373 + $0x78] sm:$0xf]
        %v5405 = vld [vmem:[%s5373 + $0x7c] sm:$0xf]
        %v5406 = vld [vmem:[%s5373 + $0x80] sm:$0xf]
        %v5407 = vld [vmem:[%s5373 + $0x84] sm:$0xf]
        %v5408 = vld [vmem:[%s5373 + $0x88] sm:$0xf]
        %v5409 = vld [vmem:[%s5373 + $0x8c] sm:$0xf]
        %v5410 = vld [vmem:[%s5373 + $0x90] sm:$0xf]
        %v5411 = vld [vmem:[%s5373 + $0x94] sm:$0xf]
        %v5412 = vld [vmem:[%s5373 + $0x98] sm:$0xf]
        %v5413 = vld [vmem:[%s5373 + $0x9c] sm:$0xf]
        %v5414 = vld [vmem:[%s5373 + $0xa0] sm:$0xf]
        %v5415 = vld [vmem:[%s5373 + $0xa4] sm:$0xf]
        %v5416 = vld [vmem:[%s5373 + $0xa8] sm:$0xf]
        %v5417 = vld [vmem:[%s5373 + $0xac] sm:$0xf]
        %v5418 = vld [vmem:[%s5373 + $0xb0] sm:$0xf]
        %v5419 = vld [vmem:[%s5373 + $0xb4] sm:$0xf]
        %v5420 = vld [vmem:[%s5373 + $0xb8] sm:$0xf]
        %v5421 = vld [vmem:[%s5373 + $0xbc] sm:$0xf]
        %v5470 = vunpack.c.l.b16 %v5374
        %v5471 = vunpack.c.l.b16 %v5375
        %v5472 = vunpack.c.l.b16 %v5376
        %v5473 = vunpack.c.l.b16 %v5377
        %v5474 = vunpack.c.l.b16 %v5378
        %v5475 = vunpack.c.l.b16 %v5379
        %v5476 = vunpack.c.l.b16 %v5380
        %v5477 = vunpack.c.l.b16 %v5381
        %v5478 = vunpack.c.l.b16 %v5382
        %v5479 = vunpack.c.l.b16 %v5383
        %v5480 = vunpack.c.l.b16 %v5384
        %v5481 = vunpack.c.l.b16 %v5385
        %v5482 = vunpack.c.l.b16 %v5386
        %v5483 = vunpack.c.l.b16 %v5387
        %v5484 = vunpack.c.l.b16 %v5388
        %v5485 = vunpack.c.l.b16 %v5389
        %v5486 = vunpack.c.l.b16 %v5390
        %v5487 = vunpack.c.l.b16 %v5391
        %v5488 = vunpack.c.l.b16 %v5392
        %v5489 = vunpack.c.l.b16 %v5393
        %v5490 = vunpack.c.l.b16 %v5394
        %v5491 = vunpack.c.l.b16 %v5395
        %v5492 = vunpack.c.l.b16 %v5396
        %v5493 = vunpack.c.l.b16 %v5397
        %v5494 = vunpack.c.l.b16 %v5398
        %v5495 = vunpack.c.l.b16 %v5399
        %v5496 = vunpack.c.l.b16 %v5400
        %v5497 = vunpack.c.l.b16 %v5401
        %v5498 = vunpack.c.l.b16 %v5402
        %v5499 = vunpack.c.l.b16 %v5403
        %v5500 = vunpack.c.l.b16 %v5404
        %v5501 = vunpack.c.l.b16 %v5405
        %v5502 = vunpack.c.l.b16 %v5406
        %v5503 = vunpack.c.l.b16 %v5407
        %v5504 = vunpack.c.l.b16 %v5408
        %v5505 = vunpack.c.l.b16 %v5409
        %v5506 = vunpack.c.l.b16 %v5410
        %v5507 = vunpack.c.l.b16 %v5411
        %v5508 = vunpack.c.l.b16 %v5412
        %v5509 = vunpack.c.l.b16 %v5413
        %v5510 = vunpack.c.l.b16 %v5414
        %v5511 = vunpack.c.l.b16 %v5415
        %v5512 = vunpack.c.l.b16 %v5416
        %v5513 = vunpack.c.l.b16 %v5417
        %v5514 = vunpack.c.l.b16 %v5418
        %v5515 = vunpack.c.l.b16 %v5419
        %v5516 = vunpack.c.l.b16 %v5420
        %v5517 = vunpack.c.l.b16 %v5421
        %v5518 = vpack.c.b16 %v5471, %v5470
        %v5519 = vpack.c.b16 %v5473, %v5472
        %v5520 = vpack.c.b16 %v5475, %v5474
        %v5521 = vpack.c.b16 %v5477, %v5476
        %v5522 = vpack.c.b16 %v5479, %v5478
        %v5523 = vpack.c.b16 %v5481, %v5480
        %v5524 = vpack.c.b16 %v5483, %v5482
        %v5525 = vpack.c.b16 %v5485, %v5484
        %v5526 = vpack.c.b16 %v5487, %v5486
        %v5527 = vpack.c.b16 %v5489, %v5488
        %v5528 = vpack.c.b16 %v5491, %v5490
        %v5529 = vpack.c.b16 %v5493, %v5492
        %v5530 = vpack.c.b16 %v5495, %v5494
        %v5531 = vpack.c.b16 %v5497, %v5496
        %v5532 = vpack.c.b16 %v5499, %v5498
        %v5533 = vpack.c.b16 %v5501, %v5500
        %v5534 = vpack.c.b16 %v5503, %v5502
        %v5535 = vpack.c.b16 %v5505, %v5504
        %v5536 = vpack.c.b16 %v5507, %v5506
        %v5537 = vpack.c.b16 %v5509, %v5508
        %v5538 = vpack.c.b16 %v5511, %v5510
        %v5539 = vpack.c.b16 %v5513, %v5512
        %v5540 = vpack.c.b16 %v5515, %v5514
        %v5541 = vpack.c.b16 %v5517, %v5516
        %5566 = vmatprep.subr.bf16.mxu0 0
        %5567 = vmatpush1.bf16.msra.mxu0 %v5518
        %5568 = vmatprep.subr.bf16.mxu0 0
        %5569 = vmatpush1.bf16.msra.mxu0 %v5519
        %5570 = vmatprep.subr.bf16.mxu0 0
        %5571 = vmatpush1.bf16.msra.mxu0 %v5520
        %5572 = vmatprep.subr.bf16.mxu0 0
        %5573 = vmatpush1.bf16.msra.mxu0 %v5521
        %5574 = vmatprep.subr.bf16.mxu0 0
        %5575 = vmatpush1.bf16.msra.mxu0 %v5522
        %5576 = vmatprep.subr.bf16.mxu0 0
        %5577 = vmatpush1.bf16.msra.mxu0 %v5523
        %5578 = vmatprep.subr.bf16.mxu0 0
        %5579 = vmatpush1.bf16.msra.mxu0 %v5524
        %5580 = vmatprep.subr.bf16.mxu0 0
        %5581 = vmatpush1.bf16.msra.mxu0 %v5525
        %5582 = vmatprep.subr.bf16.mxu0 0
        %5583 = vmatpush1.bf16.msra.mxu0 %v5526
        %5584 = vmatprep.subr.bf16.mxu0 0
        %5585 = vmatpush1.bf16.msra.mxu0 %v5527
        %5586 = vmatprep.subr.bf16.mxu0 0
        %5587 = vmatpush1.bf16.msra.mxu0 %v5528
        %5588 = vmatprep.subr.bf16.mxu0 0
        %5589 = vmatpush1.bf16.msra.mxu0 %v5529
        %5590 = vmatprep.subr.bf16.mxu0 0
        %5591 = vmatpush1.bf16.msra.mxu0 %v5530
        %5592 = vmatprep.subr.bf16.mxu0 0
        %5593 = vmatpush1.bf16.msra.mxu0 %v5531
        %5594 = vmatprep.subr.bf16.mxu0 0
        %5595 = vmatpush1.bf16.msra.mxu0 %v5532
        %5596 = vmatprep.subr.bf16.mxu0 0
        %5597 = vmatpush1.bf16.msra.mxu0 %v5533
        %5598 = vmatprep.mubr.bf16.mxu0 %v5311
        %5599 = vmatmul.mubr.bf16.gmra.mrb[0].mxu0 %v5310
        %v5600 = vpop.f32.mrb[0].mxu0
        %v5601 = vadd.f32 0.0, %v5600
        %v5602 = vpop.f32.mrb[0].mxu0
        %v5603 = vpop.f32.mrb[0].mxu0
        %v5604 = vadd.f32 0.0, %v5603
        %v5605 = vpop.f32.mrb[0].mxu0
        %5606 = vmatprep.mubr.bf16.mxu0 %v5314
        %5607 = vmatmul.mubr.bf16.gmra.mrb[0].mxu0 %v5313
        %v5608 = vpop.f32.mrb[0].mxu0
        %v5609 = vadd.f32 0.0, %v5608
        %v5610 = vpop.f32.mrb[0].mxu0
        %v5611 = vpop.f32.mrb[0].mxu0
        %v5612 = vadd.f32 0.0, %v5611
        %v5613 = vpop.f32.mrb[0].mxu0
        %5614 = vmatprep.mubr.bf16.mxu0 %v5317
        %5615 = vmatmul.mubr.bf16.gmra.mrb[0].mxu0 %v5316
        %v5616 = vpop.f32.mrb[0].mxu0
        %v5617 = vadd.f32 0.0, %v5616
        %v5618 = vpop.f32.mrb[0].mxu0
        %v5619 = vpop.f32.mrb[0].mxu0
        %v5620 = vadd.f32 0.0, %v5619
        %v5621 = vpop.f32.mrb[0].mxu0
        %5622 = vmatprep.mubr.bf16.mxu0 %v5320
        %5623 = vmatmul.mubr.bf16.gmra.mrb[0].mxu0 %v5319
        %v5624 = vpop.f32.mrb[0].mxu0
        %v5625 = vadd.f32 0.0, %v5624
        %v5626 = vpop.f32.mrb[0].mxu0
        %v5627 = vpop.f32.mrb[0].mxu0
        %v5628 = vadd.f32 0.0, %v5627
        %v5629 = vpop.f32.mrb[0].mxu0
        %5630 = vmatprep.mubr.bf16.mxu0 %v5323
        %5631 = vmatmul.mubr.bf16.gmra.mrb[0].mxu0 %v5322
        %v5632 = vpop.f32.mrb[0].mxu0
        %v5633 = vadd.f32 0.0, %v5632
        %v5634 = vpop.f32.mrb[0].mxu0
        %v5635 = vpop.f32.mrb[0].mxu0
        %v5636 = vadd.f32 0.0, %v5635
        %v5637 = vpop.f32.mrb[0].mxu0
        %5638 = vmatprep.mubr.bf16.mxu0 %v5326
        %5639 = vmatmul.mubr.bf16.gmra.mrb[0].mxu0 %v5325
        %v5640 = vpop.f32.mrb[0].mxu0
        %v5641 = vadd.f32 0.0, %v5640
        %v5642 = vpop.f32.mrb[0].mxu0
        %v5643 = vpop.f32.mrb[0].mxu0
        %v5644 = vadd.f32 0.0, %v5643
        %v5645 = vpop.f32.mrb[0].mxu0
        %5646 = vmatprep.mubr.bf16.mxu0 %v5329
        %5647 = vmatmul.mubr.bf16.gmra.mrb[0].mxu0 %v5328
        %v5648 = vpop.f32.mrb[0].mxu0
        %v5649 = vadd.f32 0.0, %v5648
        %v5650 = vpop.f32.mrb[0].mxu0
        %v5651 = vpop.f32.mrb[0].mxu0
        %v5652 = vadd.f32 0.0, %v5651
        %v5653 = vpop.f32.mrb[0].mxu0
        %5654 = vmatprep.mubr.bf16.mxu0 %v5332
        %5655 = vmatmul.mubr.bf16.gmra.mrb[0].mxu0 %v5331
        %v5656 = vpop.f32.mrb[0].mxu0
        %v5657 = vadd.f32 0.0, %v5656
        %v5658 = vpop.f32.mrb[0].mxu0
        %v5659 = vpop.f32.mrb[0].mxu0
        %v5660 = vadd.f32 0.0, %v5659
        %v5661 = vpop.f32.mrb[0].mxu0
        %5662 = vmatprep.mubr.bf16.mxu0 %v5335
        %5663 = vmatmul.mubr.bf16.gmra.mrb[0].mxu0 %v5334
        %v5664 = vpop.f32.mrb[0].mxu0
        %v5665 = vadd.f32 0.0, %v5664
        %v5666 = vpop.f32.mrb[0].mxu0
        %v5667 = vpop.f32.mrb[0].mxu0
        %v5668 = vadd.f32 0.0, %v5667
        %v5669 = vpop.f32.mrb[0].mxu0
        %5670 = vmatprep.mubr.bf16.mxu0 %v5338
        %5671 = vmatmul.mubr.bf16.gmra.mrb[0].mxu0 %v5337
        %v5672 = vpop.f32.mrb[0].mxu0
        %v5673 = vadd.f32 0.0, %v5672
        %v5674 = vpop.f32.mrb[0].mxu0
        %v5675 = vpop.f32.mrb[0].mxu0
        %v5676 = vadd.f32 0.0, %v5675
        %v5677 = vpop.f32.mrb[0].mxu0
        %5678 = vmatprep.mubr.bf16.mxu0 %v5341
        %5679 = vmatmul.mubr.bf16.gmra.mrb[0].mxu0 %v5340
        %v5680 = vpop.f32.mrb[0].mxu0
        %v5681 = vadd.f32 0.0, %v5680
        %v5682 = vpop.f32.mrb[0].mxu0
        %v5683 = vpop.f32.mrb[0].mxu0
        %v5684 = vadd.f32 0.0, %v5683
        %v5685 = vpop.f32.mrb[0].mxu0
        %5686 = vmatprep.mubr.bf16.mxu0 %v5344
        %5687 = vmatmul.mubr.bf16.gmra.mrb[0].mxu0 %v5343
        %v5688 = vpop.f32.mrb[0].mxu0
        %v5689 = vadd.f32 0.0, %v5688
        %v5690 = vpop.f32.mrb[0].mxu0
        %v5691 = vpop.f32.mrb[0].mxu0
        %v5692 = vadd.f32 0.0, %v5691
        %v5693 = vpop.f32.mrb[0].mxu0
        %5694 = vmatprep.mubr.bf16.mxu0 %v5347
        %5695 = vmatmul.mubr.bf16.gmra.mrb[0].mxu0 %v5346
        %v5696 = vpop.f32.mrb[0].mxu0
        %v5697 = vadd.f32 0.0, %v5696
        %v5698 = vpop.f32.mrb[0].mxu0
        %v5699 = vpop.f32.mrb[0].mxu0
        %v5700 = vadd.f32 0.0, %v5699
        %v5701 = vpop.f32.mrb[0].mxu0
        %5702 = vmatprep.mubr.bf16.mxu0 %v5350
        %5703 = vmatmul.mubr.bf16.gmra.mrb[0].mxu0 %v5349
        %v5704 = vpop.f32.mrb[0].mxu0
        %v5705 = vadd.f32 0.0, %v5704
        %v5706 = vpop.f32.mrb[0].mxu0
        %v5707 = vpop.f32.mrb[0].mxu0
        %v5708 = vadd.f32 0.0, %v5707
        %v5709 = vpop.f32.mrb[0].mxu0
        %5710 = vmatprep.mubr.bf16.mxu0 %v5353
        %5711 = vmatmul.mubr.bf16.gmra.mrb[0].mxu0 %v5352
        %v5712 = vpop.f32.mrb[0].mxu0
        %v5713 = vadd.f32 0.0, %v5712
        %v5714 = vpop.f32.mrb[0].mxu0
        %v5715 = vpop.f32.mrb[0].mxu0
        %v5716 = vadd.f32 0.0, %v5715
        %v5717 = vpop.f32.mrb[0].mxu0
        %5718 = vmatprep.mubr.bf16.mxu0 %v5356
        %5719 = vmatmul.mubr.bf16.gmra.mrb[0].mxu0 %v5355
        %v5720 = vpop.f32.mrb[0].mxu0
        %v5721 = vadd.f32 0.0, %v5720
        %v5722 = vpop.f32.mrb[0].mxu0
        %v5723 = vpop.f32.mrb[0].mxu0
        %v5724 = vadd.f32 0.0, %v5723
        %v5725 = vpop.f32.mrb[0].mxu0
        %5726 = vmatprep.mubr.bf16.mxu0 %v5359
        %5727 = vmatmul.mubr.bf16.gmra.mrb[0].mxu0 %v5358
        %v5728 = vpop.f32.mrb[0].mxu0
        %v5729 = vadd.f32 0.0, %v5728
        %v5730 = vpop.f32.mrb[0].mxu0
        %v5731 = vpop.f32.mrb[0].mxu0
        %v5732 = vadd.f32 0.0, %v5731
        %v5733 = vpop.f32.mrb[0].mxu0
        %5734 = vmatprep.mubr.bf16.mxu0 %v5362
        %5735 = vmatmul.mubr.bf16.gmra.mrb[0].mxu0 %v5361
        %v5736 = vpop.f32.mrb[0].mxu0
        %v5737 = vadd.f32 0.0, %v5736
        %v5738 = vpop.f32.mrb[0].mxu0
        %v5739 = vpop.f32.mrb[0].mxu0
        %v5740 = vadd.f32 0.0, %v5739
        %v5741 = vpop.f32.mrb[0].mxu0
        %5742 = vmatprep.mubr.bf16.mxu0 %v5365
        %5743 = vmatmul.mubr.bf16.gmra.mrb[0].mxu0 %v5364
        %v5744 = vpop.f32.mrb[0].mxu0
        %v5745 = vadd.f32 0.0, %v5744
        %v5746 = vpop.f32.mrb[0].mxu0
        %v5747 = vpop.f32.mrb[0].mxu0
        %v5748 = vadd.f32 0.0, %v5747
        %v5749 = vpop.f32.mrb[0].mxu0
        %5750 = vmatprep.mubr.bf16.mxu0 %v5368
        %5751 = vmatmul.mubr.bf16.gmra.mrb[0].mxu0 %v5367
        %v5752 = vpop.f32.mrb[0].mxu0
        %v5753 = vadd.f32 0.0, %v5752
        %v5754 = vpop.f32.mrb[0].mxu0
        %v5755 = vpop.f32.mrb[0].mxu0
        %v5756 = vadd.f32 0.0, %v5755
        %v5757 = vpop.f32.mrb[0].mxu0
        %5758 = vmatprep.mubr.bf16.mxu0 %v3924
        %5759 = vmatmul.mubr.bf16.gmra.mrb[0].mxu0 %v3923
        %v5760 = vpop.f32.mrb[0].mxu0
        %v5761 = vadd.f32 0.0, %v5760
        %v5762 = vpop.f32.mrb[0].mxu0
        %v5763 = vpop.f32.mrb[0].mxu0
        %v5764 = vadd.f32 0.0, %v5763
        %v5765 = vpop.f32.mrb[0].mxu0
        %5766 = vmatprep.mubr.bf16.mxu0 %v3927
        %5767 = vmatmul.mubr.bf16.gmra.mrb[0].mxu0 %v3926
        %v5768 = vpop.f32.mrb[0].mxu0
        %v5769 = vadd.f32 0.0, %v5768
        %v5770 = vpop.f32.mrb[0].mxu0
        %v5771 = vpop.f32.mrb[0].mxu0
        %v5772 = vadd.f32 0.0, %v5771
        %v5773 = vpop.f32.mrb[0].mxu0
        %5774 = vmatprep.mubr.bf16.mxu0 %v5371
        %5775 = vmatmul.mubr.bf16.gmra.mrb[0].mxu0 %v5370
        %v5776 = vpop.f32.mrb[0].mxu0
        %v5777 = vadd.f32 0.0, %v5776
        %v5778 = vpop.f32.mrb[0].mxu0
        %v5779 = vpop.f32.mrb[0].mxu0
        %v5780 = vpop.f32.mrb[0].mxu0
        %5781 = vdwg.mxu0
        %5782 = vmatprep.subr.bf16.mxu0 0
        %5783 = vmatpush1.bf16.msra.mxu0 %v5534
        %5784 = vmatprep.subr.bf16.mxu0 0
        %5785 = vmatpush1.bf16.msra.mxu0 %v5535
        %5786 = vmatprep.subr.bf16.mxu0 0
        %5787 = vmatpush1.bf16.msra.mxu0 %v5536
        %5788 = vmatprep.subr.bf16.mxu0 0
        %5789 = vmatpush1.bf16.msra.mxu0 %v5537
        %5790 = vmatprep.subr.bf16.mxu0 0
        %5791 = vmatpush1.bf16.msra.mxu0 %v5538
        %5792 = vmatprep.subr.bf16.mxu0 0
        %5793 = vmatpush1.bf16.msra.mxu0 %v5539
        %5794 = vmatprep.subr.bf16.mxu0 0
        %5795 = vmatpush1.bf16.msra.mxu0 %v5540
        %5796 = vmatprep.subr.bf16.mxu0 0
        %5797 = vmatpush1.bf16.msra.mxu0 %v5541
        %5798 = vmatprep.subr.bf16.mxu0 0
        %5799 = vmatpush1.bf16.msra.mxu0 0
        %5800 = vmatprep.subr.bf16.mxu0 0
        %5801 = vmatpush1.bf16.msra.mxu0 0
        %5802 = vmatprep.subr.bf16.mxu0 0
        %5803 = vmatpush1.bf16.msra.mxu0 0
        %5804 = vmatprep.subr.bf16.mxu0 0
        %5805 = vmatpush1.bf16.msra.mxu0 0
        %5806 = vmatprep.subr.bf16.mxu0 0
        %5807 = vmatpush1.bf16.msra.mxu0 0
        %5808 = vmatprep.subr.bf16.mxu0 0
        %5809 = vmatpush1.bf16.msra.mxu0 0
        %5810 = vmatprep.subr.bf16.mxu0 0
        %5811 = vmatpush1.bf16.msra.mxu0 0
        %5812 = vmatprep.subr.bf16.mxu0 0
        %5813 = vmatpush1.bf16.msra.mxu0 0
        %5814 = vmatprep.mubr.bf16.mxu0 0
        %5815 = vmatmul.mubr.bf16.gmra.mrb[0].mxu0 %v5312
        %v5816 = vpop.f32.mrb[0].mxu0
        %v5817 = vadd.f32 %v5601, %v5816
        %v5818 = vpop.f32.mrb[0].mxu0
        %v5819 = vpop.f32.mrb[0].mxu0
        %v5820 = vadd.f32 %v5604, %v5819
        %v5821 = vpop.f32.mrb[0].mxu0
        %5822 = vmatprep.mubr.bf16.mxu0 0
        %5823 = vmatmul.mubr.bf16.gmra.mrb[0].mxu0 %v5315
        %v5824 = vpop.f32.mrb[0].mxu0
        %v5825 = vadd.f32 %v5609, %v5824
        %v5826 = vpop.f32.mrb[0].mxu0
        %v5827 = vpop.f32.mrb[0].mxu0
        %v5828 = vadd.f32 %v5612, %v5827
        %v5829 = vpop.f32.mrb[0].mxu0
        %5830 = vmatprep.mubr.bf16.mxu0 0
        %5831 = vmatmul.mubr.bf16.gmra.mrb[0].mxu0 %v5318
        %v5832 = vpop.f32.mrb[0].mxu0
        %v5833 = vadd.f32 %v5617, %v5832
        %v5834 = vpop.f32.mrb[0].mxu0
        %v5835 = vpop.f32.mrb[0].mxu0
        %v5836 = vadd.f32 %v5620, %v5835
        %v5837 = vpop.f32.mrb[0].mxu0
        %5838 = vmatprep.mubr.bf16.mxu0 0
        %5839 = vmatmul.mubr.bf16.gmra.mrb[0].mxu0 %v5321
        %v5840 = vpop.f32.mrb[0].mxu0
        %v5841 = vadd.f32 %v5625, %v5840
        %v5842 = vpop.f32.mrb[0].mxu0
        %v5843 = vpop.f32.mrb[0].mxu0
        %v5844 = vadd.f32 %v5628, %v5843
        %v5845 = vpop.f32.mrb[0].mxu0
        %5846 = vmatprep.mubr.bf16.mxu0 0
        %5847 = vmatmul.mubr.bf16.gmra.mrb[0].mxu0 %v5324
        %v5848 = vpop.f32.mrb[0].mxu0
        %v5849 = vadd.f32 %v5633, %v5848
        %v5850 = vpop.f32.mrb[0].mxu0
        %v5851 = vpop.f32.mrb[0].mxu0
        %v5852 = vadd.f32 %v5636, %v5851
        %v5853 = vpop.f32.mrb[0].mxu0
        %5854 = vmatprep.mubr.bf16.mxu0 0
        %5855 = vmatmul.mubr.bf16.gmra.mrb[0].mxu0 %v5327
        %v5856 = vpop.f32.mrb[0].mxu0
        %v5857 = vadd.f32 %v5641, %v5856
        %v5858 = vpop.f32.mrb[0].mxu0
        %v5859 = vpop.f32.mrb[0].mxu0
        %v5860 = vadd.f32 %v5644, %v5859
        %v5861 = vpop.f32.mrb[0].mxu0
        %5862 = vmatprep.mubr.bf16.mxu0 0
        %5863 = vmatmul.mubr.bf16.gmra.mrb[0].mxu0 %v5330
        %v5864 = vpop.f32.mrb[0].mxu0
        %v5865 = vadd.f32 %v5649, %v5864
        %v5866 = vpop.f32.mrb[0].mxu0
        %v5867 = vpop.f32.mrb[0].mxu0
        %v5868 = vadd.f32 %v5652, %v5867
        %v5869 = vpop.f32.mrb[0].mxu0
        %5870 = vmatprep.mubr.bf16.mxu0 0
        %5871 = vmatmul.mubr.bf16.gmra.mrb[0].mxu0 %v5333
        %v5872 = vpop.f32.mrb[0].mxu0
        %v5873 = vadd.f32 %v5657, %v5872
        %v5874 = vpop.f32.mrb[0].mxu0
        %v5875 = vpop.f32.mrb[0].mxu0
        %v5876 = vadd.f32 %v5660, %v5875
        %v5877 = vpop.f32.mrb[0].mxu0
        %5878 = vmatprep.mubr.bf16.mxu0 0
        %5879 = vmatmul.mubr.bf16.gmra.mrb[0].mxu0 %v5336
        %v5880 = vpop.f32.mrb[0].mxu0
        %v5881 = vadd.f32 %v5665, %v5880
        %v5882 = vpop.f32.mrb[0].mxu0
        %v5883 = vpop.f32.mrb[0].mxu0
        %v5884 = vadd.f32 %v5668, %v5883
        %v5885 = vpop.f32.mrb[0].mxu0
        %5886 = vmatprep.mubr.bf16.mxu0 0
        %5887 = vmatmul.mubr.bf16.gmra.mrb[0].mxu0 %v5339
        %v5888 = vpop.f32.mrb[0].mxu0
        %v5889 = vadd.f32 %v5673, %v5888
        %v5890 = vpop.f32.mrb[0].mxu0
        %v5891 = vpop.f32.mrb[0].mxu0
        %v5892 = vadd.f32 %v5676, %v5891
        %v5893 = vpop.f32.mrb[0].mxu0
        %5894 = vmatprep.mubr.bf16.mxu0 0
        %5895 = vmatmul.mubr.bf16.gmra.mrb[0].mxu0 %v5342
        %v5896 = vpop.f32.mrb[0].mxu0
        %v5897 = vadd.f32 %v5681, %v5896
        %v5898 = vpop.f32.mrb[0].mxu0
        %v5899 = vpop.f32.mrb[0].mxu0
        %v5900 = vadd.f32 %v5684, %v5899
        %v5901 = vpop.f32.mrb[0].mxu0
        %5902 = vmatprep.mubr.bf16.mxu0 0
        %5903 = vmatmul.mubr.bf16.gmra.mrb[0].mxu0 %v5345
        %v5904 = vpop.f32.mrb[0].mxu0
        %v5905 = vadd.f32 %v5689, %v5904
        %v5906 = vpop.f32.mrb[0].mxu0
        %v5907 = vpop.f32.mrb[0].mxu0
        %v5908 = vadd.f32 %v5692, %v5907
        %v5909 = vpop.f32.mrb[0].mxu0
        %5910 = vmatprep.mubr.bf16.mxu0 0
        %5911 = vmatmul.mubr.bf16.gmra.mrb[0].mxu0 %v5348
        %v5912 = vpop.f32.mrb[0].mxu0
        %v5913 = vadd.f32 %v5697, %v5912
        %v5914 = vpop.f32.mrb[0].mxu0
        %v5915 = vpop.f32.mrb[0].mxu0
        %v5916 = vadd.f32 %v5700, %v5915
        %v5917 = vpop.f32.mrb[0].mxu0
        %5918 = vmatprep.mubr.bf16.mxu0 0
        %5919 = vmatmul.mubr.bf16.gmra.mrb[0].mxu0 %v5351
        %v5920 = vpop.f32.mrb[0].mxu0
        %v5921 = vadd.f32 %v5705, %v5920
        %v5922 = vpop.f32.mrb[0].mxu0
        %v5923 = vpop.f32.mrb[0].mxu0
        %v5924 = vadd.f32 %v5708, %v5923
        %v5925 = vpop.f32.mrb[0].mxu0
        %5926 = vmatprep.mubr.bf16.mxu0 0
        %5927 = vmatmul.mubr.bf16.gmra.mrb[0].mxu0 %v5354
        %v5928 = vpop.f32.mrb[0].mxu0
        %v5929 = vadd.f32 %v5713, %v5928
        %v5930 = vpop.f32.mrb[0].mxu0
        %v5931 = vpop.f32.mrb[0].mxu0
        %v5932 = vadd.f32 %v5716, %v5931
        %v5933 = vpop.f32.mrb[0].mxu0
        %5934 = vmatprep.mubr.bf16.mxu0 0
        %5935 = vmatmul.mubr.bf16.gmra.mrb[0].mxu0 %v5357
        %v5936 = vpop.f32.mrb[0].mxu0
        %v5937 = vadd.f32 %v5721, %v5936
        %v5938 = vpop.f32.mrb[0].mxu0
        %v5939 = vpop.f32.mrb[0].mxu0
        %v5940 = vadd.f32 %v5724, %v5939
        %v5941 = vpop.f32.mrb[0].mxu0
        %5942 = vmatprep.mubr.bf16.mxu0 0
        %5943 = vmatmul.mubr.bf16.gmra.mrb[0].mxu0 %v5360
        %v5944 = vpop.f32.mrb[0].mxu0
        %v5945 = vadd.f32 %v5729, %v5944
        %v5946 = vpop.f32.mrb[0].mxu0
        %v5947 = vpop.f32.mrb[0].mxu0
        %v5948 = vadd.f32 %v5732, %v5947
        %v5949 = vpop.f32.mrb[0].mxu0
        %5950 = vmatprep.mubr.bf16.mxu0 0
        %5951 = vmatmul.mubr.bf16.gmra.mrb[0].mxu0 %v5363
        %v5952 = vpop.f32.mrb[0].mxu0
        %v5953 = vadd.f32 %v5737, %v5952
        %v5954 = vpop.f32.mrb[0].mxu0
        %v5955 = vpop.f32.mrb[0].mxu0
        %v5956 = vadd.f32 %v5740, %v5955
        %v5957 = vpop.f32.mrb[0].mxu0
        %5958 = vmatprep.mubr.bf16.mxu0 0
        %5959 = vmatmul.mubr.bf16.gmra.mrb[0].mxu0 %v5366
        %v5960 = vpop.f32.mrb[0].mxu0
        %v5961 = vadd.f32 %v5745, %v5960
        %v5962 = vpop.f32.mrb[0].mxu0
        %v5963 = vpop.f32.mrb[0].mxu0
        %v5964 = vadd.f32 %v5748, %v5963
        %v5965 = vpop.f32.mrb[0].mxu0
        %5966 = vmatprep.mubr.bf16.mxu0 0
        %5967 = vmatmul.mubr.bf16.gmra.mrb[0].mxu0 %v5369
        %v5968 = vpop.f32.mrb[0].mxu0
        %v5969 = vadd.f32 %v5753, %v5968
        %v5970 = vpop.f32.mrb[0].mxu0
        %v5971 = vpop.f32.mrb[0].mxu0
        %v5972 = vadd.f32 %v5756, %v5971
        %v5973 = vpop.f32.mrb[0].mxu0
        %5974 = vmatprep.mubr.bf16.mxu0 0
        %5975 = vmatmul.mubr.bf16.gmra.mrb[0].mxu0 %v3925
        %v5976 = vpop.f32.mrb[0].mxu0
        %v5977 = vadd.f32 %v5761, %v5976
        %v5978 = vpop.f32.mrb[0].mxu0
        %v5979 = vpop.f32.mrb[0].mxu0
        %v5980 = vadd.f32 %v5764, %v5979
        %v5981 = vpop.f32.mrb[0].mxu0
        %5982 = vmatprep.mubr.bf16.mxu0 0
        %5983 = vmatmul.mubr.bf16.gmra.mrb[0].mxu0 %v3928
        %v5984 = vpop.f32.mrb[0].mxu0
        %v5985 = vadd.f32 %v5769, %v5984
        %v5986 = vpop.f32.mrb[0].mxu0
        %v5987 = vpop.f32.mrb[0].mxu0
        %v5988 = vadd.f32 %v5772, %v5987
        %v5989 = vpop.f32.mrb[0].mxu0
        %5990 = vmatprep.mubr.bf16.mxu0 0
        %5991 = vmatmul.mubr.bf16.gmra.mrb[0].mxu0 %v5372
        %v5992 = vpop.f32.mrb[0].mxu0
        %v5993 = vadd.f32 %v5777, %v5992
        %v5994 = vpop.f32.mrb[0].mxu0
        %v5995 = vpop.f32.mrb[0].mxu0
        %v5996 = vpop.f32.mrb[0].mxu0
        %5997 = vdwg.mxu0
        %v5998 = vadd.f32 %v5129, %v5817
        %v5999 = vadd.f32 %v5132, %v5820
        %v6000 = vadd.f32 %v5137, %v5825
        %v6001 = vadd.f32 %v5140, %v5828
        %v6002 = vadd.f32 %v5145, %v5833
        %v6003 = vadd.f32 %v5148, %v5836
        %v6004 = vadd.f32 %v5153, %v5841
        %v6005 = vadd.f32 %v5156, %v5844
        %v6006 = vadd.f32 %v5161, %v5849
        %v6007 = vadd.f32 %v5164, %v5852
        %v6008 = vadd.f32 %v5169, %v5857
        %v6009 = vadd.f32 %v5172, %v5860
        %v6010 = vadd.f32 %v5177, %v5865
        %v6011 = vadd.f32 %v5180, %v5868
        %v6012 = vadd.f32 %v5185, %v5873
        %v6013 = vadd.f32 %v5188, %v5876
        %v6014 = vadd.f32 %v5193, %v5881
        %v6015 = vadd.f32 %v5196, %v5884
        %v6016 = vadd.f32 %v5201, %v5889
        %v6017 = vadd.f32 %v5204, %v5892
        %v6018 = vadd.f32 %v5209, %v5897
        %v6019 = vadd.f32 %v5212, %v5900
        %v6020 = vadd.f32 %v5217, %v5905
        %v6021 = vadd.f32 %v5220, %v5908
        %v6022 = vadd.f32 %v5225, %v5913
        %v6023 = vadd.f32 %v5228, %v5916
        %v6024 = vadd.f32 %v5233, %v5921
        %v6025 = vadd.f32 %v5236, %v5924
        %v6026 = vadd.f32 %v5241, %v5929
        %v6027 = vadd.f32 %v5244, %v5932
        %v6028 = vadd.f32 %v5249, %v5937
        %v6029 = vadd.f32 %v5252, %v5940
        %v6030 = vadd.f32 %v5257, %v5945
        %v6031 = vadd.f32 %v5260, %v5948
        %v6032 = vadd.f32 %v5265, %v5953
        %v6033 = vadd.f32 %v5268, %v5956
        %v6034 = vadd.f32 %v5273, %v5961
        %v6035 = vadd.f32 %v5276, %v5964
        %v6036 = vadd.f32 %v5281, %v5969
        %v6037 = vadd.f32 %v5284, %v5972
        %v6038 = vadd.f32 %v5289, %v5977
        %v6039 = vadd.f32 %v5292, %v5980
        %v6040 = vadd.f32 %v5297, %v5985
        %v6041 = vadd.f32 %v5300, %v5988
        %v6042 = vadd.f32 %v5305, %v5993
        %v6043 = vld [vmem:[%s4] sm:$0x1]
        %v6045 = vlaneseq
        %v6046 = vshrl.u32 %v6045, 7
        %v6047 = vsub.s32 0, %v6046
        %v6048 = vrot.slane %v6043, %v6047
        %v6050 = vadd.f32 %v5998, %v6048
        %v6051 = vadd.f32 %v5999, %v6048
        %v6052 = vadd.f32 %v6000, %v6048
        %v6053 = vadd.f32 %v6001, %v6048
        %v6054 = vadd.f32 %v6002, %v6048
        %v6055 = vadd.f32 %v6003, %v6048
        %v6056 = vadd.f32 %v6004, %v6048
        %v6057 = vadd.f32 %v6005, %v6048
        %v6058 = vadd.f32 %v6006, %v6048
        %v6059 = vadd.f32 %v6007, %v6048
        %v6060 = vadd.f32 %v6008, %v6048
        %v6061 = vadd.f32 %v6009, %v6048
        %v6062 = vadd.f32 %v6010, %v6048
        %v6063 = vadd.f32 %v6011, %v6048
        %v6064 = vadd.f32 %v6012, %v6048
        %v6065 = vadd.f32 %v6013, %v6048
        %v6066 = vadd.f32 %v6014, %v6048
        %v6067 = vadd.f32 %v6015, %v6048
        %v6068 = vadd.f32 %v6016, %v6048
        %v6069 = vadd.f32 %v6017, %v6048
        %v6070 = vadd.f32 %v6018, %v6048
        %v6071 = vadd.f32 %v6019, %v6048
        %v6072 = vadd.f32 %v6020, %v6048
        %v6073 = vadd.f32 %v6021, %v6048
        %v6074 = vadd.f32 %v6022, %v6048
        %v6075 = vadd.f32 %v6023, %v6048
        %v6076 = vadd.f32 %v6024, %v6048
        %v6077 = vadd.f32 %v6025, %v6048
        %v6078 = vadd.f32 %v6026, %v6048
        %v6079 = vadd.f32 %v6027, %v6048
        %v6080 = vadd.f32 %v6028, %v6048
        %v6081 = vadd.f32 %v6029, %v6048
        %v6082 = vadd.f32 %v6030, %v6048
        %v6083 = vadd.f32 %v6031, %v6048
        %v6084 = vadd.f32 %v6032, %v6048
        %v6085 = vadd.f32 %v6033, %v6048
        %v6086 = vadd.f32 %v6034, %v6048
        %v6087 = vadd.f32 %v6035, %v6048
        %v6088 = vadd.f32 %v6036, %v6048
        %v6089 = vadd.f32 %v6037, %v6048
        %v6090 = vadd.f32 %v6038, %v6048
        %v6091 = vadd.f32 %v6039, %v6048
        %v6092 = vadd.f32 %v6040, %v6048
        %v6093 = vadd.f32 %v6041, %v6048
        %v6094 = vadd.f32 %v6042, %v6048
        %v6095 = vld [vmem:[#allocation6] sm:$0xf]
        %v6096 = vld [vmem:[#allocation6 + $0x4] sm:$0xf]
        %v6097 = vld [vmem:[#allocation6 + $0x8] sm:$0xf]
        %v6098 = vld [vmem:[#allocation6 + $0xc] sm:$0xf]
        %v6099 = vld [vmem:[#allocation6 + $0x10] sm:$0xf]
        %v6100 = vld [vmem:[#allocation6 + $0x14] sm:$0xf]
        %v6101 = vld [vmem:[#allocation6 + $0x18] sm:$0xf]
        %v6102 = vld [vmem:[#allocation6 + $0x1c] sm:$0xf]
        %v6103 = vld [vmem:[#allocation6 + $0x20] sm:$0xf]
        %v6104 = vld [vmem:[#allocation6 + $0x24] sm:$0xf]
        %v6105 = vld [vmem:[#allocation6 + $0x28] sm:$0xf]
        %v6106 = vld [vmem:[#allocation6 + $0x2c] sm:$0xf]
        %v6107 = vld [vmem:[#allocation6 + $0x30] sm:$0xf]
        %v6108 = vld [vmem:[#allocation6 + $0x34] sm:$0xf]
        %v6109 = vld [vmem:[#allocation6 + $0x38] sm:$0xf]
        %v6110 = vld [vmem:[#allocation6 + $0x3c] sm:$0xf]
        %v6156 = vunpack.c.l.b16 %v351
        %v6157 = vunpack.c.l.b16 %v352
        %v6158 = vunpack.c.l.b16 %v353
        %v6159 = vunpack.c.l.b16 %v354
        %v6160 = vunpack.c.l.b16 %v355
        %v6161 = vunpack.c.l.b16 %v356
        %v6162 = vunpack.c.l.b16 %v357
        %v6163 = vunpack.c.l.b16 %v358
        %v6164 = vunpack.c.l.b16 %v359
        %v6165 = vunpack.c.l.b16 %v360
        %v6166 = vunpack.c.l.b16 %v361
        %v6167 = vunpack.c.l.b16 %v362
        %v6168 = vunpack.c.l.b16 %v363
        %v6169 = vunpack.c.l.b16 %v364
        %v6170 = vunpack.c.l.b16 %v365
        %v6171 = vunpack.c.l.b16 %v366
        %v6172 = vunpack.c.l.b16 %v367
        %v6173 = vunpack.c.l.b16 %v368
        %v6174 = vunpack.c.l.b16 %v369
        %v6175 = vunpack.c.l.b16 %v370
        %v6176 = vunpack.c.l.b16 %v371
        %v6177 = vunpack.c.l.b16 %v372
        %v6178 = vunpack.c.l.b16 %v373
        %v6179 = vunpack.c.l.b16 %v374
        %v6180 = vunpack.c.l.b16 %v375
        %v6181 = vunpack.c.l.b16 %v376
        %v6182 = vunpack.c.l.b16 %v377
        %v6183 = vunpack.c.l.b16 %v378
        %v6184 = vunpack.c.l.b16 %v379
        %v6185 = vunpack.c.l.b16 %v380
        %v6186 = vunpack.c.l.b16 %v381
        %v6187 = vunpack.c.l.b16 %v382
        %v6188 = vunpack.c.l.b16 %v383
        %v6189 = vunpack.c.l.b16 %v384
        %v6190 = vunpack.c.l.b16 %v385
        %v6191 = vunpack.c.l.b16 %v386
        %v6192 = vunpack.c.l.b16 %v387
        %v6193 = vunpack.c.l.b16 %v388
        %v6194 = vunpack.c.l.b16 %v389
        %v6195 = vunpack.c.l.b16 %v390
        %v6196 = vunpack.c.l.b16 %v391
        %v6197 = vunpack.c.l.b16 %v392
        %v6198 = vunpack.c.l.b16 %v393
        %v6199 = vunpack.c.l.b16 %v394
        %v6200 = vunpack.c.l.b16 %v395
        %v6201 = vpack.c.b16 %v6157, %v6156
        %v6202 = vpack.c.b16 %v6159, %v6158
        %v6203 = vpack.c.b16 %v6161, %v6160
        %v6204 = vpack.c.b16 %v6163, %v6162
        %v6205 = vpack.c.b16 %v6165, %v6164
        %v6206 = vpack.c.b16 %v6167, %v6166
        %v6207 = vpack.c.b16 %v6169, %v6168
        %v6208 = vpack.c.b16 %v6171, %v6170
        %v6209 = vpack.c.b16 %v6173, %v6172
        %v6210 = vpack.c.b16 %v6175, %v6174
        %v6211 = vpack.c.b16 %v6177, %v6176
        %v6212 = vpack.c.b16 %v6179, %v6178
        %v6213 = vpack.c.b16 %v6181, %v6180
        %v6214 = vpack.c.b16 %v6183, %v6182
        %v6215 = vpack.c.b16 %v6185, %v6184
        %v6216 = vpack.c.b16 %v6187, %v6186
        %v6217 = vpack.c.b16 %v6189, %v6188
        %v6218 = vpack.c.b16 %v6191, %v6190
        %v6219 = vpack.c.b16 %v6193, %v6192
        %v6220 = vpack.c.b16 %v6195, %v6194
        %v6221 = vpack.c.b16 %v6197, %v6196
        %v6222 = vpack.c.b16 %v6199, %v6198
        %v6223 = vpack.c.b16 %v6200, %v6200
        %v6263 = vunpack.c.l.b16 %v6095
        %v6264 = vunpack.c.l.b16 %v6096
        %v6265 = vunpack.c.l.b16 %v6097
        %v6266 = vunpack.c.l.b16 %v6098
        %v6267 = vunpack.c.l.b16 %v6099
        %v6268 = vunpack.c.l.b16 %v6100
        %v6269 = vunpack.c.l.b16 %v6101
        %v6270 = vunpack.c.l.b16 %v6102
        %v6271 = vunpack.c.l.b16 %v6103
        %v6272 = vunpack.c.l.b16 %v6104
        %v6273 = vunpack.c.l.b16 %v6105
        %v6274 = vunpack.c.l.b16 %v6106
        %v6275 = vunpack.c.l.b16 %v6107
        %v6276 = vunpack.c.l.b16 %v6108
        %v6277 = vunpack.c.l.b16 %v6109
        %v6278 = vunpack.c.l.b16 %v6110
        %v6279 = vpack.c.b16 %v6264, %v6263
        %v6280 = vpack.c.b16 %v6266, %v6265
        %v6281 = vpack.c.b16 %v6268, %v6267
        %v6282 = vpack.c.b16 %v6270, %v6269
        %v6283 = vpack.c.b16 %v6272, %v6271
        %v6284 = vpack.c.b16 %v6274, %v6273
        %v6285 = vpack.c.b16 %v6276, %v6275
        %v6286 = vpack.c.b16 %v6278, %v6277
        %6295 = vmatprep.subr.bf16.mxu0 0
        %6296 = vmatpush1.bf16.msra.mxu0 %v6279
        %6297 = vmatprep.subr.bf16.mxu0 0
        %6298 = vmatpush1.bf16.msra.mxu0 %v6280
        %6299 = vmatprep.subr.bf16.mxu0 0
        %6300 = vmatpush1.bf16.msra.mxu0 %v6281
        %6301 = vmatprep.subr.bf16.mxu0 0
        %6302 = vmatpush1.bf16.msra.mxu0 %v6282
        %6303 = vmatprep.subr.bf16.mxu0 0
        %6304 = vmatpush1.bf16.msra.mxu0 %v6283
        %6305 = vmatprep.subr.bf16.mxu0 0
        %6306 = vmatpush1.bf16.msra.mxu0 %v6284
        %6307 = vmatprep.subr.bf16.mxu0 0
        %6308 = vmatpush1.bf16.msra.mxu0 %v6285
        %6309 = vmatprep.subr.bf16.mxu0 0
        %6310 = vmatpush1.bf16.msra.mxu0 %v6286
        %6311 = vmatprep.subr.bf16.mxu0 0
        %6312 = vmatpush1.bf16.msra.mxu0 0
        %6313 = vmatprep.subr.bf16.mxu0 0
        %6314 = vmatpush1.bf16.msra.mxu0 0
        %6315 = vmatprep.subr.bf16.mxu0 0
        %6316 = vmatpush1.bf16.msra.mxu0 0
        %6317 = vmatprep.subr.bf16.mxu0 0
        %6318 = vmatpush1.bf16.msra.mxu0 0
        %6319 = vmatprep.subr.bf16.mxu0 0
        %6320 = vmatpush1.bf16.msra.mxu0 0
        %6321 = vmatprep.subr.bf16.mxu0 0
        %6322 = vmatpush1.bf16.msra.mxu0 0
        %6323 = vmatprep.subr.bf16.mxu0 0
        %6324 = vmatpush1.bf16.msra.mxu0 0
        %6325 = vmatprep.subr.bf16.mxu0 0
        %6326 = vmatpush1.bf16.msra.mxu0 0
        %6327 = vmatprep.mubr.bf16.mxu0 0
        %6328 = vmatmul.mubr.bf16.gmra.mrb[0].mxu0 %v6201
        %v6329 = vpop.f32.mrb[0].mxu0
        %v6330 = vadd.f32 0.0, %v6329
        %v6331 = vpop.f32.mrb[0].mxu0
        %v6332 = vpop.f32.mrb[0].mxu0
        %v6333 = vadd.f32 0.0, %v6332
        %v6334 = vpop.f32.mrb[0].mxu0
        %6335 = vmatprep.mubr.bf16.mxu0 0
        %6336 = vmatmul.mubr.bf16.gmra.mrb[0].mxu0 %v6202
        %v6337 = vpop.f32.mrb[0].mxu0
        %v6338 = vadd.f32 0.0, %v6337
        %v6339 = vpop.f32.mrb[0].mxu0
        %v6340 = vpop.f32.mrb[0].mxu0
        %v6341 = vadd.f32 0.0, %v6340
        %v6342 = vpop.f32.mrb[0].mxu0
        %6343 = vmatprep.mubr.bf16.mxu0 0
        %6344 = vmatmul.mubr.bf16.gmra.mrb[0].mxu0 %v6203
        %v6345 = vpop.f32.mrb[0].mxu0
        %v6346 = vadd.f32 0.0, %v6345
        %v6347 = vpop.f32.mrb[0].mxu0
        %v6348 = vpop.f32.mrb[0].mxu0
        %v6349 = vadd.f32 0.0, %v6348
        %v6350 = vpop.f32.mrb[0].mxu0
        %6351 = vmatprep.mubr.bf16.mxu0 0
        %6352 = vmatmul.mubr.bf16.gmra.mrb[0].mxu0 %v6204
        %v6353 = vpop.f32.mrb[0].mxu0
        %v6354 = vadd.f32 0.0, %v6353
        %v6355 = vpop.f32.mrb[0].mxu0
        %v6356 = vpop.f32.mrb[0].mxu0
        %v6357 = vadd.f32 0.0, %v6356
        %v6358 = vpop.f32.mrb[0].mxu0
        %6359 = vmatprep.mubr.bf16.mxu0 0
        %6360 = vmatmul.mubr.bf16.gmra.mrb[0].mxu0 %v6205
        %v6361 = vpop.f32.mrb[0].mxu0
        %v6362 = vadd.f32 0.0, %v6361
        %v6363 = vpop.f32.mrb[0].mxu0
        %v6364 = vpop.f32.mrb[0].mxu0
        %v6365 = vadd.f32 0.0, %v6364
        %v6366 = vpop.f32.mrb[0].mxu0
        %6367 = vmatprep.mubr.bf16.mxu0 0
        %6368 = vmatmul.mubr.bf16.gmra.mrb[0].mxu0 %v6206
        %v6369 = vpop.f32.mrb[0].mxu0
        %v6370 = vadd.f32 0.0, %v6369
        %v6371 = vpop.f32.mrb[0].mxu0
        %v6372 = vpop.f32.mrb[0].mxu0
        %v6373 = vadd.f32 0.0, %v6372
        %v6374 = vpop.f32.mrb[0].mxu0
        %6375 = vmatprep.mubr.bf16.mxu0 0
        %6376 = vmatmul.mubr.bf16.gmra.mrb[0].mxu0 %v6207
        %v6377 = vpop.f32.mrb[0].mxu0
        %v6378 = vadd.f32 0.0, %v6377
        %v6379 = vpop.f32.mrb[0].mxu0
        %v6380 = vpop.f32.mrb[0].mxu0
        %v6381 = vadd.f32 0.0, %v6380
        %v6382 = vpop.f32.mrb[0].mxu0
        %6383 = vmatprep.mubr.bf16.mxu0 0
        %6384 = vmatmul.mubr.bf16.gmra.mrb[0].mxu0 %v6208
        %v6385 = vpop.f32.mrb[0].mxu0
        %v6386 = vadd.f32 0.0, %v6385
        %v6387 = vpop.f32.mrb[0].mxu0
        %v6388 = vpop.f32.mrb[0].mxu0
        %v6389 = vadd.f32 0.0, %v6388
        %v6390 = vpop.f32.mrb[0].mxu0
        %6391 = vmatprep.mubr.bf16.mxu0 0
        %6392 = vmatmul.mubr.bf16.gmra.mrb[0].mxu0 %v6209
        %v6393 = vpop.f32.mrb[0].mxu0
        %v6394 = vadd.f32 0.0, %v6393
        %v6395 = vpop.f32.mrb[0].mxu0
        %v6396 = vpop.f32.mrb[0].mxu0
        %v6397 = vadd.f32 0.0, %v6396
        %v6398 = vpop.f32.mrb[0].mxu0
        %6399 = vmatprep.mubr.bf16.mxu0 0
        %6400 = vmatmul.mubr.bf16.gmra.mrb[0].mxu0 %v6210
        %v6401 = vpop.f32.mrb[0].mxu0
        %v6402 = vadd.f32 0.0, %v6401
        %v6403 = vpop.f32.mrb[0].mxu0
        %v6404 = vpop.f32.mrb[0].mxu0
        %v6405 = vadd.f32 0.0, %v6404
        %v6406 = vpop.f32.mrb[0].mxu0
        %6407 = vmatprep.mubr.bf16.mxu0 0
        %6408 = vmatmul.mubr.bf16.gmra.mrb[0].mxu0 %v6211
        %v6409 = vpop.f32.mrb[0].mxu0
        %v6410 = vadd.f32 0.0, %v6409
        %v6411 = vpop.f32.mrb[0].mxu0
        %v6412 = vpop.f32.mrb[0].mxu0
        %v6413 = vadd.f32 0.0, %v6412
        %v6414 = vpop.f32.mrb[0].mxu0
        %6415 = vmatprep.mubr.bf16.mxu0 0
        %6416 = vmatmul.mubr.bf16.gmra.mrb[0].mxu0 %v6212
        %v6417 = vpop.f32.mrb[0].mxu0
        %v6418 = vadd.f32 0.0, %v6417
        %v6419 = vpop.f32.mrb[0].mxu0
        %v6420 = vpop.f32.mrb[0].mxu0
        %v6421 = vadd.f32 0.0, %v6420
        %v6422 = vpop.f32.mrb[0].mxu0
        %6423 = vmatprep.mubr.bf16.mxu0 0
        %6424 = vmatmul.mubr.bf16.gmra.mrb[0].mxu0 %v6213
        %v6425 = vpop.f32.mrb[0].mxu0
        %v6426 = vadd.f32 0.0, %v6425
        %v6427 = vpop.f32.mrb[0].mxu0
        %v6428 = vpop.f32.mrb[0].mxu0
        %v6429 = vadd.f32 0.0, %v6428
        %v6430 = vpop.f32.mrb[0].mxu0
        %6431 = vmatprep.mubr.bf16.mxu0 0
        %6432 = vmatmul.mubr.bf16.gmra.mrb[0].mxu0 %v6214
        %v6433 = vpop.f32.mrb[0].mxu0
        %v6434 = vadd.f32 0.0, %v6433
        %v6435 = vpop.f32.mrb[0].mxu0
        %v6436 = vpop.f32.mrb[0].mxu0
        %v6437 = vadd.f32 0.0, %v6436
        %v6438 = vpop.f32.mrb[0].mxu0
        %6439 = vmatprep.mubr.bf16.mxu0 0
        %6440 = vmatmul.mubr.bf16.gmra.mrb[0].mxu0 %v6215
        %v6441 = vpop.f32.mrb[0].mxu0
        %v6442 = vadd.f32 0.0, %v6441
        %v6443 = vpop.f32.mrb[0].mxu0
        %v6444 = vpop.f32.mrb[0].mxu0
        %v6445 = vadd.f32 0.0, %v6444
        %v6446 = vpop.f32.mrb[0].mxu0
        %6447 = vmatprep.mubr.bf16.mxu0 0
        %6448 = vmatmul.mubr.bf16.gmra.mrb[0].mxu0 %v6216
        %v6449 = vpop.f32.mrb[0].mxu0
        %v6450 = vadd.f32 0.0, %v6449
        %v6451 = vpop.f32.mrb[0].mxu0
        %v6452 = vpop.f32.mrb[0].mxu0
        %v6453 = vadd.f32 0.0, %v6452
        %v6454 = vpop.f32.mrb[0].mxu0
        %6455 = vmatprep.mubr.bf16.mxu0 0
        %6456 = vmatmul.mubr.bf16.gmra.mrb[0].mxu0 %v6217
        %v6457 = vpop.f32.mrb[0].mxu0
        %v6458 = vadd.f32 0.0, %v6457
        %v6459 = vpop.f32.mrb[0].mxu0
        %v6460 = vpop.f32.mrb[0].mxu0
        %v6461 = vadd.f32 0.0, %v6460
        %v6462 = vpop.f32.mrb[0].mxu0
        %6463 = vmatprep.mubr.bf16.mxu0 0
        %6464 = vmatmul.mubr.bf16.gmra.mrb[0].mxu0 %v6218
        %v6465 = vpop.f32.mrb[0].mxu0
        %v6466 = vadd.f32 0.0, %v6465
        %v6467 = vpop.f32.mrb[0].mxu0
        %v6468 = vpop.f32.mrb[0].mxu0
        %v6469 = vadd.f32 0.0, %v6468
        %v6470 = vpop.f32.mrb[0].mxu0
        %6471 = vmatprep.mubr.bf16.mxu0 0
        %6472 = vmatmul.mubr.bf16.gmra.mrb[0].mxu0 %v6219
        %v6473 = vpop.f32.mrb[0].mxu0
        %v6474 = vadd.f32 0.0, %v6473
        %v6475 = vpop.f32.mrb[0].mxu0
        %v6476 = vpop.f32.mrb[0].mxu0
        %v6477 = vadd.f32 0.0, %v6476
        %v6478 = vpop.f32.mrb[0].mxu0
        %6479 = vmatprep.mubr.bf16.mxu0 0
        %6480 = vmatmul.mubr.bf16.gmra.mrb[0].mxu0 %v6220
        %v6481 = vpop.f32.mrb[0].mxu0
        %v6482 = vadd.f32 0.0, %v6481
        %v6483 = vpop.f32.mrb[0].mxu0
        %v6484 = vpop.f32.mrb[0].mxu0
        %v6485 = vadd.f32 0.0, %v6484
        %v6486 = vpop.f32.mrb[0].mxu0
        %6487 = vmatprep.mubr.bf16.mxu0 0
        %6488 = vmatmul.mubr.bf16.gmra.mrb[0].mxu0 %v6221
        %v6489 = vpop.f32.mrb[0].mxu0
        %v6490 = vadd.f32 0.0, %v6489
        %v6491 = vpop.f32.mrb[0].mxu0
        %v6492 = vpop.f32.mrb[0].mxu0
        %v6493 = vadd.f32 0.0, %v6492
        %v6494 = vpop.f32.mrb[0].mxu0
        %6495 = vmatprep.mubr.bf16.mxu0 0
        %6496 = vmatmul.mubr.bf16.gmra.mrb[0].mxu0 %v6222
        %v6497 = vpop.f32.mrb[0].mxu0
        %v6498 = vadd.f32 0.0, %v6497
        %v6499 = vpop.f32.mrb[0].mxu0
        %v6500 = vpop.f32.mrb[0].mxu0
        %v6501 = vadd.f32 0.0, %v6500
        %v6502 = vpop.f32.mrb[0].mxu0
        %6503 = vmatprep.mubr.bf16.mxu0 0
        %6504 = vmatmul.mubr.bf16.gmra.mrb[0].mxu0 %v6223
        %v6505 = vpop.f32.mrb[0].mxu0
        %v6506 = vadd.f32 0.0, %v6505
        %v6507 = vpop.f32.mrb[0].mxu0
        %v6508 = vpop.f32.mrb[0].mxu0
        %v6509 = vpop.f32.mrb[0].mxu0
        %6510 = vdwg.mxu0
        %v6511 = vadd.f32 %v6050, %v6330
        %v6512 = vadd.f32 %v6051, %v6333
        %v6513 = vadd.f32 %v6052, %v6338
        %v6514 = vadd.f32 %v6053, %v6341
        %v6515 = vadd.f32 %v6054, %v6346
        %v6516 = vadd.f32 %v6055, %v6349
        %v6517 = vadd.f32 %v6056, %v6354
        %v6518 = vadd.f32 %v6057, %v6357
        %v6519 = vadd.f32 %v6058, %v6362
        %v6520 = vadd.f32 %v6059, %v6365
        %v6521 = vadd.f32 %v6060, %v6370
        %v6522 = vadd.f32 %v6061, %v6373
        %v6523 = vadd.f32 %v6062, %v6378
        %v6524 = vadd.f32 %v6063, %v6381
        %v6525 = vadd.f32 %v6064, %v6386
        %v6526 = vadd.f32 %v6065, %v6389
        %v6527 = vadd.f32 %v6066, %v6394
        %v6528 = vadd.f32 %v6067, %v6397
        %v6529 = vadd.f32 %v6068, %v6402
        %v6530 = vadd.f32 %v6069, %v6405
        %v6531 = vadd.f32 %v6070, %v6410
        %v6532 = vadd.f32 %v6071, %v6413
        %v6533 = vadd.f32 %v6072, %v6418
        %v6534 = vadd.f32 %v6073, %v6421
        %v6535 = vadd.f32 %v6074, %v6426
        %v6536 = vadd.f32 %v6075, %v6429
        %v6537 = vadd.f32 %v6076, %v6434
        %v6538 = vadd.f32 %v6077, %v6437
        %v6539 = vadd.f32 %v6078, %v6442
        %v6540 = vadd.f32 %v6079, %v6445
        %v6541 = vadd.f32 %v6080, %v6450
        %v6542 = vadd.f32 %v6081, %v6453
        %v6543 = vadd.f32 %v6082, %v6458
        %v6544 = vadd.f32 %v6083, %v6461
        %v6545 = vadd.f32 %v6084, %v6466
        %v6546 = vadd.f32 %v6085, %v6469
        %v6547 = vadd.f32 %v6086, %v6474
        %v6548 = vadd.f32 %v6087, %v6477
        %v6549 = vadd.f32 %v6088, %v6482
        %v6550 = vadd.f32 %v6089, %v6485
        %v6551 = vadd.f32 %v6090, %v6490
        %v6552 = vadd.f32 %v6091, %v6493
        %v6553 = vadd.f32 %v6092, %v6498
        %v6554 = vadd.f32 %v6093, %v6501
        %v6555 = vadd.f32 %v6094, %v6506
        %v6556 = vld [vmem:[%s7] sm:$0x1]
        %v6558 = vlaneseq
        %v6559 = vshrl.u32 %v6558, 7
        %v6560 = vsub.s32 0, %v6559
        %v6561 = vrot.slane %v6556, %v6560
        %v6563 = vadd.f32 %v6511, %v6561
        %v6564 = vadd.f32 %v6512, %v6561
        %v6565 = vadd.f32 %v6513, %v6561
        %v6566 = vadd.f32 %v6514, %v6561
        %v6567 = vadd.f32 %v6515, %v6561
        %v6568 = vadd.f32 %v6516, %v6561
        %v6569 = vadd.f32 %v6517, %v6561
        %v6570 = vadd.f32 %v6518, %v6561
        %v6571 = vadd.f32 %v6519, %v6561
        %v6572 = vadd.f32 %v6520, %v6561
        %v6573 = vadd.f32 %v6521, %v6561
        %v6574 = vadd.f32 %v6522, %v6561
        %v6575 = vadd.f32 %v6523, %v6561
        %v6576 = vadd.f32 %v6524, %v6561
        %v6577 = vadd.f32 %v6525, %v6561
        %v6578 = vadd.f32 %v6526, %v6561
        %v6579 = vadd.f32 %v6527, %v6561
        %v6580 = vadd.f32 %v6528, %v6561
        %v6581 = vadd.f32 %v6529, %v6561
        %v6582 = vadd.f32 %v6530, %v6561
        %v6583 = vadd.f32 %v6531, %v6561
        %v6584 = vadd.f32 %v6532, %v6561
        %v6585 = vadd.f32 %v6533, %v6561
        %v6586 = vadd.f32 %v6534, %v6561
        %v6587 = vadd.f32 %v6535, %v6561
        %v6588 = vadd.f32 %v6536, %v6561
        %v6589 = vadd.f32 %v6537, %v6561
        %v6590 = vadd.f32 %v6538, %v6561
        %v6591 = vadd.f32 %v6539, %v6561
        %v6592 = vadd.f32 %v6540, %v6561
        %v6593 = vadd.f32 %v6541, %v6561
        %v6594 = vadd.f32 %v6542, %v6561
        %v6595 = vadd.f32 %v6543, %v6561
        %v6596 = vadd.f32 %v6544, %v6561
        %v6597 = vadd.f32 %v6545, %v6561
        %v6598 = vadd.f32 %v6546, %v6561
        %v6599 = vadd.f32 %v6547, %v6561
        %v6600 = vadd.f32 %v6548, %v6561
        %v6601 = vadd.f32 %v6549, %v6561
        %v6602 = vadd.f32 %v6550, %v6561
        %v6603 = vadd.f32 %v6551, %v6561
        %v6604 = vadd.f32 %v6552, %v6561
        %v6605 = vadd.f32 %v6553, %v6561
        %v6606 = vadd.f32 %v6554, %v6561
        %v6607 = vadd.f32 %v6555, %v6561
        %v6653 = vcombine.high %v6563, %v6563
        %v6654 = vcombine.high %v6564, %v6564
        %v6655 = vcombine.high %v6565, %v6565
        %v6656 = vcombine.high %v6566, %v6566
        %v6657 = vcombine.high %v6567, %v6567
        %v6658 = vcombine.high %v6568, %v6568
        %v6659 = vcombine.high %v6569, %v6569
        %v6660 = vcombine.high %v6570, %v6570
        %v6661 = vcombine.high %v6571, %v6571
        %v6662 = vcombine.high %v6572, %v6572
        %v6663 = vcombine.high %v6573, %v6573
        %v6664 = vcombine.high %v6574, %v6574
        %v6665 = vcombine.high %v6575, %v6575
        %v6666 = vcombine.high %v6576, %v6576
        %v6667 = vcombine.high %v6577, %v6577
        %v6668 = vcombine.high %v6578, %v6578
        %v6669 = vcombine.high %v6579, %v6579
        %v6670 = vcombine.high %v6580, %v6580
        %v6671 = vcombine.high %v6581, %v6581
        %v6672 = vcombine.high %v6582, %v6582
        %v6673 = vcombine.high %v6583, %v6583
        %v6674 = vcombine.high %v6584, %v6584
        %v6675 = vcombine.high %v6585, %v6585
        %v6676 = vcombine.high %v6586, %v6586
        %v6677 = vcombine.high %v6587, %v6587
        %v6678 = vcombine.high %v6588, %v6588
        %v6679 = vcombine.high %v6589, %v6589
        %v6680 = vcombine.high %v6590, %v6590
        %v6681 = vcombine.high %v6591, %v6591
        %v6682 = vcombine.high %v6592, %v6592
        %v6683 = vcombine.high %v6593, %v6593
        %v6684 = vcombine.high %v6594, %v6594
        %v6685 = vcombine.high %v6595, %v6595
        %v6686 = vcombine.high %v6596, %v6596
        %v6687 = vcombine.high %v6597, %v6597
        %v6688 = vcombine.high %v6598, %v6598
        %v6689 = vcombine.high %v6599, %v6599
        %v6690 = vcombine.high %v6600, %v6600
        %v6691 = vcombine.high %v6601, %v6601
        %v6692 = vcombine.high %v6602, %v6602
        %v6693 = vcombine.high %v6603, %v6603
        %v6694 = vcombine.high %v6604, %v6604
        %v6695 = vcombine.high %v6605, %v6605
        %v6696 = vcombine.high %v6606, %v6606
        %v6697 = vcombine.high %v6607, %v6607
        %v6743 = vadd.f32 %v6563, %v6655
        %v6744 = vadd.f32 %v6653, %v6566
        %v6745 = vadd.f32 %v6564, %v6656
        %v6746 = vadd.f32 %v6654, %v6567
        %v6747 = vadd.f32 %v6565, %v6657
        %v6748 = vadd.f32 %v6568, %v6660
        %v6749 = vadd.f32 %v6658, %v6571
        %v6750 = vadd.f32 %v6569, %v6661
        %v6751 = vadd.f32 %v6659, %v6572
        %v6752 = vadd.f32 %v6570, %v6662
        %v6753 = vadd.f32 %v6573, %v6665
        %v6754 = vadd.f32 %v6663, %v6576
        %v6755 = vadd.f32 %v6574, %v6666
        %v6756 = vadd.f32 %v6664, %v6577
        %v6757 = vadd.f32 %v6575, %v6667
        %v6758 = vadd.f32 %v6578, %v6670
        %v6759 = vadd.f32 %v6668, %v6581
        %v6760 = vadd.f32 %v6579, %v6671
        %v6761 = vadd.f32 %v6669, %v6582
        %v6762 = vadd.f32 %v6580, %v6672
        %v6763 = vadd.f32 %v6583, %v6675
        %v6764 = vadd.f32 %v6673, %v6586
        %v6765 = vadd.f32 %v6584, %v6676
        %v6766 = vadd.f32 %v6674, %v6587
        %v6767 = vadd.f32 %v6585, %v6677
        %v6768 = vadd.f32 %v6588, %v6680
        %v6769 = vadd.f32 %v6678, %v6591
        %v6770 = vadd.f32 %v6589, %v6681
        %v6771 = vadd.f32 %v6679, %v6592
        %v6772 = vadd.f32 %v6590, %v6682
        %v6773 = vadd.f32 %v6593, %v6685
        %v6774 = vadd.f32 %v6683, %v6596
        %v6775 = vadd.f32 %v6594, %v6686
        %v6776 = vadd.f32 %v6684, %v6597
        %v6777 = vadd.f32 %v6595, %v6687
        %v6778 = vadd.f32 %v6598, %v6690
        %v6779 = vadd.f32 %v6688, %v6601
        %v6780 = vadd.f32 %v6599, %v6691
        %v6781 = vadd.f32 %v6689, %v6602
        %v6782 = vadd.f32 %v6600, %v6692
        %v6783 = vadd.f32 %v6603, %v6695
        %v6784 = vadd.f32 %v6693, %v6606
        %v6785 = vadd.f32 %v6604, %v6696
        %v6786 = vadd.f32 %v6694, %v6607
        %v6787 = vadd.f32 %v6605, %v6697
        %v6834 = vunpack.c.l.s4 1983009808
        %v6835 = vunpack.c.0.s8 %v6834
        %v6836 = vlaneseq
        %v6837 = vshrl.u32 %v6836, 7
        %v6838 = vsub.s32 %v6835, %v6837
        %v6839 = vrot.slane %v6743, %v6838
        %v6840 = vcombine.high %v6839, %v6839
        %v6842 = vunpack.c.l.s4 1983009808
        %v6843 = vunpack.c.0.s8 %v6842
        %v6844 = vlaneseq
        %v6845 = vshrl.u32 %v6844, 7
        %v6846 = vsub.s32 %v6843, %v6845
        %v6847 = vrot.slane %v6744, %v6846
        %v6848 = vcombine.high %v6847, %v6847
        %v6850 = vunpack.c.l.s4 1983009808
        %v6851 = vunpack.c.0.s8 %v6850
        %v6852 = vlaneseq
        %v6853 = vshrl.u32 %v6852, 7
        %v6854 = vsub.s32 %v6851, %v6853
        %v6855 = vrot.slane %v6745, %v6854
        %v6856 = vcombine.high %v6855, %v6855
        %v6858 = vunpack.c.l.s4 1983009808
        %v6859 = vunpack.c.0.s8 %v6858
        %v6860 = vlaneseq
        %v6861 = vshrl.u32 %v6860, 7
        %v6862 = vsub.s32 %v6859, %v6861
        %v6863 = vrot.slane %v6746, %v6862
        %v6864 = vcombine.high %v6863, %v6863
        %v6866 = vunpack.c.l.s4 1983009808
        %v6867 = vunpack.c.0.s8 %v6866
        %v6868 = vlaneseq
        %v6869 = vshrl.u32 %v6868, 7
        %v6870 = vsub.s32 %v6867, %v6869
        %v6871 = vrot.slane %v6747, %v6870
        %v6872 = vcombine.high %v6871, %v6871
        %v6874 = vunpack.c.l.s4 1983009808
        %v6875 = vunpack.c.0.s8 %v6874
        %v6876 = vlaneseq
        %v6877 = vshrl.u32 %v6876, 7
        %v6878 = vsub.s32 %v6875, %v6877
        %v6879 = vrot.slane %v6748, %v6878
        %v6880 = vcombine.high %v6879, %v6879
        %v6882 = vunpack.c.l.s4 1983009808
        %v6883 = vunpack.c.0.s8 %v6882
        %v6884 = vlaneseq
        %v6885 = vshrl.u32 %v6884, 7
        %v6886 = vsub.s32 %v6883, %v6885
        %v6887 = vrot.slane %v6749, %v6886
        %v6888 = vcombine.high %v6887, %v6887
        %v6890 = vunpack.c.l.s4 1983009808
        %v6891 = vunpack.c.0.s8 %v6890
        %v6892 = vlaneseq
        %v6893 = vshrl.u32 %v6892, 7
        %v6894 = vsub.s32 %v6891, %v6893
        %v6895 = vrot.slane %v6750, %v6894
        %v6896 = vcombine.high %v6895, %v6895
        %v6898 = vunpack.c.l.s4 1983009808
        %v6899 = vunpack.c.0.s8 %v6898
        %v6900 = vlaneseq
        %v6901 = vshrl.u32 %v6900, 7
        %v6902 = vsub.s32 %v6899, %v6901
        %v6903 = vrot.slane %v6751, %v6902
        %v6904 = vcombine.high %v6903, %v6903
        %v6906 = vunpack.c.l.s4 1983009808
        %v6907 = vunpack.c.0.s8 %v6906
        %v6908 = vlaneseq
        %v6909 = vshrl.u32 %v6908, 7
        %v6910 = vsub.s32 %v6907, %v6909
        %v6911 = vrot.slane %v6752, %v6910
        %v6912 = vcombine.high %v6911, %v6911
        %v6914 = vunpack.c.l.s4 1983009808
        %v6915 = vunpack.c.0.s8 %v6914
        %v6916 = vlaneseq
        %v6917 = vshrl.u32 %v6916, 7
        %v6918 = vsub.s32 %v6915, %v6917
        %v6919 = vrot.slane %v6753, %v6918
        %v6920 = vcombine.high %v6919, %v6919
        %v6922 = vunpack.c.l.s4 1983009808
        %v6923 = vunpack.c.0.s8 %v6922
        %v6924 = vlaneseq
        %v6925 = vshrl.u32 %v6924, 7
        %v6926 = vsub.s32 %v6923, %v6925
        %v6927 = vrot.slane %v6754, %v6926
        %v6928 = vcombine.high %v6927, %v6927
        %v6930 = vunpack.c.l.s4 1983009808
        %v6931 = vunpack.c.0.s8 %v6930
        %v6932 = vlaneseq
        %v6933 = vshrl.u32 %v6932, 7
        %v6934 = vsub.s32 %v6931, %v6933
        %v6935 = vrot.slane %v6755, %v6934
        %v6936 = vcombine.high %v6935, %v6935
        %v6938 = vunpack.c.l.s4 1983009808
        %v6939 = vunpack.c.0.s8 %v6938
        %v6940 = vlaneseq
        %v6941 = vshrl.u32 %v6940, 7
        %v6942 = vsub.s32 %v6939, %v6941
        %v6943 = vrot.slane %v6756, %v6942
        %v6944 = vcombine.high %v6943, %v6943
        %v6946 = vunpack.c.l.s4 1983009808
        %v6947 = vunpack.c.0.s8 %v6946
        %v6948 = vlaneseq
        %v6949 = vshrl.u32 %v6948, 7
        %v6950 = vsub.s32 %v6947, %v6949
        %v6951 = vrot.slane %v6757, %v6950
        %v6952 = vcombine.high %v6951, %v6951
        %v6954 = vunpack.c.l.s4 1983009808
        %v6955 = vunpack.c.0.s8 %v6954
        %v6956 = vlaneseq
        %v6957 = vshrl.u32 %v6956, 7
        %v6958 = vsub.s32 %v6955, %v6957
        %v6959 = vrot.slane %v6758, %v6958
        %v6960 = vcombine.high %v6959, %v6959
        %v6962 = vunpack.c.l.s4 1983009808
        %v6963 = vunpack.c.0.s8 %v6962
        %v6964 = vlaneseq
        %v6965 = vshrl.u32 %v6964, 7
        %v6966 = vsub.s32 %v6963, %v6965
        %v6967 = vrot.slane %v6759, %v6966
        %v6968 = vcombine.high %v6967, %v6967
        %v6970 = vunpack.c.l.s4 1983009808
        %v6971 = vunpack.c.0.s8 %v6970
        %v6972 = vlaneseq
        %v6973 = vshrl.u32 %v6972, 7
        %v6974 = vsub.s32 %v6971, %v6973
        %v6975 = vrot.slane %v6760, %v6974
        %v6976 = vcombine.high %v6975, %v6975
        %v6978 = vunpack.c.l.s4 1983009808
        %v6979 = vunpack.c.0.s8 %v6978
        %v6980 = vlaneseq
        %v6981 = vshrl.u32 %v6980, 7
        %v6982 = vsub.s32 %v6979, %v6981
        %v6983 = vrot.slane %v6761, %v6982
        %v6984 = vcombine.high %v6983, %v6983
        %v6986 = vunpack.c.l.s4 1983009808
        %v6987 = vunpack.c.0.s8 %v6986
        %v6988 = vlaneseq
        %v6989 = vshrl.u32 %v6988, 7
        %v6990 = vsub.s32 %v6987, %v6989
        %v6991 = vrot.slane %v6762, %v6990
        %v6992 = vcombine.high %v6991, %v6991
        %v6994 = vunpack.c.l.s4 1983009808
        %v6995 = vunpack.c.0.s8 %v6994
        %v6996 = vlaneseq
        %v6997 = vshrl.u32 %v6996, 7
        %v6998 = vsub.s32 %v6995, %v6997
        %v6999 = vrot.slane %v6763, %v6998
        %v7000 = vcombine.high %v6999, %v6999
        %v7002 = vunpack.c.l.s4 1983009808
        %v7003 = vunpack.c.0.s8 %v7002
        %v7004 = vlaneseq
        %v7005 = vshrl.u32 %v7004, 7
        %v7006 = vsub.s32 %v7003, %v7005
        %v7007 = vrot.slane %v6764, %v7006
        %v7008 = vcombine.high %v7007, %v7007
        %v7010 = vunpack.c.l.s4 1983009808
        %v7011 = vunpack.c.0.s8 %v7010
        %v7012 = vlaneseq
        %v7013 = vshrl.u32 %v7012, 7
        %v7014 = vsub.s32 %v7011, %v7013
        %v7015 = vrot.slane %v6765, %v7014
        %v7016 = vcombine.high %v7015, %v7015
        %v7018 = vunpack.c.l.s4 1983009808
        %v7019 = vunpack.c.0.s8 %v7018
        %v7020 = vlaneseq
        %v7021 = vshrl.u32 %v7020, 7
        %v7022 = vsub.s32 %v7019, %v7021
        %v7023 = vrot.slane %v6766, %v7022
        %v7024 = vcombine.high %v7023, %v7023
        %v7026 = vunpack.c.l.s4 1983009808
        %v7027 = vunpack.c.0.s8 %v7026
        %v7028 = vlaneseq
        %v7029 = vshrl.u32 %v7028, 7
        %v7030 = vsub.s32 %v7027, %v7029
        %v7031 = vrot.slane %v6767, %v7030
        %v7032 = vcombine.high %v7031, %v7031
        %v7034 = vunpack.c.l.s4 1983009808
        %v7035 = vunpack.c.0.s8 %v7034
        %v7036 = vlaneseq
        %v7037 = vshrl.u32 %v7036, 7
        %v7038 = vsub.s32 %v7035, %v7037
        %v7039 = vrot.slane %v6768, %v7038
        %v7040 = vcombine.high %v7039, %v7039
        %v7042 = vunpack.c.l.s4 1983009808
        %v7043 = vunpack.c.0.s8 %v7042
        %v7044 = vlaneseq
        %v7045 = vshrl.u32 %v7044, 7
        %v7046 = vsub.s32 %v7043, %v7045
        %v7047 = vrot.slane %v6769, %v7046
        %v7048 = vcombine.high %v7047, %v7047
        %v7050 = vunpack.c.l.s4 1983009808
        %v7051 = vunpack.c.0.s8 %v7050
        %v7052 = vlaneseq
        %v7053 = vshrl.u32 %v7052, 7
        %v7054 = vsub.s32 %v7051, %v7053
        %v7055 = vrot.slane %v6770, %v7054
        %v7056 = vcombine.high %v7055, %v7055
        %v7058 = vunpack.c.l.s4 1983009808
        %v7059 = vunpack.c.0.s8 %v7058
        %v7060 = vlaneseq
        %v7061 = vshrl.u32 %v7060, 7
        %v7062 = vsub.s32 %v7059, %v7061
        %v7063 = vrot.slane %v6771, %v7062
        %v7064 = vcombine.high %v7063, %v7063
        %v7066 = vunpack.c.l.s4 1983009808
        %v7067 = vunpack.c.0.s8 %v7066
        %v7068 = vlaneseq
        %v7069 = vshrl.u32 %v7068, 7
        %v7070 = vsub.s32 %v7067, %v7069
        %v7071 = vrot.slane %v6772, %v7070
        %v7072 = vcombine.high %v7071, %v7071
        %v7074 = vunpack.c.l.s4 1983009808
        %v7075 = vunpack.c.0.s8 %v7074
        %v7076 = vlaneseq
        %v7077 = vshrl.u32 %v7076, 7
        %v7078 = vsub.s32 %v7075, %v7077
        %v7079 = vrot.slane %v6773, %v7078
        %v7080 = vcombine.high %v7079, %v7079
        %v7082 = vunpack.c.l.s4 1983009808
        %v7083 = vunpack.c.0.s8 %v7082
        %v7084 = vlaneseq
        %v7085 = vshrl.u32 %v7084, 7
        %v7086 = vsub.s32 %v7083, %v7085
        %v7087 = vrot.slane %v6774, %v7086
        %v7088 = vcombine.high %v7087, %v7087
        %v7090 = vunpack.c.l.s4 1983009808
        %v7091 = vunpack.c.0.s8 %v7090
        %v7092 = vlaneseq
        %v7093 = vshrl.u32 %v7092, 7
        %v7094 = vsub.s32 %v7091, %v7093
        %v7095 = vrot.slane %v6775, %v7094
        %v7096 = vcombine.high %v7095, %v7095
        %v7098 = vunpack.c.l.s4 1983009808
        %v7099 = vunpack.c.0.s8 %v7098
        %v7100 = vlaneseq
        %v7101 = vshrl.u32 %v7100, 7
        %v7102 = vsub.s32 %v7099, %v7101
        %v7103 = vrot.slane %v6776, %v7102
        %v7104 = vcombine.high %v7103, %v7103
        %v7106 = vunpack.c.l.s4 1983009808
        %v7107 = vunpack.c.0.s8 %v7106
        %v7108 = vlaneseq
        %v7109 = vshrl.u32 %v7108, 7
        %v7110 = vsub.s32 %v7107, %v7109
        %v7111 = vrot.slane %v6777, %v7110
        %v7112 = vcombine.high %v7111, %v7111
        %v7114 = vunpack.c.l.s4 1983009808
        %v7115 = vunpack.c.0.s8 %v7114
        %v7116 = vlaneseq
        %v7117 = vshrl.u32 %v7116, 7
        %v7118 = vsub.s32 %v7115, %v7117
        %v7119 = vrot.slane %v6778, %v7118
        %v7120 = vcombine.high %v7119, %v7119
        %v7122 = vunpack.c.l.s4 1983009808
        %v7123 = vunpack.c.0.s8 %v7122
        %v7124 = vlaneseq
        %v7125 = vshrl.u32 %v7124, 7
        %v7126 = vsub.s32 %v7123, %v7125
        %v7127 = vrot.slane %v6779, %v7126
        %v7128 = vcombine.high %v7127, %v7127
        %v7130 = vunpack.c.l.s4 1983009808
        %v7131 = vunpack.c.0.s8 %v7130
        %v7132 = vlaneseq
        %v7133 = vshrl.u32 %v7132, 7
        %v7134 = vsub.s32 %v7131, %v7133
        %v7135 = vrot.slane %v6780, %v7134
        %v7136 = vcombine.high %v7135, %v7135
        %v7138 = vunpack.c.l.s4 1983009808
        %v7139 = vunpack.c.0.s8 %v7138
        %v7140 = vlaneseq
        %v7141 = vshrl.u32 %v7140, 7
        %v7142 = vsub.s32 %v7139, %v7141
        %v7143 = vrot.slane %v6781, %v7142
        %v7144 = vcombine.high %v7143, %v7143
        %v7146 = vunpack.c.l.s4 1983009808
        %v7147 = vunpack.c.0.s8 %v7146
        %v7148 = vlaneseq
        %v7149 = vshrl.u32 %v7148, 7
        %v7150 = vsub.s32 %v7147, %v7149
        %v7151 = vrot.slane %v6782, %v7150
        %v7152 = vcombine.high %v7151, %v7151
        %v7154 = vunpack.c.l.s4 1983009808
        %v7155 = vunpack.c.0.s8 %v7154
        %v7156 = vlaneseq
        %v7157 = vshrl.u32 %v7156, 7
        %v7158 = vsub.s32 %v7155, %v7157
        %v7159 = vrot.slane %v6783, %v7158
        %v7160 = vcombine.high %v7159, %v7159
        %v7162 = vunpack.c.l.s4 1983009808
        %v7163 = vunpack.c.0.s8 %v7162
        %v7164 = vlaneseq
        %v7165 = vshrl.u32 %v7164, 7
        %v7166 = vsub.s32 %v7163, %v7165
        %v7167 = vrot.slane %v6784, %v7166
        %v7168 = vcombine.high %v7167, %v7167
        %v7170 = vunpack.c.l.s4 1983009808
        %v7171 = vunpack.c.0.s8 %v7170
        %v7172 = vlaneseq
        %v7173 = vshrl.u32 %v7172, 7
        %v7174 = vsub.s32 %v7171, %v7173
        %v7175 = vrot.slane %v6785, %v7174
        %v7176 = vcombine.high %v7175, %v7175
        %v7178 = vunpack.c.l.s4 1983009808
        %v7179 = vunpack.c.0.s8 %v7178
        %v7180 = vlaneseq
        %v7181 = vshrl.u32 %v7180, 7
        %v7182 = vsub.s32 %v7179, %v7181
        %v7183 = vrot.slane %v6786, %v7182
        %v7184 = vcombine.high %v7183, %v7183
        %v7186 = vunpack.c.l.s4 1983009808
        %v7187 = vunpack.c.0.s8 %v7186
        %v7188 = vlaneseq
        %v7189 = vshrl.u32 %v7188, 7
        %v7190 = vsub.s32 %v7187, %v7189
        %v7191 = vrot.slane %v6787, %v7190
        %v7192 = vcombine.high %v7191, %v7191
        %v7283 = vrot.slane %v6839, 7
        %v7284 = vrot.slane %v7283, 2
        %v7285 = vrot.slane %v6840, 7
        %v7286 = vrot.slane %v7285, 2
        %v7287 = vrot.slane %v6847, 7
        %v7288 = vrot.slane %v7287, 2
        %v7289 = vrot.slane %v6848, 7
        %v7290 = vrot.slane %v7289, 2
        %v7291 = vrot.slane %v6855, 7
        %v7292 = vrot.slane %v7291, 2
        %v7293 = vrot.slane %v6856, 7
        %v7294 = vrot.slane %v7293, 2
        %v7295 = vrot.slane %v6863, 7
        %v7296 = vrot.slane %v7295, 2
        %v7297 = vrot.slane %v6864, 7
        %v7298 = vrot.slane %v7297, 2
        %v7299 = vrot.slane %v6871, 7
        %v7300 = vrot.slane %v7299, 2
        %v7301 = vrot.slane %v6872, 7
        %v7302 = vrot.slane %v7301, 2
        %v7303 = vrot.slane %v6879, 7
        %v7304 = vrot.slane %v7303, 2
        %v7305 = vrot.slane %v6880, 7
        %v7306 = vrot.slane %v7305, 2
        %v7307 = vrot.slane %v6887, 7
        %v7308 = vrot.slane %v7307, 2
        %v7309 = vrot.slane %v6888, 7
        %v7310 = vrot.slane %v7309, 2
        %v7311 = vrot.slane %v6895, 7
        %v7312 = vrot.slane %v7311, 2
        %v7313 = vrot.slane %v6896, 7
        %v7314 = vrot.slane %v7313, 2
        %v7315 = vrot.slane %v6903, 7
        %v7316 = vrot.slane %v7315, 2
        %v7317 = vrot.slane %v6904, 7
        %v7318 = vrot.slane %v7317, 2
        %v7319 = vrot.slane %v6911, 7
        %v7320 = vrot.slane %v7319, 2
        %v7321 = vrot.slane %v6912, 7
        %v7322 = vrot.slane %v7321, 2
        %v7323 = vrot.slane %v6919, 7
        %v7324 = vrot.slane %v7323, 2
        %v7325 = vrot.slane %v6920, 7
        %v7326 = vrot.slane %v7325, 2
        %v7327 = vrot.slane %v6927, 7
        %v7328 = vrot.slane %v7327, 2
        %v7329 = vrot.slane %v6928, 7
        %v7330 = vrot.slane %v7329, 2
        %v7331 = vrot.slane %v6935, 7
        %v7332 = vrot.slane %v7331, 2
        %v7333 = vrot.slane %v6936, 7
        %v7334 = vrot.slane %v7333, 2
        %v7335 = vrot.slane %v6943, 7
        %v7336 = vrot.slane %v7335, 2
        %v7337 = vrot.slane %v6944, 7
        %v7338 = vrot.slane %v7337, 2
        %v7339 = vrot.slane %v6951, 7
        %v7340 = vrot.slane %v7339, 2
        %v7341 = vrot.slane %v6952, 7
        %v7342 = vrot.slane %v7341, 2
        %v7343 = vrot.slane %v6959, 7
        %v7344 = vrot.slane %v7343, 2
        %v7345 = vrot.slane %v6960, 7
        %v7346 = vrot.slane %v7345, 2
        %v7347 = vrot.slane %v6967, 7
        %v7348 = vrot.slane %v7347, 2
        %v7349 = vrot.slane %v6968, 7
        %v7350 = vrot.slane %v7349, 2
        %v7351 = vrot.slane %v6975, 7
        %v7352 = vrot.slane %v7351, 2
        %v7353 = vrot.slane %v6976, 7
        %v7354 = vrot.slane %v7353, 2
        %v7355 = vrot.slane %v6983, 7
        %v7356 = vrot.slane %v7355, 2
        %v7357 = vrot.slane %v6984, 7
        %v7358 = vrot.slane %v7357, 2
        %v7359 = vrot.slane %v6991, 7
        %v7360 = vrot.slane %v7359, 2
        %v7361 = vrot.slane %v6992, 7
        %v7362 = vrot.slane %v7361, 2
        %v7363 = vrot.slane %v6999, 7
        %v7364 = vrot.slane %v7363, 2
        %v7365 = vrot.slane %v7000, 7
        %v7366 = vrot.slane %v7365, 2
        %v7367 = vrot.slane %v7007, 7
        %v7368 = vrot.slane %v7367, 2
        %v7369 = vrot.slane %v7008, 7
        %v7370 = vrot.slane %v7369, 2
        %v7371 = vrot.slane %v7015, 7
        %v7372 = vrot.slane %v7371, 2
        %v7373 = vrot.slane %v7016, 7
        %v7374 = vrot.slane %v7373, 2
        %v7375 = vrot.slane %v7023, 7
        %v7376 = vrot.slane %v7375, 2
        %v7377 = vrot.slane %v7024, 7
        %v7378 = vrot.slane %v7377, 2
        %v7379 = vrot.slane %v7031, 7
        %v7380 = vrot.slane %v7379, 2
        %v7381 = vrot.slane %v7032, 7
        %v7382 = vrot.slane %v7381, 2
        %v7383 = vrot.slane %v7039, 7
        %v7384 = vrot.slane %v7383, 2
        %v7385 = vrot.slane %v7040, 7
        %v7386 = vrot.slane %v7385, 2
        %v7387 = vrot.slane %v7047, 7
        %v7388 = vrot.slane %v7387, 2
        %v7389 = vrot.slane %v7048, 7
        %v7390 = vrot.slane %v7389, 2
        %v7391 = vrot.slane %v7055, 7
        %v7392 = vrot.slane %v7391, 2
        %v7393 = vrot.slane %v7056, 7
        %v7394 = vrot.slane %v7393, 2
        %v7395 = vrot.slane %v7063, 7
        %v7396 = vrot.slane %v7395, 2
        %v7397 = vrot.slane %v7064, 7
        %v7398 = vrot.slane %v7397, 2
        %v7399 = vrot.slane %v7071, 7
        %v7400 = vrot.slane %v7399, 2
        %v7401 = vrot.slane %v7072, 7
        %v7402 = vrot.slane %v7401, 2
        %v7403 = vrot.slane %v7079, 7
        %v7404 = vrot.slane %v7403, 2
        %v7405 = vrot.slane %v7080, 7
        %v7406 = vrot.slane %v7405, 2
        %v7407 = vrot.slane %v7087, 7
        %v7408 = vrot.slane %v7407, 2
        %v7409 = vrot.slane %v7088, 7
        %v7410 = vrot.slane %v7409, 2
        %v7411 = vrot.slane %v7095, 7
        %v7412 = vrot.slane %v7411, 2
        %v7413 = vrot.slane %v7096, 7
        %v7414 = vrot.slane %v7413, 2
        %v7415 = vrot.slane %v7103, 7
        %v7416 = vrot.slane %v7415, 2
        %v7417 = vrot.slane %v7104, 7
        %v7418 = vrot.slane %v7417, 2
        %v7419 = vrot.slane %v7111, 7
        %v7420 = vrot.slane %v7419, 2
        %v7421 = vrot.slane %v7112, 7
        %v7422 = vrot.slane %v7421, 2
        %v7423 = vrot.slane %v7119, 7
        %v7424 = vrot.slane %v7423, 2
        %v7425 = vrot.slane %v7120, 7
        %v7426 = vrot.slane %v7425, 2
        %v7427 = vrot.slane %v7127, 7
        %v7428 = vrot.slane %v7427, 2
        %v7429 = vrot.slane %v7128, 7
        %v7430 = vrot.slane %v7429, 2
        %v7431 = vrot.slane %v7135, 7
        %v7432 = vrot.slane %v7431, 2
        %v7433 = vrot.slane %v7136, 7
        %v7434 = vrot.slane %v7433, 2
        %v7435 = vrot.slane %v7143, 7
        %v7436 = vrot.slane %v7435, 2
        %v7437 = vrot.slane %v7144, 7
        %v7438 = vrot.slane %v7437, 2
        %v7439 = vrot.slane %v7151, 7
        %v7440 = vrot.slane %v7439, 2
        %v7441 = vrot.slane %v7152, 7
        %v7442 = vrot.slane %v7441, 2
        %v7443 = vrot.slane %v7159, 7
        %v7444 = vrot.slane %v7443, 2
        %v7445 = vrot.slane %v7160, 7
        %v7446 = vrot.slane %v7445, 2
        %v7447 = vrot.slane %v7167, 7
        %v7448 = vrot.slane %v7447, 2
        %v7449 = vrot.slane %v7168, 7
        %v7450 = vrot.slane %v7449, 2
        %v7451 = vrot.slane %v7175, 7
        %v7452 = vrot.slane %v7451, 2
        %v7453 = vrot.slane %v7176, 7
        %v7454 = vrot.slane %v7453, 2
        %v7455 = vrot.slane %v7183, 7
        %v7456 = vrot.slane %v7455, 2
        %v7457 = vrot.slane %v7184, 7
        %v7458 = vrot.slane %v7457, 2
        %v7459 = vrot.slane %v7191, 7
        %v7460 = vrot.slane %v7459, 2
        %v7461 = vrot.slane %v7192, 7
        %v7462 = vrot.slane %v7461, 2
        %v7553 = vadd.f32 %v6839, %v7284
        %v7554 = vadd.f32 %v6840, %v7286
        %v7555 = vadd.f32 %v6847, %v7288
        %v7556 = vadd.f32 %v6848, %v7290
        %v7557 = vadd.f32 %v6855, %v7292
        %v7558 = vadd.f32 %v6856, %v7294
        %v7559 = vadd.f32 %v6863, %v7296
        %v7560 = vadd.f32 %v6864, %v7298
        %v7561 = vadd.f32 %v6871, %v7300
        %v7562 = vadd.f32 %v6872, %v7302
        %v7563 = vadd.f32 %v6879, %v7304
        %v7564 = vadd.f32 %v6880, %v7306
        %v7565 = vadd.f32 %v6887, %v7308
        %v7566 = vadd.f32 %v6888, %v7310
        %v7567 = vadd.f32 %v6895, %v7312
        %v7568 = vadd.f32 %v6896, %v7314
        %v7569 = vadd.f32 %v6903, %v7316
        %v7570 = vadd.f32 %v6904, %v7318
        %v7571 = vadd.f32 %v6911, %v7320
        %v7572 = vadd.f32 %v6912, %v7322
        %v7573 = vadd.f32 %v6919, %v7324
        %v7574 = vadd.f32 %v6920, %v7326
        %v7575 = vadd.f32 %v6927, %v7328
        %v7576 = vadd.f32 %v6928, %v7330
        %v7577 = vadd.f32 %v6935, %v7332
        %v7578 = vadd.f32 %v6936, %v7334
        %v7579 = vadd.f32 %v6943, %v7336
        %v7580 = vadd.f32 %v6944, %v7338
        %v7581 = vadd.f32 %v6951, %v7340
        %v7582 = vadd.f32 %v6952, %v7342
        %v7583 = vadd.f32 %v6959, %v7344
        %v7584 = vadd.f32 %v6960, %v7346
        %v7585 = vadd.f32 %v6967, %v7348
        %v7586 = vadd.f32 %v6968, %v7350
        %v7587 = vadd.f32 %v6975, %v7352
        %v7588 = vadd.f32 %v6976, %v7354
        %v7589 = vadd.f32 %v6983, %v7356
        %v7590 = vadd.f32 %v6984, %v7358
        %v7591 = vadd.f32 %v6991, %v7360
        %v7592 = vadd.f32 %v6992, %v7362
        %v7593 = vadd.f32 %v6999, %v7364
        %v7594 = vadd.f32 %v7000, %v7366
        %v7595 = vadd.f32 %v7007, %v7368
        %v7596 = vadd.f32 %v7008, %v7370
        %v7597 = vadd.f32 %v7015, %v7372
        %v7598 = vadd.f32 %v7016, %v7374
        %v7599 = vadd.f32 %v7023, %v7376
        %v7600 = vadd.f32 %v7024, %v7378
        %v7601 = vadd.f32 %v7031, %v7380
        %v7602 = vadd.f32 %v7032, %v7382
        %v7603 = vadd.f32 %v7039, %v7384
        %v7604 = vadd.f32 %v7040, %v7386
        %v7605 = vadd.f32 %v7047, %v7388
        %v7606 = vadd.f32 %v7048, %v7390
        %v7607 = vadd.f32 %v7055, %v7392
        %v7608 = vadd.f32 %v7056, %v7394
        %v7609 = vadd.f32 %v7063, %v7396
        %v7610 = vadd.f32 %v7064, %v7398
        %v7611 = vadd.f32 %v7071, %v7400
        %v7612 = vadd.f32 %v7072, %v7402
        %v7613 = vadd.f32 %v7079, %v7404
        %v7614 = vadd.f32 %v7080, %v7406
        %v7615 = vadd.f32 %v7087, %v7408
        %v7616 = vadd.f32 %v7088, %v7410
        %v7617 = vadd.f32 %v7095, %v7412
        %v7618 = vadd.f32 %v7096, %v7414
        %v7619 = vadd.f32 %v7103, %v7416
        %v7620 = vadd.f32 %v7104, %v7418
        %v7621 = vadd.f32 %v7111, %v7420
        %v7622 = vadd.f32 %v7112, %v7422
        %v7623 = vadd.f32 %v7119, %v7424
        %v7624 = vadd.f32 %v7120, %v7426
        %v7625 = vadd.f32 %v7127, %v7428
        %v7626 = vadd.f32 %v7128, %v7430
        %v7627 = vadd.f32 %v7135, %v7432
        %v7628 = vadd.f32 %v7136, %v7434
        %v7629 = vadd.f32 %v7143, %v7436
        %v7630 = vadd.f32 %v7144, %v7438
        %v7631 = vadd.f32 %v7151, %v7440
        %v7632 = vadd.f32 %v7152, %v7442
        %v7633 = vadd.f32 %v7159, %v7444
        %v7634 = vadd.f32 %v7160, %v7446
        %v7635 = vadd.f32 %v7167, %v7448
        %v7636 = vadd.f32 %v7168, %v7450
        %v7637 = vadd.f32 %v7175, %v7452
        %v7638 = vadd.f32 %v7176, %v7454
        %v7639 = vadd.f32 %v7183, %v7456
        %v7640 = vadd.f32 %v7184, %v7458
        %v7641 = vadd.f32 %v7191, %v7460
        %v7642 = vadd.f32 %v7192, %v7462
        %v7643 = vmul.f32 %v7553, 0.25
        %v7644 = vmul.f32 %v7554, 0.25
        %v7645 = vmul.f32 %v7555, 0.25
        %v7646 = vmul.f32 %v7556, 0.25
        %v7647 = vmul.f32 %v7557, 0.25
        %v7648 = vmul.f32 %v7558, 0.25
        %v7649 = vmul.f32 %v7559, 0.25
        %v7650 = vmul.f32 %v7560, 0.25
        %v7651 = vmul.f32 %v7561, 0.25
        %v7652 = vmul.f32 %v7562, 0.25
        %v7653 = vmul.f32 %v7563, 0.25
        %v7654 = vmul.f32 %v7564, 0.25
        %v7655 = vmul.f32 %v7565, 0.25
        %v7656 = vmul.f32 %v7566, 0.25
        %v7657 = vmul.f32 %v7567, 0.25
        %v7658 = vmul.f32 %v7568, 0.25
        %v7659 = vmul.f32 %v7569, 0.25
        %v7660 = vmul.f32 %v7570, 0.25
        %v7661 = vmul.f32 %v7571, 0.25
        %v7662 = vmul.f32 %v7572, 0.25
        %v7663 = vmul.f32 %v7573, 0.25
        %v7664 = vmul.f32 %v7574, 0.25
        %v7665 = vmul.f32 %v7575, 0.25
        %v7666 = vmul.f32 %v7576, 0.25
        %v7667 = vmul.f32 %v7577, 0.25
        %v7668 = vmul.f32 %v7578, 0.25
        %v7669 = vmul.f32 %v7579, 0.25
        %v7670 = vmul.f32 %v7580, 0.25
        %v7671 = vmul.f32 %v7581, 0.25
        %v7672 = vmul.f32 %v7582, 0.25
        %v7673 = vmul.f32 %v7583, 0.25
        %v7674 = vmul.f32 %v7584, 0.25
        %v7675 = vmul.f32 %v7585, 0.25
        %v7676 = vmul.f32 %v7586, 0.25
        %v7677 = vmul.f32 %v7587, 0.25
        %v7678 = vmul.f32 %v7588, 0.25
        %v7679 = vmul.f32 %v7589, 0.25
        %v7680 = vmul.f32 %v7590, 0.25
        %v7681 = vmul.f32 %v7591, 0.25
        %v7682 = vmul.f32 %v7592, 0.25
        %v7683 = vmul.f32 %v7593, 0.25
        %v7684 = vmul.f32 %v7594, 0.25
        %v7685 = vmul.f32 %v7595, 0.25
        %v7686 = vmul.f32 %v7596, 0.25
        %v7687 = vmul.f32 %v7597, 0.25
        %v7688 = vmul.f32 %v7598, 0.25
        %v7689 = vmul.f32 %v7599, 0.25
        %v7690 = vmul.f32 %v7600, 0.25
        %v7691 = vmul.f32 %v7601, 0.25
        %v7692 = vmul.f32 %v7602, 0.25
        %v7693 = vmul.f32 %v7603, 0.25
        %v7694 = vmul.f32 %v7604, 0.25
        %v7695 = vmul.f32 %v7605, 0.25
        %v7696 = vmul.f32 %v7606, 0.25
        %v7697 = vmul.f32 %v7607, 0.25
        %v7698 = vmul.f32 %v7608, 0.25
        %v7699 = vmul.f32 %v7609, 0.25
        %v7700 = vmul.f32 %v7610, 0.25
        %v7701 = vmul.f32 %v7611, 0.25
        %v7702 = vmul.f32 %v7612, 0.25
        %v7703 = vmul.f32 %v7613, 0.25
        %v7704 = vmul.f32 %v7614, 0.25
        %v7705 = vmul.f32 %v7615, 0.25
        %v7706 = vmul.f32 %v7616, 0.25
        %v7707 = vmul.f32 %v7617, 0.25
        %v7708 = vmul.f32 %v7618, 0.25
        %v7709 = vmul.f32 %v7619, 0.25
        %v7710 = vmul.f32 %v7620, 0.25
        %v7711 = vmul.f32 %v7621, 0.25
        %v7712 = vmul.f32 %v7622, 0.25
        %v7713 = vmul.f32 %v7623, 0.25
        %v7714 = vmul.f32 %v7624, 0.25
        %v7715 = vmul.f32 %v7625, 0.25
        %v7716 = vmul.f32 %v7626, 0.25
        %v7717 = vmul.f32 %v7627, 0.25
        %v7718 = vmul.f32 %v7628, 0.25
        %v7719 = vmul.f32 %v7629, 0.25
        %v7720 = vmul.f32 %v7630, 0.25
        %v7721 = vmul.f32 %v7631, 0.25
        %v7722 = vmul.f32 %v7632, 0.25
        %v7723 = vmul.f32 %v7633, 0.25
        %v7724 = vmul.f32 %v7634, 0.25
        %v7725 = vmul.f32 %v7635, 0.25
        %v7726 = vmul.f32 %v7636, 0.25
        %v7727 = vmul.f32 %v7637, 0.25
        %v7728 = vmul.f32 %v7638, 0.25
        %v7729 = vmul.f32 %v7639, 0.25
        %v7730 = vmul.f32 %v7640, 0.25
        %v7731 = vmul.f32 %v7641, 0.25
        %v7732 = vmul.f32 %v7642, 0.25
        %v7733 = vpack.c.bf16 %v7643, %v7643
        %v7734 = vpack.c.bf16 %v7644, %v7644
        %v7735 = vpack.c.bf16 %v7645, %v7645
        %v7736 = vpack.c.bf16 %v7646, %v7646
        %v7737 = vpack.c.bf16 %v7647, %v7647
        %v7738 = vpack.c.bf16 %v7648, %v7648
        %v7739 = vpack.c.bf16 %v7649, %v7649
        %v7740 = vpack.c.bf16 %v7650, %v7650
        %v7741 = vpack.c.bf16 %v7651, %v7651
        %v7742 = vpack.c.bf16 %v7652, %v7652
        %v7743 = vpack.c.bf16 %v7653, %v7653
        %v7744 = vpack.c.bf16 %v7654, %v7654
        %v7745 = vpack.c.bf16 %v7655, %v7655
        %v7746 = vpack.c.bf16 %v7656, %v7656
        %v7747 = vpack.c.bf16 %v7657, %v7657
        %v7748 = vpack.c.bf16 %v7658, %v7658
        %v7749 = vpack.c.bf16 %v7659, %v7659
        %v7750 = vpack.c.bf16 %v7660, %v7660
        %v7751 = vpack.c.bf16 %v7661, %v7661
        %v7752 = vpack.c.bf16 %v7662, %v7662
        %v7753 = vpack.c.bf16 %v7663, %v7663
        %v7754 = vpack.c.bf16 %v7664, %v7664
        %v7755 = vpack.c.bf16 %v7665, %v7665
        %v7756 = vpack.c.bf16 %v7666, %v7666
        %v7757 = vpack.c.bf16 %v7667, %v7667
        %v7758 = vpack.c.bf16 %v7668, %v7668
        %v7759 = vpack.c.bf16 %v7669, %v7669
        %v7760 = vpack.c.bf16 %v7670, %v7670
        %v7761 = vpack.c.bf16 %v7671, %v7671
        %v7762 = vpack.c.bf16 %v7672, %v7672
        %v7763 = vpack.c.bf16 %v7673, %v7673
        %v7764 = vpack.c.bf16 %v7674, %v7674
        %v7765 = vpack.c.bf16 %v7675, %v7675
        %v7766 = vpack.c.bf16 %v7676, %v7676
        %v7767 = vpack.c.bf16 %v7677, %v7677
        %v7768 = vpack.c.bf16 %v7678, %v7678
        %v7769 = vpack.c.bf16 %v7679, %v7679
        %v7770 = vpack.c.bf16 %v7680, %v7680
        %v7771 = vpack.c.bf16 %v7681, %v7681
        %v7772 = vpack.c.bf16 %v7682, %v7682
        %v7773 = vpack.c.bf16 %v7683, %v7683
        %v7774 = vpack.c.bf16 %v7684, %v7684
        %v7775 = vpack.c.bf16 %v7685, %v7685
        %v7776 = vpack.c.bf16 %v7686, %v7686
        %v7777 = vpack.c.bf16 %v7687, %v7687
        %v7778 = vpack.c.bf16 %v7688, %v7688
        %v7779 = vpack.c.bf16 %v7689, %v7689
        %v7780 = vpack.c.bf16 %v7690, %v7690
        %v7781 = vpack.c.bf16 %v7691, %v7691
        %v7782 = vpack.c.bf16 %v7692, %v7692
        %v7783 = vpack.c.bf16 %v7693, %v7693
        %v7784 = vpack.c.bf16 %v7694, %v7694
        %v7785 = vpack.c.bf16 %v7695, %v7695
        %v7786 = vpack.c.bf16 %v7696, %v7696
        %v7787 = vpack.c.bf16 %v7697, %v7697
        %v7788 = vpack.c.bf16 %v7698, %v7698
        %v7789 = vpack.c.bf16 %v7699, %v7699
        %v7790 = vpack.c.bf16 %v7700, %v7700
        %v7791 = vpack.c.bf16 %v7701, %v7701
        %v7792 = vpack.c.bf16 %v7702, %v7702
        %v7793 = vpack.c.bf16 %v7703, %v7703
        %v7794 = vpack.c.bf16 %v7704, %v7704
        %v7795 = vpack.c.bf16 %v7705, %v7705
        %v7796 = vpack.c.bf16 %v7706, %v7706
        %v7797 = vpack.c.bf16 %v7707, %v7707
        %v7798 = vpack.c.bf16 %v7708, %v7708
        %v7799 = vpack.c.bf16 %v7709, %v7709
        %v7800 = vpack.c.bf16 %v7710, %v7710
        %v7801 = vpack.c.bf16 %v7711, %v7711
        %v7802 = vpack.c.bf16 %v7712, %v7712
        %v7803 = vpack.c.bf16 %v7713, %v7713
        %v7804 = vpack.c.bf16 %v7714, %v7714
        %v7805 = vpack.c.bf16 %v7715, %v7715
        %v7806 = vpack.c.bf16 %v7716, %v7716
        %v7807 = vpack.c.bf16 %v7717, %v7717
        %v7808 = vpack.c.bf16 %v7718, %v7718
        %v7809 = vpack.c.bf16 %v7719, %v7719
        %v7810 = vpack.c.bf16 %v7720, %v7720
        %v7811 = vpack.c.bf16 %v7721, %v7721
        %v7812 = vpack.c.bf16 %v7722, %v7722
        %v7813 = vpack.c.bf16 %v7723, %v7723
        %v7814 = vpack.c.bf16 %v7724, %v7724
        %v7815 = vpack.c.bf16 %v7725, %v7725
        %v7816 = vpack.c.bf16 %v7726, %v7726
        %v7817 = vpack.c.bf16 %v7727, %v7727
        %v7818 = vpack.c.bf16 %v7728, %v7728
        %v7819 = vpack.c.bf16 %v7729, %v7729
        %v7820 = vpack.c.bf16 %v7730, %v7730
        %v7821 = vpack.c.bf16 %v7731, %v7731
        %v7822 = vpack.c.bf16 %v7732, %v7732
        %v7913 = vunpack.c.l.b16 %v7733
        %v7914 = vunpack.c.l.b16 %v7734
        %v7915 = vunpack.c.l.b16 %v7735
        %v7916 = vunpack.c.l.b16 %v7736
        %v7917 = vunpack.c.l.b16 %v7737
        %v7918 = vunpack.c.l.b16 %v7738
        %v7919 = vunpack.c.l.b16 %v7739
        %v7920 = vunpack.c.l.b16 %v7740
        %v7921 = vunpack.c.l.b16 %v7741
        %v7922 = vunpack.c.l.b16 %v7742
        %v7923 = vunpack.c.l.b16 %v7743
        %v7924 = vunpack.c.l.b16 %v7744
        %v7925 = vunpack.c.l.b16 %v7745
        %v7926 = vunpack.c.l.b16 %v7746
        %v7927 = vunpack.c.l.b16 %v7747
        %v7928 = vunpack.c.l.b16 %v7748
        %v7929 = vunpack.c.l.b16 %v7749
        %v7930 = vunpack.c.l.b16 %v7750
        %v7931 = vunpack.c.l.b16 %v7751
        %v7932 = vunpack.c.l.b16 %v7752
        %v7933 = vunpack.c.l.b16 %v7753
        %v7934 = vunpack.c.l.b16 %v7754
        %v7935 = vunpack.c.l.b16 %v7755
        %v7936 = vunpack.c.l.b16 %v7756
        %v7937 = vunpack.c.l.b16 %v7757
        %v7938 = vunpack.c.l.b16 %v7758
        %v7939 = vunpack.c.l.b16 %v7759
        %v7940 = vunpack.c.l.b16 %v7760
        %v7941 = vunpack.c.l.b16 %v7761
        %v7942 = vunpack.c.l.b16 %v7762
        %v7943 = vunpack.c.l.b16 %v7763
        %v7944 = vunpack.c.l.b16 %v7764
        %v7945 = vunpack.c.l.b16 %v7765
        %v7946 = vunpack.c.l.b16 %v7766
        %v7947 = vunpack.c.l.b16 %v7767
        %v7948 = vunpack.c.l.b16 %v7768
        %v7949 = vunpack.c.l.b16 %v7769
        %v7950 = vunpack.c.l.b16 %v7770
        %v7951 = vunpack.c.l.b16 %v7771
        %v7952 = vunpack.c.l.b16 %v7772
        %v7953 = vunpack.c.l.b16 %v7773
        %v7954 = vunpack.c.l.b16 %v7774
        %v7955 = vunpack.c.l.b16 %v7775
        %v7956 = vunpack.c.l.b16 %v7776
        %v7957 = vunpack.c.l.b16 %v7777
        %v7958 = vunpack.c.l.b16 %v7778
        %v7959 = vunpack.c.l.b16 %v7779
        %v7960 = vunpack.c.l.b16 %v7780
        %v7961 = vunpack.c.l.b16 %v7781
        %v7962 = vunpack.c.l.b16 %v7782
        %v7963 = vunpack.c.l.b16 %v7783
        %v7964 = vunpack.c.l.b16 %v7784
        %v7965 = vunpack.c.l.b16 %v7785
        %v7966 = vunpack.c.l.b16 %v7786
        %v7967 = vunpack.c.l.b16 %v7787
        %v7968 = vunpack.c.l.b16 %v7788
        %v7969 = vunpack.c.l.b16 %v7789
        %v7970 = vunpack.c.l.b16 %v7790
        %v7971 = vunpack.c.l.b16 %v7791
        %v7972 = vunpack.c.l.b16 %v7792
        %v7973 = vunpack.c.l.b16 %v7793
        %v7974 = vunpack.c.l.b16 %v7794
        %v7975 = vunpack.c.l.b16 %v7795
        %v7976 = vunpack.c.l.b16 %v7796
        %v7977 = vunpack.c.l.b16 %v7797
        %v7978 = vunpack.c.l.b16 %v7798
        %v7979 = vunpack.c.l.b16 %v7799
        %v7980 = vunpack.c.l.b16 %v7800
        %v7981 = vunpack.c.l.b16 %v7801
        %v7982 = vunpack.c.l.b16 %v7802
        %v7983 = vunpack.c.l.b16 %v7803
        %v7984 = vunpack.c.l.b16 %v7804
        %v7985 = vunpack.c.l.b16 %v7805
        %v7986 = vunpack.c.l.b16 %v7806
        %v7987 = vunpack.c.l.b16 %v7807
        %v7988 = vunpack.c.l.b16 %v7808
        %v7989 = vunpack.c.l.b16 %v7809
        %v7990 = vunpack.c.l.b16 %v7810
        %v7991 = vunpack.c.l.b16 %v7811
        %v7992 = vunpack.c.l.b16 %v7812
        %v7993 = vunpack.c.l.b16 %v7813
        %v7994 = vunpack.c.l.b16 %v7814
        %v7995 = vunpack.c.l.b16 %v7815
        %v7996 = vunpack.c.l.b16 %v7816
        %v7997 = vunpack.c.l.b16 %v7817
        %v7998 = vunpack.c.l.b16 %v7818
        %v7999 = vunpack.c.l.b16 %v7819
        %v8000 = vunpack.c.l.b16 %v7820
        %v8001 = vunpack.c.l.b16 %v7821
        %v8002 = vunpack.c.l.b16 %v7822
        %v8003 = vpack.c.b16 %v7913, %v7913
        %v8004 = vpack.c.b16 %v7914, %v7914
        %v8005 = vpack.c.b16 %v7915, %v7915
        %v8006 = vpack.c.b16 %v7916, %v7916
        %v8007 = vpack.c.b16 %v7917, %v7917
        %v8008 = vpack.c.b16 %v7918, %v7918
        %v8009 = vpack.c.b16 %v7919, %v7919
        %v8010 = vpack.c.b16 %v7920, %v7920
        %v8011 = vpack.c.b16 %v7921, %v7921
        %v8012 = vpack.c.b16 %v7922, %v7922
        %v8013 = vpack.c.b16 %v7923, %v7923
        %v8014 = vpack.c.b16 %v7924, %v7924
        %v8015 = vpack.c.b16 %v7925, %v7925
        %v8016 = vpack.c.b16 %v7926, %v7926
        %v8017 = vpack.c.b16 %v7927, %v7927
        %v8018 = vpack.c.b16 %v7928, %v7928
        %v8019 = vpack.c.b16 %v7929, %v7929
        %v8020 = vpack.c.b16 %v7930, %v7930
        %v8021 = vpack.c.b16 %v7931, %v7931
        %v8022 = vpack.c.b16 %v7932, %v7932
        %v8023 = vpack.c.b16 %v7933, %v7933
        %v8024 = vpack.c.b16 %v7934, %v7934
        %v8025 = vpack.c.b16 %v7935, %v7935
        %v8026 = vpack.c.b16 %v7936, %v7936
        %v8027 = vpack.c.b16 %v7937, %v7937
        %v8028 = vpack.c.b16 %v7938, %v7938
        %v8029 = vpack.c.b16 %v7939, %v7939
        %v8030 = vpack.c.b16 %v7940, %v7940
        %v8031 = vpack.c.b16 %v7941, %v7941
        %v8032 = vpack.c.b16 %v7942, %v7942
        %v8033 = vpack.c.b16 %v7943, %v7943
        %v8034 = vpack.c.b16 %v7944, %v7944
        %v8035 = vpack.c.b16 %v7945, %v7945
        %v8036 = vpack.c.b16 %v7946, %v7946
        %v8037 = vpack.c.b16 %v7947, %v7947
        %v8038 = vpack.c.b16 %v7948, %v7948
        %v8039 = vpack.c.b16 %v7949, %v7949
        %v8040 = vpack.c.b16 %v7950, %v7950
        %v8041 = vpack.c.b16 %v7951, %v7951
        %v8042 = vpack.c.b16 %v7952, %v7952
        %v8043 = vpack.c.b16 %v7953, %v7953
        %v8044 = vpack.c.b16 %v7954, %v7954
        %v8045 = vpack.c.b16 %v7955, %v7955
        %v8046 = vpack.c.b16 %v7956, %v7956
        %v8047 = vpack.c.b16 %v7957, %v7957
        %v8048 = vpack.c.b16 %v7958, %v7958
        %v8049 = vpack.c.b16 %v7959, %v7959
        %v8050 = vpack.c.b16 %v7960, %v7960
        %v8051 = vpack.c.b16 %v7961, %v7961
        %v8052 = vpack.c.b16 %v7962, %v7962
        %v8053 = vpack.c.b16 %v7963, %v7963
        %v8054 = vpack.c.b16 %v7964, %v7964
        %v8055 = vpack.c.b16 %v7965, %v7965
        %v8056 = vpack.c.b16 %v7966, %v7966
        %v8057 = vpack.c.b16 %v7967, %v7967
        %v8058 = vpack.c.b16 %v7968, %v7968
        %v8059 = vpack.c.b16 %v7969, %v7969
        %v8060 = vpack.c.b16 %v7970, %v7970
        %v8061 = vpack.c.b16 %v7971, %v7971
        %v8062 = vpack.c.b16 %v7972, %v7972
        %v8063 = vpack.c.b16 %v7973, %v7973
        %v8064 = vpack.c.b16 %v7974, %v7974
        %v8065 = vpack.c.b16 %v7975, %v7975
        %v8066 = vpack.c.b16 %v7976, %v7976
        %v8067 = vpack.c.b16 %v7977, %v7977
        %v8068 = vpack.c.b16 %v7978, %v7978
        %v8069 = vpack.c.b16 %v7979, %v7979
        %v8070 = vpack.c.b16 %v7980, %v7980
        %v8071 = vpack.c.b16 %v7981, %v7981
        %v8072 = vpack.c.b16 %v7982, %v7982
        %v8073 = vpack.c.b16 %v7983, %v7983
        %v8074 = vpack.c.b16 %v7984, %v7984
        %v8075 = vpack.c.b16 %v7985, %v7985
        %v8076 = vpack.c.b16 %v7986, %v7986
        %v8077 = vpack.c.b16 %v7987, %v7987
        %v8078 = vpack.c.b16 %v7988, %v7988
        %v8079 = vpack.c.b16 %v7989, %v7989
        %v8080 = vpack.c.b16 %v7990, %v7990
        %v8081 = vpack.c.b16 %v7991, %v7991
        %v8082 = vpack.c.b16 %v7992, %v7992
        %v8083 = vpack.c.b16 %v7993, %v7993
        %v8084 = vpack.c.b16 %v7994, %v7994
        %v8085 = vpack.c.b16 %v7995, %v7995
        %v8086 = vpack.c.b16 %v7996, %v7996
        %v8087 = vpack.c.b16 %v7997, %v7997
        %v8088 = vpack.c.b16 %v7998, %v7998
        %v8089 = vpack.c.b16 %v7999, %v7999
        %v8090 = vpack.c.b16 %v8000, %v8000
        %v8091 = vpack.c.b16 %v8001, %v8001
        %v8092 = vpack.c.b16 %v8002, %v8002
        %v8093 = vunpack.c.l.b16 %v8003
        %v8094 = vunpack.c.l.b16 %v8004
        %v8095 = vunpack.c.l.b16 %v8005
        %v8096 = vunpack.c.l.b16 %v8006
        %v8097 = vunpack.c.l.b16 %v8007
        %v8098 = vunpack.c.l.b16 %v8008
        %v8099 = vunpack.c.l.b16 %v8009
        %v8100 = vunpack.c.l.b16 %v8010
        %v8101 = vunpack.c.l.b16 %v8011
        %v8102 = vunpack.c.l.b16 %v8012
        %v8103 = vunpack.c.l.b16 %v8013
        %v8104 = vunpack.c.l.b16 %v8014
        %v8105 = vunpack.c.l.b16 %v8015
        %v8106 = vunpack.c.l.b16 %v8016
        %v8107 = vunpack.c.l.b16 %v8017
        %v8108 = vunpack.c.l.b16 %v8018
        %v8109 = vunpack.c.l.b16 %v8019
        %v8110 = vunpack.c.l.b16 %v8020
        %v8111 = vunpack.c.l.b16 %v8021
        %v8112 = vunpack.c.l.b16 %v8022
        %v8113 = vunpack.c.l.b16 %v8023
        %v8114 = vunpack.c.l.b16 %v8024
        %v8115 = vunpack.c.l.b16 %v8025
        %v8116 = vunpack.c.l.b16 %v8026
        %v8117 = vunpack.c.l.b16 %v8027
        %v8118 = vunpack.c.l.b16 %v8028
        %v8119 = vunpack.c.l.b16 %v8029
        %v8120 = vunpack.c.l.b16 %v8030
        %v8121 = vunpack.c.l.b16 %v8031
        %v8122 = vunpack.c.l.b16 %v8032
        %v8123 = vunpack.c.l.b16 %v8033
        %v8124 = vunpack.c.l.b16 %v8034
        %v8125 = vunpack.c.l.b16 %v8035
        %v8126 = vunpack.c.l.b16 %v8036
        %v8127 = vunpack.c.l.b16 %v8037
        %v8128 = vunpack.c.l.b16 %v8038
        %v8129 = vunpack.c.l.b16 %v8039
        %v8130 = vunpack.c.l.b16 %v8040
        %v8131 = vunpack.c.l.b16 %v8041
        %v8132 = vunpack.c.l.b16 %v8042
        %v8133 = vunpack.c.l.b16 %v8043
        %v8134 = vunpack.c.l.b16 %v8044
        %v8135 = vunpack.c.l.b16 %v8045
        %v8136 = vunpack.c.l.b16 %v8046
        %v8137 = vunpack.c.l.b16 %v8047
        %v8138 = vunpack.c.l.b16 %v8048
        %v8139 = vunpack.c.l.b16 %v8049
        %v8140 = vunpack.c.l.b16 %v8050
        %v8141 = vunpack.c.l.b16 %v8051
        %v8142 = vunpack.c.l.b16 %v8052
        %v8143 = vunpack.c.l.b16 %v8053
        %v8144 = vunpack.c.l.b16 %v8054
        %v8145 = vunpack.c.l.b16 %v8055
        %v8146 = vunpack.c.l.b16 %v8056
        %v8147 = vunpack.c.l.b16 %v8057
        %v8148 = vunpack.c.l.b16 %v8058
        %v8149 = vunpack.c.l.b16 %v8059
        %v8150 = vunpack.c.l.b16 %v8060
        %v8151 = vunpack.c.l.b16 %v8061
        %v8152 = vunpack.c.l.b16 %v8062
        %v8153 = vunpack.c.l.b16 %v8063
        %v8154 = vunpack.c.l.b16 %v8064
        %v8155 = vunpack.c.l.b16 %v8065
        %v8156 = vunpack.c.l.b16 %v8066
        %v8157 = vunpack.c.l.b16 %v8067
        %v8158 = vunpack.c.l.b16 %v8068
        %v8159 = vunpack.c.l.b16 %v8069
        %v8160 = vunpack.c.l.b16 %v8070
        %v8161 = vunpack.c.l.b16 %v8071
        %v8162 = vunpack.c.l.b16 %v8072
        %v8163 = vunpack.c.l.b16 %v8073
        %v8164 = vunpack.c.l.b16 %v8074
        %v8165 = vunpack.c.l.b16 %v8075
        %v8166 = vunpack.c.l.b16 %v8076
        %v8167 = vunpack.c.l.b16 %v8077
        %v8168 = vunpack.c.l.b16 %v8078
        %v8169 = vunpack.c.l.b16 %v8079
        %v8170 = vunpack.c.l.b16 %v8080
        %v8171 = vunpack.c.l.b16 %v8081
        %v8172 = vunpack.c.l.b16 %v8082
        %v8173 = vunpack.c.l.b16 %v8083
        %v8174 = vunpack.c.l.b16 %v8084
        %v8175 = vunpack.c.l.b16 %v8085
        %v8176 = vunpack.c.l.b16 %v8086
        %v8177 = vunpack.c.l.b16 %v8087
        %v8178 = vunpack.c.l.b16 %v8088
        %v8179 = vunpack.c.l.b16 %v8089
        %v8180 = vunpack.c.l.b16 %v8090
        %v8181 = vunpack.c.l.b16 %v8091
        %v8182 = vunpack.c.l.b16 %v8092
        %v8183 = vrot.slane %v8094, 7
        %vm8184 = vcmask 1041409
        %v8185 = vsel %vm8184, %v8183, %v8093
        %v8186 = vrot.slane %v8095, 6
        %vm8187 = vcmask 1042434
        %v8188 = vsel %vm8187, %v8186, %v8185
        %v8189 = vrot.slane %v8096, 5
        %vm8190 = vcmask 1043459
        %v8191 = vsel %vm8190, %v8189, %v8188
        %v8192 = vrot.slane %v8097, 4
        %vm8193 = vcmask 1044484
        %v8194 = vsel %vm8193, %v8192, %v8191
        %v8195 = vrot.slane %v8098, 3
        %vm8196 = vcmask 1045509
        %v8197 = vsel %vm8196, %v8195, %v8194
        %v8198 = vrot.slane %v8099, 2
        %vm8199 = vcmask 1046534
        %v8200 = vsel %vm8199, %v8198, %v8197
        %v8201 = vrot.slane %v8100, 1
        %vm8202 = vcmask 1047559
        %v8203 = vsel %vm8202, %v8201, %v8200
        %v8204 = vrot.slane %v8102, 7
        %v8205 = vsel %vm8184, %v8204, %v8101
        %v8206 = vrot.slane %v8103, 6
        %v8207 = vsel %vm8187, %v8206, %v8205
        %v8208 = vrot.slane %v8104, 5
        %v8209 = vsel %vm8190, %v8208, %v8207
        %v8210 = vrot.slane %v8105, 4
        %v8211 = vsel %vm8193, %v8210, %v8209
        %v8212 = vrot.slane %v8106, 3
        %v8213 = vsel %vm8196, %v8212, %v8211
        %v8214 = vrot.slane %v8107, 2
        %v8215 = vsel %vm8199, %v8214, %v8213
        %v8216 = vrot.slane %v8108, 1
        %v8217 = vsel %vm8202, %v8216, %v8215
        %v8218 = vrot.slane %v8110, 7
        %v8219 = vsel %vm8184, %v8218, %v8109
        %v8220 = vrot.slane %v8111, 6
        %v8221 = vsel %vm8187, %v8220, %v8219
        %v8222 = vrot.slane %v8112, 5
        %v8223 = vsel %vm8190, %v8222, %v8221
        %v8224 = vrot.slane %v8113, 4
        %v8225 = vsel %vm8193, %v8224, %v8223
        %v8226 = vrot.slane %v8114, 3
        %v8227 = vsel %vm8196, %v8226, %v8225
        %v8228 = vrot.slane %v8115, 2
        %v8229 = vsel %vm8199, %v8228, %v8227
        %v8230 = vrot.slane %v8116, 1
        %v8231 = vsel %vm8202, %v8230, %v8229
        %v8232 = vrot.slane %v8118, 7
        %v8233 = vsel %vm8184, %v8232, %v8117
        %v8234 = vrot.slane %v8119, 6
        %v8235 = vsel %vm8187, %v8234, %v8233
        %v8236 = vrot.slane %v8120, 5
        %v8237 = vsel %vm8190, %v8236, %v8235
        %v8238 = vrot.slane %v8121, 4
        %v8239 = vsel %vm8193, %v8238, %v8237
        %v8240 = vrot.slane %v8122, 3
        %v8241 = vsel %vm8196, %v8240, %v8239
        %v8242 = vrot.slane %v8123, 2
        %v8243 = vsel %vm8199, %v8242, %v8241
        %v8244 = vrot.slane %v8124, 1
        %v8245 = vsel %vm8202, %v8244, %v8243
        %v8246 = vrot.slane %v8126, 7
        %v8247 = vsel %vm8184, %v8246, %v8125
        %v8248 = vrot.slane %v8127, 6
        %v8249 = vsel %vm8187, %v8248, %v8247
        %v8250 = vrot.slane %v8128, 5
        %v8251 = vsel %vm8190, %v8250, %v8249
        %v8252 = vrot.slane %v8129, 4
        %v8253 = vsel %vm8193, %v8252, %v8251
        %v8254 = vrot.slane %v8130, 3
        %v8255 = vsel %vm8196, %v8254, %v8253
        %v8256 = vrot.slane %v8131, 2
        %v8257 = vsel %vm8199, %v8256, %v8255
        %v8258 = vrot.slane %v8132, 1
        %v8259 = vsel %vm8202, %v8258, %v8257
        %v8260 = vrot.slane %v8134, 7
        %v8261 = vsel %vm8184, %v8260, %v8133
        %v8262 = vrot.slane %v8135, 6
        %v8263 = vsel %vm8187, %v8262, %v8261
        %v8264 = vrot.slane %v8136, 5
        %v8265 = vsel %vm8190, %v8264, %v8263
        %v8266 = vrot.slane %v8137, 4
        %v8267 = vsel %vm8193, %v8266, %v8265
        %v8268 = vrot.slane %v8138, 3
        %v8269 = vsel %vm8196, %v8268, %v8267
        %v8270 = vrot.slane %v8139, 2
        %v8271 = vsel %vm8199, %v8270, %v8269
        %v8272 = vrot.slane %v8140, 1
        %v8273 = vsel %vm8202, %v8272, %v8271
        %v8274 = vrot.slane %v8142, 7
        %v8275 = vsel %vm8184, %v8274, %v8141
        %v8276 = vrot.slane %v8143, 6
        %v8277 = vsel %vm8187, %v8276, %v8275
        %v8278 = vrot.slane %v8144, 5
        %v8279 = vsel %vm8190, %v8278, %v8277
        %v8280 = vrot.slane %v8145, 4
        %v8281 = vsel %vm8193, %v8280, %v8279
        %v8282 = vrot.slane %v8146, 3
        %v8283 = vsel %vm8196, %v8282, %v8281
        %v8284 = vrot.slane %v8147, 2
        %v8285 = vsel %vm8199, %v8284, %v8283
        %v8286 = vrot.slane %v8148, 1
        %v8287 = vsel %vm8202, %v8286, %v8285
        %v8288 = vrot.slane %v8150, 7
        %v8289 = vsel %vm8184, %v8288, %v8149
        %v8290 = vrot.slane %v8151, 6
        %v8291 = vsel %vm8187, %v8290, %v8289
        %v8292 = vrot.slane %v8152, 5
        %v8293 = vsel %vm8190, %v8292, %v8291
        %v8294 = vrot.slane %v8153, 4
        %v8295 = vsel %vm8193, %v8294, %v8293
        %v8296 = vrot.slane %v8154, 3
        %v8297 = vsel %vm8196, %v8296, %v8295
        %v8298 = vrot.slane %v8155, 2
        %v8299 = vsel %vm8199, %v8298, %v8297
        %v8300 = vrot.slane %v8156, 1
        %v8301 = vsel %vm8202, %v8300, %v8299
        %v8302 = vrot.slane %v8158, 7
        %v8303 = vsel %vm8184, %v8302, %v8157
        %v8304 = vrot.slane %v8159, 6
        %v8305 = vsel %vm8187, %v8304, %v8303
        %v8306 = vrot.slane %v8160, 5
        %v8307 = vsel %vm8190, %v8306, %v8305
        %v8308 = vrot.slane %v8161, 4
        %v8309 = vsel %vm8193, %v8308, %v8307
        %v8310 = vrot.slane %v8162, 3
        %v8311 = vsel %vm8196, %v8310, %v8309
        %v8312 = vrot.slane %v8163, 2
        %v8313 = vsel %vm8199, %v8312, %v8311
        %v8314 = vrot.slane %v8164, 1
        %v8315 = vsel %vm8202, %v8314, %v8313
        %v8316 = vrot.slane %v8166, 7
        %v8317 = vsel %vm8184, %v8316, %v8165
        %v8318 = vrot.slane %v8167, 6
        %v8319 = vsel %vm8187, %v8318, %v8317
        %v8320 = vrot.slane %v8168, 5
        %v8321 = vsel %vm8190, %v8320, %v8319
        %v8322 = vrot.slane %v8169, 4
        %v8323 = vsel %vm8193, %v8322, %v8321
        %v8324 = vrot.slane %v8170, 3
        %v8325 = vsel %vm8196, %v8324, %v8323
        %v8326 = vrot.slane %v8171, 2
        %v8327 = vsel %vm8199, %v8326, %v8325
        %v8328 = vrot.slane %v8172, 1
        %v8329 = vsel %vm8202, %v8328, %v8327
        %v8330 = vrot.slane %v8174, 7
        %v8331 = vsel %vm8184, %v8330, %v8173
        %v8332 = vrot.slane %v8175, 6
        %v8333 = vsel %vm8187, %v8332, %v8331
        %v8334 = vrot.slane %v8176, 5
        %v8335 = vsel %vm8190, %v8334, %v8333
        %v8336 = vrot.slane %v8177, 4
        %v8337 = vsel %vm8193, %v8336, %v8335
        %v8338 = vrot.slane %v8178, 3
        %v8339 = vsel %vm8196, %v8338, %v8337
        %v8340 = vrot.slane %v8179, 2
        %v8341 = vsel %vm8199, %v8340, %v8339
        %v8342 = vrot.slane %v8180, 1
        %v8343 = vsel %vm8202, %v8342, %v8341
        %v8344 = vrot.slane %v8182, 7
        %v8345 = vsel %vm8184, %v8344, %v8181
        %v8346 = vpack.c.b16 %v8203, %v8203
        %v8347 = vpack.c.b16 %v8217, %v8217
        %v8348 = vpack.c.b16 %v8231, %v8231
        %v8349 = vpack.c.b16 %v8245, %v8245
        %v8350 = vpack.c.b16 %v8259, %v8259
        %v8351 = vpack.c.b16 %v8273, %v8273
        %v8352 = vpack.c.b16 %v8287, %v8287
        %v8353 = vpack.c.b16 %v8301, %v8301
        %v8354 = vpack.c.b16 %v8315, %v8315
        %v8355 = vpack.c.b16 %v8329, %v8329
        %v8356 = vpack.c.b16 %v8343, %v8343
        %v8357 = vpack.c.b16 %v8345, %v8345
        %8370 = vst [vmem:[%s349] sm:$0xf] %v8346
        %8371 = vst [vmem:[%s349 + $0x4] sm:$0xf] %v8347
        %8372 = vst [vmem:[%s349 + $0x8] sm:$0xf] %v8348
        %8373 = vst [vmem:[%s349 + $0xc] sm:$0xf] %v8349
        %8374 = vst [vmem:[%s349 + $0x10] sm:$0xf] %v8350
        %8375 = vst [vmem:[%s349 + $0x14] sm:$0xf] %v8351
        %8376 = vst [vmem:[%s349 + $0x18] sm:$0xf] %v8352
        %8377 = vst [vmem:[%s349 + $0x1c] sm:$0xf] %v8353
        %8378 = vst [vmem:[%s349 + $0x20] sm:$0xf] %v8354
        %8379 = vst [vmem:[%s349 + $0x24] sm:$0xf] %v8355
        %8380 = vst [vmem:[%s349 + $0x28] sm:$0xf] %v8356
        %8381 = vst [vmem:[%s349 + $0x2c] sm:$0x1] %v8357
        %p8382 = scmp.lt.s32.totalorder %s21, 1
        %s8383 = scalar_select %p8382, %s21, 1
        %s8384 = smul.addr %s8383, 12
        %s8385 = smul.addr %s8384, 4
        %s8386 = scalar_lea.vmem %s8, %s8385
        // Predicated region
        $region65: #{tpu_custom_call.1} parent=51 // pred_check
          %p8387 = pneg %p212
        $region66: #{tpu_custom_call.1} parent=51 // pred_check_branch
          %8389 = sbr.rel (%p8387) target = $region68
        $region67: #{tpu_custom_call.1} parent=51 // pred_region
          _
        $region68: #{tpu_custom_call.1} parent=51 // pred_fallthru
          _
      $region52: #{tpu_custom_call.1} parent=5 // pred_fallthru
        _
      %p8390 = scmp.le.s32.totalorder 2, %s16
      // Predicated region
      $region69: #{tpu_custom_call.1} parent=5 // pred_check
        %p8391 = pneg %p8390
      $region70: #{tpu_custom_call.1} parent=5 // pred_check_branch
        %8393 = sbr.rel (%p8391) target = $region72
      $region71: #{tpu_custom_call.1} parent=5 // pred_region
        %s8394 = ssub.s32 %s16, 2
        // Predicated region
        $region73: #{tpu_custom_call.1} parent=71 // pred_check
          %p8395 = pneg %p218
        $region74: #{tpu_custom_call.1} parent=71 // pred_check_branch
          %8397 = sbr.rel (%p8395) target = $region76
        $region75: #{tpu_custom_call.1} parent=71 // pred_region
          %p8398 = scmp.lt.s32.totalorder %s22, 1
          %s8399 = scalar_select %p8398, %s22, 1
          %s8400 = smul.addr %s8399, 12
          %s8401 = smul.addr %s8400, 4
          %s8402 = scalar_lea.vmem %s8, %s8401
        $region76: #{tpu_custom_call.1} parent=71 // pred_fallthru
          _
      $region72: #{tpu_custom_call.1} parent=5 // pred_fallthru
        _
    $region6: #{tpu_custom_call.1} parent=1 // loop_footer
      %s20 = sadd.s32 1, %s16
    $region7: #{tpu_custom_call.1} parent=1 // loop_footer_branch
      %15 = sbr.rel target = $region3
    $region8: #{tpu_custom_call.1} parent=1 // loop_exit
      _
    %8403 = vsyncpa [#allocation3], 1
    %s8404 = scalar_lea.sflag [#allocation3], 1
    %8405 = vsyncpa %s8404, 1
    %8406 = vsyncpa [#allocation5], 1

</llo_original>
